<compile_context>
chip_gen: v6e
topology: v6e:2x2x1
jax: 0.10.0
libtpu: 0.0.40
codegen_flags: <defaults>
</compile_context>

<pallas_src>
import jax
import jax.numpy as jnp
from jax.experimental import pallas as pl


# -----------------------------------------------------------------------------
# Pallas kernel: the entire decode loop in one invocation.  Every operand is a
# whole-array VMEM block (total footprint is a few KiB).
# -----------------------------------------------------------------------------
def _decoder_kernel(e_ref, h0_ref, c0_ref, ctx_ref,
                    wih_ref, whh_ref, bg_ref,
                    wah_ref, wac_ref, wout_ref, bout_ref,
                    o_ref, h_ref, c_ref):
    seq_p = e_ref.shape[1]

    # Load everything once; all operands are tiny and stay in vregs/VMEM.
    e_all = e_ref[...]                       # (bz, seq_p, emb)
    ctx = ctx_ref[...]                       # (bz, seq_g, H)
    wih = [wih_ref[g] for g in range(4)]     # 4 x (emb, H)   (i, f, g, o)
    whh = [whh_ref[g] for g in range(4)]     # 4 x (H, H)
    bg = [bg_ref[g] for g in range(4)]       # 4 x (1, H)
    wah = wah_ref[...]                       # (H, H)   multiplies h
    wac = wac_ref[...]                       # (H, H)   multiplies weighted ctx
    wout = wout_ref[...]                     # (H, num_p)
    bout = bout_ref[...]                     # (1, num_p)

    h = h0_ref[...]                          # (bz, H)
    c = c0_ref[...]                          # (bz, H)

    # Static, fully-unrolled time loop (seq_p is small and compile-time known).
    for t in range(seq_p):
        x = e_all[:, t, :]                   # (bz, emb), static slice

        # ---- LSTMCell, per-gate dots (PyTorch i,f,g,o order) ----
        # Per-gate weights avoid lane-slicing a (bz, 4H) tensor on the
        # recurrent critical path.
        pre = [jnp.dot(x, wih[g], preferred_element_type=jnp.float32)
               + jnp.dot(h, whh[g], preferred_element_type=jnp.float32)
               + bg[g]
               for g in range(4)]
        i_g = jax.nn.sigmoid(pre[0])
        f_g = jax.nn.sigmoid(pre[1])
        g_g = jnp.tanh(pre[2])
        o_g = jax.nn.sigmoid(pre[3])
        c = f_g * c + i_g * g_g
        h = o_g * jnp.tanh(c)

        # ---- Attention ----
        scores = jnp.sum(ctx * h[:, None, :], axis=-1)          # (bz, seq_g)
        m = jnp.max(scores, axis=1, keepdims=True)
        ex = jnp.exp(scores - m)
        denom = jnp.sum(ex, axis=1, keepdims=True)
        attn = ex * pl.reciprocal(denom, approx=True)           # EUP slot
        weighted = jnp.sum(attn[:, :, None] * ctx, axis=1)      # (bz, H)

        # Linear over cat(h, weighted) as two matmuls (no concat).
        ctxt = jnp.tanh(
            jnp.dot(h, wah, preferred_element_type=jnp.float32)
            + jnp.dot(weighted, wac, preferred_element_type=jnp.float32))

        # ---- Output projection + log_softmax ----
        logits = (jnp.dot(ctxt, wout, preferred_element_type=jnp.float32)
                  + bout)                                        # (bz, num_p)
        lmax = jnp.max(logits, axis=1, keepdims=True)
        lse = lmax + jnp.log(jnp.sum(jnp.exp(logits - lmax), axis=1,
                                     keepdims=True))
        logp = logits - lse

        # Static-slice store into the batch-major output slab (VMEM-resident;
        # the HBM writeback of the whole slab happens once after the loop).
        o_ref[:, t:t + 1, :] = logp[:, None, :]

    h_ref[...] = h
    c_ref[...] = c


# -----------------------------------------------------------------------------
# Wrapper: embedding lookup + per-gate weight prep in plain JAX, everything
# else (the whole sequential loop) inside one pallas_call.  No transposes.
# -----------------------------------------------------------------------------
@jax.jit
def decoder_forward(p_seq, hidden, cell_state, context, params):
    emb_table = params["emb"].astype(jnp.float32)
    w_ih = params["w_ih"].astype(jnp.float32)
    w_hh = params["w_hh"].astype(jnp.float32)
    b_ih = params["b_ih"].astype(jnp.float32)
    b_hh = params["b_hh"].astype(jnp.float32)
    w_attn = params["w_attn"].astype(jnp.float32)
    w_out = params["w_out"].astype(jnp.float32)
    b_out = params["b_out"].astype(jnp.float32)

    bz, seq_p = p_seq.shape
    H = hidden.shape[1]
    emb_dim = emb_table.shape[1]
    num_p = emb_table.shape[0]

    # Embedding lookup (glue, stays in XLA), batch-major — no transpose.
    e_seq = jnp.take(emb_table, p_seq, axis=0).astype(jnp.float32)  # (bz, seq_p, emb)

    # Pre-split / pre-transpose weights so the kernel does per-gate x @ W.
    # PyTorch LSTMCell rows are ordered [i; f; g; o].
    w_ih_g = jnp.transpose(w_ih.reshape(4, H, emb_dim), (0, 2, 1))  # (4, emb, H)
    w_hh_g = jnp.transpose(w_hh.reshape(4, H, H), (0, 2, 1))        # (4, H, H)
    b_g = (b_ih + b_hh).reshape(4, 1, H)                            # (4, 1, H)
    w_attn_t = w_attn.T                                             # (2H, H)
    wa_h = w_attn_t[:H]                                             # multiplies h
    wa_c = w_attn_t[H:]                                             # multiplies weighted ctx
    w_out_t = w_out.T                                               # (H, num_p)
    b_out2 = b_out.reshape(1, num_p)

    o, h_out, c_out = pl.pallas_call(
        _decoder_kernel,
        out_shape=(
            jax.ShapeDtypeStruct((bz, seq_p, num_p), jnp.float32),
            jax.ShapeDtypeStruct((bz, H), jnp.float32),
            jax.ShapeDtypeStruct((bz, H), jnp.float32),
        ),
        # No grid / no BlockSpecs: every operand is a single whole-array VMEM
        # block (a few KiB total), fetched once and written back once.
    )(e_seq, hidden.astype(jnp.float32), cell_state.astype(jnp.float32),
      context.astype(jnp.float32), w_ih_g, w_hh_g, b_g,
      wa_h, wa_c, w_out_t, b_out2)

    return o, h_out, c_out


# -----------------------------------------------------------------------------
# Pure-JAX reference (mirrors the PyTorch forward) for a correctness check.
# -----------------------------------------------------------------------------
def decoder_reference(p_seq, hidden, cell_state, context, params):
    emb_table, w_ih, w_hh, b_ih, b_hh, w_attn, w_out, b_out = (
        params["emb"], params["w_ih"], params["w_hh"], params["b_ih"],
        params["b_hh"], params["w_attn"], params["w_out"], params["b_out"])
    H = hidden.shape[1]
    e_seq = jnp.take(emb_table, p_seq, axis=0)
    outs = []
    h, c = hidden, cell_state
    for t in range(p_seq.shape[1]):
        x = e_seq[:, t, :]
        gates = x @ w_ih.T + b_ih + h @ w_hh.T + b_hh
        i_g = jax.nn.sigmoid(gates[:, 0 * H:1 * H])
        f_g = jax.nn.sigmoid(gates[:, 1 * H:2 * H])
        g_g = jnp.tanh(gates[:, 2 * H:3 * H])
        o_g = jax.nn.sigmoid(gates[:, 3 * H:4 * H])
        c = f_g * c + i_g * g_g
        h = o_g * jnp.tanh(c)
        scores = jnp.einsum("bgh,bh->bg", context, h)
        attn = jax.nn.softmax(scores, axis=1)
        weighted = jnp.einsum("bg,bgh->bh", attn, context)
        ctxt = jnp.tanh(jnp.concatenate([h, weighted], axis=1) @ w_attn.T)
        outs.append(ctxt)
    out = jnp.stack(outs, axis=1)
    logits = out.reshape(-1, H) @ w_out.T + b_out
    logp = jax.nn.log_softmax(logits, axis=1)
    return logp.reshape(p_seq.shape[0], p_seq.shape[1], -1), h, c


if __name__ == "__main__":
    # Small shapes consistent with the module.
    bz, seq_p, seq_g = 2, 8, 8
    num_p, emb_dim, hidden_dim = 16, 16, 32

    key = jax.random.PRNGKey(0)
    ks = jax.random.split(key, 12)
    scale = 0.1
    params = {
        "emb":    scale * jax.random.normal(ks[0], (num_p, emb_dim), jnp.float32),
        "w_ih":   scale * jax.random.normal(ks[1], (4 * hidden_dim, emb_dim), jnp.float32),
        "w_hh":   scale * jax.random.normal(ks[2], (4 * hidden_dim, hidden_dim), jnp.float32),
        "b_ih":   scale * jax.random.normal(ks[3], (4 * hidden_dim,), jnp.float32),
        "b_hh":   scale * jax.random.normal(ks[4], (4 * hidden_dim,), jnp.float32),
        "w_attn": scale * jax.random.normal(ks[5], (hidden_dim, 2 * hidden_dim), jnp.float32),
        "w_out":  scale * jax.random.normal(ks[6], (num_p, hidden_dim), jnp.float32),
        "b_out":  scale * jax.random.normal(ks[7], (num_p,), jnp.float32),
    }

    p_seq = jax.random.randint(ks[8], (bz, seq_p), 0, num_p, dtype=jnp.int32)
    hidden = scale * jax.random.normal(ks[9], (bz, hidden_dim), jnp.float32)
    cell = scale * jax.random.normal(ks[10], (bz, hidden_dim), jnp.float32)
    context = scale * jax.random.normal(ks[11], (bz, seq_g, hidden_dim), jnp.float32)

    o, h_out, c_out = decoder_forward(p_seq, hidden, cell, context, params)
    jax.block_until_ready((o, h_out, c_out))

    o_ref, h_ref_v, c_ref_v = decoder_reference(p_seq, hidden, cell, context, params)
    assert o.shape == (bz, seq_p, num_p)
    assert h_out.shape == (bz, hidden_dim) and c_out.shape == (bz, hidden_dim)
    # h/c never pass through the approximate reciprocal -> tight tolerance.
    assert jnp.allclose(h_out, h_ref_v, atol=1e-4, rtol=1e-4)
    assert jnp.allclose(c_out, c_ref_v, atol=1e-4, rtol=1e-4)
    # log-probs use the approx EUP reciprocal in the attention softmax,
    # so allow a slightly looser tolerance.
    assert jnp.allclose(o, o_ref, atol=2e-3, rtol=2e-3)

    print("KERNEL_OK")
</pallas_src>

<mosaic_0001>
module attributes {stable_mosaic.version = 11 : i64} {
  func.func @_decoder_kernel(%arg0: memref<2x8x16xf32, #tpu.memory_space<vmem>>, %arg1: memref<2x32xf32, #tpu.memory_space<vmem>>, %arg2: memref<2x32xf32, #tpu.memory_space<vmem>>, %arg3: memref<2x8x32xf32, #tpu.memory_space<vmem>>, %arg4: memref<4x16x32xf32, #tpu.memory_space<vmem>>, %arg5: memref<4x32x32xf32, #tpu.memory_space<vmem>>, %arg6: memref<4x1x32xf32, #tpu.memory_space<vmem>>, %arg7: memref<32x32xf32, #tpu.memory_space<vmem>>, %arg8: memref<32x32xf32, #tpu.memory_space<vmem>>, %arg9: memref<32x16xf32, #tpu.memory_space<vmem>>, %arg10: memref<1x16xf32, #tpu.memory_space<vmem>>, %arg11: memref<2x8x16xf32, #tpu.memory_space<vmem>>, %arg12: memref<2x32xf32, #tpu.memory_space<vmem>>, %arg13: memref<2x32xf32, #tpu.memory_space<vmem>>) attributes {dimension_semantics = [], scalar_prefetch = 0 : i64, scratch_operands = 0 : i64, tpu.core_type = #tpu.core_type<tc>} {
    %c0 = arith.constant 0 : index
    %c0_0 = arith.constant 0 : index
    %c0_1 = arith.constant 0 : index
    %0 = vector.load %arg0[%c0, %c0_0, %c0_1] : memref<2x8x16xf32, #tpu.memory_space<vmem>>, vector<2x8x16xf32>
    %c0_2 = arith.constant 0 : index
    %c0_3 = arith.constant 0 : index
    %c0_4 = arith.constant 0 : index
    %1 = vector.load %arg3[%c0_2, %c0_3, %c0_4] : memref<2x8x32xf32, #tpu.memory_space<vmem>>, vector<2x8x32xf32>
    %c0_5 = arith.constant 0 : index
    %c0_6 = arith.constant 0 : index
    %c0_7 = arith.constant 0 : index
    %2 = vector.load %arg4[%c0_5, %c0_6, %c0_7] : memref<4x16x32xf32, #tpu.memory_space<vmem>>, vector<1x16x32xf32>
    %3 = vector.shape_cast %2 : vector<1x16x32xf32> to vector<16x32xf32>
    %c1 = arith.constant 1 : index
    %c0_8 = arith.constant 0 : index
    %c0_9 = arith.constant 0 : index
    %4 = vector.load %arg4[%c1, %c0_8, %c0_9] : memref<4x16x32xf32, #tpu.memory_space<vmem>>, vector<1x16x32xf32>
    %5 = vector.shape_cast %4 : vector<1x16x32xf32> to vector<16x32xf32>
    %c2 = arith.constant 2 : index
    %c0_10 = arith.constant 0 : index
    %c0_11 = arith.constant 0 : index
    %6 = vector.load %arg4[%c2, %c0_10, %c0_11] : memref<4x16x32xf32, #tpu.memory_space<vmem>>, vector<1x16x32xf32>
    %7 = vector.shape_cast %6 : vector<1x16x32xf32> to vector<16x32xf32>
    %c3 = arith.constant 3 : index
    %c0_12 = arith.constant 0 : index
    %c0_13 = arith.constant 0 : index
    %8 = vector.load %arg4[%c3, %c0_12, %c0_13] : memref<4x16x32xf32, #tpu.memory_space<vmem>>, vector<1x16x32xf32>
    %9 = vector.shape_cast %8 : vector<1x16x32xf32> to vector<16x32xf32>
    %c0_14 = arith.constant 0 : index
    %c0_15 = arith.constant 0 : index
    %c0_16 = arith.constant 0 : index
    %10 = vector.load %arg5[%c0_14, %c0_15, %c0_16] : memref<4x32x32xf32, #tpu.memory_space<vmem>>, vector<1x32x32xf32>
    %11 = vector.shape_cast %10 : vector<1x32x32xf32> to vector<32x32xf32>
    %c1_17 = arith.constant 1 : index
    %c0_18 = arith.constant 0 : index
    %c0_19 = arith.constant 0 : index
    %12 = vector.load %arg5[%c1_17, %c0_18, %c0_19] : memref<4x32x32xf32, #tpu.memory_space<vmem>>, vector<1x32x32xf32>
    %13 = vector.shape_cast %12 : vector<1x32x32xf32> to vector<32x32xf32>
    %c2_20 = arith.constant 2 : index
    %c0_21 = arith.constant 0 : index
    %c0_22 = arith.constant 0 : index
    %14 = vector.load %arg5[%c2_20, %c0_21, %c0_22] : memref<4x32x32xf32, #tpu.memory_space<vmem>>, vector<1x32x32xf32>
    %15 = vector.shape_cast %14 : vector<1x32x32xf32> to vector<32x32xf32>
    %c3_23 = arith.constant 3 : index
    %c0_24 = arith.constant 0 : index
    %c0_25 = arith.constant 0 : index
    %16 = vector.load %arg5[%c3_23, %c0_24, %c0_25] : memref<4x32x32xf32, #tpu.memory_space<vmem>>, vector<1x32x32xf32>
    %17 = vector.shape_cast %16 : vector<1x32x32xf32> to vector<32x32xf32>
    %c0_26 = arith.constant 0 : index
    %c0_27 = arith.constant 0 : index
    %c0_28 = arith.constant 0 : index
    %18 = vector.load %arg6[%c0_26, %c0_27, %c0_28] : memref<4x1x32xf32, #tpu.memory_space<vmem>>, vector<1x1x32xf32>
    %19 = vector.shape_cast %18 : vector<1x1x32xf32> to vector<1x32xf32>
    %c1_29 = arith.constant 1 : index
    %c0_30 = arith.constant 0 : index
    %c0_31 = arith.constant 0 : index
    %20 = vector.load %arg6[%c1_29, %c0_30, %c0_31] : memref<4x1x32xf32, #tpu.memory_space<vmem>>, vector<1x1x32xf32>
    %21 = vector.shape_cast %20 : vector<1x1x32xf32> to vector<1x32xf32>
    %c2_32 = arith.constant 2 : index
    %c0_33 = arith.constant 0 : index
    %c0_34 = arith.constant 0 : index
    %22 = vector.load %arg6[%c2_32, %c0_33, %c0_34] : memref<4x1x32xf32, #tpu.memory_space<vmem>>, vector<1x1x32xf32>
    %23 = vector.shape_cast %22 : vector<1x1x32xf32> to vector<1x32xf32>
    %c3_35 = arith.constant 3 : index
    %c0_36 = arith.constant 0 : index
    %c0_37 = arith.constant 0 : index
    %24 = vector.load %arg6[%c3_35, %c0_36, %c0_37] : memref<4x1x32xf32, #tpu.memory_space<vmem>>, vector<1x1x32xf32>
    %25 = vector.shape_cast %24 : vector<1x1x32xf32> to vector<1x32xf32>
    %c0_38 = arith.constant 0 : index
    %c0_39 = arith.constant 0 : index
    %26 = vector.load %arg7[%c0_38, %c0_39] : memref<32x32xf32, #tpu.memory_space<vmem>>, vector<32x32xf32>
    %c0_40 = arith.constant 0 : index
    %c0_41 = arith.constant 0 : index
    %27 = vector.load %arg8[%c0_40, %c0_41] : memref<32x32xf32, #tpu.memory_space<vmem>>, vector<32x32xf32>
    %c0_42 = arith.constant 0 : index
    %c0_43 = arith.constant 0 : index
    %28 = vector.load %arg9[%c0_42, %c0_43] : memref<32x16xf32, #tpu.memory_space<vmem>>, vector<32x16xf32>
    %c0_44 = arith.constant 0 : index
    %c0_45 = arith.constant 0 : index
    %29 = vector.load %arg10[%c0_44, %c0_45] : memref<1x16xf32, #tpu.memory_space<vmem>>, vector<1x16xf32>
    %c0_46 = arith.constant 0 : index
    %c0_47 = arith.constant 0 : index
    %30 = vector.load %arg1[%c0_46, %c0_47] : memref<2x32xf32, #tpu.memory_space<vmem>>, vector<2x32xf32>
    %c0_48 = arith.constant 0 : index
    %c0_49 = arith.constant 0 : index
    %31 = vector.load %arg2[%c0_48, %c0_49] : memref<2x32xf32, #tpu.memory_space<vmem>>, vector<2x32xf32>
    %32 = vector.extract_strided_slice %0 {offsets = [0, 0, 0], sizes = [2, 1, 16], strides = [1, 1, 1]} : vector<2x8x16xf32> to vector<2x1x16xf32>
    %33 = vector.shape_cast %32 : vector<2x1x16xf32> to vector<2x16xf32>
    %cst = arith.constant dense<0.000000e+00> : vector<2x32xf32>
    %34 = tpu.matmul %33, %3, %cst {dimension_numbers = #tpu.dot_dimension_numbers<[1], [0], [0], [1], [0, 0, 1, 1], [], []>} : vector<2x16xf32>, vector<16x32xf32>, vector<2x32xf32> -> vector<2x32xf32>
    %cst_50 = arith.constant dense<0.000000e+00> : vector<2x32xf32>
    %35 = tpu.matmul %30, %11, %cst_50 {dimension_numbers = #tpu.dot_dimension_numbers<[1], [0], [0], [1], [0, 0, 1, 1], [], []>} : vector<2x32xf32>, vector<32x32xf32>, vector<2x32xf32> -> vector<2x32xf32>
    %36 = arith.addf %34, %35 : vector<2x32xf32>
    %37 = vector.broadcast %19 : vector<1x32xf32> to vector<2x32xf32>
    %38 = arith.addf %36, %37 : vector<2x32xf32>
    %cst_51 = arith.constant dense<0.000000e+00> : vector<2x32xf32>
    %39 = tpu.matmul %33, %5, %cst_51 {dimension_numbers = #tpu.dot_dimension_numbers<[1], [0], [0], [1], [0, 0, 1, 1], [], []>} : vector<2x16xf32>, vector<16x32xf32>, vector<2x32xf32> -> vector<2x32xf32>
    %cst_52 = arith.constant dense<0.000000e+00> : vector<2x32xf32>
    %40 = tpu.matmul %30, %13, %cst_52 {dimension_numbers = #tpu.dot_dimension_numbers<[1], [0], [0], [1], [0, 0, 1, 1], [], []>} : vector<2x32xf32>, vector<32x32xf32>, vector<2x32xf32> -> vector<2x32xf32>
    %41 = arith.addf %39, %40 : vector<2x32xf32>
    %42 = vector.broadcast %21 : vector<1x32xf32> to vector<2x32xf32>
    %43 = arith.addf %41, %42 : vector<2x32xf32>
    %cst_53 = arith.constant dense<0.000000e+00> : vector<2x32xf32>
    %44 = tpu.matmul %33, %7, %cst_53 {dimension_numbers = #tpu.dot_dimension_numbers<[1], [0], [0], [1], [0, 0, 1, 1], [], []>} : vector<2x16xf32>, vector<16x32xf32>, vector<2x32xf32> -> vector<2x32xf32>
    %cst_54 = arith.constant dense<0.000000e+00> : vector<2x32xf32>
    %45 = tpu.matmul %30, %15, %cst_54 {dimension_numbers = #tpu.dot_dimension_numbers<[1], [0], [0], [1], [0, 0, 1, 1], [], []>} : vector<2x32xf32>, vector<32x32xf32>, vector<2x32xf32> -> vector<2x32xf32>
    %46 = arith.addf %44, %45 : vector<2x32xf32>
    %47 = vector.broadcast %23 : vector<1x32xf32> to vector<2x32xf32>
    %48 = arith.addf %46, %47 : vector<2x32xf32>
    %cst_55 = arith.constant dense<0.000000e+00> : vector<2x32xf32>
    %49 = tpu.matmul %33, %9, %cst_55 {dimension_numbers = #tpu.dot_dimension_numbers<[1], [0], [0], [1], [0, 0, 1, 1], [], []>} : vector<2x16xf32>, vector<16x32xf32>, vector<2x32xf32> -> vector<2x32xf32>
    %cst_56 = arith.constant dense<0.000000e+00> : vector<2x32xf32>
    %50 = tpu.matmul %30, %17, %cst_56 {dimension_numbers = #tpu.dot_dimension_numbers<[1], [0], [0], [1], [0, 0, 1, 1], [], []>} : vector<2x32xf32>, vector<32x32xf32>, vector<2x32xf32> -> vector<2x32xf32>
    %51 = arith.addf %49, %50 : vector<2x32xf32>
    %52 = vector.broadcast %25 : vector<1x32xf32> to vector<2x32xf32>
    %53 = arith.addf %51, %52 : vector<2x32xf32>
    %54 = arith.negf %38 : vector<2x32xf32>
    %55 = math.exp %54 : vector<2x32xf32>
    %cst_57 = arith.constant 1.000000e+00 : f32
    %56 = vector.broadcast %cst_57 : f32 to vector<2x32xf32>
    %57 = arith.addf %56, %55 : vector<2x32xf32>
    %58 = arith.divf %56, %57 : vector<2x32xf32>
    %59 = arith.negf %43 : vector<2x32xf32>
    %60 = math.exp %59 : vector<2x32xf32>
    %cst_58 = arith.constant 1.000000e+00 : f32
    %61 = vector.broadcast %cst_58 : f32 to vector<2x32xf32>
    %62 = arith.addf %61, %60 : vector<2x32xf32>
    %63 = arith.divf %61, %62 : vector<2x32xf32>
    %64 = math.tanh %48 : vector<2x32xf32>
    %65 = arith.negf %53 : vector<2x32xf32>
    %66 = math.exp %65 : vector<2x32xf32>
    %cst_59 = arith.constant 1.000000e+00 : f32
    %67 = vector.broadcast %cst_59 : f32 to vector<2x32xf32>
    %68 = arith.addf %67, %66 : vector<2x32xf32>
    %69 = arith.divf %67, %68 : vector<2x32xf32>
    %70 = arith.mulf %63, %31 : vector<2x32xf32>
    %71 = arith.mulf %58, %64 : vector<2x32xf32>
    %72 = arith.addf %70, %71 : vector<2x32xf32>
    %73 = math.tanh %72 : vector<2x32xf32>
    %74 = arith.mulf %69, %73 : vector<2x32xf32>
    %75 = vector.shape_cast %74 : vector<2x32xf32> to vector<2x1x32xf32>
    %76 = vector.broadcast %75 : vector<2x1x32xf32> to vector<2x8x32xf32>
    %77 = arith.mulf %1, %76 : vector<2x8x32xf32>
    %cst_60 = arith.constant dense<0.000000e+00> : vector<2x8xf32>
    %78 = vector.multi_reduction <add>, %77, %cst_60 [2] : vector<2x8x32xf32> to vector<2x8xf32>
    %cst_61 = arith.constant dense<0xFF800000> : vector<2xf32>
    %79 = vector.multi_reduction <maximumf>, %78, %cst_61 [1] : vector<2x8xf32> to vector<2xf32>
    %80 = vector.shape_cast %79 : vector<2xf32> to vector<2x1xf32>
    %81 = vector.broadcast %80 : vector<2x1xf32> to vector<2x8xf32>
    %82 = arith.subf %78, %81 : vector<2x8xf32>
    %83 = math.exp %82 : vector<2x8xf32>
    %cst_62 = arith.constant dense<0.000000e+00> : vector<2xf32>
    %84 = vector.multi_reduction <add>, %83, %cst_62 [1] : vector<2x8xf32> to vector<2xf32>
    %85 = vector.shape_cast %84 : vector<2xf32> to vector<2x1xf32>
    %86 = tpu.reciprocal %85 {approx = true} : vector<2x1xf32> -> vector<2x1xf32>
    %87 = vector.broadcast %86 : vector<2x1xf32> to vector<2x8xf32>
    %88 = arith.mulf %83, %87 : vector<2x8xf32>
    %89 = vector.shape_cast %88 : vector<2x8xf32> to vector<2x8x1xf32>
    %90 = vector.broadcast %89 : vector<2x8x1xf32> to vector<2x8x32xf32>
    %91 = arith.mulf %90, %1 : vector<2x8x32xf32>
    %cst_63 = arith.constant dense<0.000000e+00> : vector<2x32xf32>
    %92 = vector.multi_reduction <add>, %91, %cst_63 [1] : vector<2x8x32xf32> to vector<2x32xf32>
    %cst_64 = arith.constant dense<0.000000e+00> : vector<2x32xf32>
    %93 = tpu.matmul %74, %26, %cst_64 {dimension_numbers = #tpu.dot_dimension_numbers<[1], [0], [0], [1], [0, 0, 1, 1], [], []>} : vector<2x32xf32>, vector<32x32xf32>, vector<2x32xf32> -> vector<2x32xf32>
    %cst_65 = arith.constant dense<0.000000e+00> : vector<2x32xf32>
    %94 = tpu.matmul %92, %27, %cst_65 {dimension_numbers = #tpu.dot_dimension_numbers<[1], [0], [0], [1], [0, 0, 1, 1], [], []>} : vector<2x32xf32>, vector<32x32xf32>, vector<2x32xf32> -> vector<2x32xf32>
    %95 = arith.addf %93, %94 : vector<2x32xf32>
    %96 = math.tanh %95 : vector<2x32xf32>
    %cst_66 = arith.constant dense<0.000000e+00> : vector<2x16xf32>
    %97 = tpu.matmul %96, %28, %cst_66 {dimension_numbers = #tpu.dot_dimension_numbers<[1], [0], [0], [1], [0, 0, 1, 1], [], []>} : vector<2x32xf32>, vector<32x16xf32>, vector<2x16xf32> -> vector<2x16xf32>
    %98 = vector.broadcast %29 : vector<1x16xf32> to vector<2x16xf32>
    %99 = arith.addf %97, %98 : vector<2x16xf32>
    %cst_67 = arith.constant dense<0xFF800000> : vector<2xf32>
    %100 = vector.multi_reduction <maximumf>, %99, %cst_67 [1] : vector<2x16xf32> to vector<2xf32>
    %101 = vector.shape_cast %100 : vector<2xf32> to vector<2x1xf32>
    %102 = vector.broadcast %101 : vector<2x1xf32> to vector<2x16xf32>
    %103 = arith.subf %99, %102 : vector<2x16xf32>
    %104 = math.exp %103 : vector<2x16xf32>
    %cst_68 = arith.constant dense<0.000000e+00> : vector<2xf32>
    %105 = vector.multi_reduction <add>, %104, %cst_68 [1] : vector<2x16xf32> to vector<2xf32>
    %106 = vector.shape_cast %105 : vector<2xf32> to vector<2x1xf32>
    %107 = math.log %106 : vector<2x1xf32>
    %108 = arith.addf %101, %107 : vector<2x1xf32>
    %109 = vector.broadcast %108 : vector<2x1xf32> to vector<2x16xf32>
    %110 = arith.subf %99, %109 : vector<2x16xf32>
    %111 = vector.shape_cast %110 : vector<2x16xf32> to vector<2x1x16xf32>
    %c0_69 = arith.constant 0 : index
    %c0_70 = arith.constant 0 : index
    %c0_71 = arith.constant 0 : index
    %112 = vector.load %arg11[%c0_69, %c0_70, %c0_71] : memref<2x8x16xf32, #tpu.memory_space<vmem>>, vector<2x1x16xf32>
    tpu.vector_store %arg11[%c0_69, %c0_70, %c0_71], %111 {strides = array<i32>} : memref<2x8x16xf32, #tpu.memory_space<vmem>>, vector<2x1x16xf32>,
    %113 = vector.extract_strided_slice %0 {offsets = [0, 1, 0], sizes = [2, 1, 16], strides = [1, 1, 1]} : vector<2x8x16xf32> to vector<2x1x16xf32>
    %114 = vector.shape_cast %113 : vector<2x1x16xf32> to vector<2x16xf32>
    %cst_72 = arith.constant dense<0.000000e+00> : vector<2x32xf32>
    %115 = tpu.matmul %114, %3, %cst_72 {dimension_numbers = #tpu.dot_dimension_numbers<[1], [0], [0], [1], [0, 0, 1, 1], [], []>} : vector<2x16xf32>, vector<16x32xf32>, vector<2x32xf32> -> vector<2x32xf32>
    %cst_73 = arith.constant dense<0.000000e+00> : vector<2x32xf32>
    %116 = tpu.matmul %74, %11, %cst_73 {dimension_numbers = #tpu.dot_dimension_numbers<[1], [0], [0], [1], [0, 0, 1, 1], [], []>} : vector<2x32xf32>, vector<32x32xf32>, vector<2x32xf32> -> vector<2x32xf32>
    %117 = arith.addf %115, %116 : vector<2x32xf32>
    %118 = vector.broadcast %19 : vector<1x32xf32> to vector<2x32xf32>
    %119 = arith.addf %117, %118 : vector<2x32xf32>
    %cst_74 = arith.constant dense<0.000000e+00> : vector<2x32xf32>
    %120 = tpu.matmul %114, %5, %cst_74 {dimension_numbers = #tpu.dot_dimension_numbers<[1], [0], [0], [1], [0, 0, 1, 1], [], []>} : vector<2x16xf32>, vector<16x32xf32>, vector<2x32xf32> -> vector<2x32xf32>
    %cst_75 = arith.constant dense<0.000000e+00> : vector<2x32xf32>
    %121 = tpu.matmul %74, %13, %cst_75 {dimension_numbers = #tpu.dot_dimension_numbers<[1], [0], [0], [1], [0, 0, 1, 1], [], []>} : vector<2x32xf32>, vector<32x32xf32>, vector<2x32xf32> -> vector<2x32xf32>
    %122 = arith.addf %120, %121 : vector<2x32xf32>
    %123 = vector.broadcast %21 : vector<1x32xf32> to vector<2x32xf32>
    %124 = arith.addf %122, %123 : vector<2x32xf32>
    %cst_76 = arith.constant dense<0.000000e+00> : vector<2x32xf32>
    %125 = tpu.matmul %114, %7, %cst_76 {dimension_numbers = #tpu.dot_dimension_numbers<[1], [0], [0], [1], [0, 0, 1, 1], [], []>} : vector<2x16xf32>, vector<16x32xf32>, vector<2x32xf32> -> vector<2x32xf32>
    %cst_77 = arith.constant dense<0.000000e+00> : vector<2x32xf32>
    %126 = tpu.matmul %74, %15, %cst_77 {dimension_numbers = #tpu.dot_dimension_numbers<[1], [0], [0], [1], [0, 0, 1, 1], [], []>} : vector<2x32xf32>, vector<32x32xf32>, vector<2x32xf32> -> vector<2x32xf32>
    %127 = arith.addf %125, %126 : vector<2x32xf32>
    %128 = vector.broadcast %23 : vector<1x32xf32> to vector<2x32xf32>
    %129 = arith.addf %127, %128 : vector<2x32xf32>
    %cst_78 = arith.constant dense<0.000000e+00> : vector<2x32xf32>
    %130 = tpu.matmul %114, %9, %cst_78 {dimension_numbers = #tpu.dot_dimension_numbers<[1], [0], [0], [1], [0, 0, 1, 1], [], []>} : vector<2x16xf32>, vector<16x32xf32>, vector<2x32xf32> -> vector<2x32xf32>
    %cst_79 = arith.constant dense<0.000000e+00> : vector<2x32xf32>
    %131 = tpu.matmul %74, %17, %cst_79 {dimension_numbers = #tpu.dot_dimension_numbers<[1], [0], [0], [1], [0, 0, 1, 1], [], []>} : vector<2x32xf32>, vector<32x32xf32>, vector<2x32xf32> -> vector<2x32xf32>
    %132 = arith.addf %130, %131 : vector<2x32xf32>
    %133 = vector.broadcast %25 : vector<1x32xf32> to vector<2x32xf32>
    %134 = arith.addf %132, %133 : vector<2x32xf32>
    %135 = arith.negf %119 : vector<2x32xf32>
    %136 = math.exp %135 : vector<2x32xf32>
    %cst_80 = arith.constant 1.000000e+00 : f32
    %137 = vector.broadcast %cst_80 : f32 to vector<2x32xf32>
    %138 = arith.addf %137, %136 : vector<2x32xf32>
    %139 = arith.divf %137, %138 : vector<2x32xf32>
    %140 = arith.negf %124 : vector<2x32xf32>
    %141 = math.exp %140 : vector<2x32xf32>
    %cst_81 = arith.constant 1.000000e+00 : f32
    %142 = vector.broadcast %cst_81 : f32 to vector<2x32xf32>
    %143 = arith.addf %142, %141 : vector<2x32xf32>
    %144 = arith.divf %142, %143 : vector<2x32xf32>
    %145 = math.tanh %129 : vector<2x32xf32>
    %146 = arith.negf %134 : vector<2x32xf32>
    %147 = math.exp %146 : vector<2x32xf32>
    %cst_82 = arith.constant 1.000000e+00 : f32
    %148 = vector.broadcast %cst_82 : f32 to vector<2x32xf32>
    %149 = arith.addf %148, %147 : vector<2x32xf32>
    %150 = arith.divf %148, %149 : vector<2x32xf32>
    %151 = arith.mulf %144, %72 : vector<2x32xf32>
    %152 = arith.mulf %139, %145 : vector<2x32xf32>
    %153 = arith.addf %151, %152 : vector<2x32xf32>
    %154 = math.tanh %153 : vector<2x32xf32>
    %155 = arith.mulf %150, %154 : vector<2x32xf32>
    %156 = vector.shape_cast %155 : vector<2x32xf32> to vector<2x1x32xf32>
    %157 = vector.broadcast %156 : vector<2x1x32xf32> to vector<2x8x32xf32>
    %158 = arith.mulf %1, %157 : vector<2x8x32xf32>
    %cst_83 = arith.constant dense<0.000000e+00> : vector<2x8xf32>
    %159 = vector.multi_reduction <add>, %158, %cst_83 [2] : vector<2x8x32xf32> to vector<2x8xf32>
    %cst_84 = arith.constant dense<0xFF800000> : vector<2xf32>
    %160 = vector.multi_reduction <maximumf>, %159, %cst_84 [1] : vector<2x8xf32> to vector<2xf32>
    %161 = vector.shape_cast %160 : vector<2xf32> to vector<2x1xf32>
    %162 = vector.broadcast %161 : vector<2x1xf32> to vector<2x8xf32>
    %163 = arith.subf %159, %162 : vector<2x8xf32>
    %164 = math.exp %163 : vector<2x8xf32>
    %cst_85 = arith.constant dense<0.000000e+00> : vector<2xf32>
    %165 = vector.multi_reduction <add>, %164, %cst_85 [1] : vector<2x8xf32> to vector<2xf32>
    %166 = vector.shape_cast %165 : vector<2xf32> to vector<2x1xf32>
    %167 = tpu.reciprocal %166 {approx = true} : vector<2x1xf32> -> vector<2x1xf32>
    %168 = vector.broadcast %167 : vector<2x1xf32> to vector<2x8xf32>
    %169 = arith.mulf %164, %168 : vector<2x8xf32>
    %170 = vector.shape_cast %169 : vector<2x8xf32> to vector<2x8x1xf32>
    %171 = vector.broadcast %170 : vector<2x8x1xf32> to vector<2x8x32xf32>
    %172 = arith.mulf %171, %1 : vector<2x8x32xf32>
    %cst_86 = arith.constant dense<0.000000e+00> : vector<2x32xf32>
    %173 = vector.multi_reduction <add>, %172, %cst_86 [1] : vector<2x8x32xf32> to vector<2x32xf32>
    %cst_87 = arith.constant dense<0.000000e+00> : vector<2x32xf32>
    %174 = tpu.matmul %155, %26, %cst_87 {dimension_numbers = #tpu.dot_dimension_numbers<[1], [0], [0], [1], [0, 0, 1, 1], [], []>} : vector<2x32xf32>, vector<32x32xf32>, vector<2x32xf32> -> vector<2x32xf32>
    %cst_88 = arith.constant dense<0.000000e+00> : vector<2x32xf32>
    %175 = tpu.matmul %173, %27, %cst_88 {dimension_numbers = #tpu.dot_dimension_numbers<[1], [0], [0], [1], [0, 0, 1, 1], [], []>} : vector<2x32xf32>, vector<32x32xf32>, vector<2x32xf32> -> vector<2x32xf32>
    %176 = arith.addf %174, %175 : vector<2x32xf32>
    %177 = math.tanh %176 : vector<2x32xf32>
    %cst_89 = arith.constant dense<0.000000e+00> : vector<2x16xf32>
    %178 = tpu.matmul %177, %28, %cst_89 {dimension_numbers = #tpu.dot_dimension_numbers<[1], [0], [0], [1], [0, 0, 1, 1], [], []>} : vector<2x32xf32>, vector<32x16xf32>, vector<2x16xf32> -> vector<2x16xf32>
    %179 = vector.broadcast %29 : vector<1x16xf32> to vector<2x16xf32>
    %180 = arith.addf %178, %179 : vector<2x16xf32>
    %cst_90 = arith.constant dense<0xFF800000> : vector<2xf32>
    %181 = vector.multi_reduction <maximumf>, %180, %cst_90 [1] : vector<2x16xf32> to vector<2xf32>
    %182 = vector.shape_cast %181 : vector<2xf32> to vector<2x1xf32>
    %183 = vector.broadcast %182 : vector<2x1xf32> to vector<2x16xf32>
    %184 = arith.subf %180, %183 : vector<2x16xf32>
    %185 = math.exp %184 : vector<2x16xf32>
    %cst_91 = arith.constant dense<0.000000e+00> : vector<2xf32>
    %186 = vector.multi_reduction <add>, %185, %cst_91 [1] : vector<2x16xf32> to vector<2xf32>
    %187 = vector.shape_cast %186 : vector<2xf32> to vector<2x1xf32>
    %188 = math.log %187 : vector<2x1xf32>
    %189 = arith.addf %182, %188 : vector<2x1xf32>
    %190 = vector.broadcast %189 : vector<2x1xf32> to vector<2x16xf32>
    %191 = arith.subf %180, %190 : vector<2x16xf32>
    %192 = vector.shape_cast %191 : vector<2x16xf32> to vector<2x1x16xf32>
    %c0_92 = arith.constant 0 : index
    %c1_93 = arith.constant 1 : index
    %c0_94 = arith.constant 0 : index
    %193 = vector.load %arg11[%c0_92, %c1_93, %c0_94] : memref<2x8x16xf32, #tpu.memory_space<vmem>>, vector<2x1x16xf32>
    tpu.vector_store %arg11[%c0_92, %c1_93, %c0_94], %192 {strides = array<i32>} : memref<2x8x16xf32, #tpu.memory_space<vmem>>, vector<2x1x16xf32>,
    %194 = vector.extract_strided_slice %0 {offsets = [0, 2, 0], sizes = [2, 1, 16], strides = [1, 1, 1]} : vector<2x8x16xf32> to vector<2x1x16xf32>
    %195 = vector.shape_cast %194 : vector<2x1x16xf32> to vector<2x16xf32>
    %cst_95 = arith.constant dense<0.000000e+00> : vector<2x32xf32>
    %196 = tpu.matmul %195, %3, %cst_95 {dimension_numbers = #tpu.dot_dimension_numbers<[1], [0], [0], [1], [0, 0, 1, 1], [], []>} : vector<2x16xf32>, vector<16x32xf32>, vector<2x32xf32> -> vector<2x32xf32>
    %cst_96 = arith.constant dense<0.000000e+00> : vector<2x32xf32>
    %197 = tpu.matmul %155, %11, %cst_96 {dimension_numbers = #tpu.dot_dimension_numbers<[1], [0], [0], [1], [0, 0, 1, 1], [], []>} : vector<2x32xf32>, vector<32x32xf32>, vector<2x32xf32> -> vector<2x32xf32>
    %198 = arith.addf %196, %197 : vector<2x32xf32>
    %199 = vector.broadcast %19 : vector<1x32xf32> to vector<2x32xf32>
    %200 = arith.addf %198, %199 : vector<2x32xf32>
    %cst_97 = arith.constant dense<0.000000e+00> : vector<2x32xf32>
    %201 = tpu.matmul %195, %5, %cst_97 {dimension_numbers = #tpu.dot_dimension_numbers<[1], [0], [0], [1], [0, 0, 1, 1], [], []>} : vector<2x16xf32>, vector<16x32xf32>, vector<2x32xf32> -> vector<2x32xf32>
    %cst_98 = arith.constant dense<0.000000e+00> : vector<2x32xf32>
    %202 = tpu.matmul %155, %13, %cst_98 {dimension_numbers = #tpu.dot_dimension_numbers<[1], [0], [0], [1], [0, 0, 1, 1], [], []>} : vector<2x32xf32>, vector<32x32xf32>, vector<2x32xf32> -> vector<2x32xf32>
    %203 = arith.addf %201, %202 : vector<2x32xf32>
    %204 = vector.broadcast %21 : vector<1x32xf32> to vector<2x32xf32>
    %205 = arith.addf %203, %204 : vector<2x32xf32>
    %cst_99 = arith.constant dense<0.000000e+00> : vector<2x32xf32>
    %206 = tpu.matmul %195, %7, %cst_99 {dimension_numbers = #tpu.dot_dimension_numbers<[1], [0], [0], [1], [0, 0, 1, 1], [], []>} : vector<2x16xf32>, vector<16x32xf32>, vector<2x32xf32> -> vector<2x32xf32>
    %cst_100 = arith.constant dense<0.000000e+00> : vector<2x32xf32>
    %207 = tpu.matmul %155, %15, %cst_100 {dimension_numbers = #tpu.dot_dimension_numbers<[1], [0], [0], [1], [0, 0, 1, 1], [], []>} : vector<2x32xf32>, vector<32x32xf32>, vector<2x32xf32> -> vector<2x32xf32>
    %208 = arith.addf %206, %207 : vector<2x32xf32>
    %209 = vector.broadcast %23 : vector<1x32xf32> to vector<2x32xf32>
    %210 = arith.addf %208, %209 : vector<2x32xf32>
    %cst_101 = arith.constant dense<0.000000e+00> : vector<2x32xf32>
    %211 = tpu.matmul %195, %9, %cst_101 {dimension_numbers = #tpu.dot_dimension_numbers<[1], [0], [0], [1], [0, 0, 1, 1], [], []>} : vector<2x16xf32>, vector<16x32xf32>, vector<2x32xf32> -> vector<2x32xf32>
    %cst_102 = arith.constant dense<0.000000e+00> : vector<2x32xf32>
    %212 = tpu.matmul %155, %17, %cst_102 {dimension_numbers = #tpu.dot_dimension_numbers<[1], [0], [0], [1], [0, 0, 1, 1], [], []>} : vector<2x32xf32>, vector<32x32xf32>, vector<2x32xf32> -> vector<2x32xf32>
    %213 = arith.addf %211, %212 : vector<2x32xf32>
    %214 = vector.broadcast %25 : vector<1x32xf32> to vector<2x32xf32>
    %215 = arith.addf %213, %214 : vector<2x32xf32>
    %216 = arith.negf %200 : vector<2x32xf32>
    %217 = math.exp %216 : vector<2x32xf32>
    %cst_103 = arith.constant 1.000000e+00 : f32
    %218 = vector.broadcast %cst_103 : f32 to vector<2x32xf32>
    %219 = arith.addf %218, %217 : vector<2x32xf32>
    %220 = arith.divf %218, %219 : vector<2x32xf32>
    %221 = arith.negf %205 : vector<2x32xf32>
    %222 = math.exp %221 : vector<2x32xf32>
    %cst_104 = arith.constant 1.000000e+00 : f32
    %223 = vector.broadcast %cst_104 : f32 to vector<2x32xf32>
    %224 = arith.addf %223, %222 : vector<2x32xf32>
    %225 = arith.divf %223, %224 : vector<2x32xf32>
    %226 = math.tanh %210 : vector<2x32xf32>
    %227 = arith.negf %215 : vector<2x32xf32>
    %228 = math.exp %227 : vector<2x32xf32>
    %cst_105 = arith.constant 1.000000e+00 : f32
    %229 = vector.broadcast %cst_105 : f32 to vector<2x32xf32>
    %230 = arith.addf %229, %228 : vector<2x32xf32>
    %231 = arith.divf %229, %230 : vector<2x32xf32>
    %232 = arith.mulf %225, %153 : vector<2x32xf32>
    %233 = arith.mulf %220, %226 : vector<2x32xf32>
    %234 = arith.addf %232, %233 : vector<2x32xf32>
    %235 = math.tanh %234 : vector<2x32xf32>
    %236 = arith.mulf %231, %235 : vector<2x32xf32>
    %237 = vector.shape_cast %236 : vector<2x32xf32> to vector<2x1x32xf32>
    %238 = vector.broadcast %237 : vector<2x1x32xf32> to vector<2x8x32xf32>
    %239 = arith.mulf %1, %238 : vector<2x8x32xf32>
    %cst_106 = arith.constant dense<0.000000e+00> : vector<2x8xf32>
    %240 = vector.multi_reduction <add>, %239, %cst_106 [2] : vector<2x8x32xf32> to vector<2x8xf32>
    %cst_107 = arith.constant dense<0xFF800000> : vector<2xf32>
    %241 = vector.multi_reduction <maximumf>, %240, %cst_107 [1] : vector<2x8xf32> to vector<2xf32>
    %242 = vector.shape_cast %241 : vector<2xf32> to vector<2x1xf32>
    %243 = vector.broadcast %242 : vector<2x1xf32> to vector<2x8xf32>
    %244 = arith.subf %240, %243 : vector<2x8xf32>
    %245 = math.exp %244 : vector<2x8xf32>
    %cst_108 = arith.constant dense<0.000000e+00> : vector<2xf32>
    %246 = vector.multi_reduction <add>, %245, %cst_108 [1] : vector<2x8xf32> to vector<2xf32>
    %247 = vector.shape_cast %246 : vector<2xf32> to vector<2x1xf32>
    %248 = tpu.reciprocal %247 {approx = true} : vector<2x1xf32> -> vector<2x1xf32>
    %249 = vector.broadcast %248 : vector<2x1xf32> to vector<2x8xf32>
    %250 = arith.mulf %245, %249 : vector<2x8xf32>
    %251 = vector.shape_cast %250 : vector<2x8xf32> to vector<2x8x1xf32>
    %252 = vector.broadcast %251 : vector<2x8x1xf32> to vector<2x8x32xf32>
    %253 = arith.mulf %252, %1 : vector<2x8x32xf32>
    %cst_109 = arith.constant dense<0.000000e+00> : vector<2x32xf32>
    %254 = vector.multi_reduction <add>, %253, %cst_109 [1] : vector<2x8x32xf32> to vector<2x32xf32>
    %cst_110 = arith.constant dense<0.000000e+00> : vector<2x32xf32>
    %255 = tpu.matmul %236, %26, %cst_110 {dimension_numbers = #tpu.dot_dimension_numbers<[1], [0], [0], [1], [0, 0, 1, 1], [], []>} : vector<2x32xf32>, vector<32x32xf32>, vector<2x32xf32> -> vector<2x32xf32>
    %cst_111 = arith.constant dense<0.000000e+00> : vector<2x32xf32>
    %256 = tpu.matmul %254, %27, %cst_111 {dimension_numbers = #tpu.dot_dimension_numbers<[1], [0], [0], [1], [0, 0, 1, 1], [], []>} : vector<2x32xf32>, vector<32x32xf32>, vector<2x32xf32> -> vector<2x32xf32>
    %257 = arith.addf %255, %256 : vector<2x32xf32>
    %258 = math.tanh %257 : vector<2x32xf32>
    %cst_112 = arith.constant dense<0.000000e+00> : vector<2x16xf32>
    %259 = tpu.matmul %258, %28, %cst_112 {dimension_numbers = #tpu.dot_dimension_numbers<[1], [0], [0], [1], [0, 0, 1, 1], [], []>} : vector<2x32xf32>, vector<32x16xf32>, vector<2x16xf32> -> vector<2x16xf32>
    %260 = vector.broadcast %29 : vector<1x16xf32> to vector<2x16xf32>
    %261 = arith.addf %259, %260 : vector<2x16xf32>
    %cst_113 = arith.constant dense<0xFF800000> : vector<2xf32>
    %262 = vector.multi_reduction <maximumf>, %261, %cst_113 [1] : vector<2x16xf32> to vector<2xf32>
    %263 = vector.shape_cast %262 : vector<2xf32> to vector<2x1xf32>
    %264 = vector.broadcast %263 : vector<2x1xf32> to vector<2x16xf32>
    %265 = arith.subf %261, %264 : vector<2x16xf32>
    %266 = math.exp %265 : vector<2x16xf32>
    %cst_114 = arith.constant dense<0.000000e+00> : vector<2xf32>
    %267 = vector.multi_reduction <add>, %266, %cst_114 [1] : vector<2x16xf32> to vector<2xf32>
    %268 = vector.shape_cast %267 : vector<2xf32> to vector<2x1xf32>
    %269 = math.log %268 : vector<2x1xf32>
    %270 = arith.addf %263, %269 : vector<2x1xf32>
    %271 = vector.broadcast %270 : vector<2x1xf32> to vector<2x16xf32>
    %272 = arith.subf %261, %271 : vector<2x16xf32>
    %273 = vector.shape_cast %272 : vector<2x16xf32> to vector<2x1x16xf32>
    %c0_115 = arith.constant 0 : index
    %c2_116 = arith.constant 2 : index
    %c0_117 = arith.constant 0 : index
    %274 = vector.load %arg11[%c0_115, %c2_116, %c0_117] : memref<2x8x16xf32, #tpu.memory_space<vmem>>, vector<2x1x16xf32>
    tpu.vector_store %arg11[%c0_115, %c2_116, %c0_117], %273 {strides = array<i32>} : memref<2x8x16xf32, #tpu.memory_space<vmem>>, vector<2x1x16xf32>,
    %275 = vector.extract_strided_slice %0 {offsets = [0, 3, 0], sizes = [2, 1, 16], strides = [1, 1, 1]} : vector<2x8x16xf32> to vector<2x1x16xf32>
    %276 = vector.shape_cast %275 : vector<2x1x16xf32> to vector<2x16xf32>
    %cst_118 = arith.constant dense<0.000000e+00> : vector<2x32xf32>
    %277 = tpu.matmul %276, %3, %cst_118 {dimension_numbers = #tpu.dot_dimension_numbers<[1], [0], [0], [1], [0, 0, 1, 1], [], []>} : vector<2x16xf32>, vector<16x32xf32>, vector<2x32xf32> -> vector<2x32xf32>
    %cst_119 = arith.constant dense<0.000000e+00> : vector<2x32xf32>
    %278 = tpu.matmul %236, %11, %cst_119 {dimension_numbers = #tpu.dot_dimension_numbers<[1], [0], [0], [1], [0, 0, 1, 1], [], []>} : vector<2x32xf32>, vector<32x32xf32>, vector<2x32xf32> -> vector<2x32xf32>
    %279 = arith.addf %277, %278 : vector<2x32xf32>
    %280 = vector.broadcast %19 : vector<1x32xf32> to vector<2x32xf32>
    %281 = arith.addf %279, %280 : vector<2x32xf32>
    %cst_120 = arith.constant dense<0.000000e+00> : vector<2x32xf32>
    %282 = tpu.matmul %276, %5, %cst_120 {dimension_numbers = #tpu.dot_dimension_numbers<[1], [0], [0], [1], [0, 0, 1, 1], [], []>} : vector<2x16xf32>, vector<16x32xf32>, vector<2x32xf32> -> vector<2x32xf32>
    %cst_121 = arith.constant dense<0.000000e+00> : vector<2x32xf32>
    %283 = tpu.matmul %236, %13, %cst_121 {dimension_numbers = #tpu.dot_dimension_numbers<[1], [0], [0], [1], [0, 0, 1, 1], [], []>} : vector<2x32xf32>, vector<32x32xf32>, vector<2x32xf32> -> vector<2x32xf32>
    %284 = arith.addf %282, %283 : vector<2x32xf32>
    %285 = vector.broadcast %21 : vector<1x32xf32> to vector<2x32xf32>
    %286 = arith.addf %284, %285 : vector<2x32xf32>
    %cst_122 = arith.constant dense<0.000000e+00> : vector<2x32xf32>
    %287 = tpu.matmul %276, %7, %cst_122 {dimension_numbers = #tpu.dot_dimension_numbers<[1], [0], [0], [1], [0, 0, 1, 1], [], []>} : vector<2x16xf32>, vector<16x32xf32>, vector<2x32xf32> -> vector<2x32xf32>
    %cst_123 = arith.constant dense<0.000000e+00> : vector<2x32xf32>
    %288 = tpu.matmul %236, %15, %cst_123 {dimension_numbers = #tpu.dot_dimension_numbers<[1], [0], [0], [1], [0, 0, 1, 1], [], []>} : vector<2x32xf32>, vector<32x32xf32>, vector<2x32xf32> -> vector<2x32xf32>
    %289 = arith.addf %287, %288 : vector<2x32xf32>
    %290 = vector.broadcast %23 : vector<1x32xf32> to vector<2x32xf32>
    %291 = arith.addf %289, %290 : vector<2x32xf32>
    %cst_124 = arith.constant dense<0.000000e+00> : vector<2x32xf32>
    %292 = tpu.matmul %276, %9, %cst_124 {dimension_numbers = #tpu.dot_dimension_numbers<[1], [0], [0], [1], [0, 0, 1, 1], [], []>} : vector<2x16xf32>, vector<16x32xf32>, vector<2x32xf32> -> vector<2x32xf32>
    %cst_125 = arith.constant dense<0.000000e+00> : vector<2x32xf32>
    %293 = tpu.matmul %236, %17, %cst_125 {dimension_numbers = #tpu.dot_dimension_numbers<[1], [0], [0], [1], [0, 0, 1, 1], [], []>} : vector<2x32xf32>, vector<32x32xf32>, vector<2x32xf32> -> vector<2x32xf32>
    %294 = arith.addf %292, %293 : vector<2x32xf32>
    %295 = vector.broadcast %25 : vector<1x32xf32> to vector<2x32xf32>
    %296 = arith.addf %294, %295 : vector<2x32xf32>
    %297 = arith.negf %281 : vector<2x32xf32>
    %298 = math.exp %297 : vector<2x32xf32>
    %cst_126 = arith.constant 1.000000e+00 : f32
    %299 = vector.broadcast %cst_126 : f32 to vector<2x32xf32>
    %300 = arith.addf %299, %298 : vector<2x32xf32>
    %301 = arith.divf %299, %300 : vector<2x32xf32>
    %302 = arith.negf %286 : vector<2x32xf32>
    %303 = math.exp %302 : vector<2x32xf32>
    %cst_127 = arith.constant 1.000000e+00 : f32
    %304 = vector.broadcast %cst_127 : f32 to vector<2x32xf32>
    %305 = arith.addf %304, %303 : vector<2x32xf32>
    %306 = arith.divf %304, %305 : vector<2x32xf32>
    %307 = math.tanh %291 : vector<2x32xf32>
    %308 = arith.negf %296 : vector<2x32xf32>
    %309 = math.exp %308 : vector<2x32xf32>
    %cst_128 = arith.constant 1.000000e+00 : f32
    %310 = vector.broadcast %cst_128 : f32 to vector<2x32xf32>
    %311 = arith.addf %310, %309 : vector<2x32xf32>
    %312 = arith.divf %310, %311 : vector<2x32xf32>
    %313 = arith.mulf %306, %234 : vector<2x32xf32>
    %314 = arith.mulf %301, %307 : vector<2x32xf32>
    %315 = arith.addf %313, %314 : vector<2x32xf32>
    %316 = math.tanh %315 : vector<2x32xf32>
    %317 = arith.mulf %312, %316 : vector<2x32xf32>
    %318 = vector.shape_cast %317 : vector<2x32xf32> to vector<2x1x32xf32>
    %319 = vector.broadcast %318 : vector<2x1x32xf32> to vector<2x8x32xf32>
    %320 = arith.mulf %1, %319 : vector<2x8x32xf32>
    %cst_129 = arith.constant dense<0.000000e+00> : vector<2x8xf32>
    %321 = vector.multi_reduction <add>, %320, %cst_129 [2] : vector<2x8x32xf32> to vector<2x8xf32>
    %cst_130 = arith.constant dense<0xFF800000> : vector<2xf32>
    %322 = vector.multi_reduction <maximumf>, %321, %cst_130 [1] : vector<2x8xf32> to vector<2xf32>
    %323 = vector.shape_cast %322 : vector<2xf32> to vector<2x1xf32>
    %324 = vector.broadcast %323 : vector<2x1xf32> to vector<2x8xf32>
    %325 = arith.subf %321, %324 : vector<2x8xf32>
    %326 = math.exp %325 : vector<2x8xf32>
    %cst_131 = arith.constant dense<0.000000e+00> : vector<2xf32>
    %327 = vector.multi_reduction <add>, %326, %cst_131 [1] : vector<2x8xf32> to vector<2xf32>
    %328 = vector.shape_cast %327 : vector<2xf32> to vector<2x1xf32>
    %329 = tpu.reciprocal %328 {approx = true} : vector<2x1xf32> -> vector<2x1xf32>
    %330 = vector.broadcast %329 : vector<2x1xf32> to vector<2x8xf32>
    %331 = arith.mulf %326, %330 : vector<2x8xf32>
    %332 = vector.shape_cast %331 : vector<2x8xf32> to vector<2x8x1xf32>
    %333 = vector.broadcast %332 : vector<2x8x1xf32> to vector<2x8x32xf32>
    %334 = arith.mulf %333, %1 : vector<2x8x32xf32>
    %cst_132 = arith.constant dense<0.000000e+00> : vector<2x32xf32>
    %335 = vector.multi_reduction <add>, %334, %cst_132 [1] : vector<2x8x32xf32> to vector<2x32xf32>
    %cst_133 = arith.constant dense<0.000000e+00> : vector<2x32xf32>
    %336 = tpu.matmul %317, %26, %cst_133 {dimension_numbers = #tpu.dot_dimension_numbers<[1], [0], [0], [1], [0, 0, 1, 1], [], []>} : vector<2x32xf32>, vector<32x32xf32>, vector<2x32xf32> -> vector<2x32xf32>
    %cst_134 = arith.constant dense<0.000000e+00> : vector<2x32xf32>
    %337 = tpu.matmul %335, %27, %cst_134 {dimension_numbers = #tpu.dot_dimension_numbers<[1], [0], [0], [1], [0, 0, 1, 1], [], []>} : vector<2x32xf32>, vector<32x32xf32>, vector<2x32xf32> -> vector<2x32xf32>
    %338 = arith.addf %336, %337 : vector<2x32xf32>
    %339 = math.tanh %338 : vector<2x32xf32>
    %cst_135 = arith.constant dense<0.000000e+00> : vector<2x16xf32>
    %340 = tpu.matmul %339, %28, %cst_135 {dimension_numbers = #tpu.dot_dimension_numbers<[1], [0], [0], [1], [0, 0, 1, 1], [], []>} : vector<2x32xf32>, vector<32x16xf32>, vector<2x16xf32> -> vector<2x16xf32>
    %341 = vector.broadcast %29 : vector<1x16xf32> to vector<2x16xf32>
    %342 = arith.addf %340, %341 : vector<2x16xf32>
    %cst_136 = arith.constant dense<0xFF800000> : vector<2xf32>
    %343 = vector.multi_reduction <maximumf>, %342, %cst_136 [1] : vector<2x16xf32> to vector<2xf32>
    %344 = vector.shape_cast %343 : vector<2xf32> to vector<2x1xf32>
    %345 = vector.broadcast %344 : vector<2x1xf32> to vector<2x16xf32>
    %346 = arith.subf %342, %345 : vector<2x16xf32>
    %347 = math.exp %346 : vector<2x16xf32>
    %cst_137 = arith.constant dense<0.000000e+00> : vector<2xf32>
    %348 = vector.multi_reduction <add>, %347, %cst_137 [1] : vector<2x16xf32> to vector<2xf32>
    %349 = vector.shape_cast %348 : vector<2xf32> to vector<2x1xf32>
    %350 = math.log %349 : vector<2x1xf32>
    %351 = arith.addf %344, %350 : vector<2x1xf32>
    %352 = vector.broadcast %351 : vector<2x1xf32> to vector<2x16xf32>
    %353 = arith.subf %342, %352 : vector<2x16xf32>
    %354 = vector.shape_cast %353 : vector<2x16xf32> to vector<2x1x16xf32>
    %c0_138 = arith.constant 0 : index
    %c3_139 = arith.constant 3 : index
    %c0_140 = arith.constant 0 : index
    %355 = vector.load %arg11[%c0_138, %c3_139, %c0_140] : memref<2x8x16xf32, #tpu.memory_space<vmem>>, vector<2x1x16xf32>
    tpu.vector_store %arg11[%c0_138, %c3_139, %c0_140], %354 {strides = array<i32>} : memref<2x8x16xf32, #tpu.memory_space<vmem>>, vector<2x1x16xf32>,
    %356 = vector.extract_strided_slice %0 {offsets = [0, 4, 0], sizes = [2, 1, 16], strides = [1, 1, 1]} : vector<2x8x16xf32> to vector<2x1x16xf32>
    %357 = vector.shape_cast %356 : vector<2x1x16xf32> to vector<2x16xf32>
    %cst_141 = arith.constant dense<0.000000e+00> : vector<2x32xf32>
    %358 = tpu.matmul %357, %3, %cst_141 {dimension_numbers = #tpu.dot_dimension_numbers<[1], [0], [0], [1], [0, 0, 1, 1], [], []>} : vector<2x16xf32>, vector<16x32xf32>, vector<2x32xf32> -> vector<2x32xf32>
    %cst_142 = arith.constant dense<0.000000e+00> : vector<2x32xf32>
    %359 = tpu.matmul %317, %11, %cst_142 {dimension_numbers = #tpu.dot_dimension_numbers<[1], [0], [0], [1], [0, 0, 1, 1], [], []>} : vector<2x32xf32>, vector<32x32xf32>, vector<2x32xf32> -> vector<2x32xf32>
    %360 = arith.addf %358, %359 : vector<2x32xf32>
    %361 = vector.broadcast %19 : vector<1x32xf32> to vector<2x32xf32>
    %362 = arith.addf %360, %361 : vector<2x32xf32>
    %cst_143 = arith.constant dense<0.000000e+00> : vector<2x32xf32>
    %363 = tpu.matmul %357, %5, %cst_143 {dimension_numbers = #tpu.dot_dimension_numbers<[1], [0], [0], [1], [0, 0, 1, 1], [], []>} : vector<2x16xf32>, vector<16x32xf32>, vector<2x32xf32> -> vector<2x32xf32>
    %cst_144 = arith.constant dense<0.000000e+00> : vector<2x32xf32>
    %364 = tpu.matmul %317, %13, %cst_144 {dimension_numbers = #tpu.dot_dimension_numbers<[1], [0], [0], [1], [0, 0, 1, 1], [], []>} : vector<2x32xf32>, vector<32x32xf32>, vector<2x32xf32> -> vector<2x32xf32>
    %365 = arith.addf %363, %364 : vector<2x32xf32>
    %366 = vector.broadcast %21 : vector<1x32xf32> to vector<2x32xf32>
    %367 = arith.addf %365, %366 : vector<2x32xf32>
    %cst_145 = arith.constant dense<0.000000e+00> : vector<2x32xf32>
    %368 = tpu.matmul %357, %7, %cst_145 {dimension_numbers = #tpu.dot_dimension_numbers<[1], [0], [0], [1], [0, 0, 1, 1], [], []>} : vector<2x16xf32>, vector<16x32xf32>, vector<2x32xf32> -> vector<2x32xf32>
    %cst_146 = arith.constant dense<0.000000e+00> : vector<2x32xf32>
    %369 = tpu.matmul %317, %15, %cst_146 {dimension_numbers = #tpu.dot_dimension_numbers<[1], [0], [0], [1], [0, 0, 1, 1], [], []>} : vector<2x32xf32>, vector<32x32xf32>, vector<2x32xf32> -> vector<2x32xf32>
    %370 = arith.addf %368, %369 : vector<2x32xf32>
    %371 = vector.broadcast %23 : vector<1x32xf32> to vector<2x32xf32>
    %372 = arith.addf %370, %371 : vector<2x32xf32>
    %cst_147 = arith.constant dense<0.000000e+00> : vector<2x32xf32>
    %373 = tpu.matmul %357, %9, %cst_147 {dimension_numbers = #tpu.dot_dimension_numbers<[1], [0], [0], [1], [0, 0, 1, 1], [], []>} : vector<2x16xf32>, vector<16x32xf32>, vector<2x32xf32> -> vector<2x32xf32>
    %cst_148 = arith.constant dense<0.000000e+00> : vector<2x32xf32>
    %374 = tpu.matmul %317, %17, %cst_148 {dimension_numbers = #tpu.dot_dimension_numbers<[1], [0], [0], [1], [0, 0, 1, 1], [], []>} : vector<2x32xf32>, vector<32x32xf32>, vector<2x32xf32> -> vector<2x32xf32>
    %375 = arith.addf %373, %374 : vector<2x32xf32>
    %376 = vector.broadcast %25 : vector<1x32xf32> to vector<2x32xf32>
    %377 = arith.addf %375, %376 : vector<2x32xf32>
    %378 = arith.negf %362 : vector<2x32xf32>
    %379 = math.exp %378 : vector<2x32xf32>
    %cst_149 = arith.constant 1.000000e+00 : f32
    %380 = vector.broadcast %cst_149 : f32 to vector<2x32xf32>
    %381 = arith.addf %380, %379 : vector<2x32xf32>
    %382 = arith.divf %380, %381 : vector<2x32xf32>
    %383 = arith.negf %367 : vector<2x32xf32>
    %384 = math.exp %383 : vector<2x32xf32>
    %cst_150 = arith.constant 1.000000e+00 : f32
    %385 = vector.broadcast %cst_150 : f32 to vector<2x32xf32>
    %386 = arith.addf %385, %384 : vector<2x32xf32>
    %387 = arith.divf %385, %386 : vector<2x32xf32>
    %388 = math.tanh %372 : vector<2x32xf32>
    %389 = arith.negf %377 : vector<2x32xf32>
    %390 = math.exp %389 : vector<2x32xf32>
    %cst_151 = arith.constant 1.000000e+00 : f32
    %391 = vector.broadcast %cst_151 : f32 to vector<2x32xf32>
    %392 = arith.addf %391, %390 : vector<2x32xf32>
    %393 = arith.divf %391, %392 : vector<2x32xf32>
    %394 = arith.mulf %387, %315 : vector<2x32xf32>
    %395 = arith.mulf %382, %388 : vector<2x32xf32>
    %396 = arith.addf %394, %395 : vector<2x32xf32>
    %397 = math.tanh %396 : vector<2x32xf32>
    %398 = arith.mulf %393, %397 : vector<2x32xf32>
    %399 = vector.shape_cast %398 : vector<2x32xf32> to vector<2x1x32xf32>
    %400 = vector.broadcast %399 : vector<2x1x32xf32> to vector<2x8x32xf32>
    %401 = arith.mulf %1, %400 : vector<2x8x32xf32>
    %cst_152 = arith.constant dense<0.000000e+00> : vector<2x8xf32>
    %402 = vector.multi_reduction <add>, %401, %cst_152 [2] : vector<2x8x32xf32> to vector<2x8xf32>
    %cst_153 = arith.constant dense<0xFF800000> : vector<2xf32>
    %403 = vector.multi_reduction <maximumf>, %402, %cst_153 [1] : vector<2x8xf32> to vector<2xf32>
    %404 = vector.shape_cast %403 : vector<2xf32> to vector<2x1xf32>
    %405 = vector.broadcast %404 : vector<2x1xf32> to vector<2x8xf32>
    %406 = arith.subf %402, %405 : vector<2x8xf32>
    %407 = math.exp %406 : vector<2x8xf32>
    %cst_154 = arith.constant dense<0.000000e+00> : vector<2xf32>
    %408 = vector.multi_reduction <add>, %407, %cst_154 [1] : vector<2x8xf32> to vector<2xf32>
    %409 = vector.shape_cast %408 : vector<2xf32> to vector<2x1xf32>
    %410 = tpu.reciprocal %409 {approx = true} : vector<2x1xf32> -> vector<2x1xf32>
    %411 = vector.broadcast %410 : vector<2x1xf32> to vector<2x8xf32>
    %412 = arith.mulf %407, %411 : vector<2x8xf32>
    %413 = vector.shape_cast %412 : vector<2x8xf32> to vector<2x8x1xf32>
    %414 = vector.broadcast %413 : vector<2x8x1xf32> to vector<2x8x32xf32>
    %415 = arith.mulf %414, %1 : vector<2x8x32xf32>
    %cst_155 = arith.constant dense<0.000000e+00> : vector<2x32xf32>
    %416 = vector.multi_reduction <add>, %415, %cst_155 [1] : vector<2x8x32xf32> to vector<2x32xf32>
    %cst_156 = arith.constant dense<0.000000e+00> : vector<2x32xf32>
    %417 = tpu.matmul %398, %26, %cst_156 {dimension_numbers = #tpu.dot_dimension_numbers<[1], [0], [0], [1], [0, 0, 1, 1], [], []>} : vector<2x32xf32>, vector<32x32xf32>, vector<2x32xf32> -> vector<2x32xf32>
    %cst_157 = arith.constant dense<0.000000e+00> : vector<2x32xf32>
    %418 = tpu.matmul %416, %27, %cst_157 {dimension_numbers = #tpu.dot_dimension_numbers<[1], [0], [0], [1], [0, 0, 1, 1], [], []>} : vector<2x32xf32>, vector<32x32xf32>, vector<2x32xf32> -> vector<2x32xf32>
    %419 = arith.addf %417, %418 : vector<2x32xf32>
    %420 = math.tanh %419 : vector<2x32xf32>
    %cst_158 = arith.constant dense<0.000000e+00> : vector<2x16xf32>
    %421 = tpu.matmul %420, %28, %cst_158 {dimension_numbers = #tpu.dot_dimension_numbers<[1], [0], [0], [1], [0, 0, 1, 1], [], []>} : vector<2x32xf32>, vector<32x16xf32>, vector<2x16xf32> -> vector<2x16xf32>
    %422 = vector.broadcast %29 : vector<1x16xf32> to vector<2x16xf32>
    %423 = arith.addf %421, %422 : vector<2x16xf32>
    %cst_159 = arith.constant dense<0xFF800000> : vector<2xf32>
    %424 = vector.multi_reduction <maximumf>, %423, %cst_159 [1] : vector<2x16xf32> to vector<2xf32>
    %425 = vector.shape_cast %424 : vector<2xf32> to vector<2x1xf32>
    %426 = vector.broadcast %425 : vector<2x1xf32> to vector<2x16xf32>
    %427 = arith.subf %423, %426 : vector<2x16xf32>
    %428 = math.exp %427 : vector<2x16xf32>
    %cst_160 = arith.constant dense<0.000000e+00> : vector<2xf32>
    %429 = vector.multi_reduction <add>, %428, %cst_160 [1] : vector<2x16xf32> to vector<2xf32>
    %430 = vector.shape_cast %429 : vector<2xf32> to vector<2x1xf32>
    %431 = math.log %430 : vector<2x1xf32>
    %432 = arith.addf %425, %431 : vector<2x1xf32>
    %433 = vector.broadcast %432 : vector<2x1xf32> to vector<2x16xf32>
    %434 = arith.subf %423, %433 : vector<2x16xf32>
    %435 = vector.shape_cast %434 : vector<2x16xf32> to vector<2x1x16xf32>
    %c0_161 = arith.constant 0 : index
    %c4 = arith.constant 4 : index
    %c0_162 = arith.constant 0 : index
    %436 = vector.load %arg11[%c0_161, %c4, %c0_162] : memref<2x8x16xf32, #tpu.memory_space<vmem>>, vector<2x1x16xf32>
    tpu.vector_store %arg11[%c0_161, %c4, %c0_162], %435 {strides = array<i32>} : memref<2x8x16xf32, #tpu.memory_space<vmem>>, vector<2x1x16xf32>,
    %437 = vector.extract_strided_slice %0 {offsets = [0, 5, 0], sizes = [2, 1, 16], strides = [1, 1, 1]} : vector<2x8x16xf32> to vector<2x1x16xf32>
    %438 = vector.shape_cast %437 : vector<2x1x16xf32> to vector<2x16xf32>
    %cst_163 = arith.constant dense<0.000000e+00> : vector<2x32xf32>
    %439 = tpu.matmul %438, %3, %cst_163 {dimension_numbers = #tpu.dot_dimension_numbers<[1], [0], [0], [1], [0, 0, 1, 1], [], []>} : vector<2x16xf32>, vector<16x32xf32>, vector<2x32xf32> -> vector<2x32xf32>
    %cst_164 = arith.constant dense<0.000000e+00> : vector<2x32xf32>
    %440 = tpu.matmul %398, %11, %cst_164 {dimension_numbers = #tpu.dot_dimension_numbers<[1], [0], [0], [1], [0, 0, 1, 1], [], []>} : vector<2x32xf32>, vector<32x32xf32>, vector<2x32xf32> -> vector<2x32xf32>
    %441 = arith.addf %439, %440 : vector<2x32xf32>
    %442 = vector.broadcast %19 : vector<1x32xf32> to vector<2x32xf32>
    %443 = arith.addf %441, %442 : vector<2x32xf32>
    %cst_165 = arith.constant dense<0.000000e+00> : vector<2x32xf32>
    %444 = tpu.matmul %438, %5, %cst_165 {dimension_numbers = #tpu.dot_dimension_numbers<[1], [0], [0], [1], [0, 0, 1, 1], [], []>} : vector<2x16xf32>, vector<16x32xf32>, vector<2x32xf32> -> vector<2x32xf32>
    %cst_166 = arith.constant dense<0.000000e+00> : vector<2x32xf32>
    %445 = tpu.matmul %398, %13, %cst_166 {dimension_numbers = #tpu.dot_dimension_numbers<[1], [0], [0], [1], [0, 0, 1, 1], [], []>} : vector<2x32xf32>, vector<32x32xf32>, vector<2x32xf32> -> vector<2x32xf32>
    %446 = arith.addf %444, %445 : vector<2x32xf32>
    %447 = vector.broadcast %21 : vector<1x32xf32> to vector<2x32xf32>
    %448 = arith.addf %446, %447 : vector<2x32xf32>
    %cst_167 = arith.constant dense<0.000000e+00> : vector<2x32xf32>
    %449 = tpu.matmul %438, %7, %cst_167 {dimension_numbers = #tpu.dot_dimension_numbers<[1], [0], [0], [1], [0, 0, 1, 1], [], []>} : vector<2x16xf32>, vector<16x32xf32>, vector<2x32xf32> -> vector<2x32xf32>
    %cst_168 = arith.constant dense<0.000000e+00> : vector<2x32xf32>
    %450 = tpu.matmul %398, %15, %cst_168 {dimension_numbers = #tpu.dot_dimension_numbers<[1], [0], [0], [1], [0, 0, 1, 1], [], []>} : vector<2x32xf32>, vector<32x32xf32>, vector<2x32xf32> -> vector<2x32xf32>
    %451 = arith.addf %449, %450 : vector<2x32xf32>
    %452 = vector.broadcast %23 : vector<1x32xf32> to vector<2x32xf32>
    %453 = arith.addf %451, %452 : vector<2x32xf32>
    %cst_169 = arith.constant dense<0.000000e+00> : vector<2x32xf32>
    %454 = tpu.matmul %438, %9, %cst_169 {dimension_numbers = #tpu.dot_dimension_numbers<[1], [0], [0], [1], [0, 0, 1, 1], [], []>} : vector<2x16xf32>, vector<16x32xf32>, vector<2x32xf32> -> vector<2x32xf32>
    %cst_170 = arith.constant dense<0.000000e+00> : vector<2x32xf32>
    %455 = tpu.matmul %398, %17, %cst_170 {dimension_numbers = #tpu.dot_dimension_numbers<[1], [0], [0], [1], [0, 0, 1, 1], [], []>} : vector<2x32xf32>, vector<32x32xf32>, vector<2x32xf32> -> vector<2x32xf32>
    %456 = arith.addf %454, %455 : vector<2x32xf32>
    %457 = vector.broadcast %25 : vector<1x32xf32> to vector<2x32xf32>
    %458 = arith.addf %456, %457 : vector<2x32xf32>
    %459 = arith.negf %443 : vector<2x32xf32>
    %460 = math.exp %459 : vector<2x32xf32>
    %cst_171 = arith.constant 1.000000e+00 : f32
    %461 = vector.broadcast %cst_171 : f32 to vector<2x32xf32>
    %462 = arith.addf %461, %460 : vector<2x32xf32>
    %463 = arith.divf %461, %462 : vector<2x32xf32>
    %464 = arith.negf %448 : vector<2x32xf32>
    %465 = math.exp %464 : vector<2x32xf32>
    %cst_172 = arith.constant 1.000000e+00 : f32
    %466 = vector.broadcast %cst_172 : f32 to vector<2x32xf32>
    %467 = arith.addf %466, %465 : vector<2x32xf32>
    %468 = arith.divf %466, %467 : vector<2x32xf32>
    %469 = math.tanh %453 : vector<2x32xf32>
    %470 = arith.negf %458 : vector<2x32xf32>
    %471 = math.exp %470 : vector<2x32xf32>
    %cst_173 = arith.constant 1.000000e+00 : f32
    %472 = vector.broadcast %cst_173 : f32 to vector<2x32xf32>
    %473 = arith.addf %472, %471 : vector<2x32xf32>
    %474 = arith.divf %472, %473 : vector<2x32xf32>
    %475 = arith.mulf %468, %396 : vector<2x32xf32>
    %476 = arith.mulf %463, %469 : vector<2x32xf32>
    %477 = arith.addf %475, %476 : vector<2x32xf32>
    %478 = math.tanh %477 : vector<2x32xf32>
    %479 = arith.mulf %474, %478 : vector<2x32xf32>
    %480 = vector.shape_cast %479 : vector<2x32xf32> to vector<2x1x32xf32>
    %481 = vector.broadcast %480 : vector<2x1x32xf32> to vector<2x8x32xf32>
    %482 = arith.mulf %1, %481 : vector<2x8x32xf32>
    %cst_174 = arith.constant dense<0.000000e+00> : vector<2x8xf32>
    %483 = vector.multi_reduction <add>, %482, %cst_174 [2] : vector<2x8x32xf32> to vector<2x8xf32>
    %cst_175 = arith.constant dense<0xFF800000> : vector<2xf32>
    %484 = vector.multi_reduction <maximumf>, %483, %cst_175 [1] : vector<2x8xf32> to vector<2xf32>
    %485 = vector.shape_cast %484 : vector<2xf32> to vector<2x1xf32>
    %486 = vector.broadcast %485 : vector<2x1xf32> to vector<2x8xf32>
    %487 = arith.subf %483, %486 : vector<2x8xf32>
    %488 = math.exp %487 : vector<2x8xf32>
    %cst_176 = arith.constant dense<0.000000e+00> : vector<2xf32>
    %489 = vector.multi_reduction <add>, %488, %cst_176 [1] : vector<2x8xf32> to vector<2xf32>
    %490 = vector.shape_cast %489 : vector<2xf32> to vector<2x1xf32>
    %491 = tpu.reciprocal %490 {approx = true} : vector<2x1xf32> -> vector<2x1xf32>
    %492 = vector.broadcast %491 : vector<2x1xf32> to vector<2x8xf32>
    %493 = arith.mulf %488, %492 : vector<2x8xf32>
    %494 = vector.shape_cast %493 : vector<2x8xf32> to vector<2x8x1xf32>
    %495 = vector.broadcast %494 : vector<2x8x1xf32> to vector<2x8x32xf32>
    %496 = arith.mulf %495, %1 : vector<2x8x32xf32>
    %cst_177 = arith.constant dense<0.000000e+00> : vector<2x32xf32>
    %497 = vector.multi_reduction <add>, %496, %cst_177 [1] : vector<2x8x32xf32> to vector<2x32xf32>
    %cst_178 = arith.constant dense<0.000000e+00> : vector<2x32xf32>
    %498 = tpu.matmul %479, %26, %cst_178 {dimension_numbers = #tpu.dot_dimension_numbers<[1], [0], [0], [1], [0, 0, 1, 1], [], []>} : vector<2x32xf32>, vector<32x32xf32>, vector<2x32xf32> -> vector<2x32xf32>
    %cst_179 = arith.constant dense<0.000000e+00> : vector<2x32xf32>
    %499 = tpu.matmul %497, %27, %cst_179 {dimension_numbers = #tpu.dot_dimension_numbers<[1], [0], [0], [1], [0, 0, 1, 1], [], []>} : vector<2x32xf32>, vector<32x32xf32>, vector<2x32xf32> -> vector<2x32xf32>
    %500 = arith.addf %498, %499 : vector<2x32xf32>
    %501 = math.tanh %500 : vector<2x32xf32>
    %cst_180 = arith.constant dense<0.000000e+00> : vector<2x16xf32>
    %502 = tpu.matmul %501, %28, %cst_180 {dimension_numbers = #tpu.dot_dimension_numbers<[1], [0], [0], [1], [0, 0, 1, 1], [], []>} : vector<2x32xf32>, vector<32x16xf32>, vector<2x16xf32> -> vector<2x16xf32>
    %503 = vector.broadcast %29 : vector<1x16xf32> to vector<2x16xf32>
    %504 = arith.addf %502, %503 : vector<2x16xf32>
    %cst_181 = arith.constant dense<0xFF800000> : vector<2xf32>
    %505 = vector.multi_reduction <maximumf>, %504, %cst_181 [1] : vector<2x16xf32> to vector<2xf32>
    %506 = vector.shape_cast %505 : vector<2xf32> to vector<2x1xf32>
    %507 = vector.broadcast %506 : vector<2x1xf32> to vector<2x16xf32>
    %508 = arith.subf %504, %507 : vector<2x16xf32>
    %509 = math.exp %508 : vector<2x16xf32>
    %cst_182 = arith.constant dense<0.000000e+00> : vector<2xf32>
    %510 = vector.multi_reduction <add>, %509, %cst_182 [1] : vector<2x16xf32> to vector<2xf32>
    %511 = vector.shape_cast %510 : vector<2xf32> to vector<2x1xf32>
    %512 = math.log %511 : vector<2x1xf32>
    %513 = arith.addf %506, %512 : vector<2x1xf32>
    %514 = vector.broadcast %513 : vector<2x1xf32> to vector<2x16xf32>
    %515 = arith.subf %504, %514 : vector<2x16xf32>
    %516 = vector.shape_cast %515 : vector<2x16xf32> to vector<2x1x16xf32>
    %c0_183 = arith.constant 0 : index
    %c5 = arith.constant 5 : index
    %c0_184 = arith.constant 0 : index
    %517 = vector.load %arg11[%c0_183, %c5, %c0_184] : memref<2x8x16xf32, #tpu.memory_space<vmem>>, vector<2x1x16xf32>
    tpu.vector_store %arg11[%c0_183, %c5, %c0_184], %516 {strides = array<i32>} : memref<2x8x16xf32, #tpu.memory_space<vmem>>, vector<2x1x16xf32>,
    %518 = vector.extract_strided_slice %0 {offsets = [0, 6, 0], sizes = [2, 1, 16], strides = [1, 1, 1]} : vector<2x8x16xf32> to vector<2x1x16xf32>
    %519 = vector.shape_cast %518 : vector<2x1x16xf32> to vector<2x16xf32>
    %cst_185 = arith.constant dense<0.000000e+00> : vector<2x32xf32>
    %520 = tpu.matmul %519, %3, %cst_185 {dimension_numbers = #tpu.dot_dimension_numbers<[1], [0], [0], [1], [0, 0, 1, 1], [], []>} : vector<2x16xf32>, vector<16x32xf32>, vector<2x32xf32> -> vector<2x32xf32>
    %cst_186 = arith.constant dense<0.000000e+00> : vector<2x32xf32>
    %521 = tpu.matmul %479, %11, %cst_186 {dimension_numbers = #tpu.dot_dimension_numbers<[1], [0], [0], [1], [0, 0, 1, 1], [], []>} : vector<2x32xf32>, vector<32x32xf32>, vector<2x32xf32> -> vector<2x32xf32>
    %522 = arith.addf %520, %521 : vector<2x32xf32>
    %523 = vector.broadcast %19 : vector<1x32xf32> to vector<2x32xf32>
    %524 = arith.addf %522, %523 : vector<2x32xf32>
    %cst_187 = arith.constant dense<0.000000e+00> : vector<2x32xf32>
    %525 = tpu.matmul %519, %5, %cst_187 {dimension_numbers = #tpu.dot_dimension_numbers<[1], [0], [0], [1], [0, 0, 1, 1], [], []>} : vector<2x16xf32>, vector<16x32xf32>, vector<2x32xf32> -> vector<2x32xf32>
    %cst_188 = arith.constant dense<0.000000e+00> : vector<2x32xf32>
    %526 = tpu.matmul %479, %13, %cst_188 {dimension_numbers = #tpu.dot_dimension_numbers<[1], [0], [0], [1], [0, 0, 1, 1], [], []>} : vector<2x32xf32>, vector<32x32xf32>, vector<2x32xf32> -> vector<2x32xf32>
    %527 = arith.addf %525, %526 : vector<2x32xf32>
    %528 = vector.broadcast %21 : vector<1x32xf32> to vector<2x32xf32>
    %529 = arith.addf %527, %528 : vector<2x32xf32>
    %cst_189 = arith.constant dense<0.000000e+00> : vector<2x32xf32>
    %530 = tpu.matmul %519, %7, %cst_189 {dimension_numbers = #tpu.dot_dimension_numbers<[1], [0], [0], [1], [0, 0, 1, 1], [], []>} : vector<2x16xf32>, vector<16x32xf32>, vector<2x32xf32> -> vector<2x32xf32>
    %cst_190 = arith.constant dense<0.000000e+00> : vector<2x32xf32>
    %531 = tpu.matmul %479, %15, %cst_190 {dimension_numbers = #tpu.dot_dimension_numbers<[1], [0], [0], [1], [0, 0, 1, 1], [], []>} : vector<2x32xf32>, vector<32x32xf32>, vector<2x32xf32> -> vector<2x32xf32>
    %532 = arith.addf %530, %531 : vector<2x32xf32>
    %533 = vector.broadcast %23 : vector<1x32xf32> to vector<2x32xf32>
    %534 = arith.addf %532, %533 : vector<2x32xf32>
    %cst_191 = arith.constant dense<0.000000e+00> : vector<2x32xf32>
    %535 = tpu.matmul %519, %9, %cst_191 {dimension_numbers = #tpu.dot_dimension_numbers<[1], [0], [0], [1], [0, 0, 1, 1], [], []>} : vector<2x16xf32>, vector<16x32xf32>, vector<2x32xf32> -> vector<2x32xf32>
    %cst_192 = arith.constant dense<0.000000e+00> : vector<2x32xf32>
    %536 = tpu.matmul %479, %17, %cst_192 {dimension_numbers = #tpu.dot_dimension_numbers<[1], [0], [0], [1], [0, 0, 1, 1], [], []>} : vector<2x32xf32>, vector<32x32xf32>, vector<2x32xf32> -> vector<2x32xf32>
    %537 = arith.addf %535, %536 : vector<2x32xf32>
    %538 = vector.broadcast %25 : vector<1x32xf32> to vector<2x32xf32>
    %539 = arith.addf %537, %538 : vector<2x32xf32>
    %540 = arith.negf %524 : vector<2x32xf32>
    %541 = math.exp %540 : vector<2x32xf32>
    %cst_193 = arith.constant 1.000000e+00 : f32
    %542 = vector.broadcast %cst_193 : f32 to vector<2x32xf32>
    %543 = arith.addf %542, %541 : vector<2x32xf32>
    %544 = arith.divf %542, %543 : vector<2x32xf32>
    %545 = arith.negf %529 : vector<2x32xf32>
    %546 = math.exp %545 : vector<2x32xf32>
    %cst_194 = arith.constant 1.000000e+00 : f32
    %547 = vector.broadcast %cst_194 : f32 to vector<2x32xf32>
    %548 = arith.addf %547, %546 : vector<2x32xf32>
    %549 = arith.divf %547, %548 : vector<2x32xf32>
    %550 = math.tanh %534 : vector<2x32xf32>
    %551 = arith.negf %539 : vector<2x32xf32>
    %552 = math.exp %551 : vector<2x32xf32>
    %cst_195 = arith.constant 1.000000e+00 : f32
    %553 = vector.broadcast %cst_195 : f32 to vector<2x32xf32>
    %554 = arith.addf %553, %552 : vector<2x32xf32>
    %555 = arith.divf %553, %554 : vector<2x32xf32>
    %556 = arith.mulf %549, %477 : vector<2x32xf32>
    %557 = arith.mulf %544, %550 : vector<2x32xf32>
    %558 = arith.addf %556, %557 : vector<2x32xf32>
    %559 = math.tanh %558 : vector<2x32xf32>
    %560 = arith.mulf %555, %559 : vector<2x32xf32>
    %561 = vector.shape_cast %560 : vector<2x32xf32> to vector<2x1x32xf32>
    %562 = vector.broadcast %561 : vector<2x1x32xf32> to vector<2x8x32xf32>
    %563 = arith.mulf %1, %562 : vector<2x8x32xf32>
    %cst_196 = arith.constant dense<0.000000e+00> : vector<2x8xf32>
    %564 = vector.multi_reduction <add>, %563, %cst_196 [2] : vector<2x8x32xf32> to vector<2x8xf32>
    %cst_197 = arith.constant dense<0xFF800000> : vector<2xf32>
    %565 = vector.multi_reduction <maximumf>, %564, %cst_197 [1] : vector<2x8xf32> to vector<2xf32>
    %566 = vector.shape_cast %565 : vector<2xf32> to vector<2x1xf32>
    %567 = vector.broadcast %566 : vector<2x1xf32> to vector<2x8xf32>
    %568 = arith.subf %564, %567 : vector<2x8xf32>
    %569 = math.exp %568 : vector<2x8xf32>
    %cst_198 = arith.constant dense<0.000000e+00> : vector<2xf32>
    %570 = vector.multi_reduction <add>, %569, %cst_198 [1] : vector<2x8xf32> to vector<2xf32>
    %571 = vector.shape_cast %570 : vector<2xf32> to vector<2x1xf32>
    %572 = tpu.reciprocal %571 {approx = true} : vector<2x1xf32> -> vector<2x1xf32>
    %573 = vector.broadcast %572 : vector<2x1xf32> to vector<2x8xf32>
    %574 = arith.mulf %569, %573 : vector<2x8xf32>
    %575 = vector.shape_cast %574 : vector<2x8xf32> to vector<2x8x1xf32>
    %576 = vector.broadcast %575 : vector<2x8x1xf32> to vector<2x8x32xf32>
    %577 = arith.mulf %576, %1 : vector<2x8x32xf32>
    %cst_199 = arith.constant dense<0.000000e+00> : vector<2x32xf32>
    %578 = vector.multi_reduction <add>, %577, %cst_199 [1] : vector<2x8x32xf32> to vector<2x32xf32>
    %cst_200 = arith.constant dense<0.000000e+00> : vector<2x32xf32>
    %579 = tpu.matmul %560, %26, %cst_200 {dimension_numbers = #tpu.dot_dimension_numbers<[1], [0], [0], [1], [0, 0, 1, 1], [], []>} : vector<2x32xf32>, vector<32x32xf32>, vector<2x32xf32> -> vector<2x32xf32>
    %cst_201 = arith.constant dense<0.000000e+00> : vector<2x32xf32>
    %580 = tpu.matmul %578, %27, %cst_201 {dimension_numbers = #tpu.dot_dimension_numbers<[1], [0], [0], [1], [0, 0, 1, 1], [], []>} : vector<2x32xf32>, vector<32x32xf32>, vector<2x32xf32> -> vector<2x32xf32>
    %581 = arith.addf %579, %580 : vector<2x32xf32>
    %582 = math.tanh %581 : vector<2x32xf32>
    %cst_202 = arith.constant dense<0.000000e+00> : vector<2x16xf32>
    %583 = tpu.matmul %582, %28, %cst_202 {dimension_numbers = #tpu.dot_dimension_numbers<[1], [0], [0], [1], [0, 0, 1, 1], [], []>} : vector<2x32xf32>, vector<32x16xf32>, vector<2x16xf32> -> vector<2x16xf32>
    %584 = vector.broadcast %29 : vector<1x16xf32> to vector<2x16xf32>
    %585 = arith.addf %583, %584 : vector<2x16xf32>
    %cst_203 = arith.constant dense<0xFF800000> : vector<2xf32>
    %586 = vector.multi_reduction <maximumf>, %585, %cst_203 [1] : vector<2x16xf32> to vector<2xf32>
    %587 = vector.shape_cast %586 : vector<2xf32> to vector<2x1xf32>
    %588 = vector.broadcast %587 : vector<2x1xf32> to vector<2x16xf32>
    %589 = arith.subf %585, %588 : vector<2x16xf32>
    %590 = math.exp %589 : vector<2x16xf32>
    %cst_204 = arith.constant dense<0.000000e+00> : vector<2xf32>
    %591 = vector.multi_reduction <add>, %590, %cst_204 [1] : vector<2x16xf32> to vector<2xf32>
    %592 = vector.shape_cast %591 : vector<2xf32> to vector<2x1xf32>
    %593 = math.log %592 : vector<2x1xf32>
    %594 = arith.addf %587, %593 : vector<2x1xf32>
    %595 = vector.broadcast %594 : vector<2x1xf32> to vector<2x16xf32>
    %596 = arith.subf %585, %595 : vector<2x16xf32>
    %597 = vector.shape_cast %596 : vector<2x16xf32> to vector<2x1x16xf32>
    %c0_205 = arith.constant 0 : index
    %c6 = arith.constant 6 : index
    %c0_206 = arith.constant 0 : index
    %598 = vector.load %arg11[%c0_205, %c6, %c0_206] : memref<2x8x16xf32, #tpu.memory_space<vmem>>, vector<2x1x16xf32>
    tpu.vector_store %arg11[%c0_205, %c6, %c0_206], %597 {strides = array<i32>} : memref<2x8x16xf32, #tpu.memory_space<vmem>>, vector<2x1x16xf32>,
    %599 = vector.extract_strided_slice %0 {offsets = [0, 7, 0], sizes = [2, 1, 16], strides = [1, 1, 1]} : vector<2x8x16xf32> to vector<2x1x16xf32>
    %600 = vector.shape_cast %599 : vector<2x1x16xf32> to vector<2x16xf32>
    %cst_207 = arith.constant dense<0.000000e+00> : vector<2x32xf32>
    %601 = tpu.matmul %600, %3, %cst_207 {dimension_numbers = #tpu.dot_dimension_numbers<[1], [0], [0], [1], [0, 0, 1, 1], [], []>} : vector<2x16xf32>, vector<16x32xf32>, vector<2x32xf32> -> vector<2x32xf32>
    %cst_208 = arith.constant dense<0.000000e+00> : vector<2x32xf32>
    %602 = tpu.matmul %560, %11, %cst_208 {dimension_numbers = #tpu.dot_dimension_numbers<[1], [0], [0], [1], [0, 0, 1, 1], [], []>} : vector<2x32xf32>, vector<32x32xf32>, vector<2x32xf32> -> vector<2x32xf32>
    %603 = arith.addf %601, %602 : vector<2x32xf32>
    %604 = vector.broadcast %19 : vector<1x32xf32> to vector<2x32xf32>
    %605 = arith.addf %603, %604 : vector<2x32xf32>
    %cst_209 = arith.constant dense<0.000000e+00> : vector<2x32xf32>
    %606 = tpu.matmul %600, %5, %cst_209 {dimension_numbers = #tpu.dot_dimension_numbers<[1], [0], [0], [1], [0, 0, 1, 1], [], []>} : vector<2x16xf32>, vector<16x32xf32>, vector<2x32xf32> -> vector<2x32xf32>
    %cst_210 = arith.constant dense<0.000000e+00> : vector<2x32xf32>
    %607 = tpu.matmul %560, %13, %cst_210 {dimension_numbers = #tpu.dot_dimension_numbers<[1], [0], [0], [1], [0, 0, 1, 1], [], []>} : vector<2x32xf32>, vector<32x32xf32>, vector<2x32xf32> -> vector<2x32xf32>
    %608 = arith.addf %606, %607 : vector<2x32xf32>
    %609 = vector.broadcast %21 : vector<1x32xf32> to vector<2x32xf32>
    %610 = arith.addf %608, %609 : vector<2x32xf32>
    %cst_211 = arith.constant dense<0.000000e+00> : vector<2x32xf32>
    %611 = tpu.matmul %600, %7, %cst_211 {dimension_numbers = #tpu.dot_dimension_numbers<[1], [0], [0], [1], [0, 0, 1, 1], [], []>} : vector<2x16xf32>, vector<16x32xf32>, vector<2x32xf32> -> vector<2x32xf32>
    %cst_212 = arith.constant dense<0.000000e+00> : vector<2x32xf32>
    %612 = tpu.matmul %560, %15, %cst_212 {dimension_numbers = #tpu.dot_dimension_numbers<[1], [0], [0], [1], [0, 0, 1, 1], [], []>} : vector<2x32xf32>, vector<32x32xf32>, vector<2x32xf32> -> vector<2x32xf32>
    %613 = arith.addf %611, %612 : vector<2x32xf32>
    %614 = vector.broadcast %23 : vector<1x32xf32> to vector<2x32xf32>
    %615 = arith.addf %613, %614 : vector<2x32xf32>
    %cst_213 = arith.constant dense<0.000000e+00> : vector<2x32xf32>
    %616 = tpu.matmul %600, %9, %cst_213 {dimension_numbers = #tpu.dot_dimension_numbers<[1], [0], [0], [1], [0, 0, 1, 1], [], []>} : vector<2x16xf32>, vector<16x32xf32>, vector<2x32xf32> -> vector<2x32xf32>
    %cst_214 = arith.constant dense<0.000000e+00> : vector<2x32xf32>
    %617 = tpu.matmul %560, %17, %cst_214 {dimension_numbers = #tpu.dot_dimension_numbers<[1], [0], [0], [1], [0, 0, 1, 1], [], []>} : vector<2x32xf32>, vector<32x32xf32>, vector<2x32xf32> -> vector<2x32xf32>
    %618 = arith.addf %616, %617 : vector<2x32xf32>
    %619 = vector.broadcast %25 : vector<1x32xf32> to vector<2x32xf32>
    %620 = arith.addf %618, %619 : vector<2x32xf32>
    %621 = arith.negf %605 : vector<2x32xf32>
    %622 = math.exp %621 : vector<2x32xf32>
    %cst_215 = arith.constant 1.000000e+00 : f32
    %623 = vector.broadcast %cst_215 : f32 to vector<2x32xf32>
    %624 = arith.addf %623, %622 : vector<2x32xf32>
    %625 = arith.divf %623, %624 : vector<2x32xf32>
    %626 = arith.negf %610 : vector<2x32xf32>
    %627 = math.exp %626 : vector<2x32xf32>
    %cst_216 = arith.constant 1.000000e+00 : f32
    %628 = vector.broadcast %cst_216 : f32 to vector<2x32xf32>
    %629 = arith.addf %628, %627 : vector<2x32xf32>
    %630 = arith.divf %628, %629 : vector<2x32xf32>
    %631 = math.tanh %615 : vector<2x32xf32>
    %632 = arith.negf %620 : vector<2x32xf32>
    %633 = math.exp %632 : vector<2x32xf32>
    %cst_217 = arith.constant 1.000000e+00 : f32
    %634 = vector.broadcast %cst_217 : f32 to vector<2x32xf32>
    %635 = arith.addf %634, %633 : vector<2x32xf32>
    %636 = arith.divf %634, %635 : vector<2x32xf32>
    %637 = arith.mulf %630, %558 : vector<2x32xf32>
    %638 = arith.mulf %625, %631 : vector<2x32xf32>
    %639 = arith.addf %637, %638 : vector<2x32xf32>
    %640 = math.tanh %639 : vector<2x32xf32>
    %641 = arith.mulf %636, %640 : vector<2x32xf32>
    %642 = vector.shape_cast %641 : vector<2x32xf32> to vector<2x1x32xf32>
    %643 = vector.broadcast %642 : vector<2x1x32xf32> to vector<2x8x32xf32>
    %644 = arith.mulf %1, %643 : vector<2x8x32xf32>
    %cst_218 = arith.constant dense<0.000000e+00> : vector<2x8xf32>
    %645 = vector.multi_reduction <add>, %644, %cst_218 [2] : vector<2x8x32xf32> to vector<2x8xf32>
    %cst_219 = arith.constant dense<0xFF800000> : vector<2xf32>
    %646 = vector.multi_reduction <maximumf>, %645, %cst_219 [1] : vector<2x8xf32> to vector<2xf32>
    %647 = vector.shape_cast %646 : vector<2xf32> to vector<2x1xf32>
    %648 = vector.broadcast %647 : vector<2x1xf32> to vector<2x8xf32>
    %649 = arith.subf %645, %648 : vector<2x8xf32>
    %650 = math.exp %649 : vector<2x8xf32>
    %cst_220 = arith.constant dense<0.000000e+00> : vector<2xf32>
    %651 = vector.multi_reduction <add>, %650, %cst_220 [1] : vector<2x8xf32> to vector<2xf32>
    %652 = vector.shape_cast %651 : vector<2xf32> to vector<2x1xf32>
    %653 = tpu.reciprocal %652 {approx = true} : vector<2x1xf32> -> vector<2x1xf32>
    %654 = vector.broadcast %653 : vector<2x1xf32> to vector<2x8xf32>
    %655 = arith.mulf %650, %654 : vector<2x8xf32>
    %656 = vector.shape_cast %655 : vector<2x8xf32> to vector<2x8x1xf32>
    %657 = vector.broadcast %656 : vector<2x8x1xf32> to vector<2x8x32xf32>
    %658 = arith.mulf %657, %1 : vector<2x8x32xf32>
    %cst_221 = arith.constant dense<0.000000e+00> : vector<2x32xf32>
    %659 = vector.multi_reduction <add>, %658, %cst_221 [1] : vector<2x8x32xf32> to vector<2x32xf32>
    %cst_222 = arith.constant dense<0.000000e+00> : vector<2x32xf32>
    %660 = tpu.matmul %641, %26, %cst_222 {dimension_numbers = #tpu.dot_dimension_numbers<[1], [0], [0], [1], [0, 0, 1, 1], [], []>} : vector<2x32xf32>, vector<32x32xf32>, vector<2x32xf32> -> vector<2x32xf32>
    %cst_223 = arith.constant dense<0.000000e+00> : vector<2x32xf32>
    %661 = tpu.matmul %659, %27, %cst_223 {dimension_numbers = #tpu.dot_dimension_numbers<[1], [0], [0], [1], [0, 0, 1, 1], [], []>} : vector<2x32xf32>, vector<32x32xf32>, vector<2x32xf32> -> vector<2x32xf32>
    %662 = arith.addf %660, %661 : vector<2x32xf32>
    %663 = math.tanh %662 : vector<2x32xf32>
    %cst_224 = arith.constant dense<0.000000e+00> : vector<2x16xf32>
    %664 = tpu.matmul %663, %28, %cst_224 {dimension_numbers = #tpu.dot_dimension_numbers<[1], [0], [0], [1], [0, 0, 1, 1], [], []>} : vector<2x32xf32>, vector<32x16xf32>, vector<2x16xf32> -> vector<2x16xf32>
    %665 = vector.broadcast %29 : vector<1x16xf32> to vector<2x16xf32>
    %666 = arith.addf %664, %665 : vector<2x16xf32>
    %cst_225 = arith.constant dense<0xFF800000> : vector<2xf32>
    %667 = vector.multi_reduction <maximumf>, %666, %cst_225 [1] : vector<2x16xf32> to vector<2xf32>
    %668 = vector.shape_cast %667 : vector<2xf32> to vector<2x1xf32>
    %669 = vector.broadcast %668 : vector<2x1xf32> to vector<2x16xf32>
    %670 = arith.subf %666, %669 : vector<2x16xf32>
    %671 = math.exp %670 : vector<2x16xf32>
    %cst_226 = arith.constant dense<0.000000e+00> : vector<2xf32>
    %672 = vector.multi_reduction <add>, %671, %cst_226 [1] : vector<2x16xf32> to vector<2xf32>
    %673 = vector.shape_cast %672 : vector<2xf32> to vector<2x1xf32>
    %674 = math.log %673 : vector<2x1xf32>
    %675 = arith.addf %668, %674 : vector<2x1xf32>
    %676 = vector.broadcast %675 : vector<2x1xf32> to vector<2x16xf32>
    %677 = arith.subf %666, %676 : vector<2x16xf32>
    %678 = vector.shape_cast %677 : vector<2x16xf32> to vector<2x1x16xf32>
    %c0_227 = arith.constant 0 : index
    %c7 = arith.constant 7 : index
    %c0_228 = arith.constant 0 : index
    %679 = vector.load %arg11[%c0_227, %c7, %c0_228] : memref<2x8x16xf32, #tpu.memory_space<vmem>>, vector<2x1x16xf32>
    tpu.vector_store %arg11[%c0_227, %c7, %c0_228], %678 {strides = array<i32>} : memref<2x8x16xf32, #tpu.memory_space<vmem>>, vector<2x1x16xf32>,
    %c0_229 = arith.constant 0 : index
    %c0_230 = arith.constant 0 : index
    %680 = vector.load %arg12[%c0_229, %c0_230] : memref<2x32xf32, #tpu.memory_space<vmem>>, vector<2x32xf32>
    tpu.vector_store %arg12[%c0_229, %c0_230], %641 {strides = array<i32>} : memref<2x32xf32, #tpu.memory_space<vmem>>, vector<2x32xf32>,
    %c0_231 = arith.constant 0 : index
    %c0_232 = arith.constant 0 : index
    %681 = vector.load %arg13[%c0_231, %c0_232] : memref<2x32xf32, #tpu.memory_space<vmem>>, vector<2x32xf32>
    tpu.vector_store %arg13[%c0_231, %c0_232], %639 {strides = array<i32>} : memref<2x32xf32, #tpu.memory_space<vmem>>, vector<2x32xf32>,
    return
  }
}

</mosaic_0001>

<llo_original>
// kernel: decoder_forward.1
$region0: #{decoder_forward.1}
  #allocation0 [shape = 'u32[]', space=smem, size = 0x4, offset = 0x4, fixed_abs, tag = 'smem constant byte address 0x4 - core index']
  #allocation1 [shape = 'u32[144,128]{1,0:T(1,128)}', space=vmem, size = 0x12000, scoped, tag = 'internal scratch']
  %s0 = inlined_call_operand.vmem [shape: f32[2,8,16], index: 0, kind: input, shape index: {}]
  %s1 = inlined_call_operand.vmem [shape: f32[2,32], index: 1, kind: input, shape index: {}]
  %s2 = inlined_call_operand.vmem [shape: f32[2,32], index: 2, kind: input, shape index: {}]
  %s3 = inlined_call_operand.vmem [shape: f32[2,8,32], index: 3, kind: input, shape index: {}]
  %s4 = inlined_call_operand.vmem [shape: f32[4,16,32], index: 4, kind: input, shape index: {}]
  %s5 = inlined_call_operand.vmem [shape: f32[4,32,32], index: 5, kind: input, shape index: {}]
  %s6 = inlined_call_operand.vmem [shape: f32[4,1,32], index: 6, kind: input, shape index: {}]
  %s7 = inlined_call_operand.vmem [shape: f32[32,32], index: 7, kind: input, shape index: {}]
  %s8 = inlined_call_operand.vmem [shape: f32[32,32], index: 8, kind: input, shape index: {}]
  %s9 = inlined_call_operand.vmem [shape: f32[32,16], index: 9, kind: input, shape index: {}]
  %s10 = inlined_call_operand.vmem [shape: f32[1,16], index: 10, kind: input, shape index: {}]
  %s11 = inlined_call_operand.hbm [shape: f32[2,8,16], index: 11, kind: output, shape index: {0}]
  %s12 = inlined_call_operand.hbm [shape: f32[2,32], index: 12, kind: output, shape index: {1}]
  %s13 = inlined_call_operand.hbm [shape: f32[2,32], index: 13, kind: output, shape index: {2}]
  %14 = xla_tuple %s11, %s12, %s13
  %s15 = sld [smem:[#allocation0]]
  $region70: #{decoder_forward.1} parent=0
    _
  %s17 = ssub.s32 1, %s15
  %s18 = scalar_select 0, %s17, %s15
  $region1: #{decoder_forward.1} parent=0
    #allocation2 [shape = 'u8[8192]{0}', space=vmem, size = 0x2000, scoped, tag = 'output window, operand 0, single buffered']
    #allocation3 [shape = 's32[1]{0}', space=sflag, size = 0x4, scoped, tag = 'scoped memory for decoder_forward.1']
    #allocation4 [shape = 'u8[1024]{0}', space=vmem, size = 0x400, scoped, tag = 'output window, operand 1, single buffered']
    #allocation5 [shape = 's32[1]{0}', space=sflag, size = 0x4, scoped, tag = 'scoped memory for decoder_forward.1']
    #allocation6 [shape = 'u8[1024]{0}', space=vmem, size = 0x400, scoped, tag = 'output window, operand 2, single buffered']
    %19 = vsyncpa [#allocation3], 0
    %20 = vsyncpa [#allocation5], 0
    // Predicated region
    $region2: #{decoder_forward.1} parent=1 // pred_check
      _
    $region3: #{decoder_forward.1} parent=1 // pred_check_branch
      %22 = sbr.rel (0) target = $region5
    $region4: #{decoder_forward.1} parent=1 // pred_region
      _
    $region5: #{decoder_forward.1} parent=1 // pred_fallthru
      _
    // Predicated region
    $region6: #{decoder_forward.1} parent=1 // pred_check
      _
    $region7: #{decoder_forward.1} parent=1 // pred_check_branch
      %24 = sbr.rel (0) target = $region9
    $region8: #{decoder_forward.1} parent=1 // pred_region
      _
    $region9: #{decoder_forward.1} parent=1 // pred_fallthru
      _
    // Predicated region
    $region10: #{decoder_forward.1} parent=1 // pred_check
      _
    $region11: #{decoder_forward.1} parent=1 // pred_check_branch
      %26 = sbr.rel (0) target = $region13
    $region12: #{decoder_forward.1} parent=1 // pred_region
      _
    $region13: #{decoder_forward.1} parent=1 // pred_fallthru
      _
    // Predicated region
    $region14: #{decoder_forward.1} parent=1 // pred_check
      _
    $region15: #{decoder_forward.1} parent=1 // pred_check_branch
      %28 = sbr.rel (0) target = $region17
    $region16: #{decoder_forward.1} parent=1 // pred_region
      _
    $region17: #{decoder_forward.1} parent=1 // pred_fallthru
      _
    // Predicated region
    $region18: #{decoder_forward.1} parent=1 // pred_check
      _
    $region19: #{decoder_forward.1} parent=1 // pred_check_branch
      %30 = sbr.rel (0) target = $region21
    $region20: #{decoder_forward.1} parent=1 // pred_region
      _
    $region21: #{decoder_forward.1} parent=1 // pred_fallthru
      _
    // Predicated region
    $region22: #{decoder_forward.1} parent=1 // pred_check
      _
    $region23: #{decoder_forward.1} parent=1 // pred_check_branch
      %32 = sbr.rel (0) target = $region25
    $region24: #{decoder_forward.1} parent=1 // pred_region
      _
    $region25: #{decoder_forward.1} parent=1 // pred_fallthru
      _
    // Predicated region
    $region26: #{decoder_forward.1} parent=1 // pred_check
      _
    $region27: #{decoder_forward.1} parent=1 // pred_check_branch
      %34 = sbr.rel (0) target = $region29
    $region28: #{decoder_forward.1} parent=1 // pred_region
      _
    $region29: #{decoder_forward.1} parent=1 // pred_fallthru
      _
    // Predicated region
    $region30: #{decoder_forward.1} parent=1 // pred_check
      _
    $region31: #{decoder_forward.1} parent=1 // pred_check_branch
      %36 = sbr.rel (0) target = $region33
    $region32: #{decoder_forward.1} parent=1 // pred_region
      _
    $region33: #{decoder_forward.1} parent=1 // pred_fallthru
      _
    // Predicated region
    $region34: #{decoder_forward.1} parent=1 // pred_check
      _
    $region35: #{decoder_forward.1} parent=1 // pred_check_branch
      %38 = sbr.rel (0) target = $region37
    $region36: #{decoder_forward.1} parent=1 // pred_region
      _
    $region37: #{decoder_forward.1} parent=1 // pred_fallthru
      _
    // Predicated region
    $region38: #{decoder_forward.1} parent=1 // pred_check
      _
    $region39: #{decoder_forward.1} parent=1 // pred_check_branch
      %40 = sbr.rel (0) target = $region41
    $region40: #{decoder_forward.1} parent=1 // pred_region
      _
    $region41: #{decoder_forward.1} parent=1 // pred_fallthru
      _
    // Predicated region
    $region42: #{decoder_forward.1} parent=1 // pred_check
      _
    $region43: #{decoder_forward.1} parent=1 // pred_check_branch
      %42 = sbr.rel (0) target = $region45
    $region44: #{decoder_forward.1} parent=1 // pred_region
      _
    $region45: #{decoder_forward.1} parent=1 // pred_fallthru
      _
    %v43 = vld [vmem:[%s0] sm:$0xff]
    %v44 = vld [vmem:[%s0 + $0x8] sm:$0xff]
    %v45 = vld [vmem:[%s3] sm:$0xff]
    %v46 = vld [vmem:[%s3 + $0x8] sm:$0xff]
    %v47 = vld [vmem:[%s4] sm:$0xff]
    %v48 = vld [vmem:[%s4 + $0x8] sm:$0xff]
    %s49 = scalar_lea.vmem %s4, 16
    %v50 = vld [vmem:[%s49] sm:$0xff]
    %v51 = vld [vmem:[%s49 + $0x8] sm:$0xff]
    %s52 = scalar_lea.vmem %s4, 32
    %v53 = vld [vmem:[%s52] sm:$0xff]
    %v54 = vld [vmem:[%s52 + $0x8] sm:$0xff]
    %s55 = scalar_lea.vmem %s4, 48
    %v56 = vld [vmem:[%s55] sm:$0xff]
    %v57 = vld [vmem:[%s55 + $0x8] sm:$0xff]
    %v58 = vld [vmem:[%s5] sm:$0xff]
    %v59 = vld [vmem:[%s5 + $0x8] sm:$0xff]
    %v60 = vld [vmem:[%s5 + $0x10] sm:$0xff]
    %v61 = vld [vmem:[%s5 + $0x18] sm:$0xff]
    %s62 = scalar_lea.vmem %s5, 32
    %v63 = vld [vmem:[%s62] sm:$0xff]
    %v64 = vld [vmem:[%s62 + $0x8] sm:$0xff]
    %v65 = vld [vmem:[%s62 + $0x10] sm:$0xff]
    %v66 = vld [vmem:[%s62 + $0x18] sm:$0xff]
    %s67 = scalar_lea.vmem %s5, 64
    %v68 = vld [vmem:[%s67] sm:$0xff]
    %v69 = vld [vmem:[%s67 + $0x8] sm:$0xff]
    %v70 = vld [vmem:[%s67 + $0x10] sm:$0xff]
    %v71 = vld [vmem:[%s67 + $0x18] sm:$0xff]
    %s72 = scalar_lea.vmem %s5, 96
    %v73 = vld [vmem:[%s72] sm:$0xff]
    %v74 = vld [vmem:[%s72 + $0x8] sm:$0xff]
    %v75 = vld [vmem:[%s72 + $0x10] sm:$0xff]
    %v76 = vld [vmem:[%s72 + $0x18] sm:$0xff]
    %v77 = vld [vmem:[%s6] sm:$0x1]
    %s78 = scalar_lea.vmem %s6, 1
    %v79 = vld [vmem:[%s78] sm:$0x1]
    %s80 = scalar_lea.vmem %s6, 2
    %v81 = vld [vmem:[%s80] sm:$0x1]
    %s82 = scalar_lea.vmem %s6, 3
    %v83 = vld [vmem:[%s82] sm:$0x1]
    %v84 = vld [vmem:[%s7] sm:$0xff]
    %v85 = vld [vmem:[%s7 + $0x8] sm:$0xff]
    %v86 = vld [vmem:[%s7 + $0x10] sm:$0xff]
    %v87 = vld [vmem:[%s7 + $0x18] sm:$0xff]
    %v88 = vld [vmem:[%s8] sm:$0xff]
    %v89 = vld [vmem:[%s8 + $0x8] sm:$0xff]
    %v90 = vld [vmem:[%s8 + $0x10] sm:$0xff]
    %v91 = vld [vmem:[%s8 + $0x18] sm:$0xff]
    %v92 = vld [vmem:[%s9] sm:$0xff]
    %v93 = vld [vmem:[%s9 + $0x8] sm:$0xff]
    %v94 = vld [vmem:[%s9 + $0x10] sm:$0xff]
    %v95 = vld [vmem:[%s9 + $0x18] sm:$0xff]
    %v96 = vld [vmem:[%s10] sm:$0x1]
    %v97 = vld [vmem:[%s1] sm:$0x3]
    %v98 = vld [vmem:[%s2] sm:$0x3]
    %vm99 = vcmask 261120
    %v101 = vsel %vm99, %v97, 0
    %103 = vmatprep.subr.mxu0 0.0
    %104 = vmatpush1.msra.mxu0 0.0
    %105 = vmatprep.subr.mxu0 0.0
    %106 = vmatpush1.msra.mxu0 0.0
    %107 = vmatprep.subr.mxu0 0.0
    %108 = vmatpush1.msra.mxu0 0.0
    %109 = vmatprep.subr.mxu0 0.0
    %110 = vmatpush1.msra.mxu0 0.0
    %111 = vmatprep.subr.mxu0 0.0
    %112 = vmatpush1.msra.mxu0 0.0
    %113 = vmatprep.subr.mxu0 0.0
    %114 = vmatpush1.msra.mxu0 0.0
    %115 = vmatprep.subr.mxu0 0.0
    %116 = vmatpush1.msra.mxu0 0.0
    %117 = vmatprep.subr.mxu0 0.0
    %118 = vmatpush1.msra.mxu0 0.0
    %119 = vmatprep.subr.mxu0 0.0
    %120 = vmatpush1.msra.mxu0 0.0
    %121 = vmatprep.subr.mxu0 0.0
    %122 = vmatpush1.msra.mxu0 0.0
    %123 = vmatprep.subr.mxu0 0.0
    %124 = vmatpush1.msra.mxu0 0.0
    %125 = vmatprep.subr.mxu0 0.0
    %126 = vmatpush1.msra.mxu0 0.0
    %127 = vmatprep.subr.mxu0 0.0
    %128 = vmatpush1.msra.mxu0 %v61
    %129 = vmatprep.subr.mxu0 0.0
    %130 = vmatpush1.msra.mxu0 %v60
    %131 = vmatprep.subr.mxu0 0.0
    %132 = vmatpush1.msra.mxu0 %v59
    %133 = vmatprep.subr.mxu0 0.0
    %134 = vmatpush1.msra.mxu0 %v58
    %135 = vmatprep.subr.mxu0 0.0
    %136 = vmatpush2.msra.mxu0 0.0
    %137 = vmatprep.subr.mxu0 0.0
    %138 = vmatpush2.msra.mxu0 0.0
    %139 = vmatprep.subr.mxu0 0.0
    %140 = vmatpush2.msra.mxu0 0.0
    %141 = vmatprep.subr.mxu0 0.0
    %142 = vmatpush2.msra.mxu0 0.0
    %143 = vmatprep.subr.mxu0 0.0
    %144 = vmatpush2.msra.mxu0 0.0
    %145 = vmatprep.subr.mxu0 0.0
    %146 = vmatpush2.msra.mxu0 0.0
    %147 = vmatprep.subr.mxu0 0.0
    %148 = vmatpush2.msra.mxu0 0.0
    %149 = vmatprep.subr.mxu0 0.0
    %150 = vmatpush2.msra.mxu0 0.0
    %151 = vmatprep.subr.mxu0 0.0
    %152 = vmatpush2.msra.mxu0 0.0
    %153 = vmatprep.subr.mxu0 0.0
    %154 = vmatpush2.msra.mxu0 0.0
    %155 = vmatprep.subr.mxu0 0.0
    %156 = vmatpush2.msra.mxu0 0.0
    %157 = vmatprep.subr.mxu0 0.0
    %158 = vmatpush2.msra.mxu0 0.0
    %159 = vmatprep.subr.mxu0 0.0
    %160 = vmatpush2.msra.mxu0 0.0
    %161 = vmatprep.subr.mxu0 0.0
    %162 = vmatpush2.msra.mxu0 0.0
    %163 = vmatprep.subr.mxu0 0.0
    %164 = vmatpush2.msra.mxu0 0.0
    %165 = vmatprep.subr.mxu0 0.0
    %166 = vmatpush2.msra.mxu0 0.0
    %167 = vmatprep.mubr.f32.mxu0 0.0
    %168 = vmatmul.mubr.f32.gmra.mxu0 %v101
    %v169 = vpop.f32.mrf.mxu0
    %v170 = vadd.f32 0.0, %v169
    %v171 = vpop.f32.mrf.mxu0
    %172 = vdwg.mxu0
    %v175 = vrot.slane %v44, 7
    %vm176 = vcmask 1041409
    %v177 = vsel %vm176, %v175, %v43
    %vm178 = vcmask 130048
    %v179 = vsel %vm178, %v177, 0
    %181 = vmatprep.subr.mxu0 0.0
    %182 = vmatpush1.msra.mxu0 0.0
    %183 = vmatprep.subr.mxu0 0.0
    %184 = vmatpush1.msra.mxu0 0.0
    %185 = vmatprep.subr.mxu0 0.0
    %186 = vmatpush1.msra.mxu0 0.0
    %187 = vmatprep.subr.mxu0 0.0
    %188 = vmatpush1.msra.mxu0 0.0
    %189 = vmatprep.subr.mxu0 0.0
    %190 = vmatpush1.msra.mxu0 0.0
    %191 = vmatprep.subr.mxu0 0.0
    %192 = vmatpush1.msra.mxu0 0.0
    %193 = vmatprep.subr.mxu0 0.0
    %194 = vmatpush1.msra.mxu0 0.0
    %195 = vmatprep.subr.mxu0 0.0
    %196 = vmatpush1.msra.mxu0 0.0
    %197 = vmatprep.subr.mxu0 0.0
    %198 = vmatpush1.msra.mxu0 0.0
    %199 = vmatprep.subr.mxu0 0.0
    %200 = vmatpush1.msra.mxu0 0.0
    %201 = vmatprep.subr.mxu0 0.0
    %202 = vmatpush1.msra.mxu0 0.0
    %203 = vmatprep.subr.mxu0 0.0
    %204 = vmatpush1.msra.mxu0 0.0
    %205 = vmatprep.subr.mxu0 0.0
    %206 = vmatpush1.msra.mxu0 0.0
    %207 = vmatprep.subr.mxu0 0.0
    %208 = vmatpush1.msra.mxu0 0.0
    %209 = vmatprep.subr.mxu0 0.0
    %210 = vmatpush1.msra.mxu0 %v48
    %211 = vmatprep.subr.mxu0 0.0
    %212 = vmatpush1.msra.mxu0 %v47
    %213 = vmatprep.subr.mxu0 0.0
    %214 = vmatpush2.msra.mxu0 0.0
    %215 = vmatprep.subr.mxu0 0.0
    %216 = vmatpush2.msra.mxu0 0.0
    %217 = vmatprep.subr.mxu0 0.0
    %218 = vmatpush2.msra.mxu0 0.0
    %219 = vmatprep.subr.mxu0 0.0
    %220 = vmatpush2.msra.mxu0 0.0
    %221 = vmatprep.subr.mxu0 0.0
    %222 = vmatpush2.msra.mxu0 0.0
    %223 = vmatprep.subr.mxu0 0.0
    %224 = vmatpush2.msra.mxu0 0.0
    %225 = vmatprep.subr.mxu0 0.0
    %226 = vmatpush2.msra.mxu0 0.0
    %227 = vmatprep.subr.mxu0 0.0
    %228 = vmatpush2.msra.mxu0 0.0
    %229 = vmatprep.subr.mxu0 0.0
    %230 = vmatpush2.msra.mxu0 0.0
    %231 = vmatprep.subr.mxu0 0.0
    %232 = vmatpush2.msra.mxu0 0.0
    %233 = vmatprep.subr.mxu0 0.0
    %234 = vmatpush2.msra.mxu0 0.0
    %235 = vmatprep.subr.mxu0 0.0
    %236 = vmatpush2.msra.mxu0 0.0
    %237 = vmatprep.subr.mxu0 0.0
    %238 = vmatpush2.msra.mxu0 0.0
    %239 = vmatprep.subr.mxu0 0.0
    %240 = vmatpush2.msra.mxu0 0.0
    %241 = vmatprep.subr.mxu0 0.0
    %242 = vmatpush2.msra.mxu0 0.0
    %243 = vmatprep.subr.mxu0 0.0
    %244 = vmatpush2.msra.mxu0 0.0
    %245 = vmatprep.mubr.f32.mxu0 0.0
    %246 = vmatmul.mubr.f32.gmra.mxu0 %v179
    %v247 = vpop.f32.mrf.mxu0
    %v248 = vadd.f32 %v170, %v247
    %v249 = vpop.f32.mrf.mxu0
    %250 = vdwg.mxu0
    %v252 = vlaneseq
    %v253 = vshrl.u32 %v252, 7
    %v254 = vsub.s32 0, %v253
    %v255 = vrot.slane %v77, %v254
    %v257 = vadd.f32 %v248, %v255
    %258 = vmatprep.subr.mxu0 0.0
    %259 = vmatpush1.msra.mxu0 0.0
    %260 = vmatprep.subr.mxu0 0.0
    %261 = vmatpush1.msra.mxu0 0.0
    %262 = vmatprep.subr.mxu0 0.0
    %263 = vmatpush1.msra.mxu0 0.0
    %264 = vmatprep.subr.mxu0 0.0
    %265 = vmatpush1.msra.mxu0 0.0
    %266 = vmatprep.subr.mxu0 0.0
    %267 = vmatpush1.msra.mxu0 0.0
    %268 = vmatprep.subr.mxu0 0.0
    %269 = vmatpush1.msra.mxu0 0.0
    %270 = vmatprep.subr.mxu0 0.0
    %271 = vmatpush1.msra.mxu0 0.0
    %272 = vmatprep.subr.mxu0 0.0
    %273 = vmatpush1.msra.mxu0 0.0
    %274 = vmatprep.subr.mxu0 0.0
    %275 = vmatpush1.msra.mxu0 0.0
    %276 = vmatprep.subr.mxu0 0.0
    %277 = vmatpush1.msra.mxu0 0.0
    %278 = vmatprep.subr.mxu0 0.0
    %279 = vmatpush1.msra.mxu0 0.0
    %280 = vmatprep.subr.mxu0 0.0
    %281 = vmatpush1.msra.mxu0 0.0
    %282 = vmatprep.subr.mxu0 0.0
    %283 = vmatpush1.msra.mxu0 %v66
    %284 = vmatprep.subr.mxu0 0.0
    %285 = vmatpush1.msra.mxu0 %v65
    %286 = vmatprep.subr.mxu0 0.0
    %287 = vmatpush1.msra.mxu0 %v64
    %288 = vmatprep.subr.mxu0 0.0
    %289 = vmatpush1.msra.mxu0 %v63
    %290 = vmatprep.subr.mxu0 0.0
    %291 = vmatpush2.msra.mxu0 0.0
    %292 = vmatprep.subr.mxu0 0.0
    %293 = vmatpush2.msra.mxu0 0.0
    %294 = vmatprep.subr.mxu0 0.0
    %295 = vmatpush2.msra.mxu0 0.0
    %296 = vmatprep.subr.mxu0 0.0
    %297 = vmatpush2.msra.mxu0 0.0
    %298 = vmatprep.subr.mxu0 0.0
    %299 = vmatpush2.msra.mxu0 0.0
    %300 = vmatprep.subr.mxu0 0.0
    %301 = vmatpush2.msra.mxu0 0.0
    %302 = vmatprep.subr.mxu0 0.0
    %303 = vmatpush2.msra.mxu0 0.0
    %304 = vmatprep.subr.mxu0 0.0
    %305 = vmatpush2.msra.mxu0 0.0
    %306 = vmatprep.subr.mxu0 0.0
    %307 = vmatpush2.msra.mxu0 0.0
    %308 = vmatprep.subr.mxu0 0.0
    %309 = vmatpush2.msra.mxu0 0.0
    %310 = vmatprep.subr.mxu0 0.0
    %311 = vmatpush2.msra.mxu0 0.0
    %312 = vmatprep.subr.mxu0 0.0
    %313 = vmatpush2.msra.mxu0 0.0
    %314 = vmatprep.subr.mxu0 0.0
    %315 = vmatpush2.msra.mxu0 0.0
    %316 = vmatprep.subr.mxu0 0.0
    %317 = vmatpush2.msra.mxu0 0.0
    %318 = vmatprep.subr.mxu0 0.0
    %319 = vmatpush2.msra.mxu0 0.0
    %320 = vmatprep.subr.mxu0 0.0
    %321 = vmatpush2.msra.mxu0 0.0
    %322 = vmatprep.mubr.f32.mxu0 0.0
    %323 = vmatmul.mubr.f32.gmra.mxu0 %v101
    %v324 = vpop.f32.mrf.mxu0
    %v325 = vadd.f32 0.0, %v324
    %v326 = vpop.f32.mrf.mxu0
    %327 = vdwg.mxu0
    %328 = vmatprep.subr.mxu0 0.0
    %329 = vmatpush1.msra.mxu0 0.0
    %330 = vmatprep.subr.mxu0 0.0
    %331 = vmatpush1.msra.mxu0 0.0
    %332 = vmatprep.subr.mxu0 0.0
    %333 = vmatpush1.msra.mxu0 0.0
    %334 = vmatprep.subr.mxu0 0.0
    %335 = vmatpush1.msra.mxu0 0.0
    %336 = vmatprep.subr.mxu0 0.0
    %337 = vmatpush1.msra.mxu0 0.0
    %338 = vmatprep.subr.mxu0 0.0
    %339 = vmatpush1.msra.mxu0 0.0
    %340 = vmatprep.subr.mxu0 0.0
    %341 = vmatpush1.msra.mxu0 0.0
    %342 = vmatprep.subr.mxu0 0.0
    %343 = vmatpush1.msra.mxu0 0.0
    %344 = vmatprep.subr.mxu0 0.0
    %345 = vmatpush1.msra.mxu0 0.0
    %346 = vmatprep.subr.mxu0 0.0
    %347 = vmatpush1.msra.mxu0 0.0
    %348 = vmatprep.subr.mxu0 0.0
    %349 = vmatpush1.msra.mxu0 0.0
    %350 = vmatprep.subr.mxu0 0.0
    %351 = vmatpush1.msra.mxu0 0.0
    %352 = vmatprep.subr.mxu0 0.0
    %353 = vmatpush1.msra.mxu0 0.0
    %354 = vmatprep.subr.mxu0 0.0
    %355 = vmatpush1.msra.mxu0 0.0
    %356 = vmatprep.subr.mxu0 0.0
    %357 = vmatpush1.msra.mxu0 %v51
    %358 = vmatprep.subr.mxu0 0.0
    %359 = vmatpush1.msra.mxu0 %v50
    %360 = vmatprep.subr.mxu0 0.0
    %361 = vmatpush2.msra.mxu0 0.0
    %362 = vmatprep.subr.mxu0 0.0
    %363 = vmatpush2.msra.mxu0 0.0
    %364 = vmatprep.subr.mxu0 0.0
    %365 = vmatpush2.msra.mxu0 0.0
    %366 = vmatprep.subr.mxu0 0.0
    %367 = vmatpush2.msra.mxu0 0.0
    %368 = vmatprep.subr.mxu0 0.0
    %369 = vmatpush2.msra.mxu0 0.0
    %370 = vmatprep.subr.mxu0 0.0
    %371 = vmatpush2.msra.mxu0 0.0
    %372 = vmatprep.subr.mxu0 0.0
    %373 = vmatpush2.msra.mxu0 0.0
    %374 = vmatprep.subr.mxu0 0.0
    %375 = vmatpush2.msra.mxu0 0.0
    %376 = vmatprep.subr.mxu0 0.0
    %377 = vmatpush2.msra.mxu0 0.0
    %378 = vmatprep.subr.mxu0 0.0
    %379 = vmatpush2.msra.mxu0 0.0
    %380 = vmatprep.subr.mxu0 0.0
    %381 = vmatpush2.msra.mxu0 0.0
    %382 = vmatprep.subr.mxu0 0.0
    %383 = vmatpush2.msra.mxu0 0.0
    %384 = vmatprep.subr.mxu0 0.0
    %385 = vmatpush2.msra.mxu0 0.0
    %386 = vmatprep.subr.mxu0 0.0
    %387 = vmatpush2.msra.mxu0 0.0
    %388 = vmatprep.subr.mxu0 0.0
    %389 = vmatpush2.msra.mxu0 0.0
    %390 = vmatprep.subr.mxu0 0.0
    %391 = vmatpush2.msra.mxu0 0.0
    %392 = vmatprep.mubr.f32.mxu0 0.0
    %393 = vmatmul.mubr.f32.gmra.mxu0 %v179
    %v394 = vpop.f32.mrf.mxu0
    %v395 = vadd.f32 %v325, %v394
    %v396 = vpop.f32.mrf.mxu0
    %397 = vdwg.mxu0
    %v399 = vlaneseq
    %v400 = vshrl.u32 %v399, 7
    %v401 = vsub.s32 0, %v400
    %v402 = vrot.slane %v79, %v401
    %v404 = vadd.f32 %v395, %v402
    %405 = vmatprep.subr.mxu0 0.0
    %406 = vmatpush1.msra.mxu0 0.0
    %407 = vmatprep.subr.mxu0 0.0
    %408 = vmatpush1.msra.mxu0 0.0
    %409 = vmatprep.subr.mxu0 0.0
    %410 = vmatpush1.msra.mxu0 0.0
    %411 = vmatprep.subr.mxu0 0.0
    %412 = vmatpush1.msra.mxu0 0.0
    %413 = vmatprep.subr.mxu0 0.0
    %414 = vmatpush1.msra.mxu0 0.0
    %415 = vmatprep.subr.mxu0 0.0
    %416 = vmatpush1.msra.mxu0 0.0
    %417 = vmatprep.subr.mxu0 0.0
    %418 = vmatpush1.msra.mxu0 0.0
    %419 = vmatprep.subr.mxu0 0.0
    %420 = vmatpush1.msra.mxu0 0.0
    %421 = vmatprep.subr.mxu0 0.0
    %422 = vmatpush1.msra.mxu0 0.0
    %423 = vmatprep.subr.mxu0 0.0
    %424 = vmatpush1.msra.mxu0 0.0
    %425 = vmatprep.subr.mxu0 0.0
    %426 = vmatpush1.msra.mxu0 0.0
    %427 = vmatprep.subr.mxu0 0.0
    %428 = vmatpush1.msra.mxu0 0.0
    %429 = vmatprep.subr.mxu0 0.0
    %430 = vmatpush1.msra.mxu0 %v71
    %431 = vmatprep.subr.mxu0 0.0
    %432 = vmatpush1.msra.mxu0 %v70
    %433 = vmatprep.subr.mxu0 0.0
    %434 = vmatpush1.msra.mxu0 %v69
    %435 = vmatprep.subr.mxu0 0.0
    %436 = vmatpush1.msra.mxu0 %v68
    %437 = vmatprep.subr.mxu0 0.0
    %438 = vmatpush2.msra.mxu0 0.0
    %439 = vmatprep.subr.mxu0 0.0
    %440 = vmatpush2.msra.mxu0 0.0
    %441 = vmatprep.subr.mxu0 0.0
    %442 = vmatpush2.msra.mxu0 0.0
    %443 = vmatprep.subr.mxu0 0.0
    %444 = vmatpush2.msra.mxu0 0.0
    %445 = vmatprep.subr.mxu0 0.0
    %446 = vmatpush2.msra.mxu0 0.0
    %447 = vmatprep.subr.mxu0 0.0
    %448 = vmatpush2.msra.mxu0 0.0
    %449 = vmatprep.subr.mxu0 0.0
    %450 = vmatpush2.msra.mxu0 0.0
    %451 = vmatprep.subr.mxu0 0.0
    %452 = vmatpush2.msra.mxu0 0.0
    %453 = vmatprep.subr.mxu0 0.0
    %454 = vmatpush2.msra.mxu0 0.0
    %455 = vmatprep.subr.mxu0 0.0
    %456 = vmatpush2.msra.mxu0 0.0
    %457 = vmatprep.subr.mxu0 0.0
    %458 = vmatpush2.msra.mxu0 0.0
    %459 = vmatprep.subr.mxu0 0.0
    %460 = vmatpush2.msra.mxu0 0.0
    %461 = vmatprep.subr.mxu0 0.0
    %462 = vmatpush2.msra.mxu0 0.0
    %463 = vmatprep.subr.mxu0 0.0
    %464 = vmatpush2.msra.mxu0 0.0
    %465 = vmatprep.subr.mxu0 0.0
    %466 = vmatpush2.msra.mxu0 0.0
    %467 = vmatprep.subr.mxu0 0.0
    %468 = vmatpush2.msra.mxu0 0.0
    %469 = vmatprep.mubr.f32.mxu0 0.0
    %470 = vmatmul.mubr.f32.gmra.mxu0 %v101
    %v471 = vpop.f32.mrf.mxu0
    %v472 = vadd.f32 0.0, %v471
    %v473 = vpop.f32.mrf.mxu0
    %474 = vdwg.mxu0
    %475 = vmatprep.subr.mxu0 0.0
    %476 = vmatpush1.msra.mxu0 0.0
    %477 = vmatprep.subr.mxu0 0.0
    %478 = vmatpush1.msra.mxu0 0.0
    %479 = vmatprep.subr.mxu0 0.0
    %480 = vmatpush1.msra.mxu0 0.0
    %481 = vmatprep.subr.mxu0 0.0
    %482 = vmatpush1.msra.mxu0 0.0
    %483 = vmatprep.subr.mxu0 0.0
    %484 = vmatpush1.msra.mxu0 0.0
    %485 = vmatprep.subr.mxu0 0.0
    %486 = vmatpush1.msra.mxu0 0.0
    %487 = vmatprep.subr.mxu0 0.0
    %488 = vmatpush1.msra.mxu0 0.0
    %489 = vmatprep.subr.mxu0 0.0
    %490 = vmatpush1.msra.mxu0 0.0
    %491 = vmatprep.subr.mxu0 0.0
    %492 = vmatpush1.msra.mxu0 0.0
    %493 = vmatprep.subr.mxu0 0.0
    %494 = vmatpush1.msra.mxu0 0.0
    %495 = vmatprep.subr.mxu0 0.0
    %496 = vmatpush1.msra.mxu0 0.0
    %497 = vmatprep.subr.mxu0 0.0
    %498 = vmatpush1.msra.mxu0 0.0
    %499 = vmatprep.subr.mxu0 0.0
    %500 = vmatpush1.msra.mxu0 0.0
    %501 = vmatprep.subr.mxu0 0.0
    %502 = vmatpush1.msra.mxu0 0.0
    %503 = vmatprep.subr.mxu0 0.0
    %504 = vmatpush1.msra.mxu0 %v54
    %505 = vmatprep.subr.mxu0 0.0
    %506 = vmatpush1.msra.mxu0 %v53
    %507 = vmatprep.subr.mxu0 0.0
    %508 = vmatpush2.msra.mxu0 0.0
    %509 = vmatprep.subr.mxu0 0.0
    %510 = vmatpush2.msra.mxu0 0.0
    %511 = vmatprep.subr.mxu0 0.0
    %512 = vmatpush2.msra.mxu0 0.0
    %513 = vmatprep.subr.mxu0 0.0
    %514 = vmatpush2.msra.mxu0 0.0
    %515 = vmatprep.subr.mxu0 0.0
    %516 = vmatpush2.msra.mxu0 0.0
    %517 = vmatprep.subr.mxu0 0.0
    %518 = vmatpush2.msra.mxu0 0.0
    %519 = vmatprep.subr.mxu0 0.0
    %520 = vmatpush2.msra.mxu0 0.0
    %521 = vmatprep.subr.mxu0 0.0
    %522 = vmatpush2.msra.mxu0 0.0
    %523 = vmatprep.subr.mxu0 0.0
    %524 = vmatpush2.msra.mxu0 0.0
    %525 = vmatprep.subr.mxu0 0.0
    %526 = vmatpush2.msra.mxu0 0.0
    %527 = vmatprep.subr.mxu0 0.0
    %528 = vmatpush2.msra.mxu0 0.0
    %529 = vmatprep.subr.mxu0 0.0
    %530 = vmatpush2.msra.mxu0 0.0
    %531 = vmatprep.subr.mxu0 0.0
    %532 = vmatpush2.msra.mxu0 0.0
    %533 = vmatprep.subr.mxu0 0.0
    %534 = vmatpush2.msra.mxu0 0.0
    %535 = vmatprep.subr.mxu0 0.0
    %536 = vmatpush2.msra.mxu0 0.0
    %537 = vmatprep.subr.mxu0 0.0
    %538 = vmatpush2.msra.mxu0 0.0
    %539 = vmatprep.mubr.f32.mxu0 0.0
    %540 = vmatmul.mubr.f32.gmra.mxu0 %v179
    %v541 = vpop.f32.mrf.mxu0
    %v542 = vadd.f32 %v472, %v541
    %v543 = vpop.f32.mrf.mxu0
    %544 = vdwg.mxu0
    %v546 = vlaneseq
    %v547 = vshrl.u32 %v546, 7
    %v548 = vsub.s32 0, %v547
    %v549 = vrot.slane %v81, %v548
    %v551 = vadd.f32 %v542, %v549
    %552 = vmatprep.subr.mxu0 0.0
    %553 = vmatpush1.msra.mxu0 0.0
    %554 = vmatprep.subr.mxu0 0.0
    %555 = vmatpush1.msra.mxu0 0.0
    %556 = vmatprep.subr.mxu0 0.0
    %557 = vmatpush1.msra.mxu0 0.0
    %558 = vmatprep.subr.mxu0 0.0
    %559 = vmatpush1.msra.mxu0 0.0
    %560 = vmatprep.subr.mxu0 0.0
    %561 = vmatpush1.msra.mxu0 0.0
    %562 = vmatprep.subr.mxu0 0.0
    %563 = vmatpush1.msra.mxu0 0.0
    %564 = vmatprep.subr.mxu0 0.0
    %565 = vmatpush1.msra.mxu0 0.0
    %566 = vmatprep.subr.mxu0 0.0
    %567 = vmatpush1.msra.mxu0 0.0
    %568 = vmatprep.subr.mxu0 0.0
    %569 = vmatpush1.msra.mxu0 0.0
    %570 = vmatprep.subr.mxu0 0.0
    %571 = vmatpush1.msra.mxu0 0.0
    %572 = vmatprep.subr.mxu0 0.0
    %573 = vmatpush1.msra.mxu0 0.0
    %574 = vmatprep.subr.mxu0 0.0
    %575 = vmatpush1.msra.mxu0 0.0
    %576 = vmatprep.subr.mxu0 0.0
    %577 = vmatpush1.msra.mxu0 %v76
    %578 = vmatprep.subr.mxu0 0.0
    %579 = vmatpush1.msra.mxu0 %v75
    %580 = vmatprep.subr.mxu0 0.0
    %581 = vmatpush1.msra.mxu0 %v74
    %582 = vmatprep.subr.mxu0 0.0
    %583 = vmatpush1.msra.mxu0 %v73
    %584 = vmatprep.subr.mxu0 0.0
    %585 = vmatpush2.msra.mxu0 0.0
    %586 = vmatprep.subr.mxu0 0.0
    %587 = vmatpush2.msra.mxu0 0.0
    %588 = vmatprep.subr.mxu0 0.0
    %589 = vmatpush2.msra.mxu0 0.0
    %590 = vmatprep.subr.mxu0 0.0
    %591 = vmatpush2.msra.mxu0 0.0
    %592 = vmatprep.subr.mxu0 0.0
    %593 = vmatpush2.msra.mxu0 0.0
    %594 = vmatprep.subr.mxu0 0.0
    %595 = vmatpush2.msra.mxu0 0.0
    %596 = vmatprep.subr.mxu0 0.0
    %597 = vmatpush2.msra.mxu0 0.0
    %598 = vmatprep.subr.mxu0 0.0
    %599 = vmatpush2.msra.mxu0 0.0
    %600 = vmatprep.subr.mxu0 0.0
    %601 = vmatpush2.msra.mxu0 0.0
    %602 = vmatprep.subr.mxu0 0.0
    %603 = vmatpush2.msra.mxu0 0.0
    %604 = vmatprep.subr.mxu0 0.0
    %605 = vmatpush2.msra.mxu0 0.0
    %606 = vmatprep.subr.mxu0 0.0
    %607 = vmatpush2.msra.mxu0 0.0
    %608 = vmatprep.subr.mxu0 0.0
    %609 = vmatpush2.msra.mxu0 0.0
    %610 = vmatprep.subr.mxu0 0.0
    %611 = vmatpush2.msra.mxu0 0.0
    %612 = vmatprep.subr.mxu0 0.0
    %613 = vmatpush2.msra.mxu0 0.0
    %614 = vmatprep.subr.mxu0 0.0
    %615 = vmatpush2.msra.mxu0 0.0
    %616 = vmatprep.mubr.f32.mxu0 0.0
    %617 = vmatmul.mubr.f32.gmra.mxu0 %v101
    %v618 = vpop.f32.mrf.mxu0
    %v619 = vadd.f32 0.0, %v618
    %v620 = vpop.f32.mrf.mxu0
    %621 = vdwg.mxu0
    %622 = vmatprep.subr.mxu0 0.0
    %623 = vmatpush1.msra.mxu0 0.0
    %624 = vmatprep.subr.mxu0 0.0
    %625 = vmatpush1.msra.mxu0 0.0
    %626 = vmatprep.subr.mxu0 0.0
    %627 = vmatpush1.msra.mxu0 0.0
    %628 = vmatprep.subr.mxu0 0.0
    %629 = vmatpush1.msra.mxu0 0.0
    %630 = vmatprep.subr.mxu0 0.0
    %631 = vmatpush1.msra.mxu0 0.0
    %632 = vmatprep.subr.mxu0 0.0
    %633 = vmatpush1.msra.mxu0 0.0
    %634 = vmatprep.subr.mxu0 0.0
    %635 = vmatpush1.msra.mxu0 0.0
    %636 = vmatprep.subr.mxu0 0.0
    %637 = vmatpush1.msra.mxu0 0.0
    %638 = vmatprep.subr.mxu0 0.0
    %639 = vmatpush1.msra.mxu0 0.0
    %640 = vmatprep.subr.mxu0 0.0
    %641 = vmatpush1.msra.mxu0 0.0
    %642 = vmatprep.subr.mxu0 0.0
    %643 = vmatpush1.msra.mxu0 0.0
    %644 = vmatprep.subr.mxu0 0.0
    %645 = vmatpush1.msra.mxu0 0.0
    %646 = vmatprep.subr.mxu0 0.0
    %647 = vmatpush1.msra.mxu0 0.0
    %648 = vmatprep.subr.mxu0 0.0
    %649 = vmatpush1.msra.mxu0 0.0
    %650 = vmatprep.subr.mxu0 0.0
    %651 = vmatpush1.msra.mxu0 %v57
    %652 = vmatprep.subr.mxu0 0.0
    %653 = vmatpush1.msra.mxu0 %v56
    %654 = vmatprep.subr.mxu0 0.0
    %655 = vmatpush2.msra.mxu0 0.0
    %656 = vmatprep.subr.mxu0 0.0
    %657 = vmatpush2.msra.mxu0 0.0
    %658 = vmatprep.subr.mxu0 0.0
    %659 = vmatpush2.msra.mxu0 0.0
    %660 = vmatprep.subr.mxu0 0.0
    %661 = vmatpush2.msra.mxu0 0.0
    %662 = vmatprep.subr.mxu0 0.0
    %663 = vmatpush2.msra.mxu0 0.0
    %664 = vmatprep.subr.mxu0 0.0
    %665 = vmatpush2.msra.mxu0 0.0
    %666 = vmatprep.subr.mxu0 0.0
    %667 = vmatpush2.msra.mxu0 0.0
    %668 = vmatprep.subr.mxu0 0.0
    %669 = vmatpush2.msra.mxu0 0.0
    %670 = vmatprep.subr.mxu0 0.0
    %671 = vmatpush2.msra.mxu0 0.0
    %672 = vmatprep.subr.mxu0 0.0
    %673 = vmatpush2.msra.mxu0 0.0
    %674 = vmatprep.subr.mxu0 0.0
    %675 = vmatpush2.msra.mxu0 0.0
    %676 = vmatprep.subr.mxu0 0.0
    %677 = vmatpush2.msra.mxu0 0.0
    %678 = vmatprep.subr.mxu0 0.0
    %679 = vmatpush2.msra.mxu0 0.0
    %680 = vmatprep.subr.mxu0 0.0
    %681 = vmatpush2.msra.mxu0 0.0
    %682 = vmatprep.subr.mxu0 0.0
    %683 = vmatpush2.msra.mxu0 0.0
    %684 = vmatprep.subr.mxu0 0.0
    %685 = vmatpush2.msra.mxu0 0.0
    %686 = vmatprep.mubr.f32.mxu0 0.0
    %687 = vmatmul.mubr.f32.gmra.mxu0 %v179
    %v688 = vpop.f32.mrf.mxu0
    %v689 = vadd.f32 %v619, %v688
    %v690 = vpop.f32.mrf.mxu0
    %691 = vdwg.mxu0
    %v693 = vlaneseq
    %v694 = vshrl.u32 %v693, 7
    %v695 = vsub.s32 0, %v694
    %v696 = vrot.slane %v83, %v695
    %v698 = vadd.f32 %v689, %v696
    %v699 = vxor.u32 %v257, 2147483648
    %v700 = vmul.f32 %v699, 1.442695
    %v701 = vpow.pop %v700
    %v702 = vadd.f32 %v701, 1.0
    %v703 = vrcp.pop %v702
    %v704 = vmul.f32 1.0, %v703
    %v705 = vxor.u32 %v404, 2147483648
    %v706 = vmul.f32 %v705, 1.442695
    %v707 = vpow.pop %v706
    %v708 = vadd.f32 %v707, 1.0
    %v709 = vrcp.pop %v708
    %v710 = vmul.f32 1.0, %v709
    %v711 = vtanh.pop %v551
    %v712 = vxor.u32 %v698, 2147483648
    %v713 = vmul.f32 %v712, 1.442695
    %v714 = vpow.pop %v713
    %v715 = vadd.f32 %v714, 1.0
    %v716 = vrcp.pop %v715
    %v717 = vmul.f32 1.0, %v716
    %v718 = vmul.f32 %v710, %v98
    %v719 = vmul.f32 %v704, %v711
    %v720 = vadd.f32 %v718, %v719
    %v721 = vtanh.pop %v720
    %v722 = vmul.f32 %v717, %v721
    %v725 = vunpack.c.l.s4 1966171168
    %v726 = vunpack.c.0.s8 %v725
    %v727 = vlaneseq
    %v728 = vshrl.u32 %v727, 7
    %v729 = vsub.s32 %v726, %v728
    %v730 = vrot.slane %v722, %v729
    %v731 = vcombine.high %v730, %v730
    %v733 = vunpack.c.l.s4 1966171168
    %v734 = vunpack.c.0.s8 %v733
    %v735 = vlaneseq
    %v736 = vshrl.u32 %v735, 7
    %v737 = vsub.s32 %v734, %v736
    %v738 = vrot.slane %v730, %v737
    %v740 = vunpack.c.l.s4 1966171168
    %v741 = vunpack.c.0.s8 %v740
    %v742 = vlaneseq
    %v743 = vshrl.u32 %v742, 7
    %v744 = vsub.s32 %v741, %v743
    %v745 = vrot.slane %v731, %v744
    %v746 = vlaneseq
    %v747 = vshrl.u32 %v746, 7
    %v748 = vsub.s32 0, %v747
    %v749 = vrot.slane %v738, %v748
    %v750 = vlaneseq
    %v751 = vshrl.u32 %v750, 7
    %v752 = vsub.s32 0, %v751
    %v753 = vrot.slane %v745, %v752
    %v756 = vmul.f32 %v45, %v749
    %v757 = vmul.f32 %v46, %v753
    %v758 = vsel %vm99, %v756, 0.0
    %759 = vadd.xlane.f32.xlu0 %v758
    %v760 = vpop.xlane.xlu0 %759
    %v761 = vsel %vm99, %v757, 0.0
    %762 = vadd.xlane.f32.xlu0 %v761
    %v763 = vpop.xlane.xlu0 %762
    %v766 = vlaneseq
    %v767 = vand.u32 %v766, 127
    %v768 = vlaneseq
    %v769 = vshrl.u32 %v768, 7
    %v770 = vsub.s32 %v767, %v769
    %v771 = vrot.slane %v760, %v770
    %v772 = vlaneseq
    %v773 = vshrl.u32 %v772, 7
    %v774 = vsub.s32 %v767, %v773
    %v775 = vrot.slane %v763, %v774
    %v776 = vsel %vm176, %v775, %v771
    %vm778 = vcmask 58368
    %v779 = vsel %vm778, %v776, -inf
    %780 = vmax.xlane.f32.xlu0 %v779
    %v781 = vpop.xlane.xlu0 %780
    %v783 = vlaneseq
    %v784 = vshrl.u32 %v783, 7
    %v785 = vsub.s32 0, %v784
    %v786 = vrot.slane %v781, %v785
    %v787 = vlaneseq
    %v788 = vshrl.u32 %v787, 7
    %v789 = vsub.s32 1, %v788
    %v790 = vrot.slane %v781, %v789
    %v793 = vsub.f32 %v760, %v786
    %v794 = vsub.f32 %v763, %v790
    %v795 = vmul.f32 %v793, 1.442695
    %v796 = vpow.pop %v795
    %v797 = vmul.f32 %v794, 1.442695
    %v798 = vpow.pop %v797
    %801 = vset.pattern.permute.xlu0 0
    %802 = vperm.xlu0 %801, %v796
    %v803 = vpop.permute.xlu0 %802
    %804 = vset.pattern.permute.xlu0 0
    %805 = vperm.xlu0 %804, %v798
    %v806 = vpop.permute.xlu0 %805
    %v807 = vlaneseq
    %v808 = vshrl.u32 %v807, 7
    %v809 = vsub.s32 %v767, %v808
    %v810 = vrot.slane %v803, %v809
    %v811 = vlaneseq
    %v812 = vshrl.u32 %v811, 7
    %v813 = vsub.s32 %v767, %v812
    %v814 = vrot.slane %v806, %v813
    %v815 = vsel %vm176, %v814, %v810
    %v817 = vsel %vm778, %v815, 0.0
    %818 = vadd.xlane.f32.xlu0 %v817
    %v819 = vpop.xlane.xlu0 %818
    %v820 = vrcp.pop %v819
    %v822 = vlaneseq
    %v823 = vshrl.u32 %v822, 7
    %v824 = vsub.s32 0, %v823
    %v825 = vrot.slane %v820, %v824
    %v826 = vlaneseq
    %v827 = vshrl.u32 %v826, 7
    %v828 = vsub.s32 1, %v827
    %v829 = vrot.slane %v820, %v828
    %v832 = vmul.f32 %v796, %v825
    %v833 = vmul.f32 %v798, %v829
    %835 = vset.pattern.permute.xlu0 0
    %836 = vperm.xlu0 %835, %v832
    %v837 = vpop.permute.xlu0 %836
    %840 = vset.pattern.permute.xlu0 0
    %841 = vperm.xlu0 %840, %v833
    %v842 = vpop.permute.xlu0 %841
    %v844 = vmul.f32 %v837, %v45
    %v845 = vmul.f32 %v842, %v46
    %v846 = vsel %vm99, %v844, 0.0
    %v847 = vrot.slane %v846, 4
    %v848 = vadd.f32 %v846, %v847
    %v849 = vrot.slane %v848, 2
    %v850 = vadd.f32 %v848, %v849
    %v851 = vrot.slane %v850, 1
    %v852 = vadd.f32 %v850, %v851
    %v853 = vsel %vm99, %v845, 0.0
    %v854 = vrot.slane %v853, 4
    %v855 = vadd.f32 %v853, %v854
    %v856 = vrot.slane %v855, 2
    %v857 = vadd.f32 %v855, %v856
    %v858 = vrot.slane %v857, 1
    %v859 = vadd.f32 %v857, %v858
    %v862 = vsel %vm176, %v859, %v852
    %v863 = vsel %vm99, %v862, 0
    %865 = vmatprep.subr.mxu0 0.0
    %866 = vmatpush1.msra.mxu0 0.0
    %867 = vmatprep.subr.mxu0 0.0
    %868 = vmatpush1.msra.mxu0 0.0
    %869 = vmatprep.subr.mxu0 0.0
    %870 = vmatpush1.msra.mxu0 0.0
    %871 = vmatprep.subr.mxu0 0.0
    %872 = vmatpush1.msra.mxu0 0.0
    %873 = vmatprep.subr.mxu0 0.0
    %874 = vmatpush1.msra.mxu0 0.0
    %875 = vmatprep.subr.mxu0 0.0
    %876 = vmatpush1.msra.mxu0 0.0
    %877 = vmatprep.subr.mxu0 0.0
    %878 = vmatpush1.msra.mxu0 0.0
    %879 = vmatprep.subr.mxu0 0.0
    %880 = vmatpush1.msra.mxu0 0.0
    %881 = vmatprep.subr.mxu0 0.0
    %882 = vmatpush1.msra.mxu0 0.0
    %883 = vmatprep.subr.mxu0 0.0
    %884 = vmatpush1.msra.mxu0 0.0
    %885 = vmatprep.subr.mxu0 0.0
    %886 = vmatpush1.msra.mxu0 0.0
    %887 = vmatprep.subr.mxu0 0.0
    %888 = vmatpush1.msra.mxu0 0.0
    %889 = vmatprep.subr.mxu0 0.0
    %890 = vmatpush1.msra.mxu0 %v91
    %891 = vmatprep.subr.mxu0 0.0
    %892 = vmatpush1.msra.mxu0 %v90
    %893 = vmatprep.subr.mxu0 0.0
    %894 = vmatpush1.msra.mxu0 %v89
    %895 = vmatprep.subr.mxu0 0.0
    %896 = vmatpush1.msra.mxu0 %v88
    %897 = vmatprep.subr.mxu0 0.0
    %898 = vmatpush2.msra.mxu0 0.0
    %899 = vmatprep.subr.mxu0 0.0
    %900 = vmatpush2.msra.mxu0 0.0
    %901 = vmatprep.subr.mxu0 0.0
    %902 = vmatpush2.msra.mxu0 0.0
    %903 = vmatprep.subr.mxu0 0.0
    %904 = vmatpush2.msra.mxu0 0.0
    %905 = vmatprep.subr.mxu0 0.0
    %906 = vmatpush2.msra.mxu0 0.0
    %907 = vmatprep.subr.mxu0 0.0
    %908 = vmatpush2.msra.mxu0 0.0
    %909 = vmatprep.subr.mxu0 0.0
    %910 = vmatpush2.msra.mxu0 0.0
    %911 = vmatprep.subr.mxu0 0.0
    %912 = vmatpush2.msra.mxu0 0.0
    %913 = vmatprep.subr.mxu0 0.0
    %914 = vmatpush2.msra.mxu0 0.0
    %915 = vmatprep.subr.mxu0 0.0
    %916 = vmatpush2.msra.mxu0 0.0
    %917 = vmatprep.subr.mxu0 0.0
    %918 = vmatpush2.msra.mxu0 0.0
    %919 = vmatprep.subr.mxu0 0.0
    %920 = vmatpush2.msra.mxu0 0.0
    %921 = vmatprep.subr.mxu0 0.0
    %922 = vmatpush2.msra.mxu0 0.0
    %923 = vmatprep.subr.mxu0 0.0
    %924 = vmatpush2.msra.mxu0 0.0
    %925 = vmatprep.subr.mxu0 0.0
    %926 = vmatpush2.msra.mxu0 0.0
    %927 = vmatprep.subr.mxu0 0.0
    %928 = vmatpush2.msra.mxu0 0.0
    %929 = vmatprep.mubr.f32.mxu0 0.0
    %930 = vmatmul.mubr.f32.gmra.mxu0 %v863
    %v931 = vpop.f32.mrf.mxu0
    %v932 = vadd.f32 0.0, %v931
    %v933 = vpop.f32.mrf.mxu0
    %934 = vdwg.mxu0
    %v935 = vsel %vm99, %v722, 0
    %937 = vmatprep.subr.mxu0 0.0
    %938 = vmatpush1.msra.mxu0 0.0
    %939 = vmatprep.subr.mxu0 0.0
    %940 = vmatpush1.msra.mxu0 0.0
    %941 = vmatprep.subr.mxu0 0.0
    %942 = vmatpush1.msra.mxu0 0.0
    %943 = vmatprep.subr.mxu0 0.0
    %944 = vmatpush1.msra.mxu0 0.0
    %945 = vmatprep.subr.mxu0 0.0
    %946 = vmatpush1.msra.mxu0 0.0
    %947 = vmatprep.subr.mxu0 0.0
    %948 = vmatpush1.msra.mxu0 0.0
    %949 = vmatprep.subr.mxu0 0.0
    %950 = vmatpush1.msra.mxu0 0.0
    %951 = vmatprep.subr.mxu0 0.0
    %952 = vmatpush1.msra.mxu0 0.0
    %953 = vmatprep.subr.mxu0 0.0
    %954 = vmatpush1.msra.mxu0 0.0
    %955 = vmatprep.subr.mxu0 0.0
    %956 = vmatpush1.msra.mxu0 0.0
    %957 = vmatprep.subr.mxu0 0.0
    %958 = vmatpush1.msra.mxu0 0.0
    %959 = vmatprep.subr.mxu0 0.0
    %960 = vmatpush1.msra.mxu0 0.0
    %961 = vmatprep.subr.mxu0 0.0
    %962 = vmatpush1.msra.mxu0 %v87
    %963 = vmatprep.subr.mxu0 0.0
    %964 = vmatpush1.msra.mxu0 %v86
    %965 = vmatprep.subr.mxu0 0.0
    %966 = vmatpush1.msra.mxu0 %v85
    %967 = vmatprep.subr.mxu0 0.0
    %968 = vmatpush1.msra.mxu0 %v84
    %969 = vmatprep.subr.mxu0 0.0
    %970 = vmatpush2.msra.mxu0 0.0
    %971 = vmatprep.subr.mxu0 0.0
    %972 = vmatpush2.msra.mxu0 0.0
    %973 = vmatprep.subr.mxu0 0.0
    %974 = vmatpush2.msra.mxu0 0.0
    %975 = vmatprep.subr.mxu0 0.0
    %976 = vmatpush2.msra.mxu0 0.0
    %977 = vmatprep.subr.mxu0 0.0
    %978 = vmatpush2.msra.mxu0 0.0
    %979 = vmatprep.subr.mxu0 0.0
    %980 = vmatpush2.msra.mxu0 0.0
    %981 = vmatprep.subr.mxu0 0.0
    %982 = vmatpush2.msra.mxu0 0.0
    %983 = vmatprep.subr.mxu0 0.0
    %984 = vmatpush2.msra.mxu0 0.0
    %985 = vmatprep.subr.mxu0 0.0
    %986 = vmatpush2.msra.mxu0 0.0
    %987 = vmatprep.subr.mxu0 0.0
    %988 = vmatpush2.msra.mxu0 0.0
    %989 = vmatprep.subr.mxu0 0.0
    %990 = vmatpush2.msra.mxu0 0.0
    %991 = vmatprep.subr.mxu0 0.0
    %992 = vmatpush2.msra.mxu0 0.0
    %993 = vmatprep.subr.mxu0 0.0
    %994 = vmatpush2.msra.mxu0 0.0
    %995 = vmatprep.subr.mxu0 0.0
    %996 = vmatpush2.msra.mxu0 0.0
    %997 = vmatprep.subr.mxu0 0.0
    %998 = vmatpush2.msra.mxu0 0.0
    %999 = vmatprep.subr.mxu0 0.0
    %1000 = vmatpush2.msra.mxu0 0.0
    %1001 = vmatprep.mubr.f32.mxu0 0.0
    %1002 = vmatmul.mubr.f32.gmra.mxu0 %v935
    %v1003 = vpop.f32.mrf.mxu0
    %v1004 = vadd.f32 %v932, %v1003
    %v1005 = vpop.f32.mrf.mxu0
    %1006 = vdwg.mxu0
    %v1007 = vtanh.pop %v1004
    %v1009 = vlaneseq
    %v1010 = vshrl.u32 %v1009, 7
    %v1011 = vsub.s32 0, %v1010
    %v1012 = vrot.slane %v96, %v1011
    %v1015 = vsel %vm99, %v1007, 0
    %1017 = vmatprep.subr.mxu0 0.0
    %1018 = vmatpush1.msra.mxu0 0.0
    %1019 = vmatprep.subr.mxu0 0.0
    %1020 = vmatpush1.msra.mxu0 0.0
    %1021 = vmatprep.subr.mxu0 0.0
    %1022 = vmatpush1.msra.mxu0 0.0
    %1023 = vmatprep.subr.mxu0 0.0
    %1024 = vmatpush1.msra.mxu0 0.0
    %1025 = vmatprep.subr.mxu0 0.0
    %1026 = vmatpush1.msra.mxu0 0.0
    %1027 = vmatprep.subr.mxu0 0.0
    %1028 = vmatpush1.msra.mxu0 0.0
    %1029 = vmatprep.subr.mxu0 0.0
    %1030 = vmatpush1.msra.mxu0 0.0
    %1031 = vmatprep.subr.mxu0 0.0
    %1032 = vmatpush1.msra.mxu0 0.0
    %1033 = vmatprep.subr.mxu0 0.0
    %1034 = vmatpush1.msra.mxu0 0.0
    %1035 = vmatprep.subr.mxu0 0.0
    %1036 = vmatpush1.msra.mxu0 0.0
    %1037 = vmatprep.subr.mxu0 0.0
    %1038 = vmatpush1.msra.mxu0 0.0
    %1039 = vmatprep.subr.mxu0 0.0
    %1040 = vmatpush1.msra.mxu0 0.0
    %1041 = vmatprep.subr.mxu0 0.0
    %1042 = vmatpush1.msra.mxu0 %v95
    %1043 = vmatprep.subr.mxu0 0.0
    %1044 = vmatpush1.msra.mxu0 %v94
    %1045 = vmatprep.subr.mxu0 0.0
    %1046 = vmatpush1.msra.mxu0 %v93
    %1047 = vmatprep.subr.mxu0 0.0
    %1048 = vmatpush1.msra.mxu0 %v92
    %1049 = vmatprep.subr.mxu0 0.0
    %1050 = vmatpush2.msra.mxu0 0.0
    %1051 = vmatprep.subr.mxu0 0.0
    %1052 = vmatpush2.msra.mxu0 0.0
    %1053 = vmatprep.subr.mxu0 0.0
    %1054 = vmatpush2.msra.mxu0 0.0
    %1055 = vmatprep.subr.mxu0 0.0
    %1056 = vmatpush2.msra.mxu0 0.0
    %1057 = vmatprep.subr.mxu0 0.0
    %1058 = vmatpush2.msra.mxu0 0.0
    %1059 = vmatprep.subr.mxu0 0.0
    %1060 = vmatpush2.msra.mxu0 0.0
    %1061 = vmatprep.subr.mxu0 0.0
    %1062 = vmatpush2.msra.mxu0 0.0
    %1063 = vmatprep.subr.mxu0 0.0
    %1064 = vmatpush2.msra.mxu0 0.0
    %1065 = vmatprep.subr.mxu0 0.0
    %1066 = vmatpush2.msra.mxu0 0.0
    %1067 = vmatprep.subr.mxu0 0.0
    %1068 = vmatpush2.msra.mxu0 0.0
    %1069 = vmatprep.subr.mxu0 0.0
    %1070 = vmatpush2.msra.mxu0 0.0
    %1071 = vmatprep.subr.mxu0 0.0
    %1072 = vmatpush2.msra.mxu0 0.0
    %1073 = vmatprep.subr.mxu0 0.0
    %1074 = vmatpush2.msra.mxu0 0.0
    %1075 = vmatprep.subr.mxu0 0.0
    %1076 = vmatpush2.msra.mxu0 0.0
    %1077 = vmatprep.subr.mxu0 0.0
    %1078 = vmatpush2.msra.mxu0 0.0
    %1079 = vmatprep.subr.mxu0 0.0
    %1080 = vmatpush2.msra.mxu0 0.0
    %1081 = vmatprep.mubr.f32.mxu0 0.0
    %1082 = vmatmul.mubr.f32.gmra.mxu0 %v1015
    %v1083 = vpop.f32.mrf.mxu0
    %v1084 = vadd.f32 %v1012, %v1083
    %v1085 = vpop.f32.mrf.mxu0
    %1086 = vdwg.mxu0
    %vm1087 = vcmask 123904
    %v1088 = vsel %vm1087, %v1084, -inf
    %1089 = vmax.xlane.f32.xlu0 %v1088
    %v1090 = vpop.xlane.xlu0 %1089
    %v1091 = vsub.f32 %v1084, %v1090
    %v1092 = vmul.f32 %v1091, 1.442695
    %v1093 = vpow.pop %v1092
    %v1094 = vsel %vm1087, %v1093, 0.0
    %1095 = vadd.xlane.f32.xlu0 %v1094
    %v1096 = vpop.xlane.xlu0 %1095
    %v1097 = vlog2.pop %v1096
    %v1098 = vmul.f32 %v1097, 0.6931472
    %v1099 = vadd.f32 %v1090, %v1098
    %v1100 = vsub.f32 %v1084, %v1099
    %v1103 = vunpack.c.l.s4 1966171168
    %v1104 = vunpack.c.0.s8 %v1103
    %v1105 = vlaneseq
    %v1106 = vshrl.u32 %v1105, 7
    %v1107 = vsub.s32 %v1104, %v1106
    %v1108 = vrot.slane %v1100, %v1107
    %v1109 = vcombine.high %v1108, %v1108
    %v1111 = vunpack.c.l.s4 1966171168
    %v1112 = vunpack.c.0.s8 %v1111
    %v1113 = vlaneseq
    %v1114 = vshrl.u32 %v1113, 7
    %v1115 = vsub.s32 %v1112, %v1114
    %v1116 = vrot.slane %v1108, %v1115
    %v1118 = vunpack.c.l.s4 1966171168
    %v1119 = vunpack.c.0.s8 %v1118
    %v1120 = vlaneseq
    %v1121 = vshrl.u32 %v1120, 7
    %v1122 = vsub.s32 %v1119, %v1121
    %v1123 = vrot.slane %v1109, %v1122
    %vm1126 = vcmask 122880
    %1127 = vst.msk [vmem:[#allocation2] sm:$0x1] %vm1126, %v1116
    %1128 = vst.msk [vmem:[#allocation2 + $0x8] sm:$0x1] %vm1126, %v1123
    %1129 = vmatprep.subr.mxu0 0.0
    %1130 = vmatpush1.msra.mxu0 0.0
    %1131 = vmatprep.subr.mxu0 0.0
    %1132 = vmatpush1.msra.mxu0 0.0
    %1133 = vmatprep.subr.mxu0 0.0
    %1134 = vmatpush1.msra.mxu0 0.0
    %1135 = vmatprep.subr.mxu0 0.0
    %1136 = vmatpush1.msra.mxu0 0.0
    %1137 = vmatprep.subr.mxu0 0.0
    %1138 = vmatpush1.msra.mxu0 0.0
    %1139 = vmatprep.subr.mxu0 0.0
    %1140 = vmatpush1.msra.mxu0 0.0
    %1141 = vmatprep.subr.mxu0 0.0
    %1142 = vmatpush1.msra.mxu0 0.0
    %1143 = vmatprep.subr.mxu0 0.0
    %1144 = vmatpush1.msra.mxu0 0.0
    %1145 = vmatprep.subr.mxu0 0.0
    %1146 = vmatpush1.msra.mxu0 0.0
    %1147 = vmatprep.subr.mxu0 0.0
    %1148 = vmatpush1.msra.mxu0 0.0
    %1149 = vmatprep.subr.mxu0 0.0
    %1150 = vmatpush1.msra.mxu0 0.0
    %1151 = vmatprep.subr.mxu0 0.0
    %1152 = vmatpush1.msra.mxu0 0.0
    %1153 = vmatprep.subr.mxu0 0.0
    %1154 = vmatpush1.msra.mxu0 %v61
    %1155 = vmatprep.subr.mxu0 0.0
    %1156 = vmatpush1.msra.mxu0 %v60
    %1157 = vmatprep.subr.mxu0 0.0
    %1158 = vmatpush1.msra.mxu0 %v59
    %1159 = vmatprep.subr.mxu0 0.0
    %1160 = vmatpush1.msra.mxu0 %v58
    %1161 = vmatprep.subr.mxu0 0.0
    %1162 = vmatpush2.msra.mxu0 0.0
    %1163 = vmatprep.subr.mxu0 0.0
    %1164 = vmatpush2.msra.mxu0 0.0
    %1165 = vmatprep.subr.mxu0 0.0
    %1166 = vmatpush2.msra.mxu0 0.0
    %1167 = vmatprep.subr.mxu0 0.0
    %1168 = vmatpush2.msra.mxu0 0.0
    %1169 = vmatprep.subr.mxu0 0.0
    %1170 = vmatpush2.msra.mxu0 0.0
    %1171 = vmatprep.subr.mxu0 0.0
    %1172 = vmatpush2.msra.mxu0 0.0
    %1173 = vmatprep.subr.mxu0 0.0
    %1174 = vmatpush2.msra.mxu0 0.0
    %1175 = vmatprep.subr.mxu0 0.0
    %1176 = vmatpush2.msra.mxu0 0.0
    %1177 = vmatprep.subr.mxu0 0.0
    %1178 = vmatpush2.msra.mxu0 0.0
    %1179 = vmatprep.subr.mxu0 0.0
    %1180 = vmatpush2.msra.mxu0 0.0
    %1181 = vmatprep.subr.mxu0 0.0
    %1182 = vmatpush2.msra.mxu0 0.0
    %1183 = vmatprep.subr.mxu0 0.0
    %1184 = vmatpush2.msra.mxu0 0.0
    %1185 = vmatprep.subr.mxu0 0.0
    %1186 = vmatpush2.msra.mxu0 0.0
    %1187 = vmatprep.subr.mxu0 0.0
    %1188 = vmatpush2.msra.mxu0 0.0
    %1189 = vmatprep.subr.mxu0 0.0
    %1190 = vmatpush2.msra.mxu0 0.0
    %1191 = vmatprep.subr.mxu0 0.0
    %1192 = vmatpush2.msra.mxu0 0.0
    %1193 = vmatprep.mubr.f32.mxu0 0.0
    %1194 = vmatmul.mubr.f32.gmra.mxu0 %v935
    %v1195 = vpop.f32.mrf.mxu0
    %v1196 = vadd.f32 0.0, %v1195
    %v1197 = vpop.f32.mrf.mxu0
    %1198 = vdwg.mxu0
    %v1199 = vrot.slane %v43, 1
    %v1200 = vsel %vm176, %v44, %v1199
    %v1201 = vsel %vm178, %v1200, 0
    %1203 = vmatprep.subr.mxu0 0.0
    %1204 = vmatpush1.msra.mxu0 0.0
    %1205 = vmatprep.subr.mxu0 0.0
    %1206 = vmatpush1.msra.mxu0 0.0
    %1207 = vmatprep.subr.mxu0 0.0
    %1208 = vmatpush1.msra.mxu0 0.0
    %1209 = vmatprep.subr.mxu0 0.0
    %1210 = vmatpush1.msra.mxu0 0.0
    %1211 = vmatprep.subr.mxu0 0.0
    %1212 = vmatpush1.msra.mxu0 0.0
    %1213 = vmatprep.subr.mxu0 0.0
    %1214 = vmatpush1.msra.mxu0 0.0
    %1215 = vmatprep.subr.mxu0 0.0
    %1216 = vmatpush1.msra.mxu0 0.0
    %1217 = vmatprep.subr.mxu0 0.0
    %1218 = vmatpush1.msra.mxu0 0.0
    %1219 = vmatprep.subr.mxu0 0.0
    %1220 = vmatpush1.msra.mxu0 0.0
    %1221 = vmatprep.subr.mxu0 0.0
    %1222 = vmatpush1.msra.mxu0 0.0
    %1223 = vmatprep.subr.mxu0 0.0
    %1224 = vmatpush1.msra.mxu0 0.0
    %1225 = vmatprep.subr.mxu0 0.0
    %1226 = vmatpush1.msra.mxu0 0.0
    %1227 = vmatprep.subr.mxu0 0.0
    %1228 = vmatpush1.msra.mxu0 0.0
    %1229 = vmatprep.subr.mxu0 0.0
    %1230 = vmatpush1.msra.mxu0 0.0
    %1231 = vmatprep.subr.mxu0 0.0
    %1232 = vmatpush1.msra.mxu0 %v48
    %1233 = vmatprep.subr.mxu0 0.0
    %1234 = vmatpush1.msra.mxu0 %v47
    %1235 = vmatprep.subr.mxu0 0.0
    %1236 = vmatpush2.msra.mxu0 0.0
    %1237 = vmatprep.subr.mxu0 0.0
    %1238 = vmatpush2.msra.mxu0 0.0
    %1239 = vmatprep.subr.mxu0 0.0
    %1240 = vmatpush2.msra.mxu0 0.0
    %1241 = vmatprep.subr.mxu0 0.0
    %1242 = vmatpush2.msra.mxu0 0.0
    %1243 = vmatprep.subr.mxu0 0.0
    %1244 = vmatpush2.msra.mxu0 0.0
    %1245 = vmatprep.subr.mxu0 0.0
    %1246 = vmatpush2.msra.mxu0 0.0
    %1247 = vmatprep.subr.mxu0 0.0
    %1248 = vmatpush2.msra.mxu0 0.0
    %1249 = vmatprep.subr.mxu0 0.0
    %1250 = vmatpush2.msra.mxu0 0.0
    %1251 = vmatprep.subr.mxu0 0.0
    %1252 = vmatpush2.msra.mxu0 0.0
    %1253 = vmatprep.subr.mxu0 0.0
    %1254 = vmatpush2.msra.mxu0 0.0
    %1255 = vmatprep.subr.mxu0 0.0
    %1256 = vmatpush2.msra.mxu0 0.0
    %1257 = vmatprep.subr.mxu0 0.0
    %1258 = vmatpush2.msra.mxu0 0.0
    %1259 = vmatprep.subr.mxu0 0.0
    %1260 = vmatpush2.msra.mxu0 0.0
    %1261 = vmatprep.subr.mxu0 0.0
    %1262 = vmatpush2.msra.mxu0 0.0
    %1263 = vmatprep.subr.mxu0 0.0
    %1264 = vmatpush2.msra.mxu0 0.0
    %1265 = vmatprep.subr.mxu0 0.0
    %1266 = vmatpush2.msra.mxu0 0.0
    %1267 = vmatprep.mubr.f32.mxu0 0.0
    %1268 = vmatmul.mubr.f32.gmra.mxu0 %v1201
    %v1269 = vpop.f32.mrf.mxu0
    %v1270 = vadd.f32 %v1196, %v1269
    %v1271 = vpop.f32.mrf.mxu0
    %1272 = vdwg.mxu0
    %v1273 = vadd.f32 %v1270, %v255
    %1274 = vmatprep.subr.mxu0 0.0
    %1275 = vmatpush1.msra.mxu0 0.0
    %1276 = vmatprep.subr.mxu0 0.0
    %1277 = vmatpush1.msra.mxu0 0.0
    %1278 = vmatprep.subr.mxu0 0.0
    %1279 = vmatpush1.msra.mxu0 0.0
    %1280 = vmatprep.subr.mxu0 0.0
    %1281 = vmatpush1.msra.mxu0 0.0
    %1282 = vmatprep.subr.mxu0 0.0
    %1283 = vmatpush1.msra.mxu0 0.0
    %1284 = vmatprep.subr.mxu0 0.0
    %1285 = vmatpush1.msra.mxu0 0.0
    %1286 = vmatprep.subr.mxu0 0.0
    %1287 = vmatpush1.msra.mxu0 0.0
    %1288 = vmatprep.subr.mxu0 0.0
    %1289 = vmatpush1.msra.mxu0 0.0
    %1290 = vmatprep.subr.mxu0 0.0
    %1291 = vmatpush1.msra.mxu0 0.0
    %1292 = vmatprep.subr.mxu0 0.0
    %1293 = vmatpush1.msra.mxu0 0.0
    %1294 = vmatprep.subr.mxu0 0.0
    %1295 = vmatpush1.msra.mxu0 0.0
    %1296 = vmatprep.subr.mxu0 0.0
    %1297 = vmatpush1.msra.mxu0 0.0
    %1298 = vmatprep.subr.mxu0 0.0
    %1299 = vmatpush1.msra.mxu0 %v66
    %1300 = vmatprep.subr.mxu0 0.0
    %1301 = vmatpush1.msra.mxu0 %v65
    %1302 = vmatprep.subr.mxu0 0.0
    %1303 = vmatpush1.msra.mxu0 %v64
    %1304 = vmatprep.subr.mxu0 0.0
    %1305 = vmatpush1.msra.mxu0 %v63
    %1306 = vmatprep.subr.mxu0 0.0
    %1307 = vmatpush2.msra.mxu0 0.0
    %1308 = vmatprep.subr.mxu0 0.0
    %1309 = vmatpush2.msra.mxu0 0.0
    %1310 = vmatprep.subr.mxu0 0.0
    %1311 = vmatpush2.msra.mxu0 0.0
    %1312 = vmatprep.subr.mxu0 0.0
    %1313 = vmatpush2.msra.mxu0 0.0
    %1314 = vmatprep.subr.mxu0 0.0
    %1315 = vmatpush2.msra.mxu0 0.0
    %1316 = vmatprep.subr.mxu0 0.0
    %1317 = vmatpush2.msra.mxu0 0.0
    %1318 = vmatprep.subr.mxu0 0.0
    %1319 = vmatpush2.msra.mxu0 0.0
    %1320 = vmatprep.subr.mxu0 0.0
    %1321 = vmatpush2.msra.mxu0 0.0
    %1322 = vmatprep.subr.mxu0 0.0
    %1323 = vmatpush2.msra.mxu0 0.0
    %1324 = vmatprep.subr.mxu0 0.0
    %1325 = vmatpush2.msra.mxu0 0.0
    %1326 = vmatprep.subr.mxu0 0.0
    %1327 = vmatpush2.msra.mxu0 0.0
    %1328 = vmatprep.subr.mxu0 0.0
    %1329 = vmatpush2.msra.mxu0 0.0
    %1330 = vmatprep.subr.mxu0 0.0
    %1331 = vmatpush2.msra.mxu0 0.0
    %1332 = vmatprep.subr.mxu0 0.0
    %1333 = vmatpush2.msra.mxu0 0.0
    %1334 = vmatprep.subr.mxu0 0.0
    %1335 = vmatpush2.msra.mxu0 0.0
    %1336 = vmatprep.subr.mxu0 0.0
    %1337 = vmatpush2.msra.mxu0 0.0
    %1338 = vmatprep.mubr.f32.mxu0 0.0
    %1339 = vmatmul.mubr.f32.gmra.mxu0 %v935
    %v1340 = vpop.f32.mrf.mxu0
    %v1341 = vadd.f32 0.0, %v1340
    %v1342 = vpop.f32.mrf.mxu0
    %1343 = vdwg.mxu0
    %1344 = vmatprep.subr.mxu0 0.0
    %1345 = vmatpush1.msra.mxu0 0.0
    %1346 = vmatprep.subr.mxu0 0.0
    %1347 = vmatpush1.msra.mxu0 0.0
    %1348 = vmatprep.subr.mxu0 0.0
    %1349 = vmatpush1.msra.mxu0 0.0
    %1350 = vmatprep.subr.mxu0 0.0
    %1351 = vmatpush1.msra.mxu0 0.0
    %1352 = vmatprep.subr.mxu0 0.0
    %1353 = vmatpush1.msra.mxu0 0.0
    %1354 = vmatprep.subr.mxu0 0.0
    %1355 = vmatpush1.msra.mxu0 0.0
    %1356 = vmatprep.subr.mxu0 0.0
    %1357 = vmatpush1.msra.mxu0 0.0
    %1358 = vmatprep.subr.mxu0 0.0
    %1359 = vmatpush1.msra.mxu0 0.0
    %1360 = vmatprep.subr.mxu0 0.0
    %1361 = vmatpush1.msra.mxu0 0.0
    %1362 = vmatprep.subr.mxu0 0.0
    %1363 = vmatpush1.msra.mxu0 0.0
    %1364 = vmatprep.subr.mxu0 0.0
    %1365 = vmatpush1.msra.mxu0 0.0
    %1366 = vmatprep.subr.mxu0 0.0
    %1367 = vmatpush1.msra.mxu0 0.0
    %1368 = vmatprep.subr.mxu0 0.0
    %1369 = vmatpush1.msra.mxu0 0.0
    %1370 = vmatprep.subr.mxu0 0.0
    %1371 = vmatpush1.msra.mxu0 0.0
    %1372 = vmatprep.subr.mxu0 0.0
    %1373 = vmatpush1.msra.mxu0 %v51
    %1374 = vmatprep.subr.mxu0 0.0
    %1375 = vmatpush1.msra.mxu0 %v50
    %1376 = vmatprep.subr.mxu0 0.0
    %1377 = vmatpush2.msra.mxu0 0.0
    %1378 = vmatprep.subr.mxu0 0.0
    %1379 = vmatpush2.msra.mxu0 0.0
    %1380 = vmatprep.subr.mxu0 0.0
    %1381 = vmatpush2.msra.mxu0 0.0
    %1382 = vmatprep.subr.mxu0 0.0
    %1383 = vmatpush2.msra.mxu0 0.0
    %1384 = vmatprep.subr.mxu0 0.0
    %1385 = vmatpush2.msra.mxu0 0.0
    %1386 = vmatprep.subr.mxu0 0.0
    %1387 = vmatpush2.msra.mxu0 0.0
    %1388 = vmatprep.subr.mxu0 0.0
    %1389 = vmatpush2.msra.mxu0 0.0
    %1390 = vmatprep.subr.mxu0 0.0
    %1391 = vmatpush2.msra.mxu0 0.0
    %1392 = vmatprep.subr.mxu0 0.0
    %1393 = vmatpush2.msra.mxu0 0.0
    %1394 = vmatprep.subr.mxu0 0.0
    %1395 = vmatpush2.msra.mxu0 0.0
    %1396 = vmatprep.subr.mxu0 0.0
    %1397 = vmatpush2.msra.mxu0 0.0
    %1398 = vmatprep.subr.mxu0 0.0
    %1399 = vmatpush2.msra.mxu0 0.0
    %1400 = vmatprep.subr.mxu0 0.0
    %1401 = vmatpush2.msra.mxu0 0.0
    %1402 = vmatprep.subr.mxu0 0.0
    %1403 = vmatpush2.msra.mxu0 0.0
    %1404 = vmatprep.subr.mxu0 0.0
    %1405 = vmatpush2.msra.mxu0 0.0
    %1406 = vmatprep.subr.mxu0 0.0
    %1407 = vmatpush2.msra.mxu0 0.0
    %1408 = vmatprep.mubr.f32.mxu0 0.0
    %1409 = vmatmul.mubr.f32.gmra.mxu0 %v1201
    %v1410 = vpop.f32.mrf.mxu0
    %v1411 = vadd.f32 %v1341, %v1410
    %v1412 = vpop.f32.mrf.mxu0
    %1413 = vdwg.mxu0
    %v1414 = vadd.f32 %v1411, %v402
    %1415 = vmatprep.subr.mxu0 0.0
    %1416 = vmatpush1.msra.mxu0 0.0
    %1417 = vmatprep.subr.mxu0 0.0
    %1418 = vmatpush1.msra.mxu0 0.0
    %1419 = vmatprep.subr.mxu0 0.0
    %1420 = vmatpush1.msra.mxu0 0.0
    %1421 = vmatprep.subr.mxu0 0.0
    %1422 = vmatpush1.msra.mxu0 0.0
    %1423 = vmatprep.subr.mxu0 0.0
    %1424 = vmatpush1.msra.mxu0 0.0
    %1425 = vmatprep.subr.mxu0 0.0
    %1426 = vmatpush1.msra.mxu0 0.0
    %1427 = vmatprep.subr.mxu0 0.0
    %1428 = vmatpush1.msra.mxu0 0.0
    %1429 = vmatprep.subr.mxu0 0.0
    %1430 = vmatpush1.msra.mxu0 0.0
    %1431 = vmatprep.subr.mxu0 0.0
    %1432 = vmatpush1.msra.mxu0 0.0
    %1433 = vmatprep.subr.mxu0 0.0
    %1434 = vmatpush1.msra.mxu0 0.0
    %1435 = vmatprep.subr.mxu0 0.0
    %1436 = vmatpush1.msra.mxu0 0.0
    %1437 = vmatprep.subr.mxu0 0.0
    %1438 = vmatpush1.msra.mxu0 0.0
    %1439 = vmatprep.subr.mxu0 0.0
    %1440 = vmatpush1.msra.mxu0 %v71
    %1441 = vmatprep.subr.mxu0 0.0
    %1442 = vmatpush1.msra.mxu0 %v70
    %1443 = vmatprep.subr.mxu0 0.0
    %1444 = vmatpush1.msra.mxu0 %v69
    %1445 = vmatprep.subr.mxu0 0.0
    %1446 = vmatpush1.msra.mxu0 %v68
    %1447 = vmatprep.subr.mxu0 0.0
    %1448 = vmatpush2.msra.mxu0 0.0
    %1449 = vmatprep.subr.mxu0 0.0
    %1450 = vmatpush2.msra.mxu0 0.0
    %1451 = vmatprep.subr.mxu0 0.0
    %1452 = vmatpush2.msra.mxu0 0.0
    %1453 = vmatprep.subr.mxu0 0.0
    %1454 = vmatpush2.msra.mxu0 0.0
    %1455 = vmatprep.subr.mxu0 0.0
    %1456 = vmatpush2.msra.mxu0 0.0
    %1457 = vmatprep.subr.mxu0 0.0
    %1458 = vmatpush2.msra.mxu0 0.0
    %1459 = vmatprep.subr.mxu0 0.0
    %1460 = vmatpush2.msra.mxu0 0.0
    %1461 = vmatprep.subr.mxu0 0.0
    %1462 = vmatpush2.msra.mxu0 0.0
    %1463 = vmatprep.subr.mxu0 0.0
    %1464 = vmatpush2.msra.mxu0 0.0
    %1465 = vmatprep.subr.mxu0 0.0
    %1466 = vmatpush2.msra.mxu0 0.0
    %1467 = vmatprep.subr.mxu0 0.0
    %1468 = vmatpush2.msra.mxu0 0.0
    %1469 = vmatprep.subr.mxu0 0.0
    %1470 = vmatpush2.msra.mxu0 0.0
    %1471 = vmatprep.subr.mxu0 0.0
    %1472 = vmatpush2.msra.mxu0 0.0
    %1473 = vmatprep.subr.mxu0 0.0
    %1474 = vmatpush2.msra.mxu0 0.0
    %1475 = vmatprep.subr.mxu0 0.0
    %1476 = vmatpush2.msra.mxu0 0.0
    %1477 = vmatprep.subr.mxu0 0.0
    %1478 = vmatpush2.msra.mxu0 0.0
    %1479 = vmatprep.mubr.f32.mxu0 0.0
    %1480 = vmatmul.mubr.f32.gmra.mxu0 %v935
    %v1481 = vpop.f32.mrf.mxu0
    %v1482 = vadd.f32 0.0, %v1481
    %v1483 = vpop.f32.mrf.mxu0
    %1484 = vdwg.mxu0
    %1485 = vmatprep.subr.mxu0 0.0
    %1486 = vmatpush1.msra.mxu0 0.0
    %1487 = vmatprep.subr.mxu0 0.0
    %1488 = vmatpush1.msra.mxu0 0.0
    %1489 = vmatprep.subr.mxu0 0.0
    %1490 = vmatpush1.msra.mxu0 0.0
    %1491 = vmatprep.subr.mxu0 0.0
    %1492 = vmatpush1.msra.mxu0 0.0
    %1493 = vmatprep.subr.mxu0 0.0
    %1494 = vmatpush1.msra.mxu0 0.0
    %1495 = vmatprep.subr.mxu0 0.0
    %1496 = vmatpush1.msra.mxu0 0.0
    %1497 = vmatprep.subr.mxu0 0.0
    %1498 = vmatpush1.msra.mxu0 0.0
    %1499 = vmatprep.subr.mxu0 0.0
    %1500 = vmatpush1.msra.mxu0 0.0
    %1501 = vmatprep.subr.mxu0 0.0
    %1502 = vmatpush1.msra.mxu0 0.0
    %1503 = vmatprep.subr.mxu0 0.0
    %1504 = vmatpush1.msra.mxu0 0.0
    %1505 = vmatprep.subr.mxu0 0.0
    %1506 = vmatpush1.msra.mxu0 0.0
    %1507 = vmatprep.subr.mxu0 0.0
    %1508 = vmatpush1.msra.mxu0 0.0
    %1509 = vmatprep.subr.mxu0 0.0
    %1510 = vmatpush1.msra.mxu0 0.0
    %1511 = vmatprep.subr.mxu0 0.0
    %1512 = vmatpush1.msra.mxu0 0.0
    %1513 = vmatprep.subr.mxu0 0.0
    %1514 = vmatpush1.msra.mxu0 %v54
    %1515 = vmatprep.subr.mxu0 0.0
    %1516 = vmatpush1.msra.mxu0 %v53
    %1517 = vmatprep.subr.mxu0 0.0
    %1518 = vmatpush2.msra.mxu0 0.0
    %1519 = vmatprep.subr.mxu0 0.0
    %1520 = vmatpush2.msra.mxu0 0.0
    %1521 = vmatprep.subr.mxu0 0.0
    %1522 = vmatpush2.msra.mxu0 0.0
    %1523 = vmatprep.subr.mxu0 0.0
    %1524 = vmatpush2.msra.mxu0 0.0
    %1525 = vmatprep.subr.mxu0 0.0
    %1526 = vmatpush2.msra.mxu0 0.0
    %1527 = vmatprep.subr.mxu0 0.0
    %1528 = vmatpush2.msra.mxu0 0.0
    %1529 = vmatprep.subr.mxu0 0.0
    %1530 = vmatpush2.msra.mxu0 0.0
    %1531 = vmatprep.subr.mxu0 0.0
    %1532 = vmatpush2.msra.mxu0 0.0
    %1533 = vmatprep.subr.mxu0 0.0
    %1534 = vmatpush2.msra.mxu0 0.0
    %1535 = vmatprep.subr.mxu0 0.0
    %1536 = vmatpush2.msra.mxu0 0.0
    %1537 = vmatprep.subr.mxu0 0.0
    %1538 = vmatpush2.msra.mxu0 0.0
    %1539 = vmatprep.subr.mxu0 0.0
    %1540 = vmatpush2.msra.mxu0 0.0
    %1541 = vmatprep.subr.mxu0 0.0
    %1542 = vmatpush2.msra.mxu0 0.0
    %1543 = vmatprep.subr.mxu0 0.0
    %1544 = vmatpush2.msra.mxu0 0.0
    %1545 = vmatprep.subr.mxu0 0.0
    %1546 = vmatpush2.msra.mxu0 0.0
    %1547 = vmatprep.subr.mxu0 0.0
    %1548 = vmatpush2.msra.mxu0 0.0
    %1549 = vmatprep.mubr.f32.mxu0 0.0
    %1550 = vmatmul.mubr.f32.gmra.mxu0 %v1201
    %v1551 = vpop.f32.mrf.mxu0
    %v1552 = vadd.f32 %v1482, %v1551
    %v1553 = vpop.f32.mrf.mxu0
    %1554 = vdwg.mxu0
    %v1555 = vadd.f32 %v1552, %v549
    %1556 = vmatprep.subr.mxu0 0.0
    %1557 = vmatpush1.msra.mxu0 0.0
    %1558 = vmatprep.subr.mxu0 0.0
    %1559 = vmatpush1.msra.mxu0 0.0
    %1560 = vmatprep.subr.mxu0 0.0
    %1561 = vmatpush1.msra.mxu0 0.0
    %1562 = vmatprep.subr.mxu0 0.0
    %1563 = vmatpush1.msra.mxu0 0.0
    %1564 = vmatprep.subr.mxu0 0.0
    %1565 = vmatpush1.msra.mxu0 0.0
    %1566 = vmatprep.subr.mxu0 0.0
    %1567 = vmatpush1.msra.mxu0 0.0
    %1568 = vmatprep.subr.mxu0 0.0
    %1569 = vmatpush1.msra.mxu0 0.0
    %1570 = vmatprep.subr.mxu0 0.0
    %1571 = vmatpush1.msra.mxu0 0.0
    %1572 = vmatprep.subr.mxu0 0.0
    %1573 = vmatpush1.msra.mxu0 0.0
    %1574 = vmatprep.subr.mxu0 0.0
    %1575 = vmatpush1.msra.mxu0 0.0
    %1576 = vmatprep.subr.mxu0 0.0
    %1577 = vmatpush1.msra.mxu0 0.0
    %1578 = vmatprep.subr.mxu0 0.0
    %1579 = vmatpush1.msra.mxu0 0.0
    %1580 = vmatprep.subr.mxu0 0.0
    %1581 = vmatpush1.msra.mxu0 %v76
    %1582 = vmatprep.subr.mxu0 0.0
    %1583 = vmatpush1.msra.mxu0 %v75
    %1584 = vmatprep.subr.mxu0 0.0
    %1585 = vmatpush1.msra.mxu0 %v74
    %1586 = vmatprep.subr.mxu0 0.0
    %1587 = vmatpush1.msra.mxu0 %v73
    %1588 = vmatprep.subr.mxu0 0.0
    %1589 = vmatpush2.msra.mxu0 0.0
    %1590 = vmatprep.subr.mxu0 0.0
    %1591 = vmatpush2.msra.mxu0 0.0
    %1592 = vmatprep.subr.mxu0 0.0
    %1593 = vmatpush2.msra.mxu0 0.0
    %1594 = vmatprep.subr.mxu0 0.0
    %1595 = vmatpush2.msra.mxu0 0.0
    %1596 = vmatprep.subr.mxu0 0.0
    %1597 = vmatpush2.msra.mxu0 0.0
    %1598 = vmatprep.subr.mxu0 0.0
    %1599 = vmatpush2.msra.mxu0 0.0
    %1600 = vmatprep.subr.mxu0 0.0
    %1601 = vmatpush2.msra.mxu0 0.0
    %1602 = vmatprep.subr.mxu0 0.0
    %1603 = vmatpush2.msra.mxu0 0.0
    %1604 = vmatprep.subr.mxu0 0.0
    %1605 = vmatpush2.msra.mxu0 0.0
    %1606 = vmatprep.subr.mxu0 0.0
    %1607 = vmatpush2.msra.mxu0 0.0
    %1608 = vmatprep.subr.mxu0 0.0
    %1609 = vmatpush2.msra.mxu0 0.0
    %1610 = vmatprep.subr.mxu0 0.0
    %1611 = vmatpush2.msra.mxu0 0.0
    %1612 = vmatprep.subr.mxu0 0.0
    %1613 = vmatpush2.msra.mxu0 0.0
    %1614 = vmatprep.subr.mxu0 0.0
    %1615 = vmatpush2.msra.mxu0 0.0
    %1616 = vmatprep.subr.mxu0 0.0
    %1617 = vmatpush2.msra.mxu0 0.0
    %1618 = vmatprep.subr.mxu0 0.0
    %1619 = vmatpush2.msra.mxu0 0.0
    %1620 = vmatprep.mubr.f32.mxu0 0.0
    %1621 = vmatmul.mubr.f32.gmra.mxu0 %v935
    %v1622 = vpop.f32.mrf.mxu0
    %v1623 = vadd.f32 0.0, %v1622
    %v1624 = vpop.f32.mrf.mxu0
    %1625 = vdwg.mxu0
    %1626 = vmatprep.subr.mxu0 0.0
    %1627 = vmatpush1.msra.mxu0 0.0
    %1628 = vmatprep.subr.mxu0 0.0
    %1629 = vmatpush1.msra.mxu0 0.0
    %1630 = vmatprep.subr.mxu0 0.0
    %1631 = vmatpush1.msra.mxu0 0.0
    %1632 = vmatprep.subr.mxu0 0.0
    %1633 = vmatpush1.msra.mxu0 0.0
    %1634 = vmatprep.subr.mxu0 0.0
    %1635 = vmatpush1.msra.mxu0 0.0
    %1636 = vmatprep.subr.mxu0 0.0
    %1637 = vmatpush1.msra.mxu0 0.0
    %1638 = vmatprep.subr.mxu0 0.0
    %1639 = vmatpush1.msra.mxu0 0.0
    %1640 = vmatprep.subr.mxu0 0.0
    %1641 = vmatpush1.msra.mxu0 0.0
    %1642 = vmatprep.subr.mxu0 0.0
    %1643 = vmatpush1.msra.mxu0 0.0
    %1644 = vmatprep.subr.mxu0 0.0
    %1645 = vmatpush1.msra.mxu0 0.0
    %1646 = vmatprep.subr.mxu0 0.0
    %1647 = vmatpush1.msra.mxu0 0.0
    %1648 = vmatprep.subr.mxu0 0.0
    %1649 = vmatpush1.msra.mxu0 0.0
    %1650 = vmatprep.subr.mxu0 0.0
    %1651 = vmatpush1.msra.mxu0 0.0
    %1652 = vmatprep.subr.mxu0 0.0
    %1653 = vmatpush1.msra.mxu0 0.0
    %1654 = vmatprep.subr.mxu0 0.0
    %1655 = vmatpush1.msra.mxu0 %v57
    %1656 = vmatprep.subr.mxu0 0.0
    %1657 = vmatpush1.msra.mxu0 %v56
    %1658 = vmatprep.subr.mxu0 0.0
    %1659 = vmatpush2.msra.mxu0 0.0
    %1660 = vmatprep.subr.mxu0 0.0
    %1661 = vmatpush2.msra.mxu0 0.0
    %1662 = vmatprep.subr.mxu0 0.0
    %1663 = vmatpush2.msra.mxu0 0.0
    %1664 = vmatprep.subr.mxu0 0.0
    %1665 = vmatpush2.msra.mxu0 0.0
    %1666 = vmatprep.subr.mxu0 0.0
    %1667 = vmatpush2.msra.mxu0 0.0
    %1668 = vmatprep.subr.mxu0 0.0
    %1669 = vmatpush2.msra.mxu0 0.0
    %1670 = vmatprep.subr.mxu0 0.0
    %1671 = vmatpush2.msra.mxu0 0.0
    %1672 = vmatprep.subr.mxu0 0.0
    %1673 = vmatpush2.msra.mxu0 0.0
    %1674 = vmatprep.subr.mxu0 0.0
    %1675 = vmatpush2.msra.mxu0 0.0
    %1676 = vmatprep.subr.mxu0 0.0
    %1677 = vmatpush2.msra.mxu0 0.0
    %1678 = vmatprep.subr.mxu0 0.0
    %1679 = vmatpush2.msra.mxu0 0.0
    %1680 = vmatprep.subr.mxu0 0.0
    %1681 = vmatpush2.msra.mxu0 0.0
    %1682 = vmatprep.subr.mxu0 0.0
    %1683 = vmatpush2.msra.mxu0 0.0
    %1684 = vmatprep.subr.mxu0 0.0
    %1685 = vmatpush2.msra.mxu0 0.0
    %1686 = vmatprep.subr.mxu0 0.0
    %1687 = vmatpush2.msra.mxu0 0.0
    %1688 = vmatprep.subr.mxu0 0.0
    %1689 = vmatpush2.msra.mxu0 0.0
    %1690 = vmatprep.mubr.f32.mxu0 0.0
    %1691 = vmatmul.mubr.f32.gmra.mxu0 %v1201
    %v1692 = vpop.f32.mrf.mxu0
    %v1693 = vadd.f32 %v1623, %v1692
    %v1694 = vpop.f32.mrf.mxu0
    %1695 = vdwg.mxu0
    %v1696 = vadd.f32 %v1693, %v696
    %v1697 = vxor.u32 %v1273, 2147483648
    %v1698 = vmul.f32 %v1697, 1.442695
    %v1699 = vpow.pop %v1698
    %v1700 = vadd.f32 %v1699, 1.0
    %v1701 = vrcp.pop %v1700
    %v1702 = vmul.f32 1.0, %v1701
    %v1703 = vxor.u32 %v1414, 2147483648
    %v1704 = vmul.f32 %v1703, 1.442695
    %v1705 = vpow.pop %v1704
    %v1706 = vadd.f32 %v1705, 1.0
    %v1707 = vrcp.pop %v1706
    %v1708 = vmul.f32 1.0, %v1707
    %v1709 = vtanh.pop %v1555
    %v1710 = vxor.u32 %v1696, 2147483648
    %v1711 = vmul.f32 %v1710, 1.442695
    %v1712 = vpow.pop %v1711
    %v1713 = vadd.f32 %v1712, 1.0
    %v1714 = vrcp.pop %v1713
    %v1715 = vmul.f32 1.0, %v1714
    %v1716 = vmul.f32 %v1708, %v720
    %v1717 = vmul.f32 %v1702, %v1709
    %v1718 = vadd.f32 %v1716, %v1717
    %v1719 = vtanh.pop %v1718
    %v1720 = vmul.f32 %v1715, %v1719
    %v1723 = vunpack.c.l.s4 1966171168
    %v1724 = vunpack.c.0.s8 %v1723
    %v1725 = vlaneseq
    %v1726 = vshrl.u32 %v1725, 7
    %v1727 = vsub.s32 %v1724, %v1726
    %v1728 = vrot.slane %v1720, %v1727
    %v1729 = vcombine.high %v1728, %v1728
    %v1731 = vunpack.c.l.s4 1966171168
    %v1732 = vunpack.c.0.s8 %v1731
    %v1733 = vlaneseq
    %v1734 = vshrl.u32 %v1733, 7
    %v1735 = vsub.s32 %v1732, %v1734
    %v1736 = vrot.slane %v1728, %v1735
    %v1738 = vunpack.c.l.s4 1966171168
    %v1739 = vunpack.c.0.s8 %v1738
    %v1740 = vlaneseq
    %v1741 = vshrl.u32 %v1740, 7
    %v1742 = vsub.s32 %v1739, %v1741
    %v1743 = vrot.slane %v1729, %v1742
    %v1744 = vlaneseq
    %v1745 = vshrl.u32 %v1744, 7
    %v1746 = vsub.s32 0, %v1745
    %v1747 = vrot.slane %v1736, %v1746
    %v1748 = vlaneseq
    %v1749 = vshrl.u32 %v1748, 7
    %v1750 = vsub.s32 0, %v1749
    %v1751 = vrot.slane %v1743, %v1750
    %v1754 = vmul.f32 %v45, %v1747
    %v1755 = vmul.f32 %v46, %v1751
    %v1756 = vsel %vm99, %v1754, 0.0
    %1757 = vadd.xlane.f32.xlu0 %v1756
    %v1758 = vpop.xlane.xlu0 %1757
    %v1759 = vsel %vm99, %v1755, 0.0
    %1760 = vadd.xlane.f32.xlu0 %v1759
    %v1761 = vpop.xlane.xlu0 %1760
    %v1764 = vlaneseq
    %v1765 = vshrl.u32 %v1764, 7
    %v1766 = vsub.s32 %v767, %v1765
    %v1767 = vrot.slane %v1758, %v1766
    %v1768 = vlaneseq
    %v1769 = vshrl.u32 %v1768, 7
    %v1770 = vsub.s32 %v767, %v1769
    %v1771 = vrot.slane %v1761, %v1770
    %v1772 = vsel %vm176, %v1771, %v1767
    %v1774 = vsel %vm778, %v1772, -inf
    %1775 = vmax.xlane.f32.xlu0 %v1774
    %v1776 = vpop.xlane.xlu0 %1775
    %v1778 = vlaneseq
    %v1779 = vshrl.u32 %v1778, 7
    %v1780 = vsub.s32 0, %v1779
    %v1781 = vrot.slane %v1776, %v1780
    %v1782 = vlaneseq
    %v1783 = vshrl.u32 %v1782, 7
    %v1784 = vsub.s32 1, %v1783
    %v1785 = vrot.slane %v1776, %v1784
    %v1788 = vsub.f32 %v1758, %v1781
    %v1789 = vsub.f32 %v1761, %v1785
    %v1790 = vmul.f32 %v1788, 1.442695
    %v1791 = vpow.pop %v1790
    %v1792 = vmul.f32 %v1789, 1.442695
    %v1793 = vpow.pop %v1792
    %1796 = vset.pattern.permute.xlu0 0
    %1797 = vperm.xlu0 %1796, %v1791
    %v1798 = vpop.permute.xlu0 %1797
    %1799 = vset.pattern.permute.xlu0 0
    %1800 = vperm.xlu0 %1799, %v1793
    %v1801 = vpop.permute.xlu0 %1800
    %v1802 = vlaneseq
    %v1803 = vshrl.u32 %v1802, 7
    %v1804 = vsub.s32 %v767, %v1803
    %v1805 = vrot.slane %v1798, %v1804
    %v1806 = vlaneseq
    %v1807 = vshrl.u32 %v1806, 7
    %v1808 = vsub.s32 %v767, %v1807
    %v1809 = vrot.slane %v1801, %v1808
    %v1810 = vsel %vm176, %v1809, %v1805
    %v1812 = vsel %vm778, %v1810, 0.0
    %1813 = vadd.xlane.f32.xlu0 %v1812
    %v1814 = vpop.xlane.xlu0 %1813
    %v1815 = vrcp.pop %v1814
    %v1817 = vlaneseq
    %v1818 = vshrl.u32 %v1817, 7
    %v1819 = vsub.s32 0, %v1818
    %v1820 = vrot.slane %v1815, %v1819
    %v1821 = vlaneseq
    %v1822 = vshrl.u32 %v1821, 7
    %v1823 = vsub.s32 1, %v1822
    %v1824 = vrot.slane %v1815, %v1823
    %v1827 = vmul.f32 %v1791, %v1820
    %v1828 = vmul.f32 %v1793, %v1824
    %1830 = vset.pattern.permute.xlu0 0
    %1831 = vperm.xlu0 %1830, %v1827
    %v1832 = vpop.permute.xlu0 %1831
    %1835 = vset.pattern.permute.xlu0 0
    %1836 = vperm.xlu0 %1835, %v1828
    %v1837 = vpop.permute.xlu0 %1836
    %v1839 = vmul.f32 %v1832, %v45
    %v1840 = vmul.f32 %v1837, %v46
    %v1841 = vsel %vm99, %v1839, 0.0
    %v1842 = vrot.slane %v1841, 4
    %v1843 = vadd.f32 %v1841, %v1842
    %v1844 = vrot.slane %v1843, 2
    %v1845 = vadd.f32 %v1843, %v1844
    %v1846 = vrot.slane %v1845, 1
    %v1847 = vadd.f32 %v1845, %v1846
    %v1848 = vsel %vm99, %v1840, 0.0
    %v1849 = vrot.slane %v1848, 4
    %v1850 = vadd.f32 %v1848, %v1849
    %v1851 = vrot.slane %v1850, 2
    %v1852 = vadd.f32 %v1850, %v1851
    %v1853 = vrot.slane %v1852, 1
    %v1854 = vadd.f32 %v1852, %v1853
    %v1857 = vsel %vm176, %v1854, %v1847
    %v1858 = vsel %vm99, %v1857, 0
    %1860 = vmatprep.subr.mxu0 0.0
    %1861 = vmatpush1.msra.mxu0 0.0
    %1862 = vmatprep.subr.mxu0 0.0
    %1863 = vmatpush1.msra.mxu0 0.0
    %1864 = vmatprep.subr.mxu0 0.0
    %1865 = vmatpush1.msra.mxu0 0.0
    %1866 = vmatprep.subr.mxu0 0.0
    %1867 = vmatpush1.msra.mxu0 0.0
    %1868 = vmatprep.subr.mxu0 0.0
    %1869 = vmatpush1.msra.mxu0 0.0
    %1870 = vmatprep.subr.mxu0 0.0
    %1871 = vmatpush1.msra.mxu0 0.0
    %1872 = vmatprep.subr.mxu0 0.0
    %1873 = vmatpush1.msra.mxu0 0.0
    %1874 = vmatprep.subr.mxu0 0.0
    %1875 = vmatpush1.msra.mxu0 0.0
    %1876 = vmatprep.subr.mxu0 0.0
    %1877 = vmatpush1.msra.mxu0 0.0
    %1878 = vmatprep.subr.mxu0 0.0
    %1879 = vmatpush1.msra.mxu0 0.0
    %1880 = vmatprep.subr.mxu0 0.0
    %1881 = vmatpush1.msra.mxu0 0.0
    %1882 = vmatprep.subr.mxu0 0.0
    %1883 = vmatpush1.msra.mxu0 0.0
    %1884 = vmatprep.subr.mxu0 0.0
    %1885 = vmatpush1.msra.mxu0 %v91
    %1886 = vmatprep.subr.mxu0 0.0
    %1887 = vmatpush1.msra.mxu0 %v90
    %1888 = vmatprep.subr.mxu0 0.0
    %1889 = vmatpush1.msra.mxu0 %v89
    %1890 = vmatprep.subr.mxu0 0.0
    %1891 = vmatpush1.msra.mxu0 %v88
    %1892 = vmatprep.subr.mxu0 0.0
    %1893 = vmatpush2.msra.mxu0 0.0
    %1894 = vmatprep.subr.mxu0 0.0
    %1895 = vmatpush2.msra.mxu0 0.0
    %1896 = vmatprep.subr.mxu0 0.0
    %1897 = vmatpush2.msra.mxu0 0.0
    %1898 = vmatprep.subr.mxu0 0.0
    %1899 = vmatpush2.msra.mxu0 0.0
    %1900 = vmatprep.subr.mxu0 0.0
    %1901 = vmatpush2.msra.mxu0 0.0
    %1902 = vmatprep.subr.mxu0 0.0
    %1903 = vmatpush2.msra.mxu0 0.0
    %1904 = vmatprep.subr.mxu0 0.0
    %1905 = vmatpush2.msra.mxu0 0.0
    %1906 = vmatprep.subr.mxu0 0.0
    %1907 = vmatpush2.msra.mxu0 0.0
    %1908 = vmatprep.subr.mxu0 0.0
    %1909 = vmatpush2.msra.mxu0 0.0
    %1910 = vmatprep.subr.mxu0 0.0
    %1911 = vmatpush2.msra.mxu0 0.0
    %1912 = vmatprep.subr.mxu0 0.0
    %1913 = vmatpush2.msra.mxu0 0.0
    %1914 = vmatprep.subr.mxu0 0.0
    %1915 = vmatpush2.msra.mxu0 0.0
    %1916 = vmatprep.subr.mxu0 0.0
    %1917 = vmatpush2.msra.mxu0 0.0
    %1918 = vmatprep.subr.mxu0 0.0
    %1919 = vmatpush2.msra.mxu0 0.0
    %1920 = vmatprep.subr.mxu0 0.0
    %1921 = vmatpush2.msra.mxu0 0.0
    %1922 = vmatprep.subr.mxu0 0.0
    %1923 = vmatpush2.msra.mxu0 0.0
    %1924 = vmatprep.mubr.f32.mxu0 0.0
    %1925 = vmatmul.mubr.f32.gmra.mxu0 %v1858
    %v1926 = vpop.f32.mrf.mxu0
    %v1927 = vadd.f32 0.0, %v1926
    %v1928 = vpop.f32.mrf.mxu0
    %1929 = vdwg.mxu0
    %v1930 = vsel %vm99, %v1720, 0
    %1932 = vmatprep.subr.mxu0 0.0
    %1933 = vmatpush1.msra.mxu0 0.0
    %1934 = vmatprep.subr.mxu0 0.0
    %1935 = vmatpush1.msra.mxu0 0.0
    %1936 = vmatprep.subr.mxu0 0.0
    %1937 = vmatpush1.msra.mxu0 0.0
    %1938 = vmatprep.subr.mxu0 0.0
    %1939 = vmatpush1.msra.mxu0 0.0
    %1940 = vmatprep.subr.mxu0 0.0
    %1941 = vmatpush1.msra.mxu0 0.0
    %1942 = vmatprep.subr.mxu0 0.0
    %1943 = vmatpush1.msra.mxu0 0.0
    %1944 = vmatprep.subr.mxu0 0.0
    %1945 = vmatpush1.msra.mxu0 0.0
    %1946 = vmatprep.subr.mxu0 0.0
    %1947 = vmatpush1.msra.mxu0 0.0
    %1948 = vmatprep.subr.mxu0 0.0
    %1949 = vmatpush1.msra.mxu0 0.0
    %1950 = vmatprep.subr.mxu0 0.0
    %1951 = vmatpush1.msra.mxu0 0.0
    %1952 = vmatprep.subr.mxu0 0.0
    %1953 = vmatpush1.msra.mxu0 0.0
    %1954 = vmatprep.subr.mxu0 0.0
    %1955 = vmatpush1.msra.mxu0 0.0
    %1956 = vmatprep.subr.mxu0 0.0
    %1957 = vmatpush1.msra.mxu0 %v87
    %1958 = vmatprep.subr.mxu0 0.0
    %1959 = vmatpush1.msra.mxu0 %v86
    %1960 = vmatprep.subr.mxu0 0.0
    %1961 = vmatpush1.msra.mxu0 %v85
    %1962 = vmatprep.subr.mxu0 0.0
    %1963 = vmatpush1.msra.mxu0 %v84
    %1964 = vmatprep.subr.mxu0 0.0
    %1965 = vmatpush2.msra.mxu0 0.0
    %1966 = vmatprep.subr.mxu0 0.0
    %1967 = vmatpush2.msra.mxu0 0.0
    %1968 = vmatprep.subr.mxu0 0.0
    %1969 = vmatpush2.msra.mxu0 0.0
    %1970 = vmatprep.subr.mxu0 0.0
    %1971 = vmatpush2.msra.mxu0 0.0
    %1972 = vmatprep.subr.mxu0 0.0
    %1973 = vmatpush2.msra.mxu0 0.0
    %1974 = vmatprep.subr.mxu0 0.0
    %1975 = vmatpush2.msra.mxu0 0.0
    %1976 = vmatprep.subr.mxu0 0.0
    %1977 = vmatpush2.msra.mxu0 0.0
    %1978 = vmatprep.subr.mxu0 0.0
    %1979 = vmatpush2.msra.mxu0 0.0
    %1980 = vmatprep.subr.mxu0 0.0
    %1981 = vmatpush2.msra.mxu0 0.0
    %1982 = vmatprep.subr.mxu0 0.0
    %1983 = vmatpush2.msra.mxu0 0.0
    %1984 = vmatprep.subr.mxu0 0.0
    %1985 = vmatpush2.msra.mxu0 0.0
    %1986 = vmatprep.subr.mxu0 0.0
    %1987 = vmatpush2.msra.mxu0 0.0
    %1988 = vmatprep.subr.mxu0 0.0
    %1989 = vmatpush2.msra.mxu0 0.0
    %1990 = vmatprep.subr.mxu0 0.0
    %1991 = vmatpush2.msra.mxu0 0.0
    %1992 = vmatprep.subr.mxu0 0.0
    %1993 = vmatpush2.msra.mxu0 0.0
    %1994 = vmatprep.subr.mxu0 0.0
    %1995 = vmatpush2.msra.mxu0 0.0
    %1996 = vmatprep.mubr.f32.mxu0 0.0
    %1997 = vmatmul.mubr.f32.gmra.mxu0 %v1930
    %v1998 = vpop.f32.mrf.mxu0
    %v1999 = vadd.f32 %v1927, %v1998
    %v2000 = vpop.f32.mrf.mxu0
    %2001 = vdwg.mxu0
    %v2002 = vtanh.pop %v1999
    %v2004 = vsel %vm99, %v2002, 0
    %2006 = vmatprep.subr.mxu0 0.0
    %2007 = vmatpush1.msra.mxu0 0.0
    %2008 = vmatprep.subr.mxu0 0.0
    %2009 = vmatpush1.msra.mxu0 0.0
    %2010 = vmatprep.subr.mxu0 0.0
    %2011 = vmatpush1.msra.mxu0 0.0
    %2012 = vmatprep.subr.mxu0 0.0
    %2013 = vmatpush1.msra.mxu0 0.0
    %2014 = vmatprep.subr.mxu0 0.0
    %2015 = vmatpush1.msra.mxu0 0.0
    %2016 = vmatprep.subr.mxu0 0.0
    %2017 = vmatpush1.msra.mxu0 0.0
    %2018 = vmatprep.subr.mxu0 0.0
    %2019 = vmatpush1.msra.mxu0 0.0
    %2020 = vmatprep.subr.mxu0 0.0
    %2021 = vmatpush1.msra.mxu0 0.0
    %2022 = vmatprep.subr.mxu0 0.0
    %2023 = vmatpush1.msra.mxu0 0.0
    %2024 = vmatprep.subr.mxu0 0.0
    %2025 = vmatpush1.msra.mxu0 0.0
    %2026 = vmatprep.subr.mxu0 0.0
    %2027 = vmatpush1.msra.mxu0 0.0
    %2028 = vmatprep.subr.mxu0 0.0
    %2029 = vmatpush1.msra.mxu0 0.0
    %2030 = vmatprep.subr.mxu0 0.0
    %2031 = vmatpush1.msra.mxu0 %v95
    %2032 = vmatprep.subr.mxu0 0.0
    %2033 = vmatpush1.msra.mxu0 %v94
    %2034 = vmatprep.subr.mxu0 0.0
    %2035 = vmatpush1.msra.mxu0 %v93
    %2036 = vmatprep.subr.mxu0 0.0
    %2037 = vmatpush1.msra.mxu0 %v92
    %2038 = vmatprep.subr.mxu0 0.0
    %2039 = vmatpush2.msra.mxu0 0.0
    %2040 = vmatprep.subr.mxu0 0.0
    %2041 = vmatpush2.msra.mxu0 0.0
    %2042 = vmatprep.subr.mxu0 0.0
    %2043 = vmatpush2.msra.mxu0 0.0
    %2044 = vmatprep.subr.mxu0 0.0
    %2045 = vmatpush2.msra.mxu0 0.0
    %2046 = vmatprep.subr.mxu0 0.0
    %2047 = vmatpush2.msra.mxu0 0.0
    %2048 = vmatprep.subr.mxu0 0.0
    %2049 = vmatpush2.msra.mxu0 0.0
    %2050 = vmatprep.subr.mxu0 0.0
    %2051 = vmatpush2.msra.mxu0 0.0
    %2052 = vmatprep.subr.mxu0 0.0
    %2053 = vmatpush2.msra.mxu0 0.0
    %2054 = vmatprep.subr.mxu0 0.0
    %2055 = vmatpush2.msra.mxu0 0.0
    %2056 = vmatprep.subr.mxu0 0.0
    %2057 = vmatpush2.msra.mxu0 0.0
    %2058 = vmatprep.subr.mxu0 0.0
    %2059 = vmatpush2.msra.mxu0 0.0
    %2060 = vmatprep.subr.mxu0 0.0
    %2061 = vmatpush2.msra.mxu0 0.0
    %2062 = vmatprep.subr.mxu0 0.0
    %2063 = vmatpush2.msra.mxu0 0.0
    %2064 = vmatprep.subr.mxu0 0.0
    %2065 = vmatpush2.msra.mxu0 0.0
    %2066 = vmatprep.subr.mxu0 0.0
    %2067 = vmatpush2.msra.mxu0 0.0
    %2068 = vmatprep.subr.mxu0 0.0
    %2069 = vmatpush2.msra.mxu0 0.0
    %2070 = vmatprep.mubr.f32.mxu0 0.0
    %2071 = vmatmul.mubr.f32.gmra.mxu0 %v2004
    %v2072 = vpop.f32.mrf.mxu0
    %v2073 = vadd.f32 %v1012, %v2072
    %v2074 = vpop.f32.mrf.mxu0
    %2075 = vdwg.mxu0
    %v2076 = vsel %vm1087, %v2073, -inf
    %2077 = vmax.xlane.f32.xlu0 %v2076
    %v2078 = vpop.xlane.xlu0 %2077
    %v2079 = vsub.f32 %v2073, %v2078
    %v2080 = vmul.f32 %v2079, 1.442695
    %v2081 = vpow.pop %v2080
    %v2082 = vsel %vm1087, %v2081, 0.0
    %2083 = vadd.xlane.f32.xlu0 %v2082
    %v2084 = vpop.xlane.xlu0 %2083
    %v2085 = vlog2.pop %v2084
    %v2086 = vmul.f32 %v2085, 0.6931472
    %v2087 = vadd.f32 %v2078, %v2086
    %v2088 = vsub.f32 %v2073, %v2087
    %v2091 = vunpack.c.l.s4 1966171168
    %v2092 = vunpack.c.0.s8 %v2091
    %v2093 = vlaneseq
    %v2094 = vshrl.u32 %v2093, 7
    %v2095 = vsub.s32 %v2092, %v2094
    %v2096 = vrot.slane %v2088, %v2095
    %v2097 = vcombine.high %v2096, %v2096
    %v2099 = vunpack.c.l.s4 1966171168
    %v2100 = vunpack.c.0.s8 %v2099
    %v2101 = vlaneseq
    %v2102 = vshrl.u32 %v2101, 7
    %v2103 = vsub.s32 %v2100, %v2102
    %v2104 = vrot.slane %v2096, %v2103
    %v2106 = vunpack.c.l.s4 1966171168
    %v2107 = vunpack.c.0.s8 %v2106
    %v2108 = vlaneseq
    %v2109 = vshrl.u32 %v2108, 7
    %v2110 = vsub.s32 %v2107, %v2109
    %v2111 = vrot.slane %v2097, %v2110
    %2114 = vst.msk [vmem:[#allocation2 + $0x1] sm:$0x1] %vm1126, %v2104
    %2115 = vst.msk [vmem:[#allocation2 + $0x9] sm:$0x1] %vm1126, %v2111
    %2116 = vmatprep.subr.mxu0 0.0
    %2117 = vmatpush1.msra.mxu0 0.0
    %2118 = vmatprep.subr.mxu0 0.0
    %2119 = vmatpush1.msra.mxu0 0.0
    %2120 = vmatprep.subr.mxu0 0.0
    %2121 = vmatpush1.msra.mxu0 0.0
    %2122 = vmatprep.subr.mxu0 0.0
    %2123 = vmatpush1.msra.mxu0 0.0
    %2124 = vmatprep.subr.mxu0 0.0
    %2125 = vmatpush1.msra.mxu0 0.0
    %2126 = vmatprep.subr.mxu0 0.0
    %2127 = vmatpush1.msra.mxu0 0.0
    %2128 = vmatprep.subr.mxu0 0.0
    %2129 = vmatpush1.msra.mxu0 0.0
    %2130 = vmatprep.subr.mxu0 0.0
    %2131 = vmatpush1.msra.mxu0 0.0
    %2132 = vmatprep.subr.mxu0 0.0
    %2133 = vmatpush1.msra.mxu0 0.0
    %2134 = vmatprep.subr.mxu0 0.0
    %2135 = vmatpush1.msra.mxu0 0.0
    %2136 = vmatprep.subr.mxu0 0.0
    %2137 = vmatpush1.msra.mxu0 0.0
    %2138 = vmatprep.subr.mxu0 0.0
    %2139 = vmatpush1.msra.mxu0 0.0
    %2140 = vmatprep.subr.mxu0 0.0
    %2141 = vmatpush1.msra.mxu0 %v61
    %2142 = vmatprep.subr.mxu0 0.0
    %2143 = vmatpush1.msra.mxu0 %v60
    %2144 = vmatprep.subr.mxu0 0.0
    %2145 = vmatpush1.msra.mxu0 %v59
    %2146 = vmatprep.subr.mxu0 0.0
    %2147 = vmatpush1.msra.mxu0 %v58
    %2148 = vmatprep.subr.mxu0 0.0
    %2149 = vmatpush2.msra.mxu0 0.0
    %2150 = vmatprep.subr.mxu0 0.0
    %2151 = vmatpush2.msra.mxu0 0.0
    %2152 = vmatprep.subr.mxu0 0.0
    %2153 = vmatpush2.msra.mxu0 0.0
    %2154 = vmatprep.subr.mxu0 0.0
    %2155 = vmatpush2.msra.mxu0 0.0
    %2156 = vmatprep.subr.mxu0 0.0
    %2157 = vmatpush2.msra.mxu0 0.0
    %2158 = vmatprep.subr.mxu0 0.0
    %2159 = vmatpush2.msra.mxu0 0.0
    %2160 = vmatprep.subr.mxu0 0.0
    %2161 = vmatpush2.msra.mxu0 0.0
    %2162 = vmatprep.subr.mxu0 0.0
    %2163 = vmatpush2.msra.mxu0 0.0
    %2164 = vmatprep.subr.mxu0 0.0
    %2165 = vmatpush2.msra.mxu0 0.0
    %2166 = vmatprep.subr.mxu0 0.0
    %2167 = vmatpush2.msra.mxu0 0.0
    %2168 = vmatprep.subr.mxu0 0.0
    %2169 = vmatpush2.msra.mxu0 0.0
    %2170 = vmatprep.subr.mxu0 0.0
    %2171 = vmatpush2.msra.mxu0 0.0
    %2172 = vmatprep.subr.mxu0 0.0
    %2173 = vmatpush2.msra.mxu0 0.0
    %2174 = vmatprep.subr.mxu0 0.0
    %2175 = vmatpush2.msra.mxu0 0.0
    %2176 = vmatprep.subr.mxu0 0.0
    %2177 = vmatpush2.msra.mxu0 0.0
    %2178 = vmatprep.subr.mxu0 0.0
    %2179 = vmatpush2.msra.mxu0 0.0
    %2180 = vmatprep.mubr.f32.mxu0 0.0
    %2181 = vmatmul.mubr.f32.gmra.mxu0 %v1930
    %v2182 = vpop.f32.mrf.mxu0
    %v2183 = vadd.f32 0.0, %v2182
    %v2184 = vpop.f32.mrf.mxu0
    %2185 = vdwg.mxu0
    %v2186 = vrot.slane %v43, 2
    %v2187 = vrot.slane %v44, 1
    %v2188 = vsel %vm176, %v2187, %v2186
    %v2189 = vsel %vm178, %v2188, 0
    %2191 = vmatprep.subr.mxu0 0.0
    %2192 = vmatpush1.msra.mxu0 0.0
    %2193 = vmatprep.subr.mxu0 0.0
    %2194 = vmatpush1.msra.mxu0 0.0
    %2195 = vmatprep.subr.mxu0 0.0
    %2196 = vmatpush1.msra.mxu0 0.0
    %2197 = vmatprep.subr.mxu0 0.0
    %2198 = vmatpush1.msra.mxu0 0.0
    %2199 = vmatprep.subr.mxu0 0.0
    %2200 = vmatpush1.msra.mxu0 0.0
    %2201 = vmatprep.subr.mxu0 0.0
    %2202 = vmatpush1.msra.mxu0 0.0
    %2203 = vmatprep.subr.mxu0 0.0
    %2204 = vmatpush1.msra.mxu0 0.0
    %2205 = vmatprep.subr.mxu0 0.0
    %2206 = vmatpush1.msra.mxu0 0.0
    %2207 = vmatprep.subr.mxu0 0.0
    %2208 = vmatpush1.msra.mxu0 0.0
    %2209 = vmatprep.subr.mxu0 0.0
    %2210 = vmatpush1.msra.mxu0 0.0
    %2211 = vmatprep.subr.mxu0 0.0
    %2212 = vmatpush1.msra.mxu0 0.0
    %2213 = vmatprep.subr.mxu0 0.0
    %2214 = vmatpush1.msra.mxu0 0.0
    %2215 = vmatprep.subr.mxu0 0.0
    %2216 = vmatpush1.msra.mxu0 0.0
    %2217 = vmatprep.subr.mxu0 0.0
    %2218 = vmatpush1.msra.mxu0 0.0
    %2219 = vmatprep.subr.mxu0 0.0
    %2220 = vmatpush1.msra.mxu0 %v48
    %2221 = vmatprep.subr.mxu0 0.0
    %2222 = vmatpush1.msra.mxu0 %v47
    %2223 = vmatprep.subr.mxu0 0.0
    %2224 = vmatpush2.msra.mxu0 0.0
    %2225 = vmatprep.subr.mxu0 0.0
    %2226 = vmatpush2.msra.mxu0 0.0
    %2227 = vmatprep.subr.mxu0 0.0
    %2228 = vmatpush2.msra.mxu0 0.0
    %2229 = vmatprep.subr.mxu0 0.0
    %2230 = vmatpush2.msra.mxu0 0.0
    %2231 = vmatprep.subr.mxu0 0.0
    %2232 = vmatpush2.msra.mxu0 0.0
    %2233 = vmatprep.subr.mxu0 0.0
    %2234 = vmatpush2.msra.mxu0 0.0
    %2235 = vmatprep.subr.mxu0 0.0
    %2236 = vmatpush2.msra.mxu0 0.0
    %2237 = vmatprep.subr.mxu0 0.0
    %2238 = vmatpush2.msra.mxu0 0.0
    %2239 = vmatprep.subr.mxu0 0.0
    %2240 = vmatpush2.msra.mxu0 0.0
    %2241 = vmatprep.subr.mxu0 0.0
    %2242 = vmatpush2.msra.mxu0 0.0
    %2243 = vmatprep.subr.mxu0 0.0
    %2244 = vmatpush2.msra.mxu0 0.0
    %2245 = vmatprep.subr.mxu0 0.0
    %2246 = vmatpush2.msra.mxu0 0.0
    %2247 = vmatprep.subr.mxu0 0.0
    %2248 = vmatpush2.msra.mxu0 0.0
    %2249 = vmatprep.subr.mxu0 0.0
    %2250 = vmatpush2.msra.mxu0 0.0
    %2251 = vmatprep.subr.mxu0 0.0
    %2252 = vmatpush2.msra.mxu0 0.0
    %2253 = vmatprep.subr.mxu0 0.0
    %2254 = vmatpush2.msra.mxu0 0.0
    %2255 = vmatprep.mubr.f32.mxu0 0.0
    %2256 = vmatmul.mubr.f32.gmra.mxu0 %v2189
    %v2257 = vpop.f32.mrf.mxu0
    %v2258 = vadd.f32 %v2183, %v2257
    %v2259 = vpop.f32.mrf.mxu0
    %2260 = vdwg.mxu0
    %v2261 = vadd.f32 %v2258, %v255
    %2262 = vmatprep.subr.mxu0 0.0
    %2263 = vmatpush1.msra.mxu0 0.0
    %2264 = vmatprep.subr.mxu0 0.0
    %2265 = vmatpush1.msra.mxu0 0.0
    %2266 = vmatprep.subr.mxu0 0.0
    %2267 = vmatpush1.msra.mxu0 0.0
    %2268 = vmatprep.subr.mxu0 0.0
    %2269 = vmatpush1.msra.mxu0 0.0
    %2270 = vmatprep.subr.mxu0 0.0
    %2271 = vmatpush1.msra.mxu0 0.0
    %2272 = vmatprep.subr.mxu0 0.0
    %2273 = vmatpush1.msra.mxu0 0.0
    %2274 = vmatprep.subr.mxu0 0.0
    %2275 = vmatpush1.msra.mxu0 0.0
    %2276 = vmatprep.subr.mxu0 0.0
    %2277 = vmatpush1.msra.mxu0 0.0
    %2278 = vmatprep.subr.mxu0 0.0
    %2279 = vmatpush1.msra.mxu0 0.0
    %2280 = vmatprep.subr.mxu0 0.0
    %2281 = vmatpush1.msra.mxu0 0.0
    %2282 = vmatprep.subr.mxu0 0.0
    %2283 = vmatpush1.msra.mxu0 0.0
    %2284 = vmatprep.subr.mxu0 0.0
    %2285 = vmatpush1.msra.mxu0 0.0
    %2286 = vmatprep.subr.mxu0 0.0
    %2287 = vmatpush1.msra.mxu0 %v66
    %2288 = vmatprep.subr.mxu0 0.0
    %2289 = vmatpush1.msra.mxu0 %v65
    %2290 = vmatprep.subr.mxu0 0.0
    %2291 = vmatpush1.msra.mxu0 %v64
    %2292 = vmatprep.subr.mxu0 0.0
    %2293 = vmatpush1.msra.mxu0 %v63
    %2294 = vmatprep.subr.mxu0 0.0
    %2295 = vmatpush2.msra.mxu0 0.0
    %2296 = vmatprep.subr.mxu0 0.0
    %2297 = vmatpush2.msra.mxu0 0.0
    %2298 = vmatprep.subr.mxu0 0.0
    %2299 = vmatpush2.msra.mxu0 0.0
    %2300 = vmatprep.subr.mxu0 0.0
    %2301 = vmatpush2.msra.mxu0 0.0
    %2302 = vmatprep.subr.mxu0 0.0
    %2303 = vmatpush2.msra.mxu0 0.0
    %2304 = vmatprep.subr.mxu0 0.0
    %2305 = vmatpush2.msra.mxu0 0.0
    %2306 = vmatprep.subr.mxu0 0.0
    %2307 = vmatpush2.msra.mxu0 0.0
    %2308 = vmatprep.subr.mxu0 0.0
    %2309 = vmatpush2.msra.mxu0 0.0
    %2310 = vmatprep.subr.mxu0 0.0
    %2311 = vmatpush2.msra.mxu0 0.0
    %2312 = vmatprep.subr.mxu0 0.0
    %2313 = vmatpush2.msra.mxu0 0.0
    %2314 = vmatprep.subr.mxu0 0.0
    %2315 = vmatpush2.msra.mxu0 0.0
    %2316 = vmatprep.subr.mxu0 0.0
    %2317 = vmatpush2.msra.mxu0 0.0
    %2318 = vmatprep.subr.mxu0 0.0
    %2319 = vmatpush2.msra.mxu0 0.0
    %2320 = vmatprep.subr.mxu0 0.0
    %2321 = vmatpush2.msra.mxu0 0.0
    %2322 = vmatprep.subr.mxu0 0.0
    %2323 = vmatpush2.msra.mxu0 0.0
    %2324 = vmatprep.subr.mxu0 0.0
    %2325 = vmatpush2.msra.mxu0 0.0
    %2326 = vmatprep.mubr.f32.mxu0 0.0
    %2327 = vmatmul.mubr.f32.gmra.mxu0 %v1930
    %v2328 = vpop.f32.mrf.mxu0
    %v2329 = vadd.f32 0.0, %v2328
    %v2330 = vpop.f32.mrf.mxu0
    %2331 = vdwg.mxu0
    %2332 = vmatprep.subr.mxu0 0.0
    %2333 = vmatpush1.msra.mxu0 0.0
    %2334 = vmatprep.subr.mxu0 0.0
    %2335 = vmatpush1.msra.mxu0 0.0
    %2336 = vmatprep.subr.mxu0 0.0
    %2337 = vmatpush1.msra.mxu0 0.0
    %2338 = vmatprep.subr.mxu0 0.0
    %2339 = vmatpush1.msra.mxu0 0.0
    %2340 = vmatprep.subr.mxu0 0.0
    %2341 = vmatpush1.msra.mxu0 0.0
    %2342 = vmatprep.subr.mxu0 0.0
    %2343 = vmatpush1.msra.mxu0 0.0
    %2344 = vmatprep.subr.mxu0 0.0
    %2345 = vmatpush1.msra.mxu0 0.0
    %2346 = vmatprep.subr.mxu0 0.0
    %2347 = vmatpush1.msra.mxu0 0.0
    %2348 = vmatprep.subr.mxu0 0.0
    %2349 = vmatpush1.msra.mxu0 0.0
    %2350 = vmatprep.subr.mxu0 0.0
    %2351 = vmatpush1.msra.mxu0 0.0
    %2352 = vmatprep.subr.mxu0 0.0
    %2353 = vmatpush1.msra.mxu0 0.0
    %2354 = vmatprep.subr.mxu0 0.0
    %2355 = vmatpush1.msra.mxu0 0.0
    %2356 = vmatprep.subr.mxu0 0.0
    %2357 = vmatpush1.msra.mxu0 0.0
    %2358 = vmatprep.subr.mxu0 0.0
    %2359 = vmatpush1.msra.mxu0 0.0
    %2360 = vmatprep.subr.mxu0 0.0
    %2361 = vmatpush1.msra.mxu0 %v51
    %2362 = vmatprep.subr.mxu0 0.0
    %2363 = vmatpush1.msra.mxu0 %v50
    %2364 = vmatprep.subr.mxu0 0.0
    %2365 = vmatpush2.msra.mxu0 0.0
    %2366 = vmatprep.subr.mxu0 0.0
    %2367 = vmatpush2.msra.mxu0 0.0
    %2368 = vmatprep.subr.mxu0 0.0
    %2369 = vmatpush2.msra.mxu0 0.0
    %2370 = vmatprep.subr.mxu0 0.0
    %2371 = vmatpush2.msra.mxu0 0.0
    %2372 = vmatprep.subr.mxu0 0.0
    %2373 = vmatpush2.msra.mxu0 0.0
    %2374 = vmatprep.subr.mxu0 0.0
    %2375 = vmatpush2.msra.mxu0 0.0
    %2376 = vmatprep.subr.mxu0 0.0
    %2377 = vmatpush2.msra.mxu0 0.0
    %2378 = vmatprep.subr.mxu0 0.0
    %2379 = vmatpush2.msra.mxu0 0.0
    %2380 = vmatprep.subr.mxu0 0.0
    %2381 = vmatpush2.msra.mxu0 0.0
    %2382 = vmatprep.subr.mxu0 0.0
    %2383 = vmatpush2.msra.mxu0 0.0
    %2384 = vmatprep.subr.mxu0 0.0
    %2385 = vmatpush2.msra.mxu0 0.0
    %2386 = vmatprep.subr.mxu0 0.0
    %2387 = vmatpush2.msra.mxu0 0.0
    %2388 = vmatprep.subr.mxu0 0.0
    %2389 = vmatpush2.msra.mxu0 0.0
    %2390 = vmatprep.subr.mxu0 0.0
    %2391 = vmatpush2.msra.mxu0 0.0
    %2392 = vmatprep.subr.mxu0 0.0
    %2393 = vmatpush2.msra.mxu0 0.0
    %2394 = vmatprep.subr.mxu0 0.0
    %2395 = vmatpush2.msra.mxu0 0.0
    %2396 = vmatprep.mubr.f32.mxu0 0.0
    %2397 = vmatmul.mubr.f32.gmra.mxu0 %v2189
    %v2398 = vpop.f32.mrf.mxu0
    %v2399 = vadd.f32 %v2329, %v2398
    %v2400 = vpop.f32.mrf.mxu0
    %2401 = vdwg.mxu0
    %v2402 = vadd.f32 %v2399, %v402
    %2403 = vmatprep.subr.mxu0 0.0
    %2404 = vmatpush1.msra.mxu0 0.0
    %2405 = vmatprep.subr.mxu0 0.0
    %2406 = vmatpush1.msra.mxu0 0.0
    %2407 = vmatprep.subr.mxu0 0.0
    %2408 = vmatpush1.msra.mxu0 0.0
    %2409 = vmatprep.subr.mxu0 0.0
    %2410 = vmatpush1.msra.mxu0 0.0
    %2411 = vmatprep.subr.mxu0 0.0
    %2412 = vmatpush1.msra.mxu0 0.0
    %2413 = vmatprep.subr.mxu0 0.0
    %2414 = vmatpush1.msra.mxu0 0.0
    %2415 = vmatprep.subr.mxu0 0.0
    %2416 = vmatpush1.msra.mxu0 0.0
    %2417 = vmatprep.subr.mxu0 0.0
    %2418 = vmatpush1.msra.mxu0 0.0
    %2419 = vmatprep.subr.mxu0 0.0
    %2420 = vmatpush1.msra.mxu0 0.0
    %2421 = vmatprep.subr.mxu0 0.0
    %2422 = vmatpush1.msra.mxu0 0.0
    %2423 = vmatprep.subr.mxu0 0.0
    %2424 = vmatpush1.msra.mxu0 0.0
    %2425 = vmatprep.subr.mxu0 0.0
    %2426 = vmatpush1.msra.mxu0 0.0
    %2427 = vmatprep.subr.mxu0 0.0
    %2428 = vmatpush1.msra.mxu0 %v71
    %2429 = vmatprep.subr.mxu0 0.0
    %2430 = vmatpush1.msra.mxu0 %v70
    %2431 = vmatprep.subr.mxu0 0.0
    %2432 = vmatpush1.msra.mxu0 %v69
    %2433 = vmatprep.subr.mxu0 0.0
    %2434 = vmatpush1.msra.mxu0 %v68
    %2435 = vmatprep.subr.mxu0 0.0
    %2436 = vmatpush2.msra.mxu0 0.0
    %2437 = vmatprep.subr.mxu0 0.0
    %2438 = vmatpush2.msra.mxu0 0.0
    %2439 = vmatprep.subr.mxu0 0.0
    %2440 = vmatpush2.msra.mxu0 0.0
    %2441 = vmatprep.subr.mxu0 0.0
    %2442 = vmatpush2.msra.mxu0 0.0
    %2443 = vmatprep.subr.mxu0 0.0
    %2444 = vmatpush2.msra.mxu0 0.0
    %2445 = vmatprep.subr.mxu0 0.0
    %2446 = vmatpush2.msra.mxu0 0.0
    %2447 = vmatprep.subr.mxu0 0.0
    %2448 = vmatpush2.msra.mxu0 0.0
    %2449 = vmatprep.subr.mxu0 0.0
    %2450 = vmatpush2.msra.mxu0 0.0
    %2451 = vmatprep.subr.mxu0 0.0
    %2452 = vmatpush2.msra.mxu0 0.0
    %2453 = vmatprep.subr.mxu0 0.0
    %2454 = vmatpush2.msra.mxu0 0.0
    %2455 = vmatprep.subr.mxu0 0.0
    %2456 = vmatpush2.msra.mxu0 0.0
    %2457 = vmatprep.subr.mxu0 0.0
    %2458 = vmatpush2.msra.mxu0 0.0
    %2459 = vmatprep.subr.mxu0 0.0
    %2460 = vmatpush2.msra.mxu0 0.0
    %2461 = vmatprep.subr.mxu0 0.0
    %2462 = vmatpush2.msra.mxu0 0.0
    %2463 = vmatprep.subr.mxu0 0.0
    %2464 = vmatpush2.msra.mxu0 0.0
    %2465 = vmatprep.subr.mxu0 0.0
    %2466 = vmatpush2.msra.mxu0 0.0
    %2467 = vmatprep.mubr.f32.mxu0 0.0
    %2468 = vmatmul.mubr.f32.gmra.mxu0 %v1930
    %v2469 = vpop.f32.mrf.mxu0
    %v2470 = vadd.f32 0.0, %v2469
    %v2471 = vpop.f32.mrf.mxu0
    %2472 = vdwg.mxu0
    %2473 = vmatprep.subr.mxu0 0.0
    %2474 = vmatpush1.msra.mxu0 0.0
    %2475 = vmatprep.subr.mxu0 0.0
    %2476 = vmatpush1.msra.mxu0 0.0
    %2477 = vmatprep.subr.mxu0 0.0
    %2478 = vmatpush1.msra.mxu0 0.0
    %2479 = vmatprep.subr.mxu0 0.0
    %2480 = vmatpush1.msra.mxu0 0.0
    %2481 = vmatprep.subr.mxu0 0.0
    %2482 = vmatpush1.msra.mxu0 0.0
    %2483 = vmatprep.subr.mxu0 0.0
    %2484 = vmatpush1.msra.mxu0 0.0
    %2485 = vmatprep.subr.mxu0 0.0
    %2486 = vmatpush1.msra.mxu0 0.0
    %2487 = vmatprep.subr.mxu0 0.0
    %2488 = vmatpush1.msra.mxu0 0.0
    %2489 = vmatprep.subr.mxu0 0.0
    %2490 = vmatpush1.msra.mxu0 0.0
    %2491 = vmatprep.subr.mxu0 0.0
    %2492 = vmatpush1.msra.mxu0 0.0
    %2493 = vmatprep.subr.mxu0 0.0
    %2494 = vmatpush1.msra.mxu0 0.0
    %2495 = vmatprep.subr.mxu0 0.0
    %2496 = vmatpush1.msra.mxu0 0.0
    %2497 = vmatprep.subr.mxu0 0.0
    %2498 = vmatpush1.msra.mxu0 0.0
    %2499 = vmatprep.subr.mxu0 0.0
    %2500 = vmatpush1.msra.mxu0 0.0
    %2501 = vmatprep.subr.mxu0 0.0
    %2502 = vmatpush1.msra.mxu0 %v54
    %2503 = vmatprep.subr.mxu0 0.0
    %2504 = vmatpush1.msra.mxu0 %v53
    %2505 = vmatprep.subr.mxu0 0.0
    %2506 = vmatpush2.msra.mxu0 0.0
    %2507 = vmatprep.subr.mxu0 0.0
    %2508 = vmatpush2.msra.mxu0 0.0
    %2509 = vmatprep.subr.mxu0 0.0
    %2510 = vmatpush2.msra.mxu0 0.0
    %2511 = vmatprep.subr.mxu0 0.0
    %2512 = vmatpush2.msra.mxu0 0.0
    %2513 = vmatprep.subr.mxu0 0.0
    %2514 = vmatpush2.msra.mxu0 0.0
    %2515 = vmatprep.subr.mxu0 0.0
    %2516 = vmatpush2.msra.mxu0 0.0
    %2517 = vmatprep.subr.mxu0 0.0
    %2518 = vmatpush2.msra.mxu0 0.0
    %2519 = vmatprep.subr.mxu0 0.0
    %2520 = vmatpush2.msra.mxu0 0.0
    %2521 = vmatprep.subr.mxu0 0.0
    %2522 = vmatpush2.msra.mxu0 0.0
    %2523 = vmatprep.subr.mxu0 0.0
    %2524 = vmatpush2.msra.mxu0 0.0
    %2525 = vmatprep.subr.mxu0 0.0
    %2526 = vmatpush2.msra.mxu0 0.0
    %2527 = vmatprep.subr.mxu0 0.0
    %2528 = vmatpush2.msra.mxu0 0.0
    %2529 = vmatprep.subr.mxu0 0.0
    %2530 = vmatpush2.msra.mxu0 0.0
    %2531 = vmatprep.subr.mxu0 0.0
    %2532 = vmatpush2.msra.mxu0 0.0
    %2533 = vmatprep.subr.mxu0 0.0
    %2534 = vmatpush2.msra.mxu0 0.0
    %2535 = vmatprep.subr.mxu0 0.0
    %2536 = vmatpush2.msra.mxu0 0.0
    %2537 = vmatprep.mubr.f32.mxu0 0.0
    %2538 = vmatmul.mubr.f32.gmra.mxu0 %v2189
    %v2539 = vpop.f32.mrf.mxu0
    %v2540 = vadd.f32 %v2470, %v2539
    %v2541 = vpop.f32.mrf.mxu0
    %2542 = vdwg.mxu0
    %v2543 = vadd.f32 %v2540, %v549
    %2544 = vmatprep.subr.mxu0 0.0
    %2545 = vmatpush1.msra.mxu0 0.0
    %2546 = vmatprep.subr.mxu0 0.0
    %2547 = vmatpush1.msra.mxu0 0.0
    %2548 = vmatprep.subr.mxu0 0.0
    %2549 = vmatpush1.msra.mxu0 0.0
    %2550 = vmatprep.subr.mxu0 0.0
    %2551 = vmatpush1.msra.mxu0 0.0
    %2552 = vmatprep.subr.mxu0 0.0
    %2553 = vmatpush1.msra.mxu0 0.0
    %2554 = vmatprep.subr.mxu0 0.0
    %2555 = vmatpush1.msra.mxu0 0.0
    %2556 = vmatprep.subr.mxu0 0.0
    %2557 = vmatpush1.msra.mxu0 0.0
    %2558 = vmatprep.subr.mxu0 0.0
    %2559 = vmatpush1.msra.mxu0 0.0
    %2560 = vmatprep.subr.mxu0 0.0
    %2561 = vmatpush1.msra.mxu0 0.0
    %2562 = vmatprep.subr.mxu0 0.0
    %2563 = vmatpush1.msra.mxu0 0.0
    %2564 = vmatprep.subr.mxu0 0.0
    %2565 = vmatpush1.msra.mxu0 0.0
    %2566 = vmatprep.subr.mxu0 0.0
    %2567 = vmatpush1.msra.mxu0 0.0
    %2568 = vmatprep.subr.mxu0 0.0
    %2569 = vmatpush1.msra.mxu0 %v76
    %2570 = vmatprep.subr.mxu0 0.0
    %2571 = vmatpush1.msra.mxu0 %v75
    %2572 = vmatprep.subr.mxu0 0.0
    %2573 = vmatpush1.msra.mxu0 %v74
    %2574 = vmatprep.subr.mxu0 0.0
    %2575 = vmatpush1.msra.mxu0 %v73
    %2576 = vmatprep.subr.mxu0 0.0
    %2577 = vmatpush2.msra.mxu0 0.0
    %2578 = vmatprep.subr.mxu0 0.0
    %2579 = vmatpush2.msra.mxu0 0.0
    %2580 = vmatprep.subr.mxu0 0.0
    %2581 = vmatpush2.msra.mxu0 0.0
    %2582 = vmatprep.subr.mxu0 0.0
    %2583 = vmatpush2.msra.mxu0 0.0
    %2584 = vmatprep.subr.mxu0 0.0
    %2585 = vmatpush2.msra.mxu0 0.0
    %2586 = vmatprep.subr.mxu0 0.0
    %2587 = vmatpush2.msra.mxu0 0.0
    %2588 = vmatprep.subr.mxu0 0.0
    %2589 = vmatpush2.msra.mxu0 0.0
    %2590 = vmatprep.subr.mxu0 0.0
    %2591 = vmatpush2.msra.mxu0 0.0
    %2592 = vmatprep.subr.mxu0 0.0
    %2593 = vmatpush2.msra.mxu0 0.0
    %2594 = vmatprep.subr.mxu0 0.0
    %2595 = vmatpush2.msra.mxu0 0.0
    %2596 = vmatprep.subr.mxu0 0.0
    %2597 = vmatpush2.msra.mxu0 0.0
    %2598 = vmatprep.subr.mxu0 0.0
    %2599 = vmatpush2.msra.mxu0 0.0
    %2600 = vmatprep.subr.mxu0 0.0
    %2601 = vmatpush2.msra.mxu0 0.0
    %2602 = vmatprep.subr.mxu0 0.0
    %2603 = vmatpush2.msra.mxu0 0.0
    %2604 = vmatprep.subr.mxu0 0.0
    %2605 = vmatpush2.msra.mxu0 0.0
    %2606 = vmatprep.subr.mxu0 0.0
    %2607 = vmatpush2.msra.mxu0 0.0
    %2608 = vmatprep.mubr.f32.mxu0 0.0
    %2609 = vmatmul.mubr.f32.gmra.mxu0 %v1930
    %v2610 = vpop.f32.mrf.mxu0
    %v2611 = vadd.f32 0.0, %v2610
    %v2612 = vpop.f32.mrf.mxu0
    %2613 = vdwg.mxu0
    %2614 = vmatprep.subr.mxu0 0.0
    %2615 = vmatpush1.msra.mxu0 0.0
    %2616 = vmatprep.subr.mxu0 0.0
    %2617 = vmatpush1.msra.mxu0 0.0
    %2618 = vmatprep.subr.mxu0 0.0
    %2619 = vmatpush1.msra.mxu0 0.0
    %2620 = vmatprep.subr.mxu0 0.0
    %2621 = vmatpush1.msra.mxu0 0.0
    %2622 = vmatprep.subr.mxu0 0.0
    %2623 = vmatpush1.msra.mxu0 0.0
    %2624 = vmatprep.subr.mxu0 0.0
    %2625 = vmatpush1.msra.mxu0 0.0
    %2626 = vmatprep.subr.mxu0 0.0
    %2627 = vmatpush1.msra.mxu0 0.0
    %2628 = vmatprep.subr.mxu0 0.0
    %2629 = vmatpush1.msra.mxu0 0.0
    %2630 = vmatprep.subr.mxu0 0.0
    %2631 = vmatpush1.msra.mxu0 0.0
    %2632 = vmatprep.subr.mxu0 0.0
    %2633 = vmatpush1.msra.mxu0 0.0
    %2634 = vmatprep.subr.mxu0 0.0
    %2635 = vmatpush1.msra.mxu0 0.0
    %2636 = vmatprep.subr.mxu0 0.0
    %2637 = vmatpush1.msra.mxu0 0.0
    %2638 = vmatprep.subr.mxu0 0.0
    %2639 = vmatpush1.msra.mxu0 0.0
    %2640 = vmatprep.subr.mxu0 0.0
    %2641 = vmatpush1.msra.mxu0 0.0
    %2642 = vmatprep.subr.mxu0 0.0
    %2643 = vmatpush1.msra.mxu0 %v57
    %2644 = vmatprep.subr.mxu0 0.0
    %2645 = vmatpush1.msra.mxu0 %v56
    %2646 = vmatprep.subr.mxu0 0.0
    %2647 = vmatpush2.msra.mxu0 0.0
    %2648 = vmatprep.subr.mxu0 0.0
    %2649 = vmatpush2.msra.mxu0 0.0
    %2650 = vmatprep.subr.mxu0 0.0
    %2651 = vmatpush2.msra.mxu0 0.0
    %2652 = vmatprep.subr.mxu0 0.0
    %2653 = vmatpush2.msra.mxu0 0.0
    %2654 = vmatprep.subr.mxu0 0.0
    %2655 = vmatpush2.msra.mxu0 0.0
    %2656 = vmatprep.subr.mxu0 0.0
    %2657 = vmatpush2.msra.mxu0 0.0
    %2658 = vmatprep.subr.mxu0 0.0
    %2659 = vmatpush2.msra.mxu0 0.0
    %2660 = vmatprep.subr.mxu0 0.0
    %2661 = vmatpush2.msra.mxu0 0.0
    %2662 = vmatprep.subr.mxu0 0.0
    %2663 = vmatpush2.msra.mxu0 0.0
    %2664 = vmatprep.subr.mxu0 0.0
    %2665 = vmatpush2.msra.mxu0 0.0
    %2666 = vmatprep.subr.mxu0 0.0
    %2667 = vmatpush2.msra.mxu0 0.0
    %2668 = vmatprep.subr.mxu0 0.0
    %2669 = vmatpush2.msra.mxu0 0.0
    %2670 = vmatprep.subr.mxu0 0.0
    %2671 = vmatpush2.msra.mxu0 0.0
    %2672 = vmatprep.subr.mxu0 0.0
    %2673 = vmatpush2.msra.mxu0 0.0
    %2674 = vmatprep.subr.mxu0 0.0
    %2675 = vmatpush2.msra.mxu0 0.0
    %2676 = vmatprep.subr.mxu0 0.0
    %2677 = vmatpush2.msra.mxu0 0.0
    %2678 = vmatprep.mubr.f32.mxu0 0.0
    %2679 = vmatmul.mubr.f32.gmra.mxu0 %v2189
    %v2680 = vpop.f32.mrf.mxu0
    %v2681 = vadd.f32 %v2611, %v2680
    %v2682 = vpop.f32.mrf.mxu0
    %2683 = vdwg.mxu0
    %v2684 = vadd.f32 %v2681, %v696
    %v2685 = vxor.u32 %v2261, 2147483648
    %v2686 = vmul.f32 %v2685, 1.442695
    %v2687 = vpow.pop %v2686
    %v2688 = vadd.f32 %v2687, 1.0
    %v2689 = vrcp.pop %v2688
    %v2690 = vmul.f32 1.0, %v2689
    %v2691 = vxor.u32 %v2402, 2147483648
    %v2692 = vmul.f32 %v2691, 1.442695
    %v2693 = vpow.pop %v2692
    %v2694 = vadd.f32 %v2693, 1.0
    %v2695 = vrcp.pop %v2694
    %v2696 = vmul.f32 1.0, %v2695
    %v2697 = vtanh.pop %v2543
    %v2698 = vxor.u32 %v2684, 2147483648
    %v2699 = vmul.f32 %v2698, 1.442695
    %v2700 = vpow.pop %v2699
    %v2701 = vadd.f32 %v2700, 1.0
    %v2702 = vrcp.pop %v2701
    %v2703 = vmul.f32 1.0, %v2702
    %v2704 = vmul.f32 %v2696, %v1718
    %v2705 = vmul.f32 %v2690, %v2697
    %v2706 = vadd.f32 %v2704, %v2705
    %v2707 = vtanh.pop %v2706
    %v2708 = vmul.f32 %v2703, %v2707
    %v2711 = vunpack.c.l.s4 1966171168
    %v2712 = vunpack.c.0.s8 %v2711
    %v2713 = vlaneseq
    %v2714 = vshrl.u32 %v2713, 7
    %v2715 = vsub.s32 %v2712, %v2714
    %v2716 = vrot.slane %v2708, %v2715
    %v2717 = vcombine.high %v2716, %v2716
    %v2719 = vunpack.c.l.s4 1966171168
    %v2720 = vunpack.c.0.s8 %v2719
    %v2721 = vlaneseq
    %v2722 = vshrl.u32 %v2721, 7
    %v2723 = vsub.s32 %v2720, %v2722
    %v2724 = vrot.slane %v2716, %v2723
    %v2726 = vunpack.c.l.s4 1966171168
    %v2727 = vunpack.c.0.s8 %v2726
    %v2728 = vlaneseq
    %v2729 = vshrl.u32 %v2728, 7
    %v2730 = vsub.s32 %v2727, %v2729
    %v2731 = vrot.slane %v2717, %v2730
    %v2732 = vlaneseq
    %v2733 = vshrl.u32 %v2732, 7
    %v2734 = vsub.s32 0, %v2733
    %v2735 = vrot.slane %v2724, %v2734
    %v2736 = vlaneseq
    %v2737 = vshrl.u32 %v2736, 7
    %v2738 = vsub.s32 0, %v2737
    %v2739 = vrot.slane %v2731, %v2738
    %v2742 = vmul.f32 %v45, %v2735
    %v2743 = vmul.f32 %v46, %v2739
    %v2744 = vsel %vm99, %v2742, 0.0
    %2745 = vadd.xlane.f32.xlu0 %v2744
    %v2746 = vpop.xlane.xlu0 %2745
    %v2747 = vsel %vm99, %v2743, 0.0
    %2748 = vadd.xlane.f32.xlu0 %v2747
    %v2749 = vpop.xlane.xlu0 %2748
    %v2752 = vlaneseq
    %v2753 = vshrl.u32 %v2752, 7
    %v2754 = vsub.s32 %v767, %v2753
    %v2755 = vrot.slane %v2746, %v2754
    %v2756 = vlaneseq
    %v2757 = vshrl.u32 %v2756, 7
    %v2758 = vsub.s32 %v767, %v2757
    %v2759 = vrot.slane %v2749, %v2758
    %v2760 = vsel %vm176, %v2759, %v2755
    %v2762 = vsel %vm778, %v2760, -inf
    %2763 = vmax.xlane.f32.xlu0 %v2762
    %v2764 = vpop.xlane.xlu0 %2763
    %v2766 = vlaneseq
    %v2767 = vshrl.u32 %v2766, 7
    %v2768 = vsub.s32 0, %v2767
    %v2769 = vrot.slane %v2764, %v2768
    %v2770 = vlaneseq
    %v2771 = vshrl.u32 %v2770, 7
    %v2772 = vsub.s32 1, %v2771
    %v2773 = vrot.slane %v2764, %v2772
    %v2776 = vsub.f32 %v2746, %v2769
    %v2777 = vsub.f32 %v2749, %v2773
    %v2778 = vmul.f32 %v2776, 1.442695
    %v2779 = vpow.pop %v2778
    %v2780 = vmul.f32 %v2777, 1.442695
    %v2781 = vpow.pop %v2780
    %2784 = vset.pattern.permute.xlu0 0
    %2785 = vperm.xlu0 %2784, %v2779
    %v2786 = vpop.permute.xlu0 %2785
    %2787 = vset.pattern.permute.xlu0 0
    %2788 = vperm.xlu0 %2787, %v2781
    %v2789 = vpop.permute.xlu0 %2788
    %v2790 = vlaneseq
    %v2791 = vshrl.u32 %v2790, 7
    %v2792 = vsub.s32 %v767, %v2791
    %v2793 = vrot.slane %v2786, %v2792
    %v2794 = vlaneseq
    %v2795 = vshrl.u32 %v2794, 7
    %v2796 = vsub.s32 %v767, %v2795
    %v2797 = vrot.slane %v2789, %v2796
    %v2798 = vsel %vm176, %v2797, %v2793
    %v2800 = vsel %vm778, %v2798, 0.0
    %2801 = vadd.xlane.f32.xlu0 %v2800
    %v2802 = vpop.xlane.xlu0 %2801
    %v2803 = vrcp.pop %v2802
    %v2805 = vlaneseq
    %v2806 = vshrl.u32 %v2805, 7
    %v2807 = vsub.s32 0, %v2806
    %v2808 = vrot.slane %v2803, %v2807
    %v2809 = vlaneseq
    %v2810 = vshrl.u32 %v2809, 7
    %v2811 = vsub.s32 1, %v2810
    %v2812 = vrot.slane %v2803, %v2811
    %v2815 = vmul.f32 %v2779, %v2808
    %v2816 = vmul.f32 %v2781, %v2812
    %2818 = vset.pattern.permute.xlu0 0
    %2819 = vperm.xlu0 %2818, %v2815
    %v2820 = vpop.permute.xlu0 %2819
    %2823 = vset.pattern.permute.xlu0 0
    %2824 = vperm.xlu0 %2823, %v2816
    %v2825 = vpop.permute.xlu0 %2824
    %v2827 = vmul.f32 %v2820, %v45
    %v2828 = vmul.f32 %v2825, %v46
    %v2829 = vsel %vm99, %v2827, 0.0
    %v2830 = vrot.slane %v2829, 4
    %v2831 = vadd.f32 %v2829, %v2830
    %v2832 = vrot.slane %v2831, 2
    %v2833 = vadd.f32 %v2831, %v2832
    %v2834 = vrot.slane %v2833, 1
    %v2835 = vadd.f32 %v2833, %v2834
    %v2836 = vsel %vm99, %v2828, 0.0
    %v2837 = vrot.slane %v2836, 4
    %v2838 = vadd.f32 %v2836, %v2837
    %v2839 = vrot.slane %v2838, 2
    %v2840 = vadd.f32 %v2838, %v2839
    %v2841 = vrot.slane %v2840, 1
    %v2842 = vadd.f32 %v2840, %v2841
    %v2845 = vsel %vm176, %v2842, %v2835
    %v2846 = vsel %vm99, %v2845, 0
    %2848 = vmatprep.subr.mxu0 0.0
    %2849 = vmatpush1.msra.mxu0 0.0
    %2850 = vmatprep.subr.mxu0 0.0
    %2851 = vmatpush1.msra.mxu0 0.0
    %2852 = vmatprep.subr.mxu0 0.0
    %2853 = vmatpush1.msra.mxu0 0.0
    %2854 = vmatprep.subr.mxu0 0.0
    %2855 = vmatpush1.msra.mxu0 0.0
    %2856 = vmatprep.subr.mxu0 0.0
    %2857 = vmatpush1.msra.mxu0 0.0
    %2858 = vmatprep.subr.mxu0 0.0
    %2859 = vmatpush1.msra.mxu0 0.0
    %2860 = vmatprep.subr.mxu0 0.0
    %2861 = vmatpush1.msra.mxu0 0.0
    %2862 = vmatprep.subr.mxu0 0.0
    %2863 = vmatpush1.msra.mxu0 0.0
    %2864 = vmatprep.subr.mxu0 0.0
    %2865 = vmatpush1.msra.mxu0 0.0
    %2866 = vmatprep.subr.mxu0 0.0
    %2867 = vmatpush1.msra.mxu0 0.0
    %2868 = vmatprep.subr.mxu0 0.0
    %2869 = vmatpush1.msra.mxu0 0.0
    %2870 = vmatprep.subr.mxu0 0.0
    %2871 = vmatpush1.msra.mxu0 0.0
    %2872 = vmatprep.subr.mxu0 0.0
    %2873 = vmatpush1.msra.mxu0 %v91
    %2874 = vmatprep.subr.mxu0 0.0
    %2875 = vmatpush1.msra.mxu0 %v90
    %2876 = vmatprep.subr.mxu0 0.0
    %2877 = vmatpush1.msra.mxu0 %v89
    %2878 = vmatprep.subr.mxu0 0.0
    %2879 = vmatpush1.msra.mxu0 %v88
    %2880 = vmatprep.subr.mxu0 0.0
    %2881 = vmatpush2.msra.mxu0 0.0
    %2882 = vmatprep.subr.mxu0 0.0
    %2883 = vmatpush2.msra.mxu0 0.0
    %2884 = vmatprep.subr.mxu0 0.0
    %2885 = vmatpush2.msra.mxu0 0.0
    %2886 = vmatprep.subr.mxu0 0.0
    %2887 = vmatpush2.msra.mxu0 0.0
    %2888 = vmatprep.subr.mxu0 0.0
    %2889 = vmatpush2.msra.mxu0 0.0
    %2890 = vmatprep.subr.mxu0 0.0
    %2891 = vmatpush2.msra.mxu0 0.0
    %2892 = vmatprep.subr.mxu0 0.0
    %2893 = vmatpush2.msra.mxu0 0.0
    %2894 = vmatprep.subr.mxu0 0.0
    %2895 = vmatpush2.msra.mxu0 0.0
    %2896 = vmatprep.subr.mxu0 0.0
    %2897 = vmatpush2.msra.mxu0 0.0
    %2898 = vmatprep.subr.mxu0 0.0
    %2899 = vmatpush2.msra.mxu0 0.0
    %2900 = vmatprep.subr.mxu0 0.0
    %2901 = vmatpush2.msra.mxu0 0.0
    %2902 = vmatprep.subr.mxu0 0.0
    %2903 = vmatpush2.msra.mxu0 0.0
    %2904 = vmatprep.subr.mxu0 0.0
    %2905 = vmatpush2.msra.mxu0 0.0
    %2906 = vmatprep.subr.mxu0 0.0
    %2907 = vmatpush2.msra.mxu0 0.0
    %2908 = vmatprep.subr.mxu0 0.0
    %2909 = vmatpush2.msra.mxu0 0.0
    %2910 = vmatprep.subr.mxu0 0.0
    %2911 = vmatpush2.msra.mxu0 0.0
    %2912 = vmatprep.mubr.f32.mxu0 0.0
    %2913 = vmatmul.mubr.f32.gmra.mxu0 %v2846
    %v2914 = vpop.f32.mrf.mxu0
    %v2915 = vadd.f32 0.0, %v2914
    %v2916 = vpop.f32.mrf.mxu0
    %2917 = vdwg.mxu0
    %v2918 = vsel %vm99, %v2708, 0
    %2920 = vmatprep.subr.mxu0 0.0
    %2921 = vmatpush1.msra.mxu0 0.0
    %2922 = vmatprep.subr.mxu0 0.0
    %2923 = vmatpush1.msra.mxu0 0.0
    %2924 = vmatprep.subr.mxu0 0.0
    %2925 = vmatpush1.msra.mxu0 0.0
    %2926 = vmatprep.subr.mxu0 0.0
    %2927 = vmatpush1.msra.mxu0 0.0
    %2928 = vmatprep.subr.mxu0 0.0
    %2929 = vmatpush1.msra.mxu0 0.0
    %2930 = vmatprep.subr.mxu0 0.0
    %2931 = vmatpush1.msra.mxu0 0.0
    %2932 = vmatprep.subr.mxu0 0.0
    %2933 = vmatpush1.msra.mxu0 0.0
    %2934 = vmatprep.subr.mxu0 0.0
    %2935 = vmatpush1.msra.mxu0 0.0
    %2936 = vmatprep.subr.mxu0 0.0
    %2937 = vmatpush1.msra.mxu0 0.0
    %2938 = vmatprep.subr.mxu0 0.0
    %2939 = vmatpush1.msra.mxu0 0.0
    %2940 = vmatprep.subr.mxu0 0.0
    %2941 = vmatpush1.msra.mxu0 0.0
    %2942 = vmatprep.subr.mxu0 0.0
    %2943 = vmatpush1.msra.mxu0 0.0
    %2944 = vmatprep.subr.mxu0 0.0
    %2945 = vmatpush1.msra.mxu0 %v87
    %2946 = vmatprep.subr.mxu0 0.0
    %2947 = vmatpush1.msra.mxu0 %v86
    %2948 = vmatprep.subr.mxu0 0.0
    %2949 = vmatpush1.msra.mxu0 %v85
    %2950 = vmatprep.subr.mxu0 0.0
    %2951 = vmatpush1.msra.mxu0 %v84
    %2952 = vmatprep.subr.mxu0 0.0
    %2953 = vmatpush2.msra.mxu0 0.0
    %2954 = vmatprep.subr.mxu0 0.0
    %2955 = vmatpush2.msra.mxu0 0.0
    %2956 = vmatprep.subr.mxu0 0.0
    %2957 = vmatpush2.msra.mxu0 0.0
    %2958 = vmatprep.subr.mxu0 0.0
    %2959 = vmatpush2.msra.mxu0 0.0
    %2960 = vmatprep.subr.mxu0 0.0
    %2961 = vmatpush2.msra.mxu0 0.0
    %2962 = vmatprep.subr.mxu0 0.0
    %2963 = vmatpush2.msra.mxu0 0.0
    %2964 = vmatprep.subr.mxu0 0.0
    %2965 = vmatpush2.msra.mxu0 0.0
    %2966 = vmatprep.subr.mxu0 0.0
    %2967 = vmatpush2.msra.mxu0 0.0
    %2968 = vmatprep.subr.mxu0 0.0
    %2969 = vmatpush2.msra.mxu0 0.0
    %2970 = vmatprep.subr.mxu0 0.0
    %2971 = vmatpush2.msra.mxu0 0.0
    %2972 = vmatprep.subr.mxu0 0.0
    %2973 = vmatpush2.msra.mxu0 0.0
    %2974 = vmatprep.subr.mxu0 0.0
    %2975 = vmatpush2.msra.mxu0 0.0
    %2976 = vmatprep.subr.mxu0 0.0
    %2977 = vmatpush2.msra.mxu0 0.0
    %2978 = vmatprep.subr.mxu0 0.0
    %2979 = vmatpush2.msra.mxu0 0.0
    %2980 = vmatprep.subr.mxu0 0.0
    %2981 = vmatpush2.msra.mxu0 0.0
    %2982 = vmatprep.subr.mxu0 0.0
    %2983 = vmatpush2.msra.mxu0 0.0
    %2984 = vmatprep.mubr.f32.mxu0 0.0
    %2985 = vmatmul.mubr.f32.gmra.mxu0 %v2918
    %v2986 = vpop.f32.mrf.mxu0
    %v2987 = vadd.f32 %v2915, %v2986
    %v2988 = vpop.f32.mrf.mxu0
    %2989 = vdwg.mxu0
    %v2990 = vtanh.pop %v2987
    %v2992 = vsel %vm99, %v2990, 0
    %2994 = vmatprep.subr.mxu0 0.0
    %2995 = vmatpush1.msra.mxu0 0.0
    %2996 = vmatprep.subr.mxu0 0.0
    %2997 = vmatpush1.msra.mxu0 0.0
    %2998 = vmatprep.subr.mxu0 0.0
    %2999 = vmatpush1.msra.mxu0 0.0
    %3000 = vmatprep.subr.mxu0 0.0
    %3001 = vmatpush1.msra.mxu0 0.0
    %3002 = vmatprep.subr.mxu0 0.0
    %3003 = vmatpush1.msra.mxu0 0.0
    %3004 = vmatprep.subr.mxu0 0.0
    %3005 = vmatpush1.msra.mxu0 0.0
    %3006 = vmatprep.subr.mxu0 0.0
    %3007 = vmatpush1.msra.mxu0 0.0
    %3008 = vmatprep.subr.mxu0 0.0
    %3009 = vmatpush1.msra.mxu0 0.0
    %3010 = vmatprep.subr.mxu0 0.0
    %3011 = vmatpush1.msra.mxu0 0.0
    %3012 = vmatprep.subr.mxu0 0.0
    %3013 = vmatpush1.msra.mxu0 0.0
    %3014 = vmatprep.subr.mxu0 0.0
    %3015 = vmatpush1.msra.mxu0 0.0
    %3016 = vmatprep.subr.mxu0 0.0
    %3017 = vmatpush1.msra.mxu0 0.0
    %3018 = vmatprep.subr.mxu0 0.0
    %3019 = vmatpush1.msra.mxu0 %v95
    %3020 = vmatprep.subr.mxu0 0.0
    %3021 = vmatpush1.msra.mxu0 %v94
    %3022 = vmatprep.subr.mxu0 0.0
    %3023 = vmatpush1.msra.mxu0 %v93
    %3024 = vmatprep.subr.mxu0 0.0
    %3025 = vmatpush1.msra.mxu0 %v92
    %3026 = vmatprep.subr.mxu0 0.0
    %3027 = vmatpush2.msra.mxu0 0.0
    %3028 = vmatprep.subr.mxu0 0.0
    %3029 = vmatpush2.msra.mxu0 0.0
    %3030 = vmatprep.subr.mxu0 0.0
    %3031 = vmatpush2.msra.mxu0 0.0
    %3032 = vmatprep.subr.mxu0 0.0
    %3033 = vmatpush2.msra.mxu0 0.0
    %3034 = vmatprep.subr.mxu0 0.0
    %3035 = vmatpush2.msra.mxu0 0.0
    %3036 = vmatprep.subr.mxu0 0.0
    %3037 = vmatpush2.msra.mxu0 0.0
    %3038 = vmatprep.subr.mxu0 0.0
    %3039 = vmatpush2.msra.mxu0 0.0
    %3040 = vmatprep.subr.mxu0 0.0
    %3041 = vmatpush2.msra.mxu0 0.0
    %3042 = vmatprep.subr.mxu0 0.0
    %3043 = vmatpush2.msra.mxu0 0.0
    %3044 = vmatprep.subr.mxu0 0.0
    %3045 = vmatpush2.msra.mxu0 0.0
    %3046 = vmatprep.subr.mxu0 0.0
    %3047 = vmatpush2.msra.mxu0 0.0
    %3048 = vmatprep.subr.mxu0 0.0
    %3049 = vmatpush2.msra.mxu0 0.0
    %3050 = vmatprep.subr.mxu0 0.0
    %3051 = vmatpush2.msra.mxu0 0.0
    %3052 = vmatprep.subr.mxu0 0.0
    %3053 = vmatpush2.msra.mxu0 0.0
    %3054 = vmatprep.subr.mxu0 0.0
    %3055 = vmatpush2.msra.mxu0 0.0
    %3056 = vmatprep.subr.mxu0 0.0
    %3057 = vmatpush2.msra.mxu0 0.0
    %3058 = vmatprep.mubr.f32.mxu0 0.0
    %3059 = vmatmul.mubr.f32.gmra.mxu0 %v2992
    %v3060 = vpop.f32.mrf.mxu0
    %v3061 = vadd.f32 %v1012, %v3060
    %v3062 = vpop.f32.mrf.mxu0
    %3063 = vdwg.mxu0
    %v3064 = vsel %vm1087, %v3061, -inf
    %3065 = vmax.xlane.f32.xlu0 %v3064
    %v3066 = vpop.xlane.xlu0 %3065
    %v3067 = vsub.f32 %v3061, %v3066
    %v3068 = vmul.f32 %v3067, 1.442695
    %v3069 = vpow.pop %v3068
    %v3070 = vsel %vm1087, %v3069, 0.0
    %3071 = vadd.xlane.f32.xlu0 %v3070
    %v3072 = vpop.xlane.xlu0 %3071
    %v3073 = vlog2.pop %v3072
    %v3074 = vmul.f32 %v3073, 0.6931472
    %v3075 = vadd.f32 %v3066, %v3074
    %v3076 = vsub.f32 %v3061, %v3075
    %v3079 = vunpack.c.l.s4 1966171168
    %v3080 = vunpack.c.0.s8 %v3079
    %v3081 = vlaneseq
    %v3082 = vshrl.u32 %v3081, 7
    %v3083 = vsub.s32 %v3080, %v3082
    %v3084 = vrot.slane %v3076, %v3083
    %v3085 = vcombine.high %v3084, %v3084
    %v3087 = vunpack.c.l.s4 1966171168
    %v3088 = vunpack.c.0.s8 %v3087
    %v3089 = vlaneseq
    %v3090 = vshrl.u32 %v3089, 7
    %v3091 = vsub.s32 %v3088, %v3090
    %v3092 = vrot.slane %v3084, %v3091
    %v3094 = vunpack.c.l.s4 1966171168
    %v3095 = vunpack.c.0.s8 %v3094
    %v3096 = vlaneseq
    %v3097 = vshrl.u32 %v3096, 7
    %v3098 = vsub.s32 %v3095, %v3097
    %v3099 = vrot.slane %v3085, %v3098
    %3102 = vst.msk [vmem:[#allocation2 + $0x2] sm:$0x1] %vm1126, %v3092
    %3103 = vst.msk [vmem:[#allocation2 + $0xa] sm:$0x1] %vm1126, %v3099
    %3104 = vmatprep.subr.mxu0 0.0
    %3105 = vmatpush1.msra.mxu0 0.0
    %3106 = vmatprep.subr.mxu0 0.0
    %3107 = vmatpush1.msra.mxu0 0.0
    %3108 = vmatprep.subr.mxu0 0.0
    %3109 = vmatpush1.msra.mxu0 0.0
    %3110 = vmatprep.subr.mxu0 0.0
    %3111 = vmatpush1.msra.mxu0 0.0
    %3112 = vmatprep.subr.mxu0 0.0
    %3113 = vmatpush1.msra.mxu0 0.0
    %3114 = vmatprep.subr.mxu0 0.0
    %3115 = vmatpush1.msra.mxu0 0.0
    %3116 = vmatprep.subr.mxu0 0.0
    %3117 = vmatpush1.msra.mxu0 0.0
    %3118 = vmatprep.subr.mxu0 0.0
    %3119 = vmatpush1.msra.mxu0 0.0
    %3120 = vmatprep.subr.mxu0 0.0
    %3121 = vmatpush1.msra.mxu0 0.0
    %3122 = vmatprep.subr.mxu0 0.0
    %3123 = vmatpush1.msra.mxu0 0.0
    %3124 = vmatprep.subr.mxu0 0.0
    %3125 = vmatpush1.msra.mxu0 0.0
    %3126 = vmatprep.subr.mxu0 0.0
    %3127 = vmatpush1.msra.mxu0 0.0
    %3128 = vmatprep.subr.mxu0 0.0
    %3129 = vmatpush1.msra.mxu0 %v61
    %3130 = vmatprep.subr.mxu0 0.0
    %3131 = vmatpush1.msra.mxu0 %v60
    %3132 = vmatprep.subr.mxu0 0.0
    %3133 = vmatpush1.msra.mxu0 %v59
    %3134 = vmatprep.subr.mxu0 0.0
    %3135 = vmatpush1.msra.mxu0 %v58
    %3136 = vmatprep.subr.mxu0 0.0
    %3137 = vmatpush2.msra.mxu0 0.0
    %3138 = vmatprep.subr.mxu0 0.0
    %3139 = vmatpush2.msra.mxu0 0.0
    %3140 = vmatprep.subr.mxu0 0.0
    %3141 = vmatpush2.msra.mxu0 0.0
    %3142 = vmatprep.subr.mxu0 0.0
    %3143 = vmatpush2.msra.mxu0 0.0
    %3144 = vmatprep.subr.mxu0 0.0
    %3145 = vmatpush2.msra.mxu0 0.0
    %3146 = vmatprep.subr.mxu0 0.0
    %3147 = vmatpush2.msra.mxu0 0.0
    %3148 = vmatprep.subr.mxu0 0.0
    %3149 = vmatpush2.msra.mxu0 0.0
    %3150 = vmatprep.subr.mxu0 0.0
    %3151 = vmatpush2.msra.mxu0 0.0
    %3152 = vmatprep.subr.mxu0 0.0
    %3153 = vmatpush2.msra.mxu0 0.0
    %3154 = vmatprep.subr.mxu0 0.0
    %3155 = vmatpush2.msra.mxu0 0.0
    %3156 = vmatprep.subr.mxu0 0.0
    %3157 = vmatpush2.msra.mxu0 0.0
    %3158 = vmatprep.subr.mxu0 0.0
    %3159 = vmatpush2.msra.mxu0 0.0
    %3160 = vmatprep.subr.mxu0 0.0
    %3161 = vmatpush2.msra.mxu0 0.0
    %3162 = vmatprep.subr.mxu0 0.0
    %3163 = vmatpush2.msra.mxu0 0.0
    %3164 = vmatprep.subr.mxu0 0.0
    %3165 = vmatpush2.msra.mxu0 0.0
    %3166 = vmatprep.subr.mxu0 0.0
    %3167 = vmatpush2.msra.mxu0 0.0
    %3168 = vmatprep.mubr.f32.mxu0 0.0
    %3169 = vmatmul.mubr.f32.gmra.mxu0 %v2918
    %v3170 = vpop.f32.mrf.mxu0
    %v3171 = vadd.f32 0.0, %v3170
    %v3172 = vpop.f32.mrf.mxu0
    %3173 = vdwg.mxu0
    %v3174 = vrot.slane %v43, 3
    %v3175 = vrot.slane %v44, 2
    %v3176 = vsel %vm176, %v3175, %v3174
    %v3177 = vsel %vm178, %v3176, 0
    %3179 = vmatprep.subr.mxu0 0.0
    %3180 = vmatpush1.msra.mxu0 0.0
    %3181 = vmatprep.subr.mxu0 0.0
    %3182 = vmatpush1.msra.mxu0 0.0
    %3183 = vmatprep.subr.mxu0 0.0
    %3184 = vmatpush1.msra.mxu0 0.0
    %3185 = vmatprep.subr.mxu0 0.0
    %3186 = vmatpush1.msra.mxu0 0.0
    %3187 = vmatprep.subr.mxu0 0.0
    %3188 = vmatpush1.msra.mxu0 0.0
    %3189 = vmatprep.subr.mxu0 0.0
    %3190 = vmatpush1.msra.mxu0 0.0
    %3191 = vmatprep.subr.mxu0 0.0
    %3192 = vmatpush1.msra.mxu0 0.0
    %3193 = vmatprep.subr.mxu0 0.0
    %3194 = vmatpush1.msra.mxu0 0.0
    %3195 = vmatprep.subr.mxu0 0.0
    %3196 = vmatpush1.msra.mxu0 0.0
    %3197 = vmatprep.subr.mxu0 0.0
    %3198 = vmatpush1.msra.mxu0 0.0
    %3199 = vmatprep.subr.mxu0 0.0
    %3200 = vmatpush1.msra.mxu0 0.0
    %3201 = vmatprep.subr.mxu0 0.0
    %3202 = vmatpush1.msra.mxu0 0.0
    %3203 = vmatprep.subr.mxu0 0.0
    %3204 = vmatpush1.msra.mxu0 0.0
    %3205 = vmatprep.subr.mxu0 0.0
    %3206 = vmatpush1.msra.mxu0 0.0
    %3207 = vmatprep.subr.mxu0 0.0
    %3208 = vmatpush1.msra.mxu0 %v48
    %3209 = vmatprep.subr.mxu0 0.0
    %3210 = vmatpush1.msra.mxu0 %v47
    %3211 = vmatprep.subr.mxu0 0.0
    %3212 = vmatpush2.msra.mxu0 0.0
    %3213 = vmatprep.subr.mxu0 0.0
    %3214 = vmatpush2.msra.mxu0 0.0
    %3215 = vmatprep.subr.mxu0 0.0
    %3216 = vmatpush2.msra.mxu0 0.0
    %3217 = vmatprep.subr.mxu0 0.0
    %3218 = vmatpush2.msra.mxu0 0.0
    %3219 = vmatprep.subr.mxu0 0.0
    %3220 = vmatpush2.msra.mxu0 0.0
    %3221 = vmatprep.subr.mxu0 0.0
    %3222 = vmatpush2.msra.mxu0 0.0
    %3223 = vmatprep.subr.mxu0 0.0
    %3224 = vmatpush2.msra.mxu0 0.0
    %3225 = vmatprep.subr.mxu0 0.0
    %3226 = vmatpush2.msra.mxu0 0.0
    %3227 = vmatprep.subr.mxu0 0.0
    %3228 = vmatpush2.msra.mxu0 0.0
    %3229 = vmatprep.subr.mxu0 0.0
    %3230 = vmatpush2.msra.mxu0 0.0
    %3231 = vmatprep.subr.mxu0 0.0
    %3232 = vmatpush2.msra.mxu0 0.0
    %3233 = vmatprep.subr.mxu0 0.0
    %3234 = vmatpush2.msra.mxu0 0.0
    %3235 = vmatprep.subr.mxu0 0.0
    %3236 = vmatpush2.msra.mxu0 0.0
    %3237 = vmatprep.subr.mxu0 0.0
    %3238 = vmatpush2.msra.mxu0 0.0
    %3239 = vmatprep.subr.mxu0 0.0
    %3240 = vmatpush2.msra.mxu0 0.0
    %3241 = vmatprep.subr.mxu0 0.0
    %3242 = vmatpush2.msra.mxu0 0.0
    %3243 = vmatprep.mubr.f32.mxu0 0.0
    %3244 = vmatmul.mubr.f32.gmra.mxu0 %v3177
    %v3245 = vpop.f32.mrf.mxu0
    %v3246 = vadd.f32 %v3171, %v3245
    %v3247 = vpop.f32.mrf.mxu0
    %3248 = vdwg.mxu0
    %v3249 = vadd.f32 %v3246, %v255
    %3250 = vmatprep.subr.mxu0 0.0
    %3251 = vmatpush1.msra.mxu0 0.0
    %3252 = vmatprep.subr.mxu0 0.0
    %3253 = vmatpush1.msra.mxu0 0.0
    %3254 = vmatprep.subr.mxu0 0.0
    %3255 = vmatpush1.msra.mxu0 0.0
    %3256 = vmatprep.subr.mxu0 0.0
    %3257 = vmatpush1.msra.mxu0 0.0
    %3258 = vmatprep.subr.mxu0 0.0
    %3259 = vmatpush1.msra.mxu0 0.0
    %3260 = vmatprep.subr.mxu0 0.0
    %3261 = vmatpush1.msra.mxu0 0.0
    %3262 = vmatprep.subr.mxu0 0.0
    %3263 = vmatpush1.msra.mxu0 0.0
    %3264 = vmatprep.subr.mxu0 0.0
    %3265 = vmatpush1.msra.mxu0 0.0
    %3266 = vmatprep.subr.mxu0 0.0
    %3267 = vmatpush1.msra.mxu0 0.0
    %3268 = vmatprep.subr.mxu0 0.0
    %3269 = vmatpush1.msra.mxu0 0.0
    %3270 = vmatprep.subr.mxu0 0.0
    %3271 = vmatpush1.msra.mxu0 0.0
    %3272 = vmatprep.subr.mxu0 0.0
    %3273 = vmatpush1.msra.mxu0 0.0
    %3274 = vmatprep.subr.mxu0 0.0
    %3275 = vmatpush1.msra.mxu0 %v66
    %3276 = vmatprep.subr.mxu0 0.0
    %3277 = vmatpush1.msra.mxu0 %v65
    %3278 = vmatprep.subr.mxu0 0.0
    %3279 = vmatpush1.msra.mxu0 %v64
    %3280 = vmatprep.subr.mxu0 0.0
    %3281 = vmatpush1.msra.mxu0 %v63
    %3282 = vmatprep.subr.mxu0 0.0
    %3283 = vmatpush2.msra.mxu0 0.0
    %3284 = vmatprep.subr.mxu0 0.0
    %3285 = vmatpush2.msra.mxu0 0.0
    %3286 = vmatprep.subr.mxu0 0.0
    %3287 = vmatpush2.msra.mxu0 0.0
    %3288 = vmatprep.subr.mxu0 0.0
    %3289 = vmatpush2.msra.mxu0 0.0
    %3290 = vmatprep.subr.mxu0 0.0
    %3291 = vmatpush2.msra.mxu0 0.0
    %3292 = vmatprep.subr.mxu0 0.0
    %3293 = vmatpush2.msra.mxu0 0.0
    %3294 = vmatprep.subr.mxu0 0.0
    %3295 = vmatpush2.msra.mxu0 0.0
    %3296 = vmatprep.subr.mxu0 0.0
    %3297 = vmatpush2.msra.mxu0 0.0
    %3298 = vmatprep.subr.mxu0 0.0
    %3299 = vmatpush2.msra.mxu0 0.0
    %3300 = vmatprep.subr.mxu0 0.0
    %3301 = vmatpush2.msra.mxu0 0.0
    %3302 = vmatprep.subr.mxu0 0.0
    %3303 = vmatpush2.msra.mxu0 0.0
    %3304 = vmatprep.subr.mxu0 0.0
    %3305 = vmatpush2.msra.mxu0 0.0
    %3306 = vmatprep.subr.mxu0 0.0
    %3307 = vmatpush2.msra.mxu0 0.0
    %3308 = vmatprep.subr.mxu0 0.0
    %3309 = vmatpush2.msra.mxu0 0.0
    %3310 = vmatprep.subr.mxu0 0.0
    %3311 = vmatpush2.msra.mxu0 0.0
    %3312 = vmatprep.subr.mxu0 0.0
    %3313 = vmatpush2.msra.mxu0 0.0
    %3314 = vmatprep.mubr.f32.mxu0 0.0
    %3315 = vmatmul.mubr.f32.gmra.mxu0 %v2918
    %v3316 = vpop.f32.mrf.mxu0
    %v3317 = vadd.f32 0.0, %v3316
    %v3318 = vpop.f32.mrf.mxu0
    %3319 = vdwg.mxu0
    %3320 = vmatprep.subr.mxu0 0.0
    %3321 = vmatpush1.msra.mxu0 0.0
    %3322 = vmatprep.subr.mxu0 0.0
    %3323 = vmatpush1.msra.mxu0 0.0
    %3324 = vmatprep.subr.mxu0 0.0
    %3325 = vmatpush1.msra.mxu0 0.0
    %3326 = vmatprep.subr.mxu0 0.0
    %3327 = vmatpush1.msra.mxu0 0.0
    %3328 = vmatprep.subr.mxu0 0.0
    %3329 = vmatpush1.msra.mxu0 0.0
    %3330 = vmatprep.subr.mxu0 0.0
    %3331 = vmatpush1.msra.mxu0 0.0
    %3332 = vmatprep.subr.mxu0 0.0
    %3333 = vmatpush1.msra.mxu0 0.0
    %3334 = vmatprep.subr.mxu0 0.0
    %3335 = vmatpush1.msra.mxu0 0.0
    %3336 = vmatprep.subr.mxu0 0.0
    %3337 = vmatpush1.msra.mxu0 0.0
    %3338 = vmatprep.subr.mxu0 0.0
    %3339 = vmatpush1.msra.mxu0 0.0
    %3340 = vmatprep.subr.mxu0 0.0
    %3341 = vmatpush1.msra.mxu0 0.0
    %3342 = vmatprep.subr.mxu0 0.0
    %3343 = vmatpush1.msra.mxu0 0.0
    %3344 = vmatprep.subr.mxu0 0.0
    %3345 = vmatpush1.msra.mxu0 0.0
    %3346 = vmatprep.subr.mxu0 0.0
    %3347 = vmatpush1.msra.mxu0 0.0
    %3348 = vmatprep.subr.mxu0 0.0
    %3349 = vmatpush1.msra.mxu0 %v51
    %3350 = vmatprep.subr.mxu0 0.0
    %3351 = vmatpush1.msra.mxu0 %v50
    %3352 = vmatprep.subr.mxu0 0.0
    %3353 = vmatpush2.msra.mxu0 0.0
    %3354 = vmatprep.subr.mxu0 0.0
    %3355 = vmatpush2.msra.mxu0 0.0
    %3356 = vmatprep.subr.mxu0 0.0
    %3357 = vmatpush2.msra.mxu0 0.0
    %3358 = vmatprep.subr.mxu0 0.0
    %3359 = vmatpush2.msra.mxu0 0.0
    %3360 = vmatprep.subr.mxu0 0.0
    %3361 = vmatpush2.msra.mxu0 0.0
    %3362 = vmatprep.subr.mxu0 0.0
    %3363 = vmatpush2.msra.mxu0 0.0
    %3364 = vmatprep.subr.mxu0 0.0
    %3365 = vmatpush2.msra.mxu0 0.0
    %3366 = vmatprep.subr.mxu0 0.0
    %3367 = vmatpush2.msra.mxu0 0.0
    %3368 = vmatprep.subr.mxu0 0.0
    %3369 = vmatpush2.msra.mxu0 0.0
    %3370 = vmatprep.subr.mxu0 0.0
    %3371 = vmatpush2.msra.mxu0 0.0
    %3372 = vmatprep.subr.mxu0 0.0
    %3373 = vmatpush2.msra.mxu0 0.0
    %3374 = vmatprep.subr.mxu0 0.0
    %3375 = vmatpush2.msra.mxu0 0.0
    %3376 = vmatprep.subr.mxu0 0.0
    %3377 = vmatpush2.msra.mxu0 0.0
    %3378 = vmatprep.subr.mxu0 0.0
    %3379 = vmatpush2.msra.mxu0 0.0
    %3380 = vmatprep.subr.mxu0 0.0
    %3381 = vmatpush2.msra.mxu0 0.0
    %3382 = vmatprep.subr.mxu0 0.0
    %3383 = vmatpush2.msra.mxu0 0.0
    %3384 = vmatprep.mubr.f32.mxu0 0.0
    %3385 = vmatmul.mubr.f32.gmra.mxu0 %v3177
    %v3386 = vpop.f32.mrf.mxu0
    %v3387 = vadd.f32 %v3317, %v3386
    %v3388 = vpop.f32.mrf.mxu0
    %3389 = vdwg.mxu0
    %v3390 = vadd.f32 %v3387, %v402
    %3391 = vmatprep.subr.mxu0 0.0
    %3392 = vmatpush1.msra.mxu0 0.0
    %3393 = vmatprep.subr.mxu0 0.0
    %3394 = vmatpush1.msra.mxu0 0.0
    %3395 = vmatprep.subr.mxu0 0.0
    %3396 = vmatpush1.msra.mxu0 0.0
    %3397 = vmatprep.subr.mxu0 0.0
    %3398 = vmatpush1.msra.mxu0 0.0
    %3399 = vmatprep.subr.mxu0 0.0
    %3400 = vmatpush1.msra.mxu0 0.0
    %3401 = vmatprep.subr.mxu0 0.0
    %3402 = vmatpush1.msra.mxu0 0.0
    %3403 = vmatprep.subr.mxu0 0.0
    %3404 = vmatpush1.msra.mxu0 0.0
    %3405 = vmatprep.subr.mxu0 0.0
    %3406 = vmatpush1.msra.mxu0 0.0
    %3407 = vmatprep.subr.mxu0 0.0
    %3408 = vmatpush1.msra.mxu0 0.0
    %3409 = vmatprep.subr.mxu0 0.0
    %3410 = vmatpush1.msra.mxu0 0.0
    %3411 = vmatprep.subr.mxu0 0.0
    %3412 = vmatpush1.msra.mxu0 0.0
    %3413 = vmatprep.subr.mxu0 0.0
    %3414 = vmatpush1.msra.mxu0 0.0
    %3415 = vmatprep.subr.mxu0 0.0
    %3416 = vmatpush1.msra.mxu0 %v71
    %3417 = vmatprep.subr.mxu0 0.0
    %3418 = vmatpush1.msra.mxu0 %v70
    %3419 = vmatprep.subr.mxu0 0.0
    %3420 = vmatpush1.msra.mxu0 %v69
    %3421 = vmatprep.subr.mxu0 0.0
    %3422 = vmatpush1.msra.mxu0 %v68
    %3423 = vmatprep.subr.mxu0 0.0
    %3424 = vmatpush2.msra.mxu0 0.0
    %3425 = vmatprep.subr.mxu0 0.0
    %3426 = vmatpush2.msra.mxu0 0.0
    %3427 = vmatprep.subr.mxu0 0.0
    %3428 = vmatpush2.msra.mxu0 0.0
    %3429 = vmatprep.subr.mxu0 0.0
    %3430 = vmatpush2.msra.mxu0 0.0
    %3431 = vmatprep.subr.mxu0 0.0
    %3432 = vmatpush2.msra.mxu0 0.0
    %3433 = vmatprep.subr.mxu0 0.0
    %3434 = vmatpush2.msra.mxu0 0.0
    %3435 = vmatprep.subr.mxu0 0.0
    %3436 = vmatpush2.msra.mxu0 0.0
    %3437 = vmatprep.subr.mxu0 0.0
    %3438 = vmatpush2.msra.mxu0 0.0
    %3439 = vmatprep.subr.mxu0 0.0
    %3440 = vmatpush2.msra.mxu0 0.0
    %3441 = vmatprep.subr.mxu0 0.0
    %3442 = vmatpush2.msra.mxu0 0.0
    %3443 = vmatprep.subr.mxu0 0.0
    %3444 = vmatpush2.msra.mxu0 0.0
    %3445 = vmatprep.subr.mxu0 0.0
    %3446 = vmatpush2.msra.mxu0 0.0
    %3447 = vmatprep.subr.mxu0 0.0
    %3448 = vmatpush2.msra.mxu0 0.0
    %3449 = vmatprep.subr.mxu0 0.0
    %3450 = vmatpush2.msra.mxu0 0.0
    %3451 = vmatprep.subr.mxu0 0.0
    %3452 = vmatpush2.msra.mxu0 0.0
    %3453 = vmatprep.subr.mxu0 0.0
    %3454 = vmatpush2.msra.mxu0 0.0
    %3455 = vmatprep.mubr.f32.mxu0 0.0
    %3456 = vmatmul.mubr.f32.gmra.mxu0 %v2918
    %v3457 = vpop.f32.mrf.mxu0
    %v3458 = vadd.f32 0.0, %v3457
    %v3459 = vpop.f32.mrf.mxu0
    %3460 = vdwg.mxu0
    %3461 = vmatprep.subr.mxu0 0.0
    %3462 = vmatpush1.msra.mxu0 0.0
    %3463 = vmatprep.subr.mxu0 0.0
    %3464 = vmatpush1.msra.mxu0 0.0
    %3465 = vmatprep.subr.mxu0 0.0
    %3466 = vmatpush1.msra.mxu0 0.0
    %3467 = vmatprep.subr.mxu0 0.0
    %3468 = vmatpush1.msra.mxu0 0.0
    %3469 = vmatprep.subr.mxu0 0.0
    %3470 = vmatpush1.msra.mxu0 0.0
    %3471 = vmatprep.subr.mxu0 0.0
    %3472 = vmatpush1.msra.mxu0 0.0
    %3473 = vmatprep.subr.mxu0 0.0
    %3474 = vmatpush1.msra.mxu0 0.0
    %3475 = vmatprep.subr.mxu0 0.0
    %3476 = vmatpush1.msra.mxu0 0.0
    %3477 = vmatprep.subr.mxu0 0.0
    %3478 = vmatpush1.msra.mxu0 0.0
    %3479 = vmatprep.subr.mxu0 0.0
    %3480 = vmatpush1.msra.mxu0 0.0
    %3481 = vmatprep.subr.mxu0 0.0
    %3482 = vmatpush1.msra.mxu0 0.0
    %3483 = vmatprep.subr.mxu0 0.0
    %3484 = vmatpush1.msra.mxu0 0.0
    %3485 = vmatprep.subr.mxu0 0.0
    %3486 = vmatpush1.msra.mxu0 0.0
    %3487 = vmatprep.subr.mxu0 0.0
    %3488 = vmatpush1.msra.mxu0 0.0
    %3489 = vmatprep.subr.mxu0 0.0
    %3490 = vmatpush1.msra.mxu0 %v54
    %3491 = vmatprep.subr.mxu0 0.0
    %3492 = vmatpush1.msra.mxu0 %v53
    %3493 = vmatprep.subr.mxu0 0.0
    %3494 = vmatpush2.msra.mxu0 0.0
    %3495 = vmatprep.subr.mxu0 0.0
    %3496 = vmatpush2.msra.mxu0 0.0
    %3497 = vmatprep.subr.mxu0 0.0
    %3498 = vmatpush2.msra.mxu0 0.0
    %3499 = vmatprep.subr.mxu0 0.0
    %3500 = vmatpush2.msra.mxu0 0.0
    %3501 = vmatprep.subr.mxu0 0.0
    %3502 = vmatpush2.msra.mxu0 0.0
    %3503 = vmatprep.subr.mxu0 0.0
    %3504 = vmatpush2.msra.mxu0 0.0
    %3505 = vmatprep.subr.mxu0 0.0
    %3506 = vmatpush2.msra.mxu0 0.0
    %3507 = vmatprep.subr.mxu0 0.0
    %3508 = vmatpush2.msra.mxu0 0.0
    %3509 = vmatprep.subr.mxu0 0.0
    %3510 = vmatpush2.msra.mxu0 0.0
    %3511 = vmatprep.subr.mxu0 0.0
    %3512 = vmatpush2.msra.mxu0 0.0
    %3513 = vmatprep.subr.mxu0 0.0
    %3514 = vmatpush2.msra.mxu0 0.0
    %3515 = vmatprep.subr.mxu0 0.0
    %3516 = vmatpush2.msra.mxu0 0.0
    %3517 = vmatprep.subr.mxu0 0.0
    %3518 = vmatpush2.msra.mxu0 0.0
    %3519 = vmatprep.subr.mxu0 0.0
    %3520 = vmatpush2.msra.mxu0 0.0
    %3521 = vmatprep.subr.mxu0 0.0
    %3522 = vmatpush2.msra.mxu0 0.0
    %3523 = vmatprep.subr.mxu0 0.0
    %3524 = vmatpush2.msra.mxu0 0.0
    %3525 = vmatprep.mubr.f32.mxu0 0.0
    %3526 = vmatmul.mubr.f32.gmra.mxu0 %v3177
    %v3527 = vpop.f32.mrf.mxu0
    %v3528 = vadd.f32 %v3458, %v3527
    %v3529 = vpop.f32.mrf.mxu0
    %3530 = vdwg.mxu0
    %v3531 = vadd.f32 %v3528, %v549
    %3532 = vmatprep.subr.mxu0 0.0
    %3533 = vmatpush1.msra.mxu0 0.0
    %3534 = vmatprep.subr.mxu0 0.0
    %3535 = vmatpush1.msra.mxu0 0.0
    %3536 = vmatprep.subr.mxu0 0.0
    %3537 = vmatpush1.msra.mxu0 0.0
    %3538 = vmatprep.subr.mxu0 0.0
    %3539 = vmatpush1.msra.mxu0 0.0
    %3540 = vmatprep.subr.mxu0 0.0
    %3541 = vmatpush1.msra.mxu0 0.0
    %3542 = vmatprep.subr.mxu0 0.0
    %3543 = vmatpush1.msra.mxu0 0.0
    %3544 = vmatprep.subr.mxu0 0.0
    %3545 = vmatpush1.msra.mxu0 0.0
    %3546 = vmatprep.subr.mxu0 0.0
    %3547 = vmatpush1.msra.mxu0 0.0
    %3548 = vmatprep.subr.mxu0 0.0
    %3549 = vmatpush1.msra.mxu0 0.0
    %3550 = vmatprep.subr.mxu0 0.0
    %3551 = vmatpush1.msra.mxu0 0.0
    %3552 = vmatprep.subr.mxu0 0.0
    %3553 = vmatpush1.msra.mxu0 0.0
    %3554 = vmatprep.subr.mxu0 0.0
    %3555 = vmatpush1.msra.mxu0 0.0
    %3556 = vmatprep.subr.mxu0 0.0
    %3557 = vmatpush1.msra.mxu0 %v76
    %3558 = vmatprep.subr.mxu0 0.0
    %3559 = vmatpush1.msra.mxu0 %v75
    %3560 = vmatprep.subr.mxu0 0.0
    %3561 = vmatpush1.msra.mxu0 %v74
    %3562 = vmatprep.subr.mxu0 0.0
    %3563 = vmatpush1.msra.mxu0 %v73
    %3564 = vmatprep.subr.mxu0 0.0
    %3565 = vmatpush2.msra.mxu0 0.0
    %3566 = vmatprep.subr.mxu0 0.0
    %3567 = vmatpush2.msra.mxu0 0.0
    %3568 = vmatprep.subr.mxu0 0.0
    %3569 = vmatpush2.msra.mxu0 0.0
    %3570 = vmatprep.subr.mxu0 0.0
    %3571 = vmatpush2.msra.mxu0 0.0
    %3572 = vmatprep.subr.mxu0 0.0
    %3573 = vmatpush2.msra.mxu0 0.0
    %3574 = vmatprep.subr.mxu0 0.0
    %3575 = vmatpush2.msra.mxu0 0.0
    %3576 = vmatprep.subr.mxu0 0.0
    %3577 = vmatpush2.msra.mxu0 0.0
    %3578 = vmatprep.subr.mxu0 0.0
    %3579 = vmatpush2.msra.mxu0 0.0
    %3580 = vmatprep.subr.mxu0 0.0
    %3581 = vmatpush2.msra.mxu0 0.0
    %3582 = vmatprep.subr.mxu0 0.0
    %3583 = vmatpush2.msra.mxu0 0.0
    %3584 = vmatprep.subr.mxu0 0.0
    %3585 = vmatpush2.msra.mxu0 0.0
    %3586 = vmatprep.subr.mxu0 0.0
    %3587 = vmatpush2.msra.mxu0 0.0
    %3588 = vmatprep.subr.mxu0 0.0
    %3589 = vmatpush2.msra.mxu0 0.0
    %3590 = vmatprep.subr.mxu0 0.0
    %3591 = vmatpush2.msra.mxu0 0.0
    %3592 = vmatprep.subr.mxu0 0.0
    %3593 = vmatpush2.msra.mxu0 0.0
    %3594 = vmatprep.subr.mxu0 0.0
    %3595 = vmatpush2.msra.mxu0 0.0
    %3596 = vmatprep.mubr.f32.mxu0 0.0
    %3597 = vmatmul.mubr.f32.gmra.mxu0 %v2918
    %v3598 = vpop.f32.mrf.mxu0
    %v3599 = vadd.f32 0.0, %v3598
    %v3600 = vpop.f32.mrf.mxu0
    %3601 = vdwg.mxu0
    %3602 = vmatprep.subr.mxu0 0.0
    %3603 = vmatpush1.msra.mxu0 0.0
    %3604 = vmatprep.subr.mxu0 0.0
    %3605 = vmatpush1.msra.mxu0 0.0
    %3606 = vmatprep.subr.mxu0 0.0
    %3607 = vmatpush1.msra.mxu0 0.0
    %3608 = vmatprep.subr.mxu0 0.0
    %3609 = vmatpush1.msra.mxu0 0.0
    %3610 = vmatprep.subr.mxu0 0.0
    %3611 = vmatpush1.msra.mxu0 0.0
    %3612 = vmatprep.subr.mxu0 0.0
    %3613 = vmatpush1.msra.mxu0 0.0
    %3614 = vmatprep.subr.mxu0 0.0
    %3615 = vmatpush1.msra.mxu0 0.0
    %3616 = vmatprep.subr.mxu0 0.0
    %3617 = vmatpush1.msra.mxu0 0.0
    %3618 = vmatprep.subr.mxu0 0.0
    %3619 = vmatpush1.msra.mxu0 0.0
    %3620 = vmatprep.subr.mxu0 0.0
    %3621 = vmatpush1.msra.mxu0 0.0
    %3622 = vmatprep.subr.mxu0 0.0
    %3623 = vmatpush1.msra.mxu0 0.0
    %3624 = vmatprep.subr.mxu0 0.0
    %3625 = vmatpush1.msra.mxu0 0.0
    %3626 = vmatprep.subr.mxu0 0.0
    %3627 = vmatpush1.msra.mxu0 0.0
    %3628 = vmatprep.subr.mxu0 0.0
    %3629 = vmatpush1.msra.mxu0 0.0
    %3630 = vmatprep.subr.mxu0 0.0
    %3631 = vmatpush1.msra.mxu0 %v57
    %3632 = vmatprep.subr.mxu0 0.0
    %3633 = vmatpush1.msra.mxu0 %v56
    %3634 = vmatprep.subr.mxu0 0.0
    %3635 = vmatpush2.msra.mxu0 0.0
    %3636 = vmatprep.subr.mxu0 0.0
    %3637 = vmatpush2.msra.mxu0 0.0
    %3638 = vmatprep.subr.mxu0 0.0
    %3639 = vmatpush2.msra.mxu0 0.0
    %3640 = vmatprep.subr.mxu0 0.0
    %3641 = vmatpush2.msra.mxu0 0.0
    %3642 = vmatprep.subr.mxu0 0.0
    %3643 = vmatpush2.msra.mxu0 0.0
    %3644 = vmatprep.subr.mxu0 0.0
    %3645 = vmatpush2.msra.mxu0 0.0
    %3646 = vmatprep.subr.mxu0 0.0
    %3647 = vmatpush2.msra.mxu0 0.0
    %3648 = vmatprep.subr.mxu0 0.0
    %3649 = vmatpush2.msra.mxu0 0.0
    %3650 = vmatprep.subr.mxu0 0.0
    %3651 = vmatpush2.msra.mxu0 0.0
    %3652 = vmatprep.subr.mxu0 0.0
    %3653 = vmatpush2.msra.mxu0 0.0
    %3654 = vmatprep.subr.mxu0 0.0
    %3655 = vmatpush2.msra.mxu0 0.0
    %3656 = vmatprep.subr.mxu0 0.0
    %3657 = vmatpush2.msra.mxu0 0.0
    %3658 = vmatprep.subr.mxu0 0.0
    %3659 = vmatpush2.msra.mxu0 0.0
    %3660 = vmatprep.subr.mxu0 0.0
    %3661 = vmatpush2.msra.mxu0 0.0
    %3662 = vmatprep.subr.mxu0 0.0
    %3663 = vmatpush2.msra.mxu0 0.0
    %3664 = vmatprep.subr.mxu0 0.0
    %3665 = vmatpush2.msra.mxu0 0.0
    %3666 = vmatprep.mubr.f32.mxu0 0.0
    %3667 = vmatmul.mubr.f32.gmra.mxu0 %v3177
    %v3668 = vpop.f32.mrf.mxu0
    %v3669 = vadd.f32 %v3599, %v3668
    %v3670 = vpop.f32.mrf.mxu0
    %3671 = vdwg.mxu0
    %v3672 = vadd.f32 %v3669, %v696
    %v3673 = vxor.u32 %v3249, 2147483648
    %v3674 = vmul.f32 %v3673, 1.442695
    %v3675 = vpow.pop %v3674
    %v3676 = vadd.f32 %v3675, 1.0
    %v3677 = vrcp.pop %v3676
    %v3678 = vmul.f32 1.0, %v3677
    %v3679 = vxor.u32 %v3390, 2147483648
    %v3680 = vmul.f32 %v3679, 1.442695
    %v3681 = vpow.pop %v3680
    %v3682 = vadd.f32 %v3681, 1.0
    %v3683 = vrcp.pop %v3682
    %v3684 = vmul.f32 1.0, %v3683
    %v3685 = vtanh.pop %v3531
    %v3686 = vxor.u32 %v3672, 2147483648
    %v3687 = vmul.f32 %v3686, 1.442695
    %v3688 = vpow.pop %v3687
    %v3689 = vadd.f32 %v3688, 1.0
    %v3690 = vrcp.pop %v3689
    %v3691 = vmul.f32 1.0, %v3690
    %v3692 = vmul.f32 %v3684, %v2706
    %v3693 = vmul.f32 %v3678, %v3685
    %v3694 = vadd.f32 %v3692, %v3693
    %v3695 = vtanh.pop %v3694
    %v3696 = vmul.f32 %v3691, %v3695
    %v3699 = vunpack.c.l.s4 1966171168
    %v3700 = vunpack.c.0.s8 %v3699
    %v3701 = vlaneseq
    %v3702 = vshrl.u32 %v3701, 7
    %v3703 = vsub.s32 %v3700, %v3702
    %v3704 = vrot.slane %v3696, %v3703
    %v3705 = vcombine.high %v3704, %v3704
    %v3707 = vunpack.c.l.s4 1966171168
    %v3708 = vunpack.c.0.s8 %v3707
    %v3709 = vlaneseq
    %v3710 = vshrl.u32 %v3709, 7
    %v3711 = vsub.s32 %v3708, %v3710
    %v3712 = vrot.slane %v3704, %v3711
    %v3714 = vunpack.c.l.s4 1966171168
    %v3715 = vunpack.c.0.s8 %v3714
    %v3716 = vlaneseq
    %v3717 = vshrl.u32 %v3716, 7
    %v3718 = vsub.s32 %v3715, %v3717
    %v3719 = vrot.slane %v3705, %v3718
    %v3720 = vlaneseq
    %v3721 = vshrl.u32 %v3720, 7
    %v3722 = vsub.s32 0, %v3721
    %v3723 = vrot.slane %v3712, %v3722
    %v3724 = vlaneseq
    %v3725 = vshrl.u32 %v3724, 7
    %v3726 = vsub.s32 0, %v3725
    %v3727 = vrot.slane %v3719, %v3726
    %v3730 = vmul.f32 %v45, %v3723
    %v3731 = vmul.f32 %v46, %v3727
    %v3732 = vsel %vm99, %v3730, 0.0
    %3733 = vadd.xlane.f32.xlu0 %v3732
    %v3734 = vpop.xlane.xlu0 %3733
    %v3735 = vsel %vm99, %v3731, 0.0
    %3736 = vadd.xlane.f32.xlu0 %v3735
    %v3737 = vpop.xlane.xlu0 %3736
    %v3740 = vlaneseq
    %v3741 = vshrl.u32 %v3740, 7
    %v3742 = vsub.s32 %v767, %v3741
    %v3743 = vrot.slane %v3734, %v3742
    %v3744 = vlaneseq
    %v3745 = vshrl.u32 %v3744, 7
    %v3746 = vsub.s32 %v767, %v3745
    %v3747 = vrot.slane %v3737, %v3746
    %v3748 = vsel %vm176, %v3747, %v3743
    %v3750 = vsel %vm778, %v3748, -inf
    %3751 = vmax.xlane.f32.xlu0 %v3750
    %v3752 = vpop.xlane.xlu0 %3751
    %v3754 = vlaneseq
    %v3755 = vshrl.u32 %v3754, 7
    %v3756 = vsub.s32 0, %v3755
    %v3757 = vrot.slane %v3752, %v3756
    %v3758 = vlaneseq
    %v3759 = vshrl.u32 %v3758, 7
    %v3760 = vsub.s32 1, %v3759
    %v3761 = vrot.slane %v3752, %v3760
    %v3764 = vsub.f32 %v3734, %v3757
    %v3765 = vsub.f32 %v3737, %v3761
    %v3766 = vmul.f32 %v3764, 1.442695
    %v3767 = vpow.pop %v3766
    %v3768 = vmul.f32 %v3765, 1.442695
    %v3769 = vpow.pop %v3768
    %3772 = vset.pattern.permute.xlu0 0
    %3773 = vperm.xlu0 %3772, %v3767
    %v3774 = vpop.permute.xlu0 %3773
    %3775 = vset.pattern.permute.xlu0 0
    %3776 = vperm.xlu0 %3775, %v3769
    %v3777 = vpop.permute.xlu0 %3776
    %v3778 = vlaneseq
    %v3779 = vshrl.u32 %v3778, 7
    %v3780 = vsub.s32 %v767, %v3779
    %v3781 = vrot.slane %v3774, %v3780
    %v3782 = vlaneseq
    %v3783 = vshrl.u32 %v3782, 7
    %v3784 = vsub.s32 %v767, %v3783
    %v3785 = vrot.slane %v3777, %v3784
    %v3786 = vsel %vm176, %v3785, %v3781
    %v3788 = vsel %vm778, %v3786, 0.0
    %3789 = vadd.xlane.f32.xlu0 %v3788
    %v3790 = vpop.xlane.xlu0 %3789
    %v3791 = vrcp.pop %v3790
    %v3793 = vlaneseq
    %v3794 = vshrl.u32 %v3793, 7
    %v3795 = vsub.s32 0, %v3794
    %v3796 = vrot.slane %v3791, %v3795
    %v3797 = vlaneseq
    %v3798 = vshrl.u32 %v3797, 7
    %v3799 = vsub.s32 1, %v3798
    %v3800 = vrot.slane %v3791, %v3799
    %v3803 = vmul.f32 %v3767, %v3796
    %v3804 = vmul.f32 %v3769, %v3800
    %3806 = vset.pattern.permute.xlu0 0
    %3807 = vperm.xlu0 %3806, %v3803
    %v3808 = vpop.permute.xlu0 %3807
    %3811 = vset.pattern.permute.xlu0 0
    %3812 = vperm.xlu0 %3811, %v3804
    %v3813 = vpop.permute.xlu0 %3812
    %v3815 = vmul.f32 %v3808, %v45
    %v3816 = vmul.f32 %v3813, %v46
    %v3817 = vsel %vm99, %v3815, 0.0
    %v3818 = vrot.slane %v3817, 4
    %v3819 = vadd.f32 %v3817, %v3818
    %v3820 = vrot.slane %v3819, 2
    %v3821 = vadd.f32 %v3819, %v3820
    %v3822 = vrot.slane %v3821, 1
    %v3823 = vadd.f32 %v3821, %v3822
    %v3824 = vsel %vm99, %v3816, 0.0
    %v3825 = vrot.slane %v3824, 4
    %v3826 = vadd.f32 %v3824, %v3825
    %v3827 = vrot.slane %v3826, 2
    %v3828 = vadd.f32 %v3826, %v3827
    %v3829 = vrot.slane %v3828, 1
    %v3830 = vadd.f32 %v3828, %v3829
    %v3833 = vsel %vm176, %v3830, %v3823
    %v3834 = vsel %vm99, %v3833, 0
    %3836 = vmatprep.subr.mxu0 0.0
    %3837 = vmatpush1.msra.mxu0 0.0
    %3838 = vmatprep.subr.mxu0 0.0
    %3839 = vmatpush1.msra.mxu0 0.0
    %3840 = vmatprep.subr.mxu0 0.0
    %3841 = vmatpush1.msra.mxu0 0.0
    %3842 = vmatprep.subr.mxu0 0.0
    %3843 = vmatpush1.msra.mxu0 0.0
    %3844 = vmatprep.subr.mxu0 0.0
    %3845 = vmatpush1.msra.mxu0 0.0
    %3846 = vmatprep.subr.mxu0 0.0
    %3847 = vmatpush1.msra.mxu0 0.0
    %3848 = vmatprep.subr.mxu0 0.0
    %3849 = vmatpush1.msra.mxu0 0.0
    %3850 = vmatprep.subr.mxu0 0.0
    %3851 = vmatpush1.msra.mxu0 0.0
    %3852 = vmatprep.subr.mxu0 0.0
    %3853 = vmatpush1.msra.mxu0 0.0
    %3854 = vmatprep.subr.mxu0 0.0
    %3855 = vmatpush1.msra.mxu0 0.0
    %3856 = vmatprep.subr.mxu0 0.0
    %3857 = vmatpush1.msra.mxu0 0.0
    %3858 = vmatprep.subr.mxu0 0.0
    %3859 = vmatpush1.msra.mxu0 0.0
    %3860 = vmatprep.subr.mxu0 0.0
    %3861 = vmatpush1.msra.mxu0 %v91
    %3862 = vmatprep.subr.mxu0 0.0
    %3863 = vmatpush1.msra.mxu0 %v90
    %3864 = vmatprep.subr.mxu0 0.0
    %3865 = vmatpush1.msra.mxu0 %v89
    %3866 = vmatprep.subr.mxu0 0.0
    %3867 = vmatpush1.msra.mxu0 %v88
    %3868 = vmatprep.subr.mxu0 0.0
    %3869 = vmatpush2.msra.mxu0 0.0
    %3870 = vmatprep.subr.mxu0 0.0
    %3871 = vmatpush2.msra.mxu0 0.0
    %3872 = vmatprep.subr.mxu0 0.0
    %3873 = vmatpush2.msra.mxu0 0.0
    %3874 = vmatprep.subr.mxu0 0.0
    %3875 = vmatpush2.msra.mxu0 0.0
    %3876 = vmatprep.subr.mxu0 0.0
    %3877 = vmatpush2.msra.mxu0 0.0
    %3878 = vmatprep.subr.mxu0 0.0
    %3879 = vmatpush2.msra.mxu0 0.0
    %3880 = vmatprep.subr.mxu0 0.0
    %3881 = vmatpush2.msra.mxu0 0.0
    %3882 = vmatprep.subr.mxu0 0.0
    %3883 = vmatpush2.msra.mxu0 0.0
    %3884 = vmatprep.subr.mxu0 0.0
    %3885 = vmatpush2.msra.mxu0 0.0
    %3886 = vmatprep.subr.mxu0 0.0
    %3887 = vmatpush2.msra.mxu0 0.0
    %3888 = vmatprep.subr.mxu0 0.0
    %3889 = vmatpush2.msra.mxu0 0.0
    %3890 = vmatprep.subr.mxu0 0.0
    %3891 = vmatpush2.msra.mxu0 0.0
    %3892 = vmatprep.subr.mxu0 0.0
    %3893 = vmatpush2.msra.mxu0 0.0
    %3894 = vmatprep.subr.mxu0 0.0
    %3895 = vmatpush2.msra.mxu0 0.0
    %3896 = vmatprep.subr.mxu0 0.0
    %3897 = vmatpush2.msra.mxu0 0.0
    %3898 = vmatprep.subr.mxu0 0.0
    %3899 = vmatpush2.msra.mxu0 0.0
    %3900 = vmatprep.mubr.f32.mxu0 0.0
    %3901 = vmatmul.mubr.f32.gmra.mxu0 %v3834
    %v3902 = vpop.f32.mrf.mxu0
    %v3903 = vadd.f32 0.0, %v3902
    %v3904 = vpop.f32.mrf.mxu0
    %3905 = vdwg.mxu0
    %v3906 = vsel %vm99, %v3696, 0
    %3908 = vmatprep.subr.mxu0 0.0
    %3909 = vmatpush1.msra.mxu0 0.0
    %3910 = vmatprep.subr.mxu0 0.0
    %3911 = vmatpush1.msra.mxu0 0.0
    %3912 = vmatprep.subr.mxu0 0.0
    %3913 = vmatpush1.msra.mxu0 0.0
    %3914 = vmatprep.subr.mxu0 0.0
    %3915 = vmatpush1.msra.mxu0 0.0
    %3916 = vmatprep.subr.mxu0 0.0
    %3917 = vmatpush1.msra.mxu0 0.0
    %3918 = vmatprep.subr.mxu0 0.0
    %3919 = vmatpush1.msra.mxu0 0.0
    %3920 = vmatprep.subr.mxu0 0.0
    %3921 = vmatpush1.msra.mxu0 0.0
    %3922 = vmatprep.subr.mxu0 0.0
    %3923 = vmatpush1.msra.mxu0 0.0
    %3924 = vmatprep.subr.mxu0 0.0
    %3925 = vmatpush1.msra.mxu0 0.0
    %3926 = vmatprep.subr.mxu0 0.0
    %3927 = vmatpush1.msra.mxu0 0.0
    %3928 = vmatprep.subr.mxu0 0.0
    %3929 = vmatpush1.msra.mxu0 0.0
    %3930 = vmatprep.subr.mxu0 0.0
    %3931 = vmatpush1.msra.mxu0 0.0
    %3932 = vmatprep.subr.mxu0 0.0
    %3933 = vmatpush1.msra.mxu0 %v87
    %3934 = vmatprep.subr.mxu0 0.0
    %3935 = vmatpush1.msra.mxu0 %v86
    %3936 = vmatprep.subr.mxu0 0.0
    %3937 = vmatpush1.msra.mxu0 %v85
    %3938 = vmatprep.subr.mxu0 0.0
    %3939 = vmatpush1.msra.mxu0 %v84
    %3940 = vmatprep.subr.mxu0 0.0
    %3941 = vmatpush2.msra.mxu0 0.0
    %3942 = vmatprep.subr.mxu0 0.0
    %3943 = vmatpush2.msra.mxu0 0.0
    %3944 = vmatprep.subr.mxu0 0.0
    %3945 = vmatpush2.msra.mxu0 0.0
    %3946 = vmatprep.subr.mxu0 0.0
    %3947 = vmatpush2.msra.mxu0 0.0
    %3948 = vmatprep.subr.mxu0 0.0
    %3949 = vmatpush2.msra.mxu0 0.0
    %3950 = vmatprep.subr.mxu0 0.0
    %3951 = vmatpush2.msra.mxu0 0.0
    %3952 = vmatprep.subr.mxu0 0.0
    %3953 = vmatpush2.msra.mxu0 0.0
    %3954 = vmatprep.subr.mxu0 0.0
    %3955 = vmatpush2.msra.mxu0 0.0
    %3956 = vmatprep.subr.mxu0 0.0
    %3957 = vmatpush2.msra.mxu0 0.0
    %3958 = vmatprep.subr.mxu0 0.0
    %3959 = vmatpush2.msra.mxu0 0.0
    %3960 = vmatprep.subr.mxu0 0.0
    %3961 = vmatpush2.msra.mxu0 0.0
    %3962 = vmatprep.subr.mxu0 0.0
    %3963 = vmatpush2.msra.mxu0 0.0
    %3964 = vmatprep.subr.mxu0 0.0
    %3965 = vmatpush2.msra.mxu0 0.0
    %3966 = vmatprep.subr.mxu0 0.0
    %3967 = vmatpush2.msra.mxu0 0.0
    %3968 = vmatprep.subr.mxu0 0.0
    %3969 = vmatpush2.msra.mxu0 0.0
    %3970 = vmatprep.subr.mxu0 0.0
    %3971 = vmatpush2.msra.mxu0 0.0
    %3972 = vmatprep.mubr.f32.mxu0 0.0
    %3973 = vmatmul.mubr.f32.gmra.mxu0 %v3906
    %v3974 = vpop.f32.mrf.mxu0
    %v3975 = vadd.f32 %v3903, %v3974
    %v3976 = vpop.f32.mrf.mxu0
    %3977 = vdwg.mxu0
    %v3978 = vtanh.pop %v3975
    %v3980 = vsel %vm99, %v3978, 0
    %3982 = vmatprep.subr.mxu0 0.0
    %3983 = vmatpush1.msra.mxu0 0.0
    %3984 = vmatprep.subr.mxu0 0.0
    %3985 = vmatpush1.msra.mxu0 0.0
    %3986 = vmatprep.subr.mxu0 0.0
    %3987 = vmatpush1.msra.mxu0 0.0
    %3988 = vmatprep.subr.mxu0 0.0
    %3989 = vmatpush1.msra.mxu0 0.0
    %3990 = vmatprep.subr.mxu0 0.0
    %3991 = vmatpush1.msra.mxu0 0.0
    %3992 = vmatprep.subr.mxu0 0.0
    %3993 = vmatpush1.msra.mxu0 0.0
    %3994 = vmatprep.subr.mxu0 0.0
    %3995 = vmatpush1.msra.mxu0 0.0
    %3996 = vmatprep.subr.mxu0 0.0
    %3997 = vmatpush1.msra.mxu0 0.0
    %3998 = vmatprep.subr.mxu0 0.0
    %3999 = vmatpush1.msra.mxu0 0.0
    %4000 = vmatprep.subr.mxu0 0.0
    %4001 = vmatpush1.msra.mxu0 0.0
    %4002 = vmatprep.subr.mxu0 0.0
    %4003 = vmatpush1.msra.mxu0 0.0
    %4004 = vmatprep.subr.mxu0 0.0
    %4005 = vmatpush1.msra.mxu0 0.0
    %4006 = vmatprep.subr.mxu0 0.0
    %4007 = vmatpush1.msra.mxu0 %v95
    %4008 = vmatprep.subr.mxu0 0.0
    %4009 = vmatpush1.msra.mxu0 %v94
    %4010 = vmatprep.subr.mxu0 0.0
    %4011 = vmatpush1.msra.mxu0 %v93
    %4012 = vmatprep.subr.mxu0 0.0
    %4013 = vmatpush1.msra.mxu0 %v92
    %4014 = vmatprep.subr.mxu0 0.0
    %4015 = vmatpush2.msra.mxu0 0.0
    %4016 = vmatprep.subr.mxu0 0.0
    %4017 = vmatpush2.msra.mxu0 0.0
    %4018 = vmatprep.subr.mxu0 0.0
    %4019 = vmatpush2.msra.mxu0 0.0
    %4020 = vmatprep.subr.mxu0 0.0
    %4021 = vmatpush2.msra.mxu0 0.0
    %4022 = vmatprep.subr.mxu0 0.0
    %4023 = vmatpush2.msra.mxu0 0.0
    %4024 = vmatprep.subr.mxu0 0.0
    %4025 = vmatpush2.msra.mxu0 0.0
    %4026 = vmatprep.subr.mxu0 0.0
    %4027 = vmatpush2.msra.mxu0 0.0
    %4028 = vmatprep.subr.mxu0 0.0
    %4029 = vmatpush2.msra.mxu0 0.0
    %4030 = vmatprep.subr.mxu0 0.0
    %4031 = vmatpush2.msra.mxu0 0.0
    %4032 = vmatprep.subr.mxu0 0.0
    %4033 = vmatpush2.msra.mxu0 0.0
    %4034 = vmatprep.subr.mxu0 0.0
    %4035 = vmatpush2.msra.mxu0 0.0
    %4036 = vmatprep.subr.mxu0 0.0
    %4037 = vmatpush2.msra.mxu0 0.0
    %4038 = vmatprep.subr.mxu0 0.0
    %4039 = vmatpush2.msra.mxu0 0.0
    %4040 = vmatprep.subr.mxu0 0.0
    %4041 = vmatpush2.msra.mxu0 0.0
    %4042 = vmatprep.subr.mxu0 0.0
    %4043 = vmatpush2.msra.mxu0 0.0
    %4044 = vmatprep.subr.mxu0 0.0
    %4045 = vmatpush2.msra.mxu0 0.0
    %4046 = vmatprep.mubr.f32.mxu0 0.0
    %4047 = vmatmul.mubr.f32.gmra.mxu0 %v3980
    %v4048 = vpop.f32.mrf.mxu0
    %v4049 = vadd.f32 %v1012, %v4048
    %v4050 = vpop.f32.mrf.mxu0
    %4051 = vdwg.mxu0
    %v4052 = vsel %vm1087, %v4049, -inf
    %4053 = vmax.xlane.f32.xlu0 %v4052
    %v4054 = vpop.xlane.xlu0 %4053
    %v4055 = vsub.f32 %v4049, %v4054
    %v4056 = vmul.f32 %v4055, 1.442695
    %v4057 = vpow.pop %v4056
    %v4058 = vsel %vm1087, %v4057, 0.0
    %4059 = vadd.xlane.f32.xlu0 %v4058
    %v4060 = vpop.xlane.xlu0 %4059
    %v4061 = vlog2.pop %v4060
    %v4062 = vmul.f32 %v4061, 0.6931472
    %v4063 = vadd.f32 %v4054, %v4062
    %v4064 = vsub.f32 %v4049, %v4063
    %v4067 = vunpack.c.l.s4 1966171168
    %v4068 = vunpack.c.0.s8 %v4067
    %v4069 = vlaneseq
    %v4070 = vshrl.u32 %v4069, 7
    %v4071 = vsub.s32 %v4068, %v4070
    %v4072 = vrot.slane %v4064, %v4071
    %v4073 = vcombine.high %v4072, %v4072
    %v4075 = vunpack.c.l.s4 1966171168
    %v4076 = vunpack.c.0.s8 %v4075
    %v4077 = vlaneseq
    %v4078 = vshrl.u32 %v4077, 7
    %v4079 = vsub.s32 %v4076, %v4078
    %v4080 = vrot.slane %v4072, %v4079
    %v4082 = vunpack.c.l.s4 1966171168
    %v4083 = vunpack.c.0.s8 %v4082
    %v4084 = vlaneseq
    %v4085 = vshrl.u32 %v4084, 7
    %v4086 = vsub.s32 %v4083, %v4085
    %v4087 = vrot.slane %v4073, %v4086
    %4090 = vst.msk [vmem:[#allocation2 + $0x3] sm:$0x1] %vm1126, %v4080
    %4091 = vst.msk [vmem:[#allocation2 + $0xb] sm:$0x1] %vm1126, %v4087
    %4092 = vmatprep.subr.mxu0 0.0
    %4093 = vmatpush1.msra.mxu0 0.0
    %4094 = vmatprep.subr.mxu0 0.0
    %4095 = vmatpush1.msra.mxu0 0.0
    %4096 = vmatprep.subr.mxu0 0.0
    %4097 = vmatpush1.msra.mxu0 0.0
    %4098 = vmatprep.subr.mxu0 0.0
    %4099 = vmatpush1.msra.mxu0 0.0
    %4100 = vmatprep.subr.mxu0 0.0
    %4101 = vmatpush1.msra.mxu0 0.0
    %4102 = vmatprep.subr.mxu0 0.0
    %4103 = vmatpush1.msra.mxu0 0.0
    %4104 = vmatprep.subr.mxu0 0.0
    %4105 = vmatpush1.msra.mxu0 0.0
    %4106 = vmatprep.subr.mxu0 0.0
    %4107 = vmatpush1.msra.mxu0 0.0
    %4108 = vmatprep.subr.mxu0 0.0
    %4109 = vmatpush1.msra.mxu0 0.0
    %4110 = vmatprep.subr.mxu0 0.0
    %4111 = vmatpush1.msra.mxu0 0.0
    %4112 = vmatprep.subr.mxu0 0.0
    %4113 = vmatpush1.msra.mxu0 0.0
    %4114 = vmatprep.subr.mxu0 0.0
    %4115 = vmatpush1.msra.mxu0 0.0
    %4116 = vmatprep.subr.mxu0 0.0
    %4117 = vmatpush1.msra.mxu0 %v61
    %4118 = vmatprep.subr.mxu0 0.0
    %4119 = vmatpush1.msra.mxu0 %v60
    %4120 = vmatprep.subr.mxu0 0.0
    %4121 = vmatpush1.msra.mxu0 %v59
    %4122 = vmatprep.subr.mxu0 0.0
    %4123 = vmatpush1.msra.mxu0 %v58
    %4124 = vmatprep.subr.mxu0 0.0
    %4125 = vmatpush2.msra.mxu0 0.0
    %4126 = vmatprep.subr.mxu0 0.0
    %4127 = vmatpush2.msra.mxu0 0.0
    %4128 = vmatprep.subr.mxu0 0.0
    %4129 = vmatpush2.msra.mxu0 0.0
    %4130 = vmatprep.subr.mxu0 0.0
    %4131 = vmatpush2.msra.mxu0 0.0
    %4132 = vmatprep.subr.mxu0 0.0
    %4133 = vmatpush2.msra.mxu0 0.0
    %4134 = vmatprep.subr.mxu0 0.0
    %4135 = vmatpush2.msra.mxu0 0.0
    %4136 = vmatprep.subr.mxu0 0.0
    %4137 = vmatpush2.msra.mxu0 0.0
    %4138 = vmatprep.subr.mxu0 0.0
    %4139 = vmatpush2.msra.mxu0 0.0
    %4140 = vmatprep.subr.mxu0 0.0
    %4141 = vmatpush2.msra.mxu0 0.0
    %4142 = vmatprep.subr.mxu0 0.0
    %4143 = vmatpush2.msra.mxu0 0.0
    %4144 = vmatprep.subr.mxu0 0.0
    %4145 = vmatpush2.msra.mxu0 0.0
    %4146 = vmatprep.subr.mxu0 0.0
    %4147 = vmatpush2.msra.mxu0 0.0
    %4148 = vmatprep.subr.mxu0 0.0
    %4149 = vmatpush2.msra.mxu0 0.0
    %4150 = vmatprep.subr.mxu0 0.0
    %4151 = vmatpush2.msra.mxu0 0.0
    %4152 = vmatprep.subr.mxu0 0.0
    %4153 = vmatpush2.msra.mxu0 0.0
    %4154 = vmatprep.subr.mxu0 0.0
    %4155 = vmatpush2.msra.mxu0 0.0
    %4156 = vmatprep.mubr.f32.mxu0 0.0
    %4157 = vmatmul.mubr.f32.gmra.mxu0 %v3906
    %v4158 = vpop.f32.mrf.mxu0
    %v4159 = vadd.f32 0.0, %v4158
    %v4160 = vpop.f32.mrf.mxu0
    %4161 = vdwg.mxu0
    %v4162 = vrot.slane %v43, 4
    %v4163 = vrot.slane %v44, 3
    %v4164 = vsel %vm176, %v4163, %v4162
    %v4165 = vsel %vm178, %v4164, 0
    %4167 = vmatprep.subr.mxu0 0.0
    %4168 = vmatpush1.msra.mxu0 0.0
    %4169 = vmatprep.subr.mxu0 0.0
    %4170 = vmatpush1.msra.mxu0 0.0
    %4171 = vmatprep.subr.mxu0 0.0
    %4172 = vmatpush1.msra.mxu0 0.0
    %4173 = vmatprep.subr.mxu0 0.0
    %4174 = vmatpush1.msra.mxu0 0.0
    %4175 = vmatprep.subr.mxu0 0.0
    %4176 = vmatpush1.msra.mxu0 0.0
    %4177 = vmatprep.subr.mxu0 0.0
    %4178 = vmatpush1.msra.mxu0 0.0
    %4179 = vmatprep.subr.mxu0 0.0
    %4180 = vmatpush1.msra.mxu0 0.0
    %4181 = vmatprep.subr.mxu0 0.0
    %4182 = vmatpush1.msra.mxu0 0.0
    %4183 = vmatprep.subr.mxu0 0.0
    %4184 = vmatpush1.msra.mxu0 0.0
    %4185 = vmatprep.subr.mxu0 0.0
    %4186 = vmatpush1.msra.mxu0 0.0
    %4187 = vmatprep.subr.mxu0 0.0
    %4188 = vmatpush1.msra.mxu0 0.0
    %4189 = vmatprep.subr.mxu0 0.0
    %4190 = vmatpush1.msra.mxu0 0.0
    %4191 = vmatprep.subr.mxu0 0.0
    %4192 = vmatpush1.msra.mxu0 0.0
    %4193 = vmatprep.subr.mxu0 0.0
    %4194 = vmatpush1.msra.mxu0 0.0
    %4195 = vmatprep.subr.mxu0 0.0
    %4196 = vmatpush1.msra.mxu0 %v48
    %4197 = vmatprep.subr.mxu0 0.0
    %4198 = vmatpush1.msra.mxu0 %v47
    %4199 = vmatprep.subr.mxu0 0.0
    %4200 = vmatpush2.msra.mxu0 0.0
    %4201 = vmatprep.subr.mxu0 0.0
    %4202 = vmatpush2.msra.mxu0 0.0
    %4203 = vmatprep.subr.mxu0 0.0
    %4204 = vmatpush2.msra.mxu0 0.0
    %4205 = vmatprep.subr.mxu0 0.0
    %4206 = vmatpush2.msra.mxu0 0.0
    %4207 = vmatprep.subr.mxu0 0.0
    %4208 = vmatpush2.msra.mxu0 0.0
    %4209 = vmatprep.subr.mxu0 0.0
    %4210 = vmatpush2.msra.mxu0 0.0
    %4211 = vmatprep.subr.mxu0 0.0
    %4212 = vmatpush2.msra.mxu0 0.0
    %4213 = vmatprep.subr.mxu0 0.0
    %4214 = vmatpush2.msra.mxu0 0.0
    %4215 = vmatprep.subr.mxu0 0.0
    %4216 = vmatpush2.msra.mxu0 0.0
    %4217 = vmatprep.subr.mxu0 0.0
    %4218 = vmatpush2.msra.mxu0 0.0
    %4219 = vmatprep.subr.mxu0 0.0
    %4220 = vmatpush2.msra.mxu0 0.0
    %4221 = vmatprep.subr.mxu0 0.0
    %4222 = vmatpush2.msra.mxu0 0.0
    %4223 = vmatprep.subr.mxu0 0.0
    %4224 = vmatpush2.msra.mxu0 0.0
    %4225 = vmatprep.subr.mxu0 0.0
    %4226 = vmatpush2.msra.mxu0 0.0
    %4227 = vmatprep.subr.mxu0 0.0
    %4228 = vmatpush2.msra.mxu0 0.0
    %4229 = vmatprep.subr.mxu0 0.0
    %4230 = vmatpush2.msra.mxu0 0.0
    %4231 = vmatprep.mubr.f32.mxu0 0.0
    %4232 = vmatmul.mubr.f32.gmra.mxu0 %v4165
    %v4233 = vpop.f32.mrf.mxu0
    %v4234 = vadd.f32 %v4159, %v4233
    %v4235 = vpop.f32.mrf.mxu0
    %4236 = vdwg.mxu0
    %v4237 = vadd.f32 %v4234, %v255
    %4238 = vmatprep.subr.mxu0 0.0
    %4239 = vmatpush1.msra.mxu0 0.0
    %4240 = vmatprep.subr.mxu0 0.0
    %4241 = vmatpush1.msra.mxu0 0.0
    %4242 = vmatprep.subr.mxu0 0.0
    %4243 = vmatpush1.msra.mxu0 0.0
    %4244 = vmatprep.subr.mxu0 0.0
    %4245 = vmatpush1.msra.mxu0 0.0
    %4246 = vmatprep.subr.mxu0 0.0
    %4247 = vmatpush1.msra.mxu0 0.0
    %4248 = vmatprep.subr.mxu0 0.0
    %4249 = vmatpush1.msra.mxu0 0.0
    %4250 = vmatprep.subr.mxu0 0.0
    %4251 = vmatpush1.msra.mxu0 0.0
    %4252 = vmatprep.subr.mxu0 0.0
    %4253 = vmatpush1.msra.mxu0 0.0
    %4254 = vmatprep.subr.mxu0 0.0
    %4255 = vmatpush1.msra.mxu0 0.0
    %4256 = vmatprep.subr.mxu0 0.0
    %4257 = vmatpush1.msra.mxu0 0.0
    %4258 = vmatprep.subr.mxu0 0.0
    %4259 = vmatpush1.msra.mxu0 0.0
    %4260 = vmatprep.subr.mxu0 0.0
    %4261 = vmatpush1.msra.mxu0 0.0
    %4262 = vmatprep.subr.mxu0 0.0
    %4263 = vmatpush1.msra.mxu0 %v66
    %4264 = vmatprep.subr.mxu0 0.0
    %4265 = vmatpush1.msra.mxu0 %v65
    %4266 = vmatprep.subr.mxu0 0.0
    %4267 = vmatpush1.msra.mxu0 %v64
    %4268 = vmatprep.subr.mxu0 0.0
    %4269 = vmatpush1.msra.mxu0 %v63
    %4270 = vmatprep.subr.mxu0 0.0
    %4271 = vmatpush2.msra.mxu0 0.0
    %4272 = vmatprep.subr.mxu0 0.0
    %4273 = vmatpush2.msra.mxu0 0.0
    %4274 = vmatprep.subr.mxu0 0.0
    %4275 = vmatpush2.msra.mxu0 0.0
    %4276 = vmatprep.subr.mxu0 0.0
    %4277 = vmatpush2.msra.mxu0 0.0
    %4278 = vmatprep.subr.mxu0 0.0
    %4279 = vmatpush2.msra.mxu0 0.0
    %4280 = vmatprep.subr.mxu0 0.0
    %4281 = vmatpush2.msra.mxu0 0.0
    %4282 = vmatprep.subr.mxu0 0.0
    %4283 = vmatpush2.msra.mxu0 0.0
    %4284 = vmatprep.subr.mxu0 0.0
    %4285 = vmatpush2.msra.mxu0 0.0
    %4286 = vmatprep.subr.mxu0 0.0
    %4287 = vmatpush2.msra.mxu0 0.0
    %4288 = vmatprep.subr.mxu0 0.0
    %4289 = vmatpush2.msra.mxu0 0.0
    %4290 = vmatprep.subr.mxu0 0.0
    %4291 = vmatpush2.msra.mxu0 0.0
    %4292 = vmatprep.subr.mxu0 0.0
    %4293 = vmatpush2.msra.mxu0 0.0
    %4294 = vmatprep.subr.mxu0 0.0
    %4295 = vmatpush2.msra.mxu0 0.0
    %4296 = vmatprep.subr.mxu0 0.0
    %4297 = vmatpush2.msra.mxu0 0.0
    %4298 = vmatprep.subr.mxu0 0.0
    %4299 = vmatpush2.msra.mxu0 0.0
    %4300 = vmatprep.subr.mxu0 0.0
    %4301 = vmatpush2.msra.mxu0 0.0
    %4302 = vmatprep.mubr.f32.mxu0 0.0
    %4303 = vmatmul.mubr.f32.gmra.mxu0 %v3906
    %v4304 = vpop.f32.mrf.mxu0
    %v4305 = vadd.f32 0.0, %v4304
    %v4306 = vpop.f32.mrf.mxu0
    %4307 = vdwg.mxu0
    %4308 = vmatprep.subr.mxu0 0.0
    %4309 = vmatpush1.msra.mxu0 0.0
    %4310 = vmatprep.subr.mxu0 0.0
    %4311 = vmatpush1.msra.mxu0 0.0
    %4312 = vmatprep.subr.mxu0 0.0
    %4313 = vmatpush1.msra.mxu0 0.0
    %4314 = vmatprep.subr.mxu0 0.0
    %4315 = vmatpush1.msra.mxu0 0.0
    %4316 = vmatprep.subr.mxu0 0.0
    %4317 = vmatpush1.msra.mxu0 0.0
    %4318 = vmatprep.subr.mxu0 0.0
    %4319 = vmatpush1.msra.mxu0 0.0
    %4320 = vmatprep.subr.mxu0 0.0
    %4321 = vmatpush1.msra.mxu0 0.0
    %4322 = vmatprep.subr.mxu0 0.0
    %4323 = vmatpush1.msra.mxu0 0.0
    %4324 = vmatprep.subr.mxu0 0.0
    %4325 = vmatpush1.msra.mxu0 0.0
    %4326 = vmatprep.subr.mxu0 0.0
    %4327 = vmatpush1.msra.mxu0 0.0
    %4328 = vmatprep.subr.mxu0 0.0
    %4329 = vmatpush1.msra.mxu0 0.0
    %4330 = vmatprep.subr.mxu0 0.0
    %4331 = vmatpush1.msra.mxu0 0.0
    %4332 = vmatprep.subr.mxu0 0.0
    %4333 = vmatpush1.msra.mxu0 0.0
    %4334 = vmatprep.subr.mxu0 0.0
    %4335 = vmatpush1.msra.mxu0 0.0
    %4336 = vmatprep.subr.mxu0 0.0
    %4337 = vmatpush1.msra.mxu0 %v51
    %4338 = vmatprep.subr.mxu0 0.0
    %4339 = vmatpush1.msra.mxu0 %v50
    %4340 = vmatprep.subr.mxu0 0.0
    %4341 = vmatpush2.msra.mxu0 0.0
    %4342 = vmatprep.subr.mxu0 0.0
    %4343 = vmatpush2.msra.mxu0 0.0
    %4344 = vmatprep.subr.mxu0 0.0
    %4345 = vmatpush2.msra.mxu0 0.0
    %4346 = vmatprep.subr.mxu0 0.0
    %4347 = vmatpush2.msra.mxu0 0.0
    %4348 = vmatprep.subr.mxu0 0.0
    %4349 = vmatpush2.msra.mxu0 0.0
    %4350 = vmatprep.subr.mxu0 0.0
    %4351 = vmatpush2.msra.mxu0 0.0
    %4352 = vmatprep.subr.mxu0 0.0
    %4353 = vmatpush2.msra.mxu0 0.0
    %4354 = vmatprep.subr.mxu0 0.0
    %4355 = vmatpush2.msra.mxu0 0.0
    %4356 = vmatprep.subr.mxu0 0.0
    %4357 = vmatpush2.msra.mxu0 0.0
    %4358 = vmatprep.subr.mxu0 0.0
    %4359 = vmatpush2.msra.mxu0 0.0
    %4360 = vmatprep.subr.mxu0 0.0
    %4361 = vmatpush2.msra.mxu0 0.0
    %4362 = vmatprep.subr.mxu0 0.0
    %4363 = vmatpush2.msra.mxu0 0.0
    %4364 = vmatprep.subr.mxu0 0.0
    %4365 = vmatpush2.msra.mxu0 0.0
    %4366 = vmatprep.subr.mxu0 0.0
    %4367 = vmatpush2.msra.mxu0 0.0
    %4368 = vmatprep.subr.mxu0 0.0
    %4369 = vmatpush2.msra.mxu0 0.0
    %4370 = vmatprep.subr.mxu0 0.0
    %4371 = vmatpush2.msra.mxu0 0.0
    %4372 = vmatprep.mubr.f32.mxu0 0.0
    %4373 = vmatmul.mubr.f32.gmra.mxu0 %v4165
    %v4374 = vpop.f32.mrf.mxu0
    %v4375 = vadd.f32 %v4305, %v4374
    %v4376 = vpop.f32.mrf.mxu0
    %4377 = vdwg.mxu0
    %v4378 = vadd.f32 %v4375, %v402
    %4379 = vmatprep.subr.mxu0 0.0
    %4380 = vmatpush1.msra.mxu0 0.0
    %4381 = vmatprep.subr.mxu0 0.0
    %4382 = vmatpush1.msra.mxu0 0.0
    %4383 = vmatprep.subr.mxu0 0.0
    %4384 = vmatpush1.msra.mxu0 0.0
    %4385 = vmatprep.subr.mxu0 0.0
    %4386 = vmatpush1.msra.mxu0 0.0
    %4387 = vmatprep.subr.mxu0 0.0
    %4388 = vmatpush1.msra.mxu0 0.0
    %4389 = vmatprep.subr.mxu0 0.0
    %4390 = vmatpush1.msra.mxu0 0.0
    %4391 = vmatprep.subr.mxu0 0.0
    %4392 = vmatpush1.msra.mxu0 0.0
    %4393 = vmatprep.subr.mxu0 0.0
    %4394 = vmatpush1.msra.mxu0 0.0
    %4395 = vmatprep.subr.mxu0 0.0
    %4396 = vmatpush1.msra.mxu0 0.0
    %4397 = vmatprep.subr.mxu0 0.0
    %4398 = vmatpush1.msra.mxu0 0.0
    %4399 = vmatprep.subr.mxu0 0.0
    %4400 = vmatpush1.msra.mxu0 0.0
    %4401 = vmatprep.subr.mxu0 0.0
    %4402 = vmatpush1.msra.mxu0 0.0
    %4403 = vmatprep.subr.mxu0 0.0
    %4404 = vmatpush1.msra.mxu0 %v71
    %4405 = vmatprep.subr.mxu0 0.0
    %4406 = vmatpush1.msra.mxu0 %v70
    %4407 = vmatprep.subr.mxu0 0.0
    %4408 = vmatpush1.msra.mxu0 %v69
    %4409 = vmatprep.subr.mxu0 0.0
    %4410 = vmatpush1.msra.mxu0 %v68
    %4411 = vmatprep.subr.mxu0 0.0
    %4412 = vmatpush2.msra.mxu0 0.0
    %4413 = vmatprep.subr.mxu0 0.0
    %4414 = vmatpush2.msra.mxu0 0.0
    %4415 = vmatprep.subr.mxu0 0.0
    %4416 = vmatpush2.msra.mxu0 0.0
    %4417 = vmatprep.subr.mxu0 0.0
    %4418 = vmatpush2.msra.mxu0 0.0
    %4419 = vmatprep.subr.mxu0 0.0
    %4420 = vmatpush2.msra.mxu0 0.0
    %4421 = vmatprep.subr.mxu0 0.0
    %4422 = vmatpush2.msra.mxu0 0.0
    %4423 = vmatprep.subr.mxu0 0.0
    %4424 = vmatpush2.msra.mxu0 0.0
    %4425 = vmatprep.subr.mxu0 0.0
    %4426 = vmatpush2.msra.mxu0 0.0
    %4427 = vmatprep.subr.mxu0 0.0
    %4428 = vmatpush2.msra.mxu0 0.0
    %4429 = vmatprep.subr.mxu0 0.0
    %4430 = vmatpush2.msra.mxu0 0.0
    %4431 = vmatprep.subr.mxu0 0.0
    %4432 = vmatpush2.msra.mxu0 0.0
    %4433 = vmatprep.subr.mxu0 0.0
    %4434 = vmatpush2.msra.mxu0 0.0
    %4435 = vmatprep.subr.mxu0 0.0
    %4436 = vmatpush2.msra.mxu0 0.0
    %4437 = vmatprep.subr.mxu0 0.0
    %4438 = vmatpush2.msra.mxu0 0.0
    %4439 = vmatprep.subr.mxu0 0.0
    %4440 = vmatpush2.msra.mxu0 0.0
    %4441 = vmatprep.subr.mxu0 0.0
    %4442 = vmatpush2.msra.mxu0 0.0
    %4443 = vmatprep.mubr.f32.mxu0 0.0
    %4444 = vmatmul.mubr.f32.gmra.mxu0 %v3906
    %v4445 = vpop.f32.mrf.mxu0
    %v4446 = vadd.f32 0.0, %v4445
    %v4447 = vpop.f32.mrf.mxu0
    %4448 = vdwg.mxu0
    %4449 = vmatprep.subr.mxu0 0.0
    %4450 = vmatpush1.msra.mxu0 0.0
    %4451 = vmatprep.subr.mxu0 0.0
    %4452 = vmatpush1.msra.mxu0 0.0
    %4453 = vmatprep.subr.mxu0 0.0
    %4454 = vmatpush1.msra.mxu0 0.0
    %4455 = vmatprep.subr.mxu0 0.0
    %4456 = vmatpush1.msra.mxu0 0.0
    %4457 = vmatprep.subr.mxu0 0.0
    %4458 = vmatpush1.msra.mxu0 0.0
    %4459 = vmatprep.subr.mxu0 0.0
    %4460 = vmatpush1.msra.mxu0 0.0
    %4461 = vmatprep.subr.mxu0 0.0
    %4462 = vmatpush1.msra.mxu0 0.0
    %4463 = vmatprep.subr.mxu0 0.0
    %4464 = vmatpush1.msra.mxu0 0.0
    %4465 = vmatprep.subr.mxu0 0.0
    %4466 = vmatpush1.msra.mxu0 0.0
    %4467 = vmatprep.subr.mxu0 0.0
    %4468 = vmatpush1.msra.mxu0 0.0
    %4469 = vmatprep.subr.mxu0 0.0
    %4470 = vmatpush1.msra.mxu0 0.0
    %4471 = vmatprep.subr.mxu0 0.0
    %4472 = vmatpush1.msra.mxu0 0.0
    %4473 = vmatprep.subr.mxu0 0.0
    %4474 = vmatpush1.msra.mxu0 0.0
    %4475 = vmatprep.subr.mxu0 0.0
    %4476 = vmatpush1.msra.mxu0 0.0
    %4477 = vmatprep.subr.mxu0 0.0
    %4478 = vmatpush1.msra.mxu0 %v54
    %4479 = vmatprep.subr.mxu0 0.0
    %4480 = vmatpush1.msra.mxu0 %v53
    %4481 = vmatprep.subr.mxu0 0.0
    %4482 = vmatpush2.msra.mxu0 0.0
    %4483 = vmatprep.subr.mxu0 0.0
    %4484 = vmatpush2.msra.mxu0 0.0
    %4485 = vmatprep.subr.mxu0 0.0
    %4486 = vmatpush2.msra.mxu0 0.0
    %4487 = vmatprep.subr.mxu0 0.0
    %4488 = vmatpush2.msra.mxu0 0.0
    %4489 = vmatprep.subr.mxu0 0.0
    %4490 = vmatpush2.msra.mxu0 0.0
    %4491 = vmatprep.subr.mxu0 0.0
    %4492 = vmatpush2.msra.mxu0 0.0
    %4493 = vmatprep.subr.mxu0 0.0
    %4494 = vmatpush2.msra.mxu0 0.0
    %4495 = vmatprep.subr.mxu0 0.0
    %4496 = vmatpush2.msra.mxu0 0.0
    %4497 = vmatprep.subr.mxu0 0.0
    %4498 = vmatpush2.msra.mxu0 0.0
    %4499 = vmatprep.subr.mxu0 0.0
    %4500 = vmatpush2.msra.mxu0 0.0
    %4501 = vmatprep.subr.mxu0 0.0
    %4502 = vmatpush2.msra.mxu0 0.0
    %4503 = vmatprep.subr.mxu0 0.0
    %4504 = vmatpush2.msra.mxu0 0.0
    %4505 = vmatprep.subr.mxu0 0.0
    %4506 = vmatpush2.msra.mxu0 0.0
    %4507 = vmatprep.subr.mxu0 0.0
    %4508 = vmatpush2.msra.mxu0 0.0
    %4509 = vmatprep.subr.mxu0 0.0
    %4510 = vmatpush2.msra.mxu0 0.0
    %4511 = vmatprep.subr.mxu0 0.0
    %4512 = vmatpush2.msra.mxu0 0.0
    %4513 = vmatprep.mubr.f32.mxu0 0.0
    %4514 = vmatmul.mubr.f32.gmra.mxu0 %v4165
    %v4515 = vpop.f32.mrf.mxu0
    %v4516 = vadd.f32 %v4446, %v4515
    %v4517 = vpop.f32.mrf.mxu0
    %4518 = vdwg.mxu0
    %v4519 = vadd.f32 %v4516, %v549
    %4520 = vmatprep.subr.mxu0 0.0
    %4521 = vmatpush1.msra.mxu0 0.0
    %4522 = vmatprep.subr.mxu0 0.0
    %4523 = vmatpush1.msra.mxu0 0.0
    %4524 = vmatprep.subr.mxu0 0.0
    %4525 = vmatpush1.msra.mxu0 0.0
    %4526 = vmatprep.subr.mxu0 0.0
    %4527 = vmatpush1.msra.mxu0 0.0
    %4528 = vmatprep.subr.mxu0 0.0
    %4529 = vmatpush1.msra.mxu0 0.0
    %4530 = vmatprep.subr.mxu0 0.0
    %4531 = vmatpush1.msra.mxu0 0.0
    %4532 = vmatprep.subr.mxu0 0.0
    %4533 = vmatpush1.msra.mxu0 0.0
    %4534 = vmatprep.subr.mxu0 0.0
    %4535 = vmatpush1.msra.mxu0 0.0
    %4536 = vmatprep.subr.mxu0 0.0
    %4537 = vmatpush1.msra.mxu0 0.0
    %4538 = vmatprep.subr.mxu0 0.0
    %4539 = vmatpush1.msra.mxu0 0.0
    %4540 = vmatprep.subr.mxu0 0.0
    %4541 = vmatpush1.msra.mxu0 0.0
    %4542 = vmatprep.subr.mxu0 0.0
    %4543 = vmatpush1.msra.mxu0 0.0
    %4544 = vmatprep.subr.mxu0 0.0
    %4545 = vmatpush1.msra.mxu0 %v76
    %4546 = vmatprep.subr.mxu0 0.0
    %4547 = vmatpush1.msra.mxu0 %v75
    %4548 = vmatprep.subr.mxu0 0.0
    %4549 = vmatpush1.msra.mxu0 %v74
    %4550 = vmatprep.subr.mxu0 0.0
    %4551 = vmatpush1.msra.mxu0 %v73
    %4552 = vmatprep.subr.mxu0 0.0
    %4553 = vmatpush2.msra.mxu0 0.0
    %4554 = vmatprep.subr.mxu0 0.0
    %4555 = vmatpush2.msra.mxu0 0.0
    %4556 = vmatprep.subr.mxu0 0.0
    %4557 = vmatpush2.msra.mxu0 0.0
    %4558 = vmatprep.subr.mxu0 0.0
    %4559 = vmatpush2.msra.mxu0 0.0
    %4560 = vmatprep.subr.mxu0 0.0
    %4561 = vmatpush2.msra.mxu0 0.0
    %4562 = vmatprep.subr.mxu0 0.0
    %4563 = vmatpush2.msra.mxu0 0.0
    %4564 = vmatprep.subr.mxu0 0.0
    %4565 = vmatpush2.msra.mxu0 0.0
    %4566 = vmatprep.subr.mxu0 0.0
    %4567 = vmatpush2.msra.mxu0 0.0
    %4568 = vmatprep.subr.mxu0 0.0
    %4569 = vmatpush2.msra.mxu0 0.0
    %4570 = vmatprep.subr.mxu0 0.0
    %4571 = vmatpush2.msra.mxu0 0.0
    %4572 = vmatprep.subr.mxu0 0.0
    %4573 = vmatpush2.msra.mxu0 0.0
    %4574 = vmatprep.subr.mxu0 0.0
    %4575 = vmatpush2.msra.mxu0 0.0
    %4576 = vmatprep.subr.mxu0 0.0
    %4577 = vmatpush2.msra.mxu0 0.0
    %4578 = vmatprep.subr.mxu0 0.0
    %4579 = vmatpush2.msra.mxu0 0.0
    %4580 = vmatprep.subr.mxu0 0.0
    %4581 = vmatpush2.msra.mxu0 0.0
    %4582 = vmatprep.subr.mxu0 0.0
    %4583 = vmatpush2.msra.mxu0 0.0
    %4584 = vmatprep.mubr.f32.mxu0 0.0
    %4585 = vmatmul.mubr.f32.gmra.mxu0 %v3906
    %v4586 = vpop.f32.mrf.mxu0
    %v4587 = vadd.f32 0.0, %v4586
    %v4588 = vpop.f32.mrf.mxu0
    %4589 = vdwg.mxu0
    %4590 = vmatprep.subr.mxu0 0.0
    %4591 = vmatpush1.msra.mxu0 0.0
    %4592 = vmatprep.subr.mxu0 0.0
    %4593 = vmatpush1.msra.mxu0 0.0
    %4594 = vmatprep.subr.mxu0 0.0
    %4595 = vmatpush1.msra.mxu0 0.0
    %4596 = vmatprep.subr.mxu0 0.0
    %4597 = vmatpush1.msra.mxu0 0.0
    %4598 = vmatprep.subr.mxu0 0.0
    %4599 = vmatpush1.msra.mxu0 0.0
    %4600 = vmatprep.subr.mxu0 0.0
    %4601 = vmatpush1.msra.mxu0 0.0
    %4602 = vmatprep.subr.mxu0 0.0
    %4603 = vmatpush1.msra.mxu0 0.0
    %4604 = vmatprep.subr.mxu0 0.0
    %4605 = vmatpush1.msra.mxu0 0.0
    %4606 = vmatprep.subr.mxu0 0.0
    %4607 = vmatpush1.msra.mxu0 0.0
    %4608 = vmatprep.subr.mxu0 0.0
    %4609 = vmatpush1.msra.mxu0 0.0
    %4610 = vmatprep.subr.mxu0 0.0
    %4611 = vmatpush1.msra.mxu0 0.0
    %4612 = vmatprep.subr.mxu0 0.0
    %4613 = vmatpush1.msra.mxu0 0.0
    %4614 = vmatprep.subr.mxu0 0.0
    %4615 = vmatpush1.msra.mxu0 0.0
    %4616 = vmatprep.subr.mxu0 0.0
    %4617 = vmatpush1.msra.mxu0 0.0
    %4618 = vmatprep.subr.mxu0 0.0
    %4619 = vmatpush1.msra.mxu0 %v57
    %4620 = vmatprep.subr.mxu0 0.0
    %4621 = vmatpush1.msra.mxu0 %v56
    %4622 = vmatprep.subr.mxu0 0.0
    %4623 = vmatpush2.msra.mxu0 0.0
    %4624 = vmatprep.subr.mxu0 0.0
    %4625 = vmatpush2.msra.mxu0 0.0
    %4626 = vmatprep.subr.mxu0 0.0
    %4627 = vmatpush2.msra.mxu0 0.0
    %4628 = vmatprep.subr.mxu0 0.0
    %4629 = vmatpush2.msra.mxu0 0.0
    %4630 = vmatprep.subr.mxu0 0.0
    %4631 = vmatpush2.msra.mxu0 0.0
    %4632 = vmatprep.subr.mxu0 0.0
    %4633 = vmatpush2.msra.mxu0 0.0
    %4634 = vmatprep.subr.mxu0 0.0
    %4635 = vmatpush2.msra.mxu0 0.0
    %4636 = vmatprep.subr.mxu0 0.0
    %4637 = vmatpush2.msra.mxu0 0.0
    %4638 = vmatprep.subr.mxu0 0.0
    %4639 = vmatpush2.msra.mxu0 0.0
    %4640 = vmatprep.subr.mxu0 0.0
    %4641 = vmatpush2.msra.mxu0 0.0
    %4642 = vmatprep.subr.mxu0 0.0
    %4643 = vmatpush2.msra.mxu0 0.0
    %4644 = vmatprep.subr.mxu0 0.0
    %4645 = vmatpush2.msra.mxu0 0.0
    %4646 = vmatprep.subr.mxu0 0.0
    %4647 = vmatpush2.msra.mxu0 0.0
    %4648 = vmatprep.subr.mxu0 0.0
    %4649 = vmatpush2.msra.mxu0 0.0
    %4650 = vmatprep.subr.mxu0 0.0
    %4651 = vmatpush2.msra.mxu0 0.0
    %4652 = vmatprep.subr.mxu0 0.0
    %4653 = vmatpush2.msra.mxu0 0.0
    %4654 = vmatprep.mubr.f32.mxu0 0.0
    %4655 = vmatmul.mubr.f32.gmra.mxu0 %v4165
    %v4656 = vpop.f32.mrf.mxu0
    %v4657 = vadd.f32 %v4587, %v4656
    %v4658 = vpop.f32.mrf.mxu0
    %4659 = vdwg.mxu0
    %v4660 = vadd.f32 %v4657, %v696
    %v4661 = vxor.u32 %v4237, 2147483648
    %v4662 = vmul.f32 %v4661, 1.442695
    %v4663 = vpow.pop %v4662
    %v4664 = vadd.f32 %v4663, 1.0
    %v4665 = vrcp.pop %v4664
    %v4666 = vmul.f32 1.0, %v4665
    %v4667 = vxor.u32 %v4378, 2147483648
    %v4668 = vmul.f32 %v4667, 1.442695
    %v4669 = vpow.pop %v4668
    %v4670 = vadd.f32 %v4669, 1.0
    %v4671 = vrcp.pop %v4670
    %v4672 = vmul.f32 1.0, %v4671
    %v4673 = vtanh.pop %v4519
    %v4674 = vxor.u32 %v4660, 2147483648
    %v4675 = vmul.f32 %v4674, 1.442695
    %v4676 = vpow.pop %v4675
    %v4677 = vadd.f32 %v4676, 1.0
    %v4678 = vrcp.pop %v4677
    %v4679 = vmul.f32 1.0, %v4678
    %v4680 = vmul.f32 %v4672, %v3694
    %v4681 = vmul.f32 %v4666, %v4673
    %v4682 = vadd.f32 %v4680, %v4681
    %v4683 = vtanh.pop %v4682
    %v4684 = vmul.f32 %v4679, %v4683
    %v4687 = vunpack.c.l.s4 1966171168
    %v4688 = vunpack.c.0.s8 %v4687
    %v4689 = vlaneseq
    %v4690 = vshrl.u32 %v4689, 7
    %v4691 = vsub.s32 %v4688, %v4690
    %v4692 = vrot.slane %v4684, %v4691
    %v4693 = vcombine.high %v4692, %v4692
    %v4695 = vunpack.c.l.s4 1966171168
    %v4696 = vunpack.c.0.s8 %v4695
    %v4697 = vlaneseq
    %v4698 = vshrl.u32 %v4697, 7
    %v4699 = vsub.s32 %v4696, %v4698
    %v4700 = vrot.slane %v4692, %v4699
    %v4702 = vunpack.c.l.s4 1966171168
    %v4703 = vunpack.c.0.s8 %v4702
    %v4704 = vlaneseq
    %v4705 = vshrl.u32 %v4704, 7
    %v4706 = vsub.s32 %v4703, %v4705
    %v4707 = vrot.slane %v4693, %v4706
    %v4708 = vlaneseq
    %v4709 = vshrl.u32 %v4708, 7
    %v4710 = vsub.s32 0, %v4709
    %v4711 = vrot.slane %v4700, %v4710
    %v4712 = vlaneseq
    %v4713 = vshrl.u32 %v4712, 7
    %v4714 = vsub.s32 0, %v4713
    %v4715 = vrot.slane %v4707, %v4714
    %v4718 = vmul.f32 %v45, %v4711
    %v4719 = vmul.f32 %v46, %v4715
    %v4720 = vsel %vm99, %v4718, 0.0
    %4721 = vadd.xlane.f32.xlu0 %v4720
    %v4722 = vpop.xlane.xlu0 %4721
    %v4723 = vsel %vm99, %v4719, 0.0
    %4724 = vadd.xlane.f32.xlu0 %v4723
    %v4725 = vpop.xlane.xlu0 %4724
    %v4728 = vlaneseq
    %v4729 = vshrl.u32 %v4728, 7
    %v4730 = vsub.s32 %v767, %v4729
    %v4731 = vrot.slane %v4722, %v4730
    %v4732 = vlaneseq
    %v4733 = vshrl.u32 %v4732, 7
    %v4734 = vsub.s32 %v767, %v4733
    %v4735 = vrot.slane %v4725, %v4734
    %v4736 = vsel %vm176, %v4735, %v4731
    %v4738 = vsel %vm778, %v4736, -inf
    %4739 = vmax.xlane.f32.xlu0 %v4738
    %v4740 = vpop.xlane.xlu0 %4739
    %v4742 = vlaneseq
    %v4743 = vshrl.u32 %v4742, 7
    %v4744 = vsub.s32 0, %v4743
    %v4745 = vrot.slane %v4740, %v4744
    %v4746 = vlaneseq
    %v4747 = vshrl.u32 %v4746, 7
    %v4748 = vsub.s32 1, %v4747
    %v4749 = vrot.slane %v4740, %v4748
    %v4752 = vsub.f32 %v4722, %v4745
    %v4753 = vsub.f32 %v4725, %v4749
    %v4754 = vmul.f32 %v4752, 1.442695
    %v4755 = vpow.pop %v4754
    %v4756 = vmul.f32 %v4753, 1.442695
    %v4757 = vpow.pop %v4756
    %4760 = vset.pattern.permute.xlu0 0
    %4761 = vperm.xlu0 %4760, %v4755
    %v4762 = vpop.permute.xlu0 %4761
    %4763 = vset.pattern.permute.xlu0 0
    %4764 = vperm.xlu0 %4763, %v4757
    %v4765 = vpop.permute.xlu0 %4764
    %v4766 = vlaneseq
    %v4767 = vshrl.u32 %v4766, 7
    %v4768 = vsub.s32 %v767, %v4767
    %v4769 = vrot.slane %v4762, %v4768
    %v4770 = vlaneseq
    %v4771 = vshrl.u32 %v4770, 7
    %v4772 = vsub.s32 %v767, %v4771
    %v4773 = vrot.slane %v4765, %v4772
    %v4774 = vsel %vm176, %v4773, %v4769
    %v4776 = vsel %vm778, %v4774, 0.0
    %4777 = vadd.xlane.f32.xlu0 %v4776
    %v4778 = vpop.xlane.xlu0 %4777
    %v4779 = vrcp.pop %v4778
    %v4781 = vlaneseq
    %v4782 = vshrl.u32 %v4781, 7
    %v4783 = vsub.s32 0, %v4782
    %v4784 = vrot.slane %v4779, %v4783
    %v4785 = vlaneseq
    %v4786 = vshrl.u32 %v4785, 7
    %v4787 = vsub.s32 1, %v4786
    %v4788 = vrot.slane %v4779, %v4787
    %v4791 = vmul.f32 %v4755, %v4784
    %v4792 = vmul.f32 %v4757, %v4788
    %4794 = vset.pattern.permute.xlu0 0
    %4795 = vperm.xlu0 %4794, %v4791
    %v4796 = vpop.permute.xlu0 %4795
    %4799 = vset.pattern.permute.xlu0 0
    %4800 = vperm.xlu0 %4799, %v4792
    %v4801 = vpop.permute.xlu0 %4800
    %v4803 = vmul.f32 %v4796, %v45
    %v4804 = vmul.f32 %v4801, %v46
    %v4805 = vsel %vm99, %v4803, 0.0
    %v4806 = vrot.slane %v4805, 4
    %v4807 = vadd.f32 %v4805, %v4806
    %v4808 = vrot.slane %v4807, 2
    %v4809 = vadd.f32 %v4807, %v4808
    %v4810 = vrot.slane %v4809, 1
    %v4811 = vadd.f32 %v4809, %v4810
    %v4812 = vsel %vm99, %v4804, 0.0
    %v4813 = vrot.slane %v4812, 4
    %v4814 = vadd.f32 %v4812, %v4813
    %v4815 = vrot.slane %v4814, 2
    %v4816 = vadd.f32 %v4814, %v4815
    %v4817 = vrot.slane %v4816, 1
    %v4818 = vadd.f32 %v4816, %v4817
    %v4821 = vsel %vm176, %v4818, %v4811
    %v4822 = vsel %vm99, %v4821, 0
    %4824 = vmatprep.subr.mxu0 0.0
    %4825 = vmatpush1.msra.mxu0 0.0
    %4826 = vmatprep.subr.mxu0 0.0
    %4827 = vmatpush1.msra.mxu0 0.0
    %4828 = vmatprep.subr.mxu0 0.0
    %4829 = vmatpush1.msra.mxu0 0.0
    %4830 = vmatprep.subr.mxu0 0.0
    %4831 = vmatpush1.msra.mxu0 0.0
    %4832 = vmatprep.subr.mxu0 0.0
    %4833 = vmatpush1.msra.mxu0 0.0
    %4834 = vmatprep.subr.mxu0 0.0
    %4835 = vmatpush1.msra.mxu0 0.0
    %4836 = vmatprep.subr.mxu0 0.0
    %4837 = vmatpush1.msra.mxu0 0.0
    %4838 = vmatprep.subr.mxu0 0.0
    %4839 = vmatpush1.msra.mxu0 0.0
    %4840 = vmatprep.subr.mxu0 0.0
    %4841 = vmatpush1.msra.mxu0 0.0
    %4842 = vmatprep.subr.mxu0 0.0
    %4843 = vmatpush1.msra.mxu0 0.0
    %4844 = vmatprep.subr.mxu0 0.0
    %4845 = vmatpush1.msra.mxu0 0.0
    %4846 = vmatprep.subr.mxu0 0.0
    %4847 = vmatpush1.msra.mxu0 0.0
    %4848 = vmatprep.subr.mxu0 0.0
    %4849 = vmatpush1.msra.mxu0 %v91
    %4850 = vmatprep.subr.mxu0 0.0
    %4851 = vmatpush1.msra.mxu0 %v90
    %4852 = vmatprep.subr.mxu0 0.0
    %4853 = vmatpush1.msra.mxu0 %v89
    %4854 = vmatprep.subr.mxu0 0.0
    %4855 = vmatpush1.msra.mxu0 %v88
    %4856 = vmatprep.subr.mxu0 0.0
    %4857 = vmatpush2.msra.mxu0 0.0
    %4858 = vmatprep.subr.mxu0 0.0
    %4859 = vmatpush2.msra.mxu0 0.0
    %4860 = vmatprep.subr.mxu0 0.0
    %4861 = vmatpush2.msra.mxu0 0.0
    %4862 = vmatprep.subr.mxu0 0.0
    %4863 = vmatpush2.msra.mxu0 0.0
    %4864 = vmatprep.subr.mxu0 0.0
    %4865 = vmatpush2.msra.mxu0 0.0
    %4866 = vmatprep.subr.mxu0 0.0
    %4867 = vmatpush2.msra.mxu0 0.0
    %4868 = vmatprep.subr.mxu0 0.0
    %4869 = vmatpush2.msra.mxu0 0.0
    %4870 = vmatprep.subr.mxu0 0.0
    %4871 = vmatpush2.msra.mxu0 0.0
    %4872 = vmatprep.subr.mxu0 0.0
    %4873 = vmatpush2.msra.mxu0 0.0
    %4874 = vmatprep.subr.mxu0 0.0
    %4875 = vmatpush2.msra.mxu0 0.0
    %4876 = vmatprep.subr.mxu0 0.0
    %4877 = vmatpush2.msra.mxu0 0.0
    %4878 = vmatprep.subr.mxu0 0.0
    %4879 = vmatpush2.msra.mxu0 0.0
    %4880 = vmatprep.subr.mxu0 0.0
    %4881 = vmatpush2.msra.mxu0 0.0
    %4882 = vmatprep.subr.mxu0 0.0
    %4883 = vmatpush2.msra.mxu0 0.0
    %4884 = vmatprep.subr.mxu0 0.0
    %4885 = vmatpush2.msra.mxu0 0.0
    %4886 = vmatprep.subr.mxu0 0.0
    %4887 = vmatpush2.msra.mxu0 0.0
    %4888 = vmatprep.mubr.f32.mxu0 0.0
    %4889 = vmatmul.mubr.f32.gmra.mxu0 %v4822
    %v4890 = vpop.f32.mrf.mxu0
    %v4891 = vadd.f32 0.0, %v4890
    %v4892 = vpop.f32.mrf.mxu0
    %4893 = vdwg.mxu0
    %v4894 = vsel %vm99, %v4684, 0
    %4896 = vmatprep.subr.mxu0 0.0
    %4897 = vmatpush1.msra.mxu0 0.0
    %4898 = vmatprep.subr.mxu0 0.0
    %4899 = vmatpush1.msra.mxu0 0.0
    %4900 = vmatprep.subr.mxu0 0.0
    %4901 = vmatpush1.msra.mxu0 0.0
    %4902 = vmatprep.subr.mxu0 0.0
    %4903 = vmatpush1.msra.mxu0 0.0
    %4904 = vmatprep.subr.mxu0 0.0
    %4905 = vmatpush1.msra.mxu0 0.0
    %4906 = vmatprep.subr.mxu0 0.0
    %4907 = vmatpush1.msra.mxu0 0.0
    %4908 = vmatprep.subr.mxu0 0.0
    %4909 = vmatpush1.msra.mxu0 0.0
    %4910 = vmatprep.subr.mxu0 0.0
    %4911 = vmatpush1.msra.mxu0 0.0
    %4912 = vmatprep.subr.mxu0 0.0
    %4913 = vmatpush1.msra.mxu0 0.0
    %4914 = vmatprep.subr.mxu0 0.0
    %4915 = vmatpush1.msra.mxu0 0.0
    %4916 = vmatprep.subr.mxu0 0.0
    %4917 = vmatpush1.msra.mxu0 0.0
    %4918 = vmatprep.subr.mxu0 0.0
    %4919 = vmatpush1.msra.mxu0 0.0
    %4920 = vmatprep.subr.mxu0 0.0
    %4921 = vmatpush1.msra.mxu0 %v87
    %4922 = vmatprep.subr.mxu0 0.0
    %4923 = vmatpush1.msra.mxu0 %v86
    %4924 = vmatprep.subr.mxu0 0.0
    %4925 = vmatpush1.msra.mxu0 %v85
    %4926 = vmatprep.subr.mxu0 0.0
    %4927 = vmatpush1.msra.mxu0 %v84
    %4928 = vmatprep.subr.mxu0 0.0
    %4929 = vmatpush2.msra.mxu0 0.0
    %4930 = vmatprep.subr.mxu0 0.0
    %4931 = vmatpush2.msra.mxu0 0.0
    %4932 = vmatprep.subr.mxu0 0.0
    %4933 = vmatpush2.msra.mxu0 0.0
    %4934 = vmatprep.subr.mxu0 0.0
    %4935 = vmatpush2.msra.mxu0 0.0
    %4936 = vmatprep.subr.mxu0 0.0
    %4937 = vmatpush2.msra.mxu0 0.0
    %4938 = vmatprep.subr.mxu0 0.0
    %4939 = vmatpush2.msra.mxu0 0.0
    %4940 = vmatprep.subr.mxu0 0.0
    %4941 = vmatpush2.msra.mxu0 0.0
    %4942 = vmatprep.subr.mxu0 0.0
    %4943 = vmatpush2.msra.mxu0 0.0
    %4944 = vmatprep.subr.mxu0 0.0
    %4945 = vmatpush2.msra.mxu0 0.0
    %4946 = vmatprep.subr.mxu0 0.0
    %4947 = vmatpush2.msra.mxu0 0.0
    %4948 = vmatprep.subr.mxu0 0.0
    %4949 = vmatpush2.msra.mxu0 0.0
    %4950 = vmatprep.subr.mxu0 0.0
    %4951 = vmatpush2.msra.mxu0 0.0
    %4952 = vmatprep.subr.mxu0 0.0
    %4953 = vmatpush2.msra.mxu0 0.0
    %4954 = vmatprep.subr.mxu0 0.0
    %4955 = vmatpush2.msra.mxu0 0.0
    %4956 = vmatprep.subr.mxu0 0.0
    %4957 = vmatpush2.msra.mxu0 0.0
    %4958 = vmatprep.subr.mxu0 0.0
    %4959 = vmatpush2.msra.mxu0 0.0
    %4960 = vmatprep.mubr.f32.mxu0 0.0
    %4961 = vmatmul.mubr.f32.gmra.mxu0 %v4894
    %v4962 = vpop.f32.mrf.mxu0
    %v4963 = vadd.f32 %v4891, %v4962
    %v4964 = vpop.f32.mrf.mxu0
    %4965 = vdwg.mxu0
    %v4966 = vtanh.pop %v4963
    %v4968 = vsel %vm99, %v4966, 0
    %4970 = vmatprep.subr.mxu0 0.0
    %4971 = vmatpush1.msra.mxu0 0.0
    %4972 = vmatprep.subr.mxu0 0.0
    %4973 = vmatpush1.msra.mxu0 0.0
    %4974 = vmatprep.subr.mxu0 0.0
    %4975 = vmatpush1.msra.mxu0 0.0
    %4976 = vmatprep.subr.mxu0 0.0
    %4977 = vmatpush1.msra.mxu0 0.0
    %4978 = vmatprep.subr.mxu0 0.0
    %4979 = vmatpush1.msra.mxu0 0.0
    %4980 = vmatprep.subr.mxu0 0.0
    %4981 = vmatpush1.msra.mxu0 0.0
    %4982 = vmatprep.subr.mxu0 0.0
    %4983 = vmatpush1.msra.mxu0 0.0
    %4984 = vmatprep.subr.mxu0 0.0
    %4985 = vmatpush1.msra.mxu0 0.0
    %4986 = vmatprep.subr.mxu0 0.0
    %4987 = vmatpush1.msra.mxu0 0.0
    %4988 = vmatprep.subr.mxu0 0.0
    %4989 = vmatpush1.msra.mxu0 0.0
    %4990 = vmatprep.subr.mxu0 0.0
    %4991 = vmatpush1.msra.mxu0 0.0
    %4992 = vmatprep.subr.mxu0 0.0
    %4993 = vmatpush1.msra.mxu0 0.0
    %4994 = vmatprep.subr.mxu0 0.0
    %4995 = vmatpush1.msra.mxu0 %v95
    %4996 = vmatprep.subr.mxu0 0.0
    %4997 = vmatpush1.msra.mxu0 %v94
    %4998 = vmatprep.subr.mxu0 0.0
    %4999 = vmatpush1.msra.mxu0 %v93
    %5000 = vmatprep.subr.mxu0 0.0
    %5001 = vmatpush1.msra.mxu0 %v92
    %5002 = vmatprep.subr.mxu0 0.0
    %5003 = vmatpush2.msra.mxu0 0.0
    %5004 = vmatprep.subr.mxu0 0.0
    %5005 = vmatpush2.msra.mxu0 0.0
    %5006 = vmatprep.subr.mxu0 0.0
    %5007 = vmatpush2.msra.mxu0 0.0
    %5008 = vmatprep.subr.mxu0 0.0
    %5009 = vmatpush2.msra.mxu0 0.0
    %5010 = vmatprep.subr.mxu0 0.0
    %5011 = vmatpush2.msra.mxu0 0.0
    %5012 = vmatprep.subr.mxu0 0.0
    %5013 = vmatpush2.msra.mxu0 0.0
    %5014 = vmatprep.subr.mxu0 0.0
    %5015 = vmatpush2.msra.mxu0 0.0
    %5016 = vmatprep.subr.mxu0 0.0
    %5017 = vmatpush2.msra.mxu0 0.0
    %5018 = vmatprep.subr.mxu0 0.0
    %5019 = vmatpush2.msra.mxu0 0.0
    %5020 = vmatprep.subr.mxu0 0.0
    %5021 = vmatpush2.msra.mxu0 0.0
    %5022 = vmatprep.subr.mxu0 0.0
    %5023 = vmatpush2.msra.mxu0 0.0
    %5024 = vmatprep.subr.mxu0 0.0
    %5025 = vmatpush2.msra.mxu0 0.0
    %5026 = vmatprep.subr.mxu0 0.0
    %5027 = vmatpush2.msra.mxu0 0.0
    %5028 = vmatprep.subr.mxu0 0.0
    %5029 = vmatpush2.msra.mxu0 0.0
    %5030 = vmatprep.subr.mxu0 0.0
    %5031 = vmatpush2.msra.mxu0 0.0
    %5032 = vmatprep.subr.mxu0 0.0
    %5033 = vmatpush2.msra.mxu0 0.0
    %5034 = vmatprep.mubr.f32.mxu0 0.0
    %5035 = vmatmul.mubr.f32.gmra.mxu0 %v4968
    %v5036 = vpop.f32.mrf.mxu0
    %v5037 = vadd.f32 %v1012, %v5036
    %v5038 = vpop.f32.mrf.mxu0
    %5039 = vdwg.mxu0
    %v5040 = vsel %vm1087, %v5037, -inf
    %5041 = vmax.xlane.f32.xlu0 %v5040
    %v5042 = vpop.xlane.xlu0 %5041
    %v5043 = vsub.f32 %v5037, %v5042
    %v5044 = vmul.f32 %v5043, 1.442695
    %v5045 = vpow.pop %v5044
    %v5046 = vsel %vm1087, %v5045, 0.0
    %5047 = vadd.xlane.f32.xlu0 %v5046
    %v5048 = vpop.xlane.xlu0 %5047
    %v5049 = vlog2.pop %v5048
    %v5050 = vmul.f32 %v5049, 0.6931472
    %v5051 = vadd.f32 %v5042, %v5050
    %v5052 = vsub.f32 %v5037, %v5051
    %v5055 = vunpack.c.l.s4 1966171168
    %v5056 = vunpack.c.0.s8 %v5055
    %v5057 = vlaneseq
    %v5058 = vshrl.u32 %v5057, 7
    %v5059 = vsub.s32 %v5056, %v5058
    %v5060 = vrot.slane %v5052, %v5059
    %v5061 = vcombine.high %v5060, %v5060
    %v5063 = vunpack.c.l.s4 1966171168
    %v5064 = vunpack.c.0.s8 %v5063
    %v5065 = vlaneseq
    %v5066 = vshrl.u32 %v5065, 7
    %v5067 = vsub.s32 %v5064, %v5066
    %v5068 = vrot.slane %v5060, %v5067
    %v5070 = vunpack.c.l.s4 1966171168
    %v5071 = vunpack.c.0.s8 %v5070
    %v5072 = vlaneseq
    %v5073 = vshrl.u32 %v5072, 7
    %v5074 = vsub.s32 %v5071, %v5073
    %v5075 = vrot.slane %v5061, %v5074
    %5078 = vst.msk [vmem:[#allocation2 + $0x4] sm:$0x1] %vm1126, %v5068
    %5079 = vst.msk [vmem:[#allocation2 + $0xc] sm:$0x1] %vm1126, %v5075
    %5080 = vmatprep.subr.mxu0 0.0
    %5081 = vmatpush1.msra.mxu0 0.0
    %5082 = vmatprep.subr.mxu0 0.0
    %5083 = vmatpush1.msra.mxu0 0.0
    %5084 = vmatprep.subr.mxu0 0.0
    %5085 = vmatpush1.msra.mxu0 0.0
    %5086 = vmatprep.subr.mxu0 0.0
    %5087 = vmatpush1.msra.mxu0 0.0
    %5088 = vmatprep.subr.mxu0 0.0
    %5089 = vmatpush1.msra.mxu0 0.0
    %5090 = vmatprep.subr.mxu0 0.0
    %5091 = vmatpush1.msra.mxu0 0.0
    %5092 = vmatprep.subr.mxu0 0.0
    %5093 = vmatpush1.msra.mxu0 0.0
    %5094 = vmatprep.subr.mxu0 0.0
    %5095 = vmatpush1.msra.mxu0 0.0
    %5096 = vmatprep.subr.mxu0 0.0
    %5097 = vmatpush1.msra.mxu0 0.0
    %5098 = vmatprep.subr.mxu0 0.0
    %5099 = vmatpush1.msra.mxu0 0.0
    %5100 = vmatprep.subr.mxu0 0.0
    %5101 = vmatpush1.msra.mxu0 0.0
    %5102 = vmatprep.subr.mxu0 0.0
    %5103 = vmatpush1.msra.mxu0 0.0
    %5104 = vmatprep.subr.mxu0 0.0
    %5105 = vmatpush1.msra.mxu0 %v61
    %5106 = vmatprep.subr.mxu0 0.0
    %5107 = vmatpush1.msra.mxu0 %v60
    %5108 = vmatprep.subr.mxu0 0.0
    %5109 = vmatpush1.msra.mxu0 %v59
    %5110 = vmatprep.subr.mxu0 0.0
    %5111 = vmatpush1.msra.mxu0 %v58
    %5112 = vmatprep.subr.mxu0 0.0
    %5113 = vmatpush2.msra.mxu0 0.0
    %5114 = vmatprep.subr.mxu0 0.0
    %5115 = vmatpush2.msra.mxu0 0.0
    %5116 = vmatprep.subr.mxu0 0.0
    %5117 = vmatpush2.msra.mxu0 0.0
    %5118 = vmatprep.subr.mxu0 0.0
    %5119 = vmatpush2.msra.mxu0 0.0
    %5120 = vmatprep.subr.mxu0 0.0
    %5121 = vmatpush2.msra.mxu0 0.0
    %5122 = vmatprep.subr.mxu0 0.0
    %5123 = vmatpush2.msra.mxu0 0.0
    %5124 = vmatprep.subr.mxu0 0.0
    %5125 = vmatpush2.msra.mxu0 0.0
    %5126 = vmatprep.subr.mxu0 0.0
    %5127 = vmatpush2.msra.mxu0 0.0
    %5128 = vmatprep.subr.mxu0 0.0
    %5129 = vmatpush2.msra.mxu0 0.0
    %5130 = vmatprep.subr.mxu0 0.0
    %5131 = vmatpush2.msra.mxu0 0.0
    %5132 = vmatprep.subr.mxu0 0.0
    %5133 = vmatpush2.msra.mxu0 0.0
    %5134 = vmatprep.subr.mxu0 0.0
    %5135 = vmatpush2.msra.mxu0 0.0
    %5136 = vmatprep.subr.mxu0 0.0
    %5137 = vmatpush2.msra.mxu0 0.0
    %5138 = vmatprep.subr.mxu0 0.0
    %5139 = vmatpush2.msra.mxu0 0.0
    %5140 = vmatprep.subr.mxu0 0.0
    %5141 = vmatpush2.msra.mxu0 0.0
    %5142 = vmatprep.subr.mxu0 0.0
    %5143 = vmatpush2.msra.mxu0 0.0
    %5144 = vmatprep.mubr.f32.mxu0 0.0
    %5145 = vmatmul.mubr.f32.gmra.mxu0 %v4894
    %v5146 = vpop.f32.mrf.mxu0
    %v5147 = vadd.f32 0.0, %v5146
    %v5148 = vpop.f32.mrf.mxu0
    %5149 = vdwg.mxu0
    %v5150 = vrot.slane %v43, 5
    %v5151 = vrot.slane %v44, 4
    %v5152 = vsel %vm176, %v5151, %v5150
    %v5153 = vsel %vm178, %v5152, 0
    %5155 = vmatprep.subr.mxu0 0.0
    %5156 = vmatpush1.msra.mxu0 0.0
    %5157 = vmatprep.subr.mxu0 0.0
    %5158 = vmatpush1.msra.mxu0 0.0
    %5159 = vmatprep.subr.mxu0 0.0
    %5160 = vmatpush1.msra.mxu0 0.0
    %5161 = vmatprep.subr.mxu0 0.0
    %5162 = vmatpush1.msra.mxu0 0.0
    %5163 = vmatprep.subr.mxu0 0.0
    %5164 = vmatpush1.msra.mxu0 0.0
    %5165 = vmatprep.subr.mxu0 0.0
    %5166 = vmatpush1.msra.mxu0 0.0
    %5167 = vmatprep.subr.mxu0 0.0
    %5168 = vmatpush1.msra.mxu0 0.0
    %5169 = vmatprep.subr.mxu0 0.0
    %5170 = vmatpush1.msra.mxu0 0.0
    %5171 = vmatprep.subr.mxu0 0.0
    %5172 = vmatpush1.msra.mxu0 0.0
    %5173 = vmatprep.subr.mxu0 0.0
    %5174 = vmatpush1.msra.mxu0 0.0
    %5175 = vmatprep.subr.mxu0 0.0
    %5176 = vmatpush1.msra.mxu0 0.0
    %5177 = vmatprep.subr.mxu0 0.0
    %5178 = vmatpush1.msra.mxu0 0.0
    %5179 = vmatprep.subr.mxu0 0.0
    %5180 = vmatpush1.msra.mxu0 0.0
    %5181 = vmatprep.subr.mxu0 0.0
    %5182 = vmatpush1.msra.mxu0 0.0
    %5183 = vmatprep.subr.mxu0 0.0
    %5184 = vmatpush1.msra.mxu0 %v48
    %5185 = vmatprep.subr.mxu0 0.0
    %5186 = vmatpush1.msra.mxu0 %v47
    %5187 = vmatprep.subr.mxu0 0.0
    %5188 = vmatpush2.msra.mxu0 0.0
    %5189 = vmatprep.subr.mxu0 0.0
    %5190 = vmatpush2.msra.mxu0 0.0
    %5191 = vmatprep.subr.mxu0 0.0
    %5192 = vmatpush2.msra.mxu0 0.0
    %5193 = vmatprep.subr.mxu0 0.0
    %5194 = vmatpush2.msra.mxu0 0.0
    %5195 = vmatprep.subr.mxu0 0.0
    %5196 = vmatpush2.msra.mxu0 0.0
    %5197 = vmatprep.subr.mxu0 0.0
    %5198 = vmatpush2.msra.mxu0 0.0
    %5199 = vmatprep.subr.mxu0 0.0
    %5200 = vmatpush2.msra.mxu0 0.0
    %5201 = vmatprep.subr.mxu0 0.0
    %5202 = vmatpush2.msra.mxu0 0.0
    %5203 = vmatprep.subr.mxu0 0.0
    %5204 = vmatpush2.msra.mxu0 0.0
    %5205 = vmatprep.subr.mxu0 0.0
    %5206 = vmatpush2.msra.mxu0 0.0
    %5207 = vmatprep.subr.mxu0 0.0
    %5208 = vmatpush2.msra.mxu0 0.0
    %5209 = vmatprep.subr.mxu0 0.0
    %5210 = vmatpush2.msra.mxu0 0.0
    %5211 = vmatprep.subr.mxu0 0.0
    %5212 = vmatpush2.msra.mxu0 0.0
    %5213 = vmatprep.subr.mxu0 0.0
    %5214 = vmatpush2.msra.mxu0 0.0
    %5215 = vmatprep.subr.mxu0 0.0
    %5216 = vmatpush2.msra.mxu0 0.0
    %5217 = vmatprep.subr.mxu0 0.0
    %5218 = vmatpush2.msra.mxu0 0.0
    %5219 = vmatprep.mubr.f32.mxu0 0.0
    %5220 = vmatmul.mubr.f32.gmra.mxu0 %v5153
    %v5221 = vpop.f32.mrf.mxu0
    %v5222 = vadd.f32 %v5147, %v5221
    %v5223 = vpop.f32.mrf.mxu0
    %5224 = vdwg.mxu0
    %v5225 = vadd.f32 %v5222, %v255
    %5226 = vmatprep.subr.mxu0 0.0
    %5227 = vmatpush1.msra.mxu0 0.0
    %5228 = vmatprep.subr.mxu0 0.0
    %5229 = vmatpush1.msra.mxu0 0.0
    %5230 = vmatprep.subr.mxu0 0.0
    %5231 = vmatpush1.msra.mxu0 0.0
    %5232 = vmatprep.subr.mxu0 0.0
    %5233 = vmatpush1.msra.mxu0 0.0
    %5234 = vmatprep.subr.mxu0 0.0
    %5235 = vmatpush1.msra.mxu0 0.0
    %5236 = vmatprep.subr.mxu0 0.0
    %5237 = vmatpush1.msra.mxu0 0.0
    %5238 = vmatprep.subr.mxu0 0.0
    %5239 = vmatpush1.msra.mxu0 0.0
    %5240 = vmatprep.subr.mxu0 0.0
    %5241 = vmatpush1.msra.mxu0 0.0
    %5242 = vmatprep.subr.mxu0 0.0
    %5243 = vmatpush1.msra.mxu0 0.0
    %5244 = vmatprep.subr.mxu0 0.0
    %5245 = vmatpush1.msra.mxu0 0.0
    %5246 = vmatprep.subr.mxu0 0.0
    %5247 = vmatpush1.msra.mxu0 0.0
    %5248 = vmatprep.subr.mxu0 0.0
    %5249 = vmatpush1.msra.mxu0 0.0
    %5250 = vmatprep.subr.mxu0 0.0
    %5251 = vmatpush1.msra.mxu0 %v66
    %5252 = vmatprep.subr.mxu0 0.0
    %5253 = vmatpush1.msra.mxu0 %v65
    %5254 = vmatprep.subr.mxu0 0.0
    %5255 = vmatpush1.msra.mxu0 %v64
    %5256 = vmatprep.subr.mxu0 0.0
    %5257 = vmatpush1.msra.mxu0 %v63
    %5258 = vmatprep.subr.mxu0 0.0
    %5259 = vmatpush2.msra.mxu0 0.0
    %5260 = vmatprep.subr.mxu0 0.0
    %5261 = vmatpush2.msra.mxu0 0.0
    %5262 = vmatprep.subr.mxu0 0.0
    %5263 = vmatpush2.msra.mxu0 0.0
    %5264 = vmatprep.subr.mxu0 0.0
    %5265 = vmatpush2.msra.mxu0 0.0
    %5266 = vmatprep.subr.mxu0 0.0
    %5267 = vmatpush2.msra.mxu0 0.0
    %5268 = vmatprep.subr.mxu0 0.0
    %5269 = vmatpush2.msra.mxu0 0.0
    %5270 = vmatprep.subr.mxu0 0.0
    %5271 = vmatpush2.msra.mxu0 0.0
    %5272 = vmatprep.subr.mxu0 0.0
    %5273 = vmatpush2.msra.mxu0 0.0
    %5274 = vmatprep.subr.mxu0 0.0
    %5275 = vmatpush2.msra.mxu0 0.0
    %5276 = vmatprep.subr.mxu0 0.0
    %5277 = vmatpush2.msra.mxu0 0.0
    %5278 = vmatprep.subr.mxu0 0.0
    %5279 = vmatpush2.msra.mxu0 0.0
    %5280 = vmatprep.subr.mxu0 0.0
    %5281 = vmatpush2.msra.mxu0 0.0
    %5282 = vmatprep.subr.mxu0 0.0
    %5283 = vmatpush2.msra.mxu0 0.0
    %5284 = vmatprep.subr.mxu0 0.0
    %5285 = vmatpush2.msra.mxu0 0.0
    %5286 = vmatprep.subr.mxu0 0.0
    %5287 = vmatpush2.msra.mxu0 0.0
    %5288 = vmatprep.subr.mxu0 0.0
    %5289 = vmatpush2.msra.mxu0 0.0
    %5290 = vmatprep.mubr.f32.mxu0 0.0
    %5291 = vmatmul.mubr.f32.gmra.mxu0 %v4894
    %v5292 = vpop.f32.mrf.mxu0
    %v5293 = vadd.f32 0.0, %v5292
    %v5294 = vpop.f32.mrf.mxu0
    %5295 = vdwg.mxu0
    %5296 = vmatprep.subr.mxu0 0.0
    %5297 = vmatpush1.msra.mxu0 0.0
    %5298 = vmatprep.subr.mxu0 0.0
    %5299 = vmatpush1.msra.mxu0 0.0
    %5300 = vmatprep.subr.mxu0 0.0
    %5301 = vmatpush1.msra.mxu0 0.0
    %5302 = vmatprep.subr.mxu0 0.0
    %5303 = vmatpush1.msra.mxu0 0.0
    %5304 = vmatprep.subr.mxu0 0.0
    %5305 = vmatpush1.msra.mxu0 0.0
    %5306 = vmatprep.subr.mxu0 0.0
    %5307 = vmatpush1.msra.mxu0 0.0
    %5308 = vmatprep.subr.mxu0 0.0
    %5309 = vmatpush1.msra.mxu0 0.0
    %5310 = vmatprep.subr.mxu0 0.0
    %5311 = vmatpush1.msra.mxu0 0.0
    %5312 = vmatprep.subr.mxu0 0.0
    %5313 = vmatpush1.msra.mxu0 0.0
    %5314 = vmatprep.subr.mxu0 0.0
    %5315 = vmatpush1.msra.mxu0 0.0
    %5316 = vmatprep.subr.mxu0 0.0
    %5317 = vmatpush1.msra.mxu0 0.0
    %5318 = vmatprep.subr.mxu0 0.0
    %5319 = vmatpush1.msra.mxu0 0.0
    %5320 = vmatprep.subr.mxu0 0.0
    %5321 = vmatpush1.msra.mxu0 0.0
    %5322 = vmatprep.subr.mxu0 0.0
    %5323 = vmatpush1.msra.mxu0 0.0
    %5324 = vmatprep.subr.mxu0 0.0
    %5325 = vmatpush1.msra.mxu0 %v51
    %5326 = vmatprep.subr.mxu0 0.0
    %5327 = vmatpush1.msra.mxu0 %v50
    %5328 = vmatprep.subr.mxu0 0.0
    %5329 = vmatpush2.msra.mxu0 0.0
    %5330 = vmatprep.subr.mxu0 0.0
    %5331 = vmatpush2.msra.mxu0 0.0
    %5332 = vmatprep.subr.mxu0 0.0
    %5333 = vmatpush2.msra.mxu0 0.0
    %5334 = vmatprep.subr.mxu0 0.0
    %5335 = vmatpush2.msra.mxu0 0.0
    %5336 = vmatprep.subr.mxu0 0.0
    %5337 = vmatpush2.msra.mxu0 0.0
    %5338 = vmatprep.subr.mxu0 0.0
    %5339 = vmatpush2.msra.mxu0 0.0
    %5340 = vmatprep.subr.mxu0 0.0
    %5341 = vmatpush2.msra.mxu0 0.0
    %5342 = vmatprep.subr.mxu0 0.0
    %5343 = vmatpush2.msra.mxu0 0.0
    %5344 = vmatprep.subr.mxu0 0.0
    %5345 = vmatpush2.msra.mxu0 0.0
    %5346 = vmatprep.subr.mxu0 0.0
    %5347 = vmatpush2.msra.mxu0 0.0
    %5348 = vmatprep.subr.mxu0 0.0
    %5349 = vmatpush2.msra.mxu0 0.0
    %5350 = vmatprep.subr.mxu0 0.0
    %5351 = vmatpush2.msra.mxu0 0.0
    %5352 = vmatprep.subr.mxu0 0.0
    %5353 = vmatpush2.msra.mxu0 0.0
    %5354 = vmatprep.subr.mxu0 0.0
    %5355 = vmatpush2.msra.mxu0 0.0
    %5356 = vmatprep.subr.mxu0 0.0
    %5357 = vmatpush2.msra.mxu0 0.0
    %5358 = vmatprep.subr.mxu0 0.0
    %5359 = vmatpush2.msra.mxu0 0.0
    %5360 = vmatprep.mubr.f32.mxu0 0.0
    %5361 = vmatmul.mubr.f32.gmra.mxu0 %v5153
    %v5362 = vpop.f32.mrf.mxu0
    %v5363 = vadd.f32 %v5293, %v5362
    %v5364 = vpop.f32.mrf.mxu0
    %5365 = vdwg.mxu0
    %v5366 = vadd.f32 %v5363, %v402
    %5367 = vmatprep.subr.mxu0 0.0
    %5368 = vmatpush1.msra.mxu0 0.0
    %5369 = vmatprep.subr.mxu0 0.0
    %5370 = vmatpush1.msra.mxu0 0.0
    %5371 = vmatprep.subr.mxu0 0.0
    %5372 = vmatpush1.msra.mxu0 0.0
    %5373 = vmatprep.subr.mxu0 0.0
    %5374 = vmatpush1.msra.mxu0 0.0
    %5375 = vmatprep.subr.mxu0 0.0
    %5376 = vmatpush1.msra.mxu0 0.0
    %5377 = vmatprep.subr.mxu0 0.0
    %5378 = vmatpush1.msra.mxu0 0.0
    %5379 = vmatprep.subr.mxu0 0.0
    %5380 = vmatpush1.msra.mxu0 0.0
    %5381 = vmatprep.subr.mxu0 0.0
    %5382 = vmatpush1.msra.mxu0 0.0
    %5383 = vmatprep.subr.mxu0 0.0
    %5384 = vmatpush1.msra.mxu0 0.0
    %5385 = vmatprep.subr.mxu0 0.0
    %5386 = vmatpush1.msra.mxu0 0.0
    %5387 = vmatprep.subr.mxu0 0.0
    %5388 = vmatpush1.msra.mxu0 0.0
    %5389 = vmatprep.subr.mxu0 0.0
    %5390 = vmatpush1.msra.mxu0 0.0
    %5391 = vmatprep.subr.mxu0 0.0
    %5392 = vmatpush1.msra.mxu0 %v71
    %5393 = vmatprep.subr.mxu0 0.0
    %5394 = vmatpush1.msra.mxu0 %v70
    %5395 = vmatprep.subr.mxu0 0.0
    %5396 = vmatpush1.msra.mxu0 %v69
    %5397 = vmatprep.subr.mxu0 0.0
    %5398 = vmatpush1.msra.mxu0 %v68
    %5399 = vmatprep.subr.mxu0 0.0
    %5400 = vmatpush2.msra.mxu0 0.0
    %5401 = vmatprep.subr.mxu0 0.0
    %5402 = vmatpush2.msra.mxu0 0.0
    %5403 = vmatprep.subr.mxu0 0.0
    %5404 = vmatpush2.msra.mxu0 0.0
    %5405 = vmatprep.subr.mxu0 0.0
    %5406 = vmatpush2.msra.mxu0 0.0
    %5407 = vmatprep.subr.mxu0 0.0
    %5408 = vmatpush2.msra.mxu0 0.0
    %5409 = vmatprep.subr.mxu0 0.0
    %5410 = vmatpush2.msra.mxu0 0.0
    %5411 = vmatprep.subr.mxu0 0.0
    %5412 = vmatpush2.msra.mxu0 0.0
    %5413 = vmatprep.subr.mxu0 0.0
    %5414 = vmatpush2.msra.mxu0 0.0
    %5415 = vmatprep.subr.mxu0 0.0
    %5416 = vmatpush2.msra.mxu0 0.0
    %5417 = vmatprep.subr.mxu0 0.0
    %5418 = vmatpush2.msra.mxu0 0.0
    %5419 = vmatprep.subr.mxu0 0.0
    %5420 = vmatpush2.msra.mxu0 0.0
    %5421 = vmatprep.subr.mxu0 0.0
    %5422 = vmatpush2.msra.mxu0 0.0
    %5423 = vmatprep.subr.mxu0 0.0
    %5424 = vmatpush2.msra.mxu0 0.0
    %5425 = vmatprep.subr.mxu0 0.0
    %5426 = vmatpush2.msra.mxu0 0.0
    %5427 = vmatprep.subr.mxu0 0.0
    %5428 = vmatpush2.msra.mxu0 0.0
    %5429 = vmatprep.subr.mxu0 0.0
    %5430 = vmatpush2.msra.mxu0 0.0
    %5431 = vmatprep.mubr.f32.mxu0 0.0
    %5432 = vmatmul.mubr.f32.gmra.mxu0 %v4894
    %v5433 = vpop.f32.mrf.mxu0
    %v5434 = vadd.f32 0.0, %v5433
    %v5435 = vpop.f32.mrf.mxu0
    %5436 = vdwg.mxu0
    %5437 = vmatprep.subr.mxu0 0.0
    %5438 = vmatpush1.msra.mxu0 0.0
    %5439 = vmatprep.subr.mxu0 0.0
    %5440 = vmatpush1.msra.mxu0 0.0
    %5441 = vmatprep.subr.mxu0 0.0
    %5442 = vmatpush1.msra.mxu0 0.0
    %5443 = vmatprep.subr.mxu0 0.0
    %5444 = vmatpush1.msra.mxu0 0.0
    %5445 = vmatprep.subr.mxu0 0.0
    %5446 = vmatpush1.msra.mxu0 0.0
    %5447 = vmatprep.subr.mxu0 0.0
    %5448 = vmatpush1.msra.mxu0 0.0
    %5449 = vmatprep.subr.mxu0 0.0
    %5450 = vmatpush1.msra.mxu0 0.0
    %5451 = vmatprep.subr.mxu0 0.0
    %5452 = vmatpush1.msra.mxu0 0.0
    %5453 = vmatprep.subr.mxu0 0.0
    %5454 = vmatpush1.msra.mxu0 0.0
    %5455 = vmatprep.subr.mxu0 0.0
    %5456 = vmatpush1.msra.mxu0 0.0
    %5457 = vmatprep.subr.mxu0 0.0
    %5458 = vmatpush1.msra.mxu0 0.0
    %5459 = vmatprep.subr.mxu0 0.0
    %5460 = vmatpush1.msra.mxu0 0.0
    %5461 = vmatprep.subr.mxu0 0.0
    %5462 = vmatpush1.msra.mxu0 0.0
    %5463 = vmatprep.subr.mxu0 0.0
    %5464 = vmatpush1.msra.mxu0 0.0
    %5465 = vmatprep.subr.mxu0 0.0
    %5466 = vmatpush1.msra.mxu0 %v54
    %5467 = vmatprep.subr.mxu0 0.0
    %5468 = vmatpush1.msra.mxu0 %v53
    %5469 = vmatprep.subr.mxu0 0.0
    %5470 = vmatpush2.msra.mxu0 0.0
    %5471 = vmatprep.subr.mxu0 0.0
    %5472 = vmatpush2.msra.mxu0 0.0
    %5473 = vmatprep.subr.mxu0 0.0
    %5474 = vmatpush2.msra.mxu0 0.0
    %5475 = vmatprep.subr.mxu0 0.0
    %5476 = vmatpush2.msra.mxu0 0.0
    %5477 = vmatprep.subr.mxu0 0.0
    %5478 = vmatpush2.msra.mxu0 0.0
    %5479 = vmatprep.subr.mxu0 0.0
    %5480 = vmatpush2.msra.mxu0 0.0
    %5481 = vmatprep.subr.mxu0 0.0
    %5482 = vmatpush2.msra.mxu0 0.0
    %5483 = vmatprep.subr.mxu0 0.0
    %5484 = vmatpush2.msra.mxu0 0.0
    %5485 = vmatprep.subr.mxu0 0.0
    %5486 = vmatpush2.msra.mxu0 0.0
    %5487 = vmatprep.subr.mxu0 0.0
    %5488 = vmatpush2.msra.mxu0 0.0
    %5489 = vmatprep.subr.mxu0 0.0
    %5490 = vmatpush2.msra.mxu0 0.0
    %5491 = vmatprep.subr.mxu0 0.0
    %5492 = vmatpush2.msra.mxu0 0.0
    %5493 = vmatprep.subr.mxu0 0.0
    %5494 = vmatpush2.msra.mxu0 0.0
    %5495 = vmatprep.subr.mxu0 0.0
    %5496 = vmatpush2.msra.mxu0 0.0
    %5497 = vmatprep.subr.mxu0 0.0
    %5498 = vmatpush2.msra.mxu0 0.0
    %5499 = vmatprep.subr.mxu0 0.0
    %5500 = vmatpush2.msra.mxu0 0.0
    %5501 = vmatprep.mubr.f32.mxu0 0.0
    %5502 = vmatmul.mubr.f32.gmra.mxu0 %v5153
    %v5503 = vpop.f32.mrf.mxu0
    %v5504 = vadd.f32 %v5434, %v5503
    %v5505 = vpop.f32.mrf.mxu0
    %5506 = vdwg.mxu0
    %v5507 = vadd.f32 %v5504, %v549
    %5508 = vmatprep.subr.mxu0 0.0
    %5509 = vmatpush1.msra.mxu0 0.0
    %5510 = vmatprep.subr.mxu0 0.0
    %5511 = vmatpush1.msra.mxu0 0.0
    %5512 = vmatprep.subr.mxu0 0.0
    %5513 = vmatpush1.msra.mxu0 0.0
    %5514 = vmatprep.subr.mxu0 0.0
    %5515 = vmatpush1.msra.mxu0 0.0
    %5516 = vmatprep.subr.mxu0 0.0
    %5517 = vmatpush1.msra.mxu0 0.0
    %5518 = vmatprep.subr.mxu0 0.0
    %5519 = vmatpush1.msra.mxu0 0.0
    %5520 = vmatprep.subr.mxu0 0.0
    %5521 = vmatpush1.msra.mxu0 0.0
    %5522 = vmatprep.subr.mxu0 0.0
    %5523 = vmatpush1.msra.mxu0 0.0
    %5524 = vmatprep.subr.mxu0 0.0
    %5525 = vmatpush1.msra.mxu0 0.0
    %5526 = vmatprep.subr.mxu0 0.0
    %5527 = vmatpush1.msra.mxu0 0.0
    %5528 = vmatprep.subr.mxu0 0.0
    %5529 = vmatpush1.msra.mxu0 0.0
    %5530 = vmatprep.subr.mxu0 0.0
    %5531 = vmatpush1.msra.mxu0 0.0
    %5532 = vmatprep.subr.mxu0 0.0
    %5533 = vmatpush1.msra.mxu0 %v76
    %5534 = vmatprep.subr.mxu0 0.0
    %5535 = vmatpush1.msra.mxu0 %v75
    %5536 = vmatprep.subr.mxu0 0.0
    %5537 = vmatpush1.msra.mxu0 %v74
    %5538 = vmatprep.subr.mxu0 0.0
    %5539 = vmatpush1.msra.mxu0 %v73
    %5540 = vmatprep.subr.mxu0 0.0
    %5541 = vmatpush2.msra.mxu0 0.0
    %5542 = vmatprep.subr.mxu0 0.0
    %5543 = vmatpush2.msra.mxu0 0.0
    %5544 = vmatprep.subr.mxu0 0.0
    %5545 = vmatpush2.msra.mxu0 0.0
    %5546 = vmatprep.subr.mxu0 0.0
    %5547 = vmatpush2.msra.mxu0 0.0
    %5548 = vmatprep.subr.mxu0 0.0
    %5549 = vmatpush2.msra.mxu0 0.0
    %5550 = vmatprep.subr.mxu0 0.0
    %5551 = vmatpush2.msra.mxu0 0.0
    %5552 = vmatprep.subr.mxu0 0.0
    %5553 = vmatpush2.msra.mxu0 0.0
    %5554 = vmatprep.subr.mxu0 0.0
    %5555 = vmatpush2.msra.mxu0 0.0
    %5556 = vmatprep.subr.mxu0 0.0
    %5557 = vmatpush2.msra.mxu0 0.0
    %5558 = vmatprep.subr.mxu0 0.0
    %5559 = vmatpush2.msra.mxu0 0.0
    %5560 = vmatprep.subr.mxu0 0.0
    %5561 = vmatpush2.msra.mxu0 0.0
    %5562 = vmatprep.subr.mxu0 0.0
    %5563 = vmatpush2.msra.mxu0 0.0
    %5564 = vmatprep.subr.mxu0 0.0
    %5565 = vmatpush2.msra.mxu0 0.0
    %5566 = vmatprep.subr.mxu0 0.0
    %5567 = vmatpush2.msra.mxu0 0.0
    %5568 = vmatprep.subr.mxu0 0.0
    %5569 = vmatpush2.msra.mxu0 0.0
    %5570 = vmatprep.subr.mxu0 0.0
    %5571 = vmatpush2.msra.mxu0 0.0
    %5572 = vmatprep.mubr.f32.mxu0 0.0
    %5573 = vmatmul.mubr.f32.gmra.mxu0 %v4894
    %v5574 = vpop.f32.mrf.mxu0
    %v5575 = vadd.f32 0.0, %v5574
    %v5576 = vpop.f32.mrf.mxu0
    %5577 = vdwg.mxu0
    %5578 = vmatprep.subr.mxu0 0.0
    %5579 = vmatpush1.msra.mxu0 0.0
    %5580 = vmatprep.subr.mxu0 0.0
    %5581 = vmatpush1.msra.mxu0 0.0
    %5582 = vmatprep.subr.mxu0 0.0
    %5583 = vmatpush1.msra.mxu0 0.0
    %5584 = vmatprep.subr.mxu0 0.0
    %5585 = vmatpush1.msra.mxu0 0.0
    %5586 = vmatprep.subr.mxu0 0.0
    %5587 = vmatpush1.msra.mxu0 0.0
    %5588 = vmatprep.subr.mxu0 0.0
    %5589 = vmatpush1.msra.mxu0 0.0
    %5590 = vmatprep.subr.mxu0 0.0
    %5591 = vmatpush1.msra.mxu0 0.0
    %5592 = vmatprep.subr.mxu0 0.0
    %5593 = vmatpush1.msra.mxu0 0.0
    %5594 = vmatprep.subr.mxu0 0.0
    %5595 = vmatpush1.msra.mxu0 0.0
    %5596 = vmatprep.subr.mxu0 0.0
    %5597 = vmatpush1.msra.mxu0 0.0
    %5598 = vmatprep.subr.mxu0 0.0
    %5599 = vmatpush1.msra.mxu0 0.0
    %5600 = vmatprep.subr.mxu0 0.0
    %5601 = vmatpush1.msra.mxu0 0.0
    %5602 = vmatprep.subr.mxu0 0.0
    %5603 = vmatpush1.msra.mxu0 0.0
    %5604 = vmatprep.subr.mxu0 0.0
    %5605 = vmatpush1.msra.mxu0 0.0
    %5606 = vmatprep.subr.mxu0 0.0
    %5607 = vmatpush1.msra.mxu0 %v57
    %5608 = vmatprep.subr.mxu0 0.0
    %5609 = vmatpush1.msra.mxu0 %v56
    %5610 = vmatprep.subr.mxu0 0.0
    %5611 = vmatpush2.msra.mxu0 0.0
    %5612 = vmatprep.subr.mxu0 0.0
    %5613 = vmatpush2.msra.mxu0 0.0
    %5614 = vmatprep.subr.mxu0 0.0
    %5615 = vmatpush2.msra.mxu0 0.0
    %5616 = vmatprep.subr.mxu0 0.0
    %5617 = vmatpush2.msra.mxu0 0.0
    %5618 = vmatprep.subr.mxu0 0.0
    %5619 = vmatpush2.msra.mxu0 0.0
    %5620 = vmatprep.subr.mxu0 0.0
    %5621 = vmatpush2.msra.mxu0 0.0
    %5622 = vmatprep.subr.mxu0 0.0
    %5623 = vmatpush2.msra.mxu0 0.0
    %5624 = vmatprep.subr.mxu0 0.0
    %5625 = vmatpush2.msra.mxu0 0.0
    %5626 = vmatprep.subr.mxu0 0.0
    %5627 = vmatpush2.msra.mxu0 0.0
    %5628 = vmatprep.subr.mxu0 0.0
    %5629 = vmatpush2.msra.mxu0 0.0
    %5630 = vmatprep.subr.mxu0 0.0
    %5631 = vmatpush2.msra.mxu0 0.0
    %5632 = vmatprep.subr.mxu0 0.0
    %5633 = vmatpush2.msra.mxu0 0.0
    %5634 = vmatprep.subr.mxu0 0.0
    %5635 = vmatpush2.msra.mxu0 0.0
    %5636 = vmatprep.subr.mxu0 0.0
    %5637 = vmatpush2.msra.mxu0 0.0
    %5638 = vmatprep.subr.mxu0 0.0
    %5639 = vmatpush2.msra.mxu0 0.0
    %5640 = vmatprep.subr.mxu0 0.0
    %5641 = vmatpush2.msra.mxu0 0.0
    %5642 = vmatprep.mubr.f32.mxu0 0.0
    %5643 = vmatmul.mubr.f32.gmra.mxu0 %v5153
    %v5644 = vpop.f32.mrf.mxu0
    %v5645 = vadd.f32 %v5575, %v5644
    %v5646 = vpop.f32.mrf.mxu0
    %5647 = vdwg.mxu0
    %v5648 = vadd.f32 %v5645, %v696
    %v5649 = vxor.u32 %v5225, 2147483648
    %v5650 = vmul.f32 %v5649, 1.442695
    %v5651 = vpow.pop %v5650
    %v5652 = vadd.f32 %v5651, 1.0
    %v5653 = vrcp.pop %v5652
    %v5654 = vmul.f32 1.0, %v5653
    %v5655 = vxor.u32 %v5366, 2147483648
    %v5656 = vmul.f32 %v5655, 1.442695
    %v5657 = vpow.pop %v5656
    %v5658 = vadd.f32 %v5657, 1.0
    %v5659 = vrcp.pop %v5658
    %v5660 = vmul.f32 1.0, %v5659
    %v5661 = vtanh.pop %v5507
    %v5662 = vxor.u32 %v5648, 2147483648
    %v5663 = vmul.f32 %v5662, 1.442695
    %v5664 = vpow.pop %v5663
    %v5665 = vadd.f32 %v5664, 1.0
    %v5666 = vrcp.pop %v5665
    %v5667 = vmul.f32 1.0, %v5666
    %v5668 = vmul.f32 %v5660, %v4682
    %v5669 = vmul.f32 %v5654, %v5661
    %v5670 = vadd.f32 %v5668, %v5669
    %v5671 = vtanh.pop %v5670
    %v5672 = vmul.f32 %v5667, %v5671
    %v5675 = vunpack.c.l.s4 1966171168
    %v5676 = vunpack.c.0.s8 %v5675
    %v5677 = vlaneseq
    %v5678 = vshrl.u32 %v5677, 7
    %v5679 = vsub.s32 %v5676, %v5678
    %v5680 = vrot.slane %v5672, %v5679
    %v5681 = vcombine.high %v5680, %v5680
    %v5683 = vunpack.c.l.s4 1966171168
    %v5684 = vunpack.c.0.s8 %v5683
    %v5685 = vlaneseq
    %v5686 = vshrl.u32 %v5685, 7
    %v5687 = vsub.s32 %v5684, %v5686
    %v5688 = vrot.slane %v5680, %v5687
    %v5690 = vunpack.c.l.s4 1966171168
    %v5691 = vunpack.c.0.s8 %v5690
    %v5692 = vlaneseq
    %v5693 = vshrl.u32 %v5692, 7
    %v5694 = vsub.s32 %v5691, %v5693
    %v5695 = vrot.slane %v5681, %v5694
    %v5696 = vlaneseq
    %v5697 = vshrl.u32 %v5696, 7
    %v5698 = vsub.s32 0, %v5697
    %v5699 = vrot.slane %v5688, %v5698
    %v5700 = vlaneseq
    %v5701 = vshrl.u32 %v5700, 7
    %v5702 = vsub.s32 0, %v5701
    %v5703 = vrot.slane %v5695, %v5702
    %v5706 = vmul.f32 %v45, %v5699
    %v5707 = vmul.f32 %v46, %v5703
    %v5708 = vsel %vm99, %v5706, 0.0
    %5709 = vadd.xlane.f32.xlu0 %v5708
    %v5710 = vpop.xlane.xlu0 %5709
    %v5711 = vsel %vm99, %v5707, 0.0
    %5712 = vadd.xlane.f32.xlu0 %v5711
    %v5713 = vpop.xlane.xlu0 %5712
    %v5716 = vlaneseq
    %v5717 = vshrl.u32 %v5716, 7
    %v5718 = vsub.s32 %v767, %v5717
    %v5719 = vrot.slane %v5710, %v5718
    %v5720 = vlaneseq
    %v5721 = vshrl.u32 %v5720, 7
    %v5722 = vsub.s32 %v767, %v5721
    %v5723 = vrot.slane %v5713, %v5722
    %v5724 = vsel %vm176, %v5723, %v5719
    %v5726 = vsel %vm778, %v5724, -inf
    %5727 = vmax.xlane.f32.xlu0 %v5726
    %v5728 = vpop.xlane.xlu0 %5727
    %v5730 = vlaneseq
    %v5731 = vshrl.u32 %v5730, 7
    %v5732 = vsub.s32 0, %v5731
    %v5733 = vrot.slane %v5728, %v5732
    %v5734 = vlaneseq
    %v5735 = vshrl.u32 %v5734, 7
    %v5736 = vsub.s32 1, %v5735
    %v5737 = vrot.slane %v5728, %v5736
    %v5740 = vsub.f32 %v5710, %v5733
    %v5741 = vsub.f32 %v5713, %v5737
    %v5742 = vmul.f32 %v5740, 1.442695
    %v5743 = vpow.pop %v5742
    %v5744 = vmul.f32 %v5741, 1.442695
    %v5745 = vpow.pop %v5744
    %5748 = vset.pattern.permute.xlu0 0
    %5749 = vperm.xlu0 %5748, %v5743
    %v5750 = vpop.permute.xlu0 %5749
    %5751 = vset.pattern.permute.xlu0 0
    %5752 = vperm.xlu0 %5751, %v5745
    %v5753 = vpop.permute.xlu0 %5752
    %v5754 = vlaneseq
    %v5755 = vshrl.u32 %v5754, 7
    %v5756 = vsub.s32 %v767, %v5755
    %v5757 = vrot.slane %v5750, %v5756
    %v5758 = vlaneseq
    %v5759 = vshrl.u32 %v5758, 7
    %v5760 = vsub.s32 %v767, %v5759
    %v5761 = vrot.slane %v5753, %v5760
    %v5762 = vsel %vm176, %v5761, %v5757
    %v5764 = vsel %vm778, %v5762, 0.0
    %5765 = vadd.xlane.f32.xlu0 %v5764
    %v5766 = vpop.xlane.xlu0 %5765
    %v5767 = vrcp.pop %v5766
    %v5769 = vlaneseq
    %v5770 = vshrl.u32 %v5769, 7
    %v5771 = vsub.s32 0, %v5770
    %v5772 = vrot.slane %v5767, %v5771
    %v5773 = vlaneseq
    %v5774 = vshrl.u32 %v5773, 7
    %v5775 = vsub.s32 1, %v5774
    %v5776 = vrot.slane %v5767, %v5775
    %v5779 = vmul.f32 %v5743, %v5772
    %v5780 = vmul.f32 %v5745, %v5776
    %5782 = vset.pattern.permute.xlu0 0
    %5783 = vperm.xlu0 %5782, %v5779
    %v5784 = vpop.permute.xlu0 %5783
    %5787 = vset.pattern.permute.xlu0 0
    %5788 = vperm.xlu0 %5787, %v5780
    %v5789 = vpop.permute.xlu0 %5788
    %v5791 = vmul.f32 %v5784, %v45
    %v5792 = vmul.f32 %v5789, %v46
    %v5793 = vsel %vm99, %v5791, 0.0
    %v5794 = vrot.slane %v5793, 4
    %v5795 = vadd.f32 %v5793, %v5794
    %v5796 = vrot.slane %v5795, 2
    %v5797 = vadd.f32 %v5795, %v5796
    %v5798 = vrot.slane %v5797, 1
    %v5799 = vadd.f32 %v5797, %v5798
    %v5800 = vsel %vm99, %v5792, 0.0
    %v5801 = vrot.slane %v5800, 4
    %v5802 = vadd.f32 %v5800, %v5801
    %v5803 = vrot.slane %v5802, 2
    %v5804 = vadd.f32 %v5802, %v5803
    %v5805 = vrot.slane %v5804, 1
    %v5806 = vadd.f32 %v5804, %v5805
    %v5809 = vsel %vm176, %v5806, %v5799
    %v5810 = vsel %vm99, %v5809, 0
    %5812 = vmatprep.subr.mxu0 0.0
    %5813 = vmatpush1.msra.mxu0 0.0
    %5814 = vmatprep.subr.mxu0 0.0
    %5815 = vmatpush1.msra.mxu0 0.0
    %5816 = vmatprep.subr.mxu0 0.0
    %5817 = vmatpush1.msra.mxu0 0.0
    %5818 = vmatprep.subr.mxu0 0.0
    %5819 = vmatpush1.msra.mxu0 0.0
    %5820 = vmatprep.subr.mxu0 0.0
    %5821 = vmatpush1.msra.mxu0 0.0
    %5822 = vmatprep.subr.mxu0 0.0
    %5823 = vmatpush1.msra.mxu0 0.0
    %5824 = vmatprep.subr.mxu0 0.0
    %5825 = vmatpush1.msra.mxu0 0.0
    %5826 = vmatprep.subr.mxu0 0.0
    %5827 = vmatpush1.msra.mxu0 0.0
    %5828 = vmatprep.subr.mxu0 0.0
    %5829 = vmatpush1.msra.mxu0 0.0
    %5830 = vmatprep.subr.mxu0 0.0
    %5831 = vmatpush1.msra.mxu0 0.0
    %5832 = vmatprep.subr.mxu0 0.0
    %5833 = vmatpush1.msra.mxu0 0.0
    %5834 = vmatprep.subr.mxu0 0.0
    %5835 = vmatpush1.msra.mxu0 0.0
    %5836 = vmatprep.subr.mxu0 0.0
    %5837 = vmatpush1.msra.mxu0 %v91
    %5838 = vmatprep.subr.mxu0 0.0
    %5839 = vmatpush1.msra.mxu0 %v90
    %5840 = vmatprep.subr.mxu0 0.0
    %5841 = vmatpush1.msra.mxu0 %v89
    %5842 = vmatprep.subr.mxu0 0.0
    %5843 = vmatpush1.msra.mxu0 %v88
    %5844 = vmatprep.subr.mxu0 0.0
    %5845 = vmatpush2.msra.mxu0 0.0
    %5846 = vmatprep.subr.mxu0 0.0
    %5847 = vmatpush2.msra.mxu0 0.0
    %5848 = vmatprep.subr.mxu0 0.0
    %5849 = vmatpush2.msra.mxu0 0.0
    %5850 = vmatprep.subr.mxu0 0.0
    %5851 = vmatpush2.msra.mxu0 0.0
    %5852 = vmatprep.subr.mxu0 0.0
    %5853 = vmatpush2.msra.mxu0 0.0
    %5854 = vmatprep.subr.mxu0 0.0
    %5855 = vmatpush2.msra.mxu0 0.0
    %5856 = vmatprep.subr.mxu0 0.0
    %5857 = vmatpush2.msra.mxu0 0.0
    %5858 = vmatprep.subr.mxu0 0.0
    %5859 = vmatpush2.msra.mxu0 0.0
    %5860 = vmatprep.subr.mxu0 0.0
    %5861 = vmatpush2.msra.mxu0 0.0
    %5862 = vmatprep.subr.mxu0 0.0
    %5863 = vmatpush2.msra.mxu0 0.0
    %5864 = vmatprep.subr.mxu0 0.0
    %5865 = vmatpush2.msra.mxu0 0.0
    %5866 = vmatprep.subr.mxu0 0.0
    %5867 = vmatpush2.msra.mxu0 0.0
    %5868 = vmatprep.subr.mxu0 0.0
    %5869 = vmatpush2.msra.mxu0 0.0
    %5870 = vmatprep.subr.mxu0 0.0
    %5871 = vmatpush2.msra.mxu0 0.0
    %5872 = vmatprep.subr.mxu0 0.0
    %5873 = vmatpush2.msra.mxu0 0.0
    %5874 = vmatprep.subr.mxu0 0.0
    %5875 = vmatpush2.msra.mxu0 0.0
    %5876 = vmatprep.mubr.f32.mxu0 0.0
    %5877 = vmatmul.mubr.f32.gmra.mxu0 %v5810
    %v5878 = vpop.f32.mrf.mxu0
    %v5879 = vadd.f32 0.0, %v5878
    %v5880 = vpop.f32.mrf.mxu0
    %5881 = vdwg.mxu0
    %v5882 = vsel %vm99, %v5672, 0
    %5884 = vmatprep.subr.mxu0 0.0
    %5885 = vmatpush1.msra.mxu0 0.0
    %5886 = vmatprep.subr.mxu0 0.0
    %5887 = vmatpush1.msra.mxu0 0.0
    %5888 = vmatprep.subr.mxu0 0.0
    %5889 = vmatpush1.msra.mxu0 0.0
    %5890 = vmatprep.subr.mxu0 0.0
    %5891 = vmatpush1.msra.mxu0 0.0
    %5892 = vmatprep.subr.mxu0 0.0
    %5893 = vmatpush1.msra.mxu0 0.0
    %5894 = vmatprep.subr.mxu0 0.0
    %5895 = vmatpush1.msra.mxu0 0.0
    %5896 = vmatprep.subr.mxu0 0.0
    %5897 = vmatpush1.msra.mxu0 0.0
    %5898 = vmatprep.subr.mxu0 0.0
    %5899 = vmatpush1.msra.mxu0 0.0
    %5900 = vmatprep.subr.mxu0 0.0
    %5901 = vmatpush1.msra.mxu0 0.0
    %5902 = vmatprep.subr.mxu0 0.0
    %5903 = vmatpush1.msra.mxu0 0.0
    %5904 = vmatprep.subr.mxu0 0.0
    %5905 = vmatpush1.msra.mxu0 0.0
    %5906 = vmatprep.subr.mxu0 0.0
    %5907 = vmatpush1.msra.mxu0 0.0
    %5908 = vmatprep.subr.mxu0 0.0
    %5909 = vmatpush1.msra.mxu0 %v87
    %5910 = vmatprep.subr.mxu0 0.0
    %5911 = vmatpush1.msra.mxu0 %v86
    %5912 = vmatprep.subr.mxu0 0.0
    %5913 = vmatpush1.msra.mxu0 %v85
    %5914 = vmatprep.subr.mxu0 0.0
    %5915 = vmatpush1.msra.mxu0 %v84
    %5916 = vmatprep.subr.mxu0 0.0
    %5917 = vmatpush2.msra.mxu0 0.0
    %5918 = vmatprep.subr.mxu0 0.0
    %5919 = vmatpush2.msra.mxu0 0.0
    %5920 = vmatprep.subr.mxu0 0.0
    %5921 = vmatpush2.msra.mxu0 0.0
    %5922 = vmatprep.subr.mxu0 0.0
    %5923 = vmatpush2.msra.mxu0 0.0
    %5924 = vmatprep.subr.mxu0 0.0
    %5925 = vmatpush2.msra.mxu0 0.0
    %5926 = vmatprep.subr.mxu0 0.0
    %5927 = vmatpush2.msra.mxu0 0.0
    %5928 = vmatprep.subr.mxu0 0.0
    %5929 = vmatpush2.msra.mxu0 0.0
    %5930 = vmatprep.subr.mxu0 0.0
    %5931 = vmatpush2.msra.mxu0 0.0
    %5932 = vmatprep.subr.mxu0 0.0
    %5933 = vmatpush2.msra.mxu0 0.0
    %5934 = vmatprep.subr.mxu0 0.0
    %5935 = vmatpush2.msra.mxu0 0.0
    %5936 = vmatprep.subr.mxu0 0.0
    %5937 = vmatpush2.msra.mxu0 0.0
    %5938 = vmatprep.subr.mxu0 0.0
    %5939 = vmatpush2.msra.mxu0 0.0
    %5940 = vmatprep.subr.mxu0 0.0
    %5941 = vmatpush2.msra.mxu0 0.0
    %5942 = vmatprep.subr.mxu0 0.0
    %5943 = vmatpush2.msra.mxu0 0.0
    %5944 = vmatprep.subr.mxu0 0.0
    %5945 = vmatpush2.msra.mxu0 0.0
    %5946 = vmatprep.subr.mxu0 0.0
    %5947 = vmatpush2.msra.mxu0 0.0
    %5948 = vmatprep.mubr.f32.mxu0 0.0
    %5949 = vmatmul.mubr.f32.gmra.mxu0 %v5882
    %v5950 = vpop.f32.mrf.mxu0
    %v5951 = vadd.f32 %v5879, %v5950
    %v5952 = vpop.f32.mrf.mxu0
    %5953 = vdwg.mxu0
    %v5954 = vtanh.pop %v5951
    %v5956 = vsel %vm99, %v5954, 0
    %5958 = vmatprep.subr.mxu0 0.0
    %5959 = vmatpush1.msra.mxu0 0.0
    %5960 = vmatprep.subr.mxu0 0.0
    %5961 = vmatpush1.msra.mxu0 0.0
    %5962 = vmatprep.subr.mxu0 0.0
    %5963 = vmatpush1.msra.mxu0 0.0
    %5964 = vmatprep.subr.mxu0 0.0
    %5965 = vmatpush1.msra.mxu0 0.0
    %5966 = vmatprep.subr.mxu0 0.0
    %5967 = vmatpush1.msra.mxu0 0.0
    %5968 = vmatprep.subr.mxu0 0.0
    %5969 = vmatpush1.msra.mxu0 0.0
    %5970 = vmatprep.subr.mxu0 0.0
    %5971 = vmatpush1.msra.mxu0 0.0
    %5972 = vmatprep.subr.mxu0 0.0
    %5973 = vmatpush1.msra.mxu0 0.0
    %5974 = vmatprep.subr.mxu0 0.0
    %5975 = vmatpush1.msra.mxu0 0.0
    %5976 = vmatprep.subr.mxu0 0.0
    %5977 = vmatpush1.msra.mxu0 0.0
    %5978 = vmatprep.subr.mxu0 0.0
    %5979 = vmatpush1.msra.mxu0 0.0
    %5980 = vmatprep.subr.mxu0 0.0
    %5981 = vmatpush1.msra.mxu0 0.0
    %5982 = vmatprep.subr.mxu0 0.0
    %5983 = vmatpush1.msra.mxu0 %v95
    %5984 = vmatprep.subr.mxu0 0.0
    %5985 = vmatpush1.msra.mxu0 %v94
    %5986 = vmatprep.subr.mxu0 0.0
    %5987 = vmatpush1.msra.mxu0 %v93
    %5988 = vmatprep.subr.mxu0 0.0
    %5989 = vmatpush1.msra.mxu0 %v92
    %5990 = vmatprep.subr.mxu0 0.0
    %5991 = vmatpush2.msra.mxu0 0.0
    %5992 = vmatprep.subr.mxu0 0.0
    %5993 = vmatpush2.msra.mxu0 0.0
    %5994 = vmatprep.subr.mxu0 0.0
    %5995 = vmatpush2.msra.mxu0 0.0
    %5996 = vmatprep.subr.mxu0 0.0
    %5997 = vmatpush2.msra.mxu0 0.0
    %5998 = vmatprep.subr.mxu0 0.0
    %5999 = vmatpush2.msra.mxu0 0.0
    %6000 = vmatprep.subr.mxu0 0.0
    %6001 = vmatpush2.msra.mxu0 0.0
    %6002 = vmatprep.subr.mxu0 0.0
    %6003 = vmatpush2.msra.mxu0 0.0
    %6004 = vmatprep.subr.mxu0 0.0
    %6005 = vmatpush2.msra.mxu0 0.0
    %6006 = vmatprep.subr.mxu0 0.0
    %6007 = vmatpush2.msra.mxu0 0.0
    %6008 = vmatprep.subr.mxu0 0.0
    %6009 = vmatpush2.msra.mxu0 0.0
    %6010 = vmatprep.subr.mxu0 0.0
    %6011 = vmatpush2.msra.mxu0 0.0
    %6012 = vmatprep.subr.mxu0 0.0
    %6013 = vmatpush2.msra.mxu0 0.0
    %6014 = vmatprep.subr.mxu0 0.0
    %6015 = vmatpush2.msra.mxu0 0.0
    %6016 = vmatprep.subr.mxu0 0.0
    %6017 = vmatpush2.msra.mxu0 0.0
    %6018 = vmatprep.subr.mxu0 0.0
    %6019 = vmatpush2.msra.mxu0 0.0
    %6020 = vmatprep.subr.mxu0 0.0
    %6021 = vmatpush2.msra.mxu0 0.0
    %6022 = vmatprep.mubr.f32.mxu0 0.0
    %6023 = vmatmul.mubr.f32.gmra.mxu0 %v5956
    %v6024 = vpop.f32.mrf.mxu0
    %v6025 = vadd.f32 %v1012, %v6024
    %v6026 = vpop.f32.mrf.mxu0
    %6027 = vdwg.mxu0
    %v6028 = vsel %vm1087, %v6025, -inf
    %6029 = vmax.xlane.f32.xlu0 %v6028
    %v6030 = vpop.xlane.xlu0 %6029
    %v6031 = vsub.f32 %v6025, %v6030
    %v6032 = vmul.f32 %v6031, 1.442695
    %v6033 = vpow.pop %v6032
    %v6034 = vsel %vm1087, %v6033, 0.0
    %6035 = vadd.xlane.f32.xlu0 %v6034
    %v6036 = vpop.xlane.xlu0 %6035
    %v6037 = vlog2.pop %v6036
    %v6038 = vmul.f32 %v6037, 0.6931472
    %v6039 = vadd.f32 %v6030, %v6038
    %v6040 = vsub.f32 %v6025, %v6039
    %v6043 = vunpack.c.l.s4 1966171168
    %v6044 = vunpack.c.0.s8 %v6043
    %v6045 = vlaneseq
    %v6046 = vshrl.u32 %v6045, 7
    %v6047 = vsub.s32 %v6044, %v6046
    %v6048 = vrot.slane %v6040, %v6047
    %v6049 = vcombine.high %v6048, %v6048
    %v6051 = vunpack.c.l.s4 1966171168
    %v6052 = vunpack.c.0.s8 %v6051
    %v6053 = vlaneseq
    %v6054 = vshrl.u32 %v6053, 7
    %v6055 = vsub.s32 %v6052, %v6054
    %v6056 = vrot.slane %v6048, %v6055
    %v6058 = vunpack.c.l.s4 1966171168
    %v6059 = vunpack.c.0.s8 %v6058
    %v6060 = vlaneseq
    %v6061 = vshrl.u32 %v6060, 7
    %v6062 = vsub.s32 %v6059, %v6061
    %v6063 = vrot.slane %v6049, %v6062
    %6066 = vst.msk [vmem:[#allocation2 + $0x5] sm:$0x1] %vm1126, %v6056
    %6067 = vst.msk [vmem:[#allocation2 + $0xd] sm:$0x1] %vm1126, %v6063
    %6068 = vmatprep.subr.mxu0 0.0
    %6069 = vmatpush1.msra.mxu0 0.0
    %6070 = vmatprep.subr.mxu0 0.0
    %6071 = vmatpush1.msra.mxu0 0.0
    %6072 = vmatprep.subr.mxu0 0.0
    %6073 = vmatpush1.msra.mxu0 0.0
    %6074 = vmatprep.subr.mxu0 0.0
    %6075 = vmatpush1.msra.mxu0 0.0
    %6076 = vmatprep.subr.mxu0 0.0
    %6077 = vmatpush1.msra.mxu0 0.0
    %6078 = vmatprep.subr.mxu0 0.0
    %6079 = vmatpush1.msra.mxu0 0.0
    %6080 = vmatprep.subr.mxu0 0.0
    %6081 = vmatpush1.msra.mxu0 0.0
    %6082 = vmatprep.subr.mxu0 0.0
    %6083 = vmatpush1.msra.mxu0 0.0
    %6084 = vmatprep.subr.mxu0 0.0
    %6085 = vmatpush1.msra.mxu0 0.0
    %6086 = vmatprep.subr.mxu0 0.0
    %6087 = vmatpush1.msra.mxu0 0.0
    %6088 = vmatprep.subr.mxu0 0.0
    %6089 = vmatpush1.msra.mxu0 0.0
    %6090 = vmatprep.subr.mxu0 0.0
    %6091 = vmatpush1.msra.mxu0 0.0
    %6092 = vmatprep.subr.mxu0 0.0
    %6093 = vmatpush1.msra.mxu0 %v61
    %6094 = vmatprep.subr.mxu0 0.0
    %6095 = vmatpush1.msra.mxu0 %v60
    %6096 = vmatprep.subr.mxu0 0.0
    %6097 = vmatpush1.msra.mxu0 %v59
    %6098 = vmatprep.subr.mxu0 0.0
    %6099 = vmatpush1.msra.mxu0 %v58
    %6100 = vmatprep.subr.mxu0 0.0
    %6101 = vmatpush2.msra.mxu0 0.0
    %6102 = vmatprep.subr.mxu0 0.0
    %6103 = vmatpush2.msra.mxu0 0.0
    %6104 = vmatprep.subr.mxu0 0.0
    %6105 = vmatpush2.msra.mxu0 0.0
    %6106 = vmatprep.subr.mxu0 0.0
    %6107 = vmatpush2.msra.mxu0 0.0
    %6108 = vmatprep.subr.mxu0 0.0
    %6109 = vmatpush2.msra.mxu0 0.0
    %6110 = vmatprep.subr.mxu0 0.0
    %6111 = vmatpush2.msra.mxu0 0.0
    %6112 = vmatprep.subr.mxu0 0.0
    %6113 = vmatpush2.msra.mxu0 0.0
    %6114 = vmatprep.subr.mxu0 0.0
    %6115 = vmatpush2.msra.mxu0 0.0
    %6116 = vmatprep.subr.mxu0 0.0
    %6117 = vmatpush2.msra.mxu0 0.0
    %6118 = vmatprep.subr.mxu0 0.0
    %6119 = vmatpush2.msra.mxu0 0.0
    %6120 = vmatprep.subr.mxu0 0.0
    %6121 = vmatpush2.msra.mxu0 0.0
    %6122 = vmatprep.subr.mxu0 0.0
    %6123 = vmatpush2.msra.mxu0 0.0
    %6124 = vmatprep.subr.mxu0 0.0
    %6125 = vmatpush2.msra.mxu0 0.0
    %6126 = vmatprep.subr.mxu0 0.0
    %6127 = vmatpush2.msra.mxu0 0.0
    %6128 = vmatprep.subr.mxu0 0.0
    %6129 = vmatpush2.msra.mxu0 0.0
    %6130 = vmatprep.subr.mxu0 0.0
    %6131 = vmatpush2.msra.mxu0 0.0
    %6132 = vmatprep.mubr.f32.mxu0 0.0
    %6133 = vmatmul.mubr.f32.gmra.mxu0 %v5882
    %v6134 = vpop.f32.mrf.mxu0
    %v6135 = vadd.f32 0.0, %v6134
    %v6136 = vpop.f32.mrf.mxu0
    %6137 = vdwg.mxu0
    %v6138 = vrot.slane %v43, 6
    %v6139 = vrot.slane %v44, 5
    %v6140 = vsel %vm176, %v6139, %v6138
    %v6141 = vsel %vm178, %v6140, 0
    %6143 = vmatprep.subr.mxu0 0.0
    %6144 = vmatpush1.msra.mxu0 0.0
    %6145 = vmatprep.subr.mxu0 0.0
    %6146 = vmatpush1.msra.mxu0 0.0
    %6147 = vmatprep.subr.mxu0 0.0
    %6148 = vmatpush1.msra.mxu0 0.0
    %6149 = vmatprep.subr.mxu0 0.0
    %6150 = vmatpush1.msra.mxu0 0.0
    %6151 = vmatprep.subr.mxu0 0.0
    %6152 = vmatpush1.msra.mxu0 0.0
    %6153 = vmatprep.subr.mxu0 0.0
    %6154 = vmatpush1.msra.mxu0 0.0
    %6155 = vmatprep.subr.mxu0 0.0
    %6156 = vmatpush1.msra.mxu0 0.0
    %6157 = vmatprep.subr.mxu0 0.0
    %6158 = vmatpush1.msra.mxu0 0.0
    %6159 = vmatprep.subr.mxu0 0.0
    %6160 = vmatpush1.msra.mxu0 0.0
    %6161 = vmatprep.subr.mxu0 0.0
    %6162 = vmatpush1.msra.mxu0 0.0
    %6163 = vmatprep.subr.mxu0 0.0
    %6164 = vmatpush1.msra.mxu0 0.0
    %6165 = vmatprep.subr.mxu0 0.0
    %6166 = vmatpush1.msra.mxu0 0.0
    %6167 = vmatprep.subr.mxu0 0.0
    %6168 = vmatpush1.msra.mxu0 0.0
    %6169 = vmatprep.subr.mxu0 0.0
    %6170 = vmatpush1.msra.mxu0 0.0
    %6171 = vmatprep.subr.mxu0 0.0
    %6172 = vmatpush1.msra.mxu0 %v48
    %6173 = vmatprep.subr.mxu0 0.0
    %6174 = vmatpush1.msra.mxu0 %v47
    %6175 = vmatprep.subr.mxu0 0.0
    %6176 = vmatpush2.msra.mxu0 0.0
    %6177 = vmatprep.subr.mxu0 0.0
    %6178 = vmatpush2.msra.mxu0 0.0
    %6179 = vmatprep.subr.mxu0 0.0
    %6180 = vmatpush2.msra.mxu0 0.0
    %6181 = vmatprep.subr.mxu0 0.0
    %6182 = vmatpush2.msra.mxu0 0.0
    %6183 = vmatprep.subr.mxu0 0.0
    %6184 = vmatpush2.msra.mxu0 0.0
    %6185 = vmatprep.subr.mxu0 0.0
    %6186 = vmatpush2.msra.mxu0 0.0
    %6187 = vmatprep.subr.mxu0 0.0
    %6188 = vmatpush2.msra.mxu0 0.0
    %6189 = vmatprep.subr.mxu0 0.0
    %6190 = vmatpush2.msra.mxu0 0.0
    %6191 = vmatprep.subr.mxu0 0.0
    %6192 = vmatpush2.msra.mxu0 0.0
    %6193 = vmatprep.subr.mxu0 0.0
    %6194 = vmatpush2.msra.mxu0 0.0
    %6195 = vmatprep.subr.mxu0 0.0
    %6196 = vmatpush2.msra.mxu0 0.0
    %6197 = vmatprep.subr.mxu0 0.0
    %6198 = vmatpush2.msra.mxu0 0.0
    %6199 = vmatprep.subr.mxu0 0.0
    %6200 = vmatpush2.msra.mxu0 0.0
    %6201 = vmatprep.subr.mxu0 0.0
    %6202 = vmatpush2.msra.mxu0 0.0
    %6203 = vmatprep.subr.mxu0 0.0
    %6204 = vmatpush2.msra.mxu0 0.0
    %6205 = vmatprep.subr.mxu0 0.0
    %6206 = vmatpush2.msra.mxu0 0.0
    %6207 = vmatprep.mubr.f32.mxu0 0.0
    %6208 = vmatmul.mubr.f32.gmra.mxu0 %v6141
    %v6209 = vpop.f32.mrf.mxu0
    %v6210 = vadd.f32 %v6135, %v6209
    %v6211 = vpop.f32.mrf.mxu0
    %6212 = vdwg.mxu0
    %v6213 = vadd.f32 %v6210, %v255
    %6214 = vmatprep.subr.mxu0 0.0
    %6215 = vmatpush1.msra.mxu0 0.0
    %6216 = vmatprep.subr.mxu0 0.0
    %6217 = vmatpush1.msra.mxu0 0.0
    %6218 = vmatprep.subr.mxu0 0.0
    %6219 = vmatpush1.msra.mxu0 0.0
    %6220 = vmatprep.subr.mxu0 0.0
    %6221 = vmatpush1.msra.mxu0 0.0
    %6222 = vmatprep.subr.mxu0 0.0
    %6223 = vmatpush1.msra.mxu0 0.0
    %6224 = vmatprep.subr.mxu0 0.0
    %6225 = vmatpush1.msra.mxu0 0.0
    %6226 = vmatprep.subr.mxu0 0.0
    %6227 = vmatpush1.msra.mxu0 0.0
    %6228 = vmatprep.subr.mxu0 0.0
    %6229 = vmatpush1.msra.mxu0 0.0
    %6230 = vmatprep.subr.mxu0 0.0
    %6231 = vmatpush1.msra.mxu0 0.0
    %6232 = vmatprep.subr.mxu0 0.0
    %6233 = vmatpush1.msra.mxu0 0.0
    %6234 = vmatprep.subr.mxu0 0.0
    %6235 = vmatpush1.msra.mxu0 0.0
    %6236 = vmatprep.subr.mxu0 0.0
    %6237 = vmatpush1.msra.mxu0 0.0
    %6238 = vmatprep.subr.mxu0 0.0
    %6239 = vmatpush1.msra.mxu0 %v66
    %6240 = vmatprep.subr.mxu0 0.0
    %6241 = vmatpush1.msra.mxu0 %v65
    %6242 = vmatprep.subr.mxu0 0.0
    %6243 = vmatpush1.msra.mxu0 %v64
    %6244 = vmatprep.subr.mxu0 0.0
    %6245 = vmatpush1.msra.mxu0 %v63
    %6246 = vmatprep.subr.mxu0 0.0
    %6247 = vmatpush2.msra.mxu0 0.0
    %6248 = vmatprep.subr.mxu0 0.0
    %6249 = vmatpush2.msra.mxu0 0.0
    %6250 = vmatprep.subr.mxu0 0.0
    %6251 = vmatpush2.msra.mxu0 0.0
    %6252 = vmatprep.subr.mxu0 0.0
    %6253 = vmatpush2.msra.mxu0 0.0
    %6254 = vmatprep.subr.mxu0 0.0
    %6255 = vmatpush2.msra.mxu0 0.0
    %6256 = vmatprep.subr.mxu0 0.0
    %6257 = vmatpush2.msra.mxu0 0.0
    %6258 = vmatprep.subr.mxu0 0.0
    %6259 = vmatpush2.msra.mxu0 0.0
    %6260 = vmatprep.subr.mxu0 0.0
    %6261 = vmatpush2.msra.mxu0 0.0
    %6262 = vmatprep.subr.mxu0 0.0
    %6263 = vmatpush2.msra.mxu0 0.0
    %6264 = vmatprep.subr.mxu0 0.0
    %6265 = vmatpush2.msra.mxu0 0.0
    %6266 = vmatprep.subr.mxu0 0.0
    %6267 = vmatpush2.msra.mxu0 0.0
    %6268 = vmatprep.subr.mxu0 0.0
    %6269 = vmatpush2.msra.mxu0 0.0
    %6270 = vmatprep.subr.mxu0 0.0
    %6271 = vmatpush2.msra.mxu0 0.0
    %6272 = vmatprep.subr.mxu0 0.0
    %6273 = vmatpush2.msra.mxu0 0.0
    %6274 = vmatprep.subr.mxu0 0.0
    %6275 = vmatpush2.msra.mxu0 0.0
    %6276 = vmatprep.subr.mxu0 0.0
    %6277 = vmatpush2.msra.mxu0 0.0
    %6278 = vmatprep.mubr.f32.mxu0 0.0
    %6279 = vmatmul.mubr.f32.gmra.mxu0 %v5882
    %v6280 = vpop.f32.mrf.mxu0
    %v6281 = vadd.f32 0.0, %v6280
    %v6282 = vpop.f32.mrf.mxu0
    %6283 = vdwg.mxu0
    %6284 = vmatprep.subr.mxu0 0.0
    %6285 = vmatpush1.msra.mxu0 0.0
    %6286 = vmatprep.subr.mxu0 0.0
    %6287 = vmatpush1.msra.mxu0 0.0
    %6288 = vmatprep.subr.mxu0 0.0
    %6289 = vmatpush1.msra.mxu0 0.0
    %6290 = vmatprep.subr.mxu0 0.0
    %6291 = vmatpush1.msra.mxu0 0.0
    %6292 = vmatprep.subr.mxu0 0.0
    %6293 = vmatpush1.msra.mxu0 0.0
    %6294 = vmatprep.subr.mxu0 0.0
    %6295 = vmatpush1.msra.mxu0 0.0
    %6296 = vmatprep.subr.mxu0 0.0
    %6297 = vmatpush1.msra.mxu0 0.0
    %6298 = vmatprep.subr.mxu0 0.0
    %6299 = vmatpush1.msra.mxu0 0.0
    %6300 = vmatprep.subr.mxu0 0.0
    %6301 = vmatpush1.msra.mxu0 0.0
    %6302 = vmatprep.subr.mxu0 0.0
    %6303 = vmatpush1.msra.mxu0 0.0
    %6304 = vmatprep.subr.mxu0 0.0
    %6305 = vmatpush1.msra.mxu0 0.0
    %6306 = vmatprep.subr.mxu0 0.0
    %6307 = vmatpush1.msra.mxu0 0.0
    %6308 = vmatprep.subr.mxu0 0.0
    %6309 = vmatpush1.msra.mxu0 0.0
    %6310 = vmatprep.subr.mxu0 0.0
    %6311 = vmatpush1.msra.mxu0 0.0
    %6312 = vmatprep.subr.mxu0 0.0
    %6313 = vmatpush1.msra.mxu0 %v51
    %6314 = vmatprep.subr.mxu0 0.0
    %6315 = vmatpush1.msra.mxu0 %v50
    %6316 = vmatprep.subr.mxu0 0.0
    %6317 = vmatpush2.msra.mxu0 0.0
    %6318 = vmatprep.subr.mxu0 0.0
    %6319 = vmatpush2.msra.mxu0 0.0
    %6320 = vmatprep.subr.mxu0 0.0
    %6321 = vmatpush2.msra.mxu0 0.0
    %6322 = vmatprep.subr.mxu0 0.0
    %6323 = vmatpush2.msra.mxu0 0.0
    %6324 = vmatprep.subr.mxu0 0.0
    %6325 = vmatpush2.msra.mxu0 0.0
    %6326 = vmatprep.subr.mxu0 0.0
    %6327 = vmatpush2.msra.mxu0 0.0
    %6328 = vmatprep.subr.mxu0 0.0
    %6329 = vmatpush2.msra.mxu0 0.0
    %6330 = vmatprep.subr.mxu0 0.0
    %6331 = vmatpush2.msra.mxu0 0.0
    %6332 = vmatprep.subr.mxu0 0.0
    %6333 = vmatpush2.msra.mxu0 0.0
    %6334 = vmatprep.subr.mxu0 0.0
    %6335 = vmatpush2.msra.mxu0 0.0
    %6336 = vmatprep.subr.mxu0 0.0
    %6337 = vmatpush2.msra.mxu0 0.0
    %6338 = vmatprep.subr.mxu0 0.0
    %6339 = vmatpush2.msra.mxu0 0.0
    %6340 = vmatprep.subr.mxu0 0.0
    %6341 = vmatpush2.msra.mxu0 0.0
    %6342 = vmatprep.subr.mxu0 0.0
    %6343 = vmatpush2.msra.mxu0 0.0
    %6344 = vmatprep.subr.mxu0 0.0
    %6345 = vmatpush2.msra.mxu0 0.0
    %6346 = vmatprep.subr.mxu0 0.0
    %6347 = vmatpush2.msra.mxu0 0.0
    %6348 = vmatprep.mubr.f32.mxu0 0.0
    %6349 = vmatmul.mubr.f32.gmra.mxu0 %v6141
    %v6350 = vpop.f32.mrf.mxu0
    %v6351 = vadd.f32 %v6281, %v6350
    %v6352 = vpop.f32.mrf.mxu0
    %6353 = vdwg.mxu0
    %v6354 = vadd.f32 %v6351, %v402
    %6355 = vmatprep.subr.mxu0 0.0
    %6356 = vmatpush1.msra.mxu0 0.0
    %6357 = vmatprep.subr.mxu0 0.0
    %6358 = vmatpush1.msra.mxu0 0.0
    %6359 = vmatprep.subr.mxu0 0.0
    %6360 = vmatpush1.msra.mxu0 0.0
    %6361 = vmatprep.subr.mxu0 0.0
    %6362 = vmatpush1.msra.mxu0 0.0
    %6363 = vmatprep.subr.mxu0 0.0
    %6364 = vmatpush1.msra.mxu0 0.0
    %6365 = vmatprep.subr.mxu0 0.0
    %6366 = vmatpush1.msra.mxu0 0.0
    %6367 = vmatprep.subr.mxu0 0.0
    %6368 = vmatpush1.msra.mxu0 0.0
    %6369 = vmatprep.subr.mxu0 0.0
    %6370 = vmatpush1.msra.mxu0 0.0
    %6371 = vmatprep.subr.mxu0 0.0
    %6372 = vmatpush1.msra.mxu0 0.0
    %6373 = vmatprep.subr.mxu0 0.0
    %6374 = vmatpush1.msra.mxu0 0.0
    %6375 = vmatprep.subr.mxu0 0.0
    %6376 = vmatpush1.msra.mxu0 0.0
    %6377 = vmatprep.subr.mxu0 0.0
    %6378 = vmatpush1.msra.mxu0 0.0
    %6379 = vmatprep.subr.mxu0 0.0
    %6380 = vmatpush1.msra.mxu0 %v71
    %6381 = vmatprep.subr.mxu0 0.0
    %6382 = vmatpush1.msra.mxu0 %v70
    %6383 = vmatprep.subr.mxu0 0.0
    %6384 = vmatpush1.msra.mxu0 %v69
    %6385 = vmatprep.subr.mxu0 0.0
    %6386 = vmatpush1.msra.mxu0 %v68
    %6387 = vmatprep.subr.mxu0 0.0
    %6388 = vmatpush2.msra.mxu0 0.0
    %6389 = vmatprep.subr.mxu0 0.0
    %6390 = vmatpush2.msra.mxu0 0.0
    %6391 = vmatprep.subr.mxu0 0.0
    %6392 = vmatpush2.msra.mxu0 0.0
    %6393 = vmatprep.subr.mxu0 0.0
    %6394 = vmatpush2.msra.mxu0 0.0
    %6395 = vmatprep.subr.mxu0 0.0
    %6396 = vmatpush2.msra.mxu0 0.0
    %6397 = vmatprep.subr.mxu0 0.0
    %6398 = vmatpush2.msra.mxu0 0.0
    %6399 = vmatprep.subr.mxu0 0.0
    %6400 = vmatpush2.msra.mxu0 0.0
    %6401 = vmatprep.subr.mxu0 0.0
    %6402 = vmatpush2.msra.mxu0 0.0
    %6403 = vmatprep.subr.mxu0 0.0
    %6404 = vmatpush2.msra.mxu0 0.0
    %6405 = vmatprep.subr.mxu0 0.0
    %6406 = vmatpush2.msra.mxu0 0.0
    %6407 = vmatprep.subr.mxu0 0.0
    %6408 = vmatpush2.msra.mxu0 0.0
    %6409 = vmatprep.subr.mxu0 0.0
    %6410 = vmatpush2.msra.mxu0 0.0
    %6411 = vmatprep.subr.mxu0 0.0
    %6412 = vmatpush2.msra.mxu0 0.0
    %6413 = vmatprep.subr.mxu0 0.0
    %6414 = vmatpush2.msra.mxu0 0.0
    %6415 = vmatprep.subr.mxu0 0.0
    %6416 = vmatpush2.msra.mxu0 0.0
    %6417 = vmatprep.subr.mxu0 0.0
    %6418 = vmatpush2.msra.mxu0 0.0
    %6419 = vmatprep.mubr.f32.mxu0 0.0
    %6420 = vmatmul.mubr.f32.gmra.mxu0 %v5882
    %v6421 = vpop.f32.mrf.mxu0
    %v6422 = vadd.f32 0.0, %v6421
    %v6423 = vpop.f32.mrf.mxu0
    %6424 = vdwg.mxu0
    %6425 = vmatprep.subr.mxu0 0.0
    %6426 = vmatpush1.msra.mxu0 0.0
    %6427 = vmatprep.subr.mxu0 0.0
    %6428 = vmatpush1.msra.mxu0 0.0
    %6429 = vmatprep.subr.mxu0 0.0
    %6430 = vmatpush1.msra.mxu0 0.0
    %6431 = vmatprep.subr.mxu0 0.0
    %6432 = vmatpush1.msra.mxu0 0.0
    %6433 = vmatprep.subr.mxu0 0.0
    %6434 = vmatpush1.msra.mxu0 0.0
    %6435 = vmatprep.subr.mxu0 0.0
    %6436 = vmatpush1.msra.mxu0 0.0
    %6437 = vmatprep.subr.mxu0 0.0
    %6438 = vmatpush1.msra.mxu0 0.0
    %6439 = vmatprep.subr.mxu0 0.0
    %6440 = vmatpush1.msra.mxu0 0.0
    %6441 = vmatprep.subr.mxu0 0.0
    %6442 = vmatpush1.msra.mxu0 0.0
    %6443 = vmatprep.subr.mxu0 0.0
    %6444 = vmatpush1.msra.mxu0 0.0
    %6445 = vmatprep.subr.mxu0 0.0
    %6446 = vmatpush1.msra.mxu0 0.0
    %6447 = vmatprep.subr.mxu0 0.0
    %6448 = vmatpush1.msra.mxu0 0.0
    %6449 = vmatprep.subr.mxu0 0.0
    %6450 = vmatpush1.msra.mxu0 0.0
    %6451 = vmatprep.subr.mxu0 0.0
    %6452 = vmatpush1.msra.mxu0 0.0
    %6453 = vmatprep.subr.mxu0 0.0
    %6454 = vmatpush1.msra.mxu0 %v54
    %6455 = vmatprep.subr.mxu0 0.0
    %6456 = vmatpush1.msra.mxu0 %v53
    %6457 = vmatprep.subr.mxu0 0.0
    %6458 = vmatpush2.msra.mxu0 0.0
    %6459 = vmatprep.subr.mxu0 0.0
    %6460 = vmatpush2.msra.mxu0 0.0
    %6461 = vmatprep.subr.mxu0 0.0
    %6462 = vmatpush2.msra.mxu0 0.0
    %6463 = vmatprep.subr.mxu0 0.0
    %6464 = vmatpush2.msra.mxu0 0.0
    %6465 = vmatprep.subr.mxu0 0.0
    %6466 = vmatpush2.msra.mxu0 0.0
    %6467 = vmatprep.subr.mxu0 0.0
    %6468 = vmatpush2.msra.mxu0 0.0
    %6469 = vmatprep.subr.mxu0 0.0
    %6470 = vmatpush2.msra.mxu0 0.0
    %6471 = vmatprep.subr.mxu0 0.0
    %6472 = vmatpush2.msra.mxu0 0.0
    %6473 = vmatprep.subr.mxu0 0.0
    %6474 = vmatpush2.msra.mxu0 0.0
    %6475 = vmatprep.subr.mxu0 0.0
    %6476 = vmatpush2.msra.mxu0 0.0
    %6477 = vmatprep.subr.mxu0 0.0
    %6478 = vmatpush2.msra.mxu0 0.0
    %6479 = vmatprep.subr.mxu0 0.0
    %6480 = vmatpush2.msra.mxu0 0.0
    %6481 = vmatprep.subr.mxu0 0.0
    %6482 = vmatpush2.msra.mxu0 0.0
    %6483 = vmatprep.subr.mxu0 0.0
    %6484 = vmatpush2.msra.mxu0 0.0
    %6485 = vmatprep.subr.mxu0 0.0
    %6486 = vmatpush2.msra.mxu0 0.0
    %6487 = vmatprep.subr.mxu0 0.0
    %6488 = vmatpush2.msra.mxu0 0.0
    %6489 = vmatprep.mubr.f32.mxu0 0.0
    %6490 = vmatmul.mubr.f32.gmra.mxu0 %v6141
    %v6491 = vpop.f32.mrf.mxu0
    %v6492 = vadd.f32 %v6422, %v6491
    %v6493 = vpop.f32.mrf.mxu0
    %6494 = vdwg.mxu0
    %v6495 = vadd.f32 %v6492, %v549
    %6496 = vmatprep.subr.mxu0 0.0
    %6497 = vmatpush1.msra.mxu0 0.0
    %6498 = vmatprep.subr.mxu0 0.0
    %6499 = vmatpush1.msra.mxu0 0.0
    %6500 = vmatprep.subr.mxu0 0.0
    %6501 = vmatpush1.msra.mxu0 0.0
    %6502 = vmatprep.subr.mxu0 0.0
    %6503 = vmatpush1.msra.mxu0 0.0
    %6504 = vmatprep.subr.mxu0 0.0
    %6505 = vmatpush1.msra.mxu0 0.0
    %6506 = vmatprep.subr.mxu0 0.0
    %6507 = vmatpush1.msra.mxu0 0.0
    %6508 = vmatprep.subr.mxu0 0.0
    %6509 = vmatpush1.msra.mxu0 0.0
    %6510 = vmatprep.subr.mxu0 0.0
    %6511 = vmatpush1.msra.mxu0 0.0
    %6512 = vmatprep.subr.mxu0 0.0
    %6513 = vmatpush1.msra.mxu0 0.0
    %6514 = vmatprep.subr.mxu0 0.0
    %6515 = vmatpush1.msra.mxu0 0.0
    %6516 = vmatprep.subr.mxu0 0.0
    %6517 = vmatpush1.msra.mxu0 0.0
    %6518 = vmatprep.subr.mxu0 0.0
    %6519 = vmatpush1.msra.mxu0 0.0
    %6520 = vmatprep.subr.mxu0 0.0
    %6521 = vmatpush1.msra.mxu0 %v76
    %6522 = vmatprep.subr.mxu0 0.0
    %6523 = vmatpush1.msra.mxu0 %v75
    %6524 = vmatprep.subr.mxu0 0.0
    %6525 = vmatpush1.msra.mxu0 %v74
    %6526 = vmatprep.subr.mxu0 0.0
    %6527 = vmatpush1.msra.mxu0 %v73
    %6528 = vmatprep.subr.mxu0 0.0
    %6529 = vmatpush2.msra.mxu0 0.0
    %6530 = vmatprep.subr.mxu0 0.0
    %6531 = vmatpush2.msra.mxu0 0.0
    %6532 = vmatprep.subr.mxu0 0.0
    %6533 = vmatpush2.msra.mxu0 0.0
    %6534 = vmatprep.subr.mxu0 0.0
    %6535 = vmatpush2.msra.mxu0 0.0
    %6536 = vmatprep.subr.mxu0 0.0
    %6537 = vmatpush2.msra.mxu0 0.0
    %6538 = vmatprep.subr.mxu0 0.0
    %6539 = vmatpush2.msra.mxu0 0.0
    %6540 = vmatprep.subr.mxu0 0.0
    %6541 = vmatpush2.msra.mxu0 0.0
    %6542 = vmatprep.subr.mxu0 0.0
    %6543 = vmatpush2.msra.mxu0 0.0
    %6544 = vmatprep.subr.mxu0 0.0
    %6545 = vmatpush2.msra.mxu0 0.0
    %6546 = vmatprep.subr.mxu0 0.0
    %6547 = vmatpush2.msra.mxu0 0.0
    %6548 = vmatprep.subr.mxu0 0.0
    %6549 = vmatpush2.msra.mxu0 0.0
    %6550 = vmatprep.subr.mxu0 0.0
    %6551 = vmatpush2.msra.mxu0 0.0
    %6552 = vmatprep.subr.mxu0 0.0
    %6553 = vmatpush2.msra.mxu0 0.0
    %6554 = vmatprep.subr.mxu0 0.0
    %6555 = vmatpush2.msra.mxu0 0.0
    %6556 = vmatprep.subr.mxu0 0.0
    %6557 = vmatpush2.msra.mxu0 0.0
    %6558 = vmatprep.subr.mxu0 0.0
    %6559 = vmatpush2.msra.mxu0 0.0
    %6560 = vmatprep.mubr.f32.mxu0 0.0
    %6561 = vmatmul.mubr.f32.gmra.mxu0 %v5882
    %v6562 = vpop.f32.mrf.mxu0
    %v6563 = vadd.f32 0.0, %v6562
    %v6564 = vpop.f32.mrf.mxu0
    %6565 = vdwg.mxu0
    %6566 = vmatprep.subr.mxu0 0.0
    %6567 = vmatpush1.msra.mxu0 0.0
    %6568 = vmatprep.subr.mxu0 0.0
    %6569 = vmatpush1.msra.mxu0 0.0
    %6570 = vmatprep.subr.mxu0 0.0
    %6571 = vmatpush1.msra.mxu0 0.0
    %6572 = vmatprep.subr.mxu0 0.0
    %6573 = vmatpush1.msra.mxu0 0.0
    %6574 = vmatprep.subr.mxu0 0.0
    %6575 = vmatpush1.msra.mxu0 0.0
    %6576 = vmatprep.subr.mxu0 0.0
    %6577 = vmatpush1.msra.mxu0 0.0
    %6578 = vmatprep.subr.mxu0 0.0
    %6579 = vmatpush1.msra.mxu0 0.0
    %6580 = vmatprep.subr.mxu0 0.0
    %6581 = vmatpush1.msra.mxu0 0.0
    %6582 = vmatprep.subr.mxu0 0.0
    %6583 = vmatpush1.msra.mxu0 0.0
    %6584 = vmatprep.subr.mxu0 0.0
    %6585 = vmatpush1.msra.mxu0 0.0
    %6586 = vmatprep.subr.mxu0 0.0
    %6587 = vmatpush1.msra.mxu0 0.0
    %6588 = vmatprep.subr.mxu0 0.0
    %6589 = vmatpush1.msra.mxu0 0.0
    %6590 = vmatprep.subr.mxu0 0.0
    %6591 = vmatpush1.msra.mxu0 0.0
    %6592 = vmatprep.subr.mxu0 0.0
    %6593 = vmatpush1.msra.mxu0 0.0
    %6594 = vmatprep.subr.mxu0 0.0
    %6595 = vmatpush1.msra.mxu0 %v57
    %6596 = vmatprep.subr.mxu0 0.0
    %6597 = vmatpush1.msra.mxu0 %v56
    %6598 = vmatprep.subr.mxu0 0.0
    %6599 = vmatpush2.msra.mxu0 0.0
    %6600 = vmatprep.subr.mxu0 0.0
    %6601 = vmatpush2.msra.mxu0 0.0
    %6602 = vmatprep.subr.mxu0 0.0
    %6603 = vmatpush2.msra.mxu0 0.0
    %6604 = vmatprep.subr.mxu0 0.0
    %6605 = vmatpush2.msra.mxu0 0.0
    %6606 = vmatprep.subr.mxu0 0.0
    %6607 = vmatpush2.msra.mxu0 0.0
    %6608 = vmatprep.subr.mxu0 0.0
    %6609 = vmatpush2.msra.mxu0 0.0
    %6610 = vmatprep.subr.mxu0 0.0
    %6611 = vmatpush2.msra.mxu0 0.0
    %6612 = vmatprep.subr.mxu0 0.0
    %6613 = vmatpush2.msra.mxu0 0.0
    %6614 = vmatprep.subr.mxu0 0.0
    %6615 = vmatpush2.msra.mxu0 0.0
    %6616 = vmatprep.subr.mxu0 0.0
    %6617 = vmatpush2.msra.mxu0 0.0
    %6618 = vmatprep.subr.mxu0 0.0
    %6619 = vmatpush2.msra.mxu0 0.0
    %6620 = vmatprep.subr.mxu0 0.0
    %6621 = vmatpush2.msra.mxu0 0.0
    %6622 = vmatprep.subr.mxu0 0.0
    %6623 = vmatpush2.msra.mxu0 0.0
    %6624 = vmatprep.subr.mxu0 0.0
    %6625 = vmatpush2.msra.mxu0 0.0
    %6626 = vmatprep.subr.mxu0 0.0
    %6627 = vmatpush2.msra.mxu0 0.0
    %6628 = vmatprep.subr.mxu0 0.0
    %6629 = vmatpush2.msra.mxu0 0.0
    %6630 = vmatprep.mubr.f32.mxu0 0.0
    %6631 = vmatmul.mubr.f32.gmra.mxu0 %v6141
    %v6632 = vpop.f32.mrf.mxu0
    %v6633 = vadd.f32 %v6563, %v6632
    %v6634 = vpop.f32.mrf.mxu0
    %6635 = vdwg.mxu0
    %v6636 = vadd.f32 %v6633, %v696
    %v6637 = vxor.u32 %v6213, 2147483648
    %v6638 = vmul.f32 %v6637, 1.442695
    %v6639 = vpow.pop %v6638
    %v6640 = vadd.f32 %v6639, 1.0
    %v6641 = vrcp.pop %v6640
    %v6642 = vmul.f32 1.0, %v6641
    %v6643 = vxor.u32 %v6354, 2147483648
    %v6644 = vmul.f32 %v6643, 1.442695
    %v6645 = vpow.pop %v6644
    %v6646 = vadd.f32 %v6645, 1.0
    %v6647 = vrcp.pop %v6646
    %v6648 = vmul.f32 1.0, %v6647
    %v6649 = vtanh.pop %v6495
    %v6650 = vxor.u32 %v6636, 2147483648
    %v6651 = vmul.f32 %v6650, 1.442695
    %v6652 = vpow.pop %v6651
    %v6653 = vadd.f32 %v6652, 1.0
    %v6654 = vrcp.pop %v6653
    %v6655 = vmul.f32 1.0, %v6654
    %v6656 = vmul.f32 %v6648, %v5670
    %v6657 = vmul.f32 %v6642, %v6649
    %v6658 = vadd.f32 %v6656, %v6657
    %v6659 = vtanh.pop %v6658
    %v6660 = vmul.f32 %v6655, %v6659
    %v6663 = vunpack.c.l.s4 1966171168
    %v6664 = vunpack.c.0.s8 %v6663
    %v6665 = vlaneseq
    %v6666 = vshrl.u32 %v6665, 7
    %v6667 = vsub.s32 %v6664, %v6666
    %v6668 = vrot.slane %v6660, %v6667
    %v6669 = vcombine.high %v6668, %v6668
    %v6671 = vunpack.c.l.s4 1966171168
    %v6672 = vunpack.c.0.s8 %v6671
    %v6673 = vlaneseq
    %v6674 = vshrl.u32 %v6673, 7
    %v6675 = vsub.s32 %v6672, %v6674
    %v6676 = vrot.slane %v6668, %v6675
    %v6678 = vunpack.c.l.s4 1966171168
    %v6679 = vunpack.c.0.s8 %v6678
    %v6680 = vlaneseq
    %v6681 = vshrl.u32 %v6680, 7
    %v6682 = vsub.s32 %v6679, %v6681
    %v6683 = vrot.slane %v6669, %v6682
    %v6684 = vlaneseq
    %v6685 = vshrl.u32 %v6684, 7
    %v6686 = vsub.s32 0, %v6685
    %v6687 = vrot.slane %v6676, %v6686
    %v6688 = vlaneseq
    %v6689 = vshrl.u32 %v6688, 7
    %v6690 = vsub.s32 0, %v6689
    %v6691 = vrot.slane %v6683, %v6690
    %v6694 = vmul.f32 %v45, %v6687
    %v6695 = vmul.f32 %v46, %v6691
    %v6696 = vsel %vm99, %v6694, 0.0
    %6697 = vadd.xlane.f32.xlu0 %v6696
    %v6698 = vpop.xlane.xlu0 %6697
    %v6699 = vsel %vm99, %v6695, 0.0
    %6700 = vadd.xlane.f32.xlu0 %v6699
    %v6701 = vpop.xlane.xlu0 %6700
    %v6704 = vlaneseq
    %v6705 = vshrl.u32 %v6704, 7
    %v6706 = vsub.s32 %v767, %v6705
    %v6707 = vrot.slane %v6698, %v6706
    %v6708 = vlaneseq
    %v6709 = vshrl.u32 %v6708, 7
    %v6710 = vsub.s32 %v767, %v6709
    %v6711 = vrot.slane %v6701, %v6710
    %v6712 = vsel %vm176, %v6711, %v6707
    %v6714 = vsel %vm778, %v6712, -inf
    %6715 = vmax.xlane.f32.xlu0 %v6714
    %v6716 = vpop.xlane.xlu0 %6715
    %v6718 = vlaneseq
    %v6719 = vshrl.u32 %v6718, 7
    %v6720 = vsub.s32 0, %v6719
    %v6721 = vrot.slane %v6716, %v6720
    %v6722 = vlaneseq
    %v6723 = vshrl.u32 %v6722, 7
    %v6724 = vsub.s32 1, %v6723
    %v6725 = vrot.slane %v6716, %v6724
    %v6728 = vsub.f32 %v6698, %v6721
    %v6729 = vsub.f32 %v6701, %v6725
    %v6730 = vmul.f32 %v6728, 1.442695
    %v6731 = vpow.pop %v6730
    %v6732 = vmul.f32 %v6729, 1.442695
    %v6733 = vpow.pop %v6732
    %6736 = vset.pattern.permute.xlu0 0
    %6737 = vperm.xlu0 %6736, %v6731
    %v6738 = vpop.permute.xlu0 %6737
    %6739 = vset.pattern.permute.xlu0 0
    %6740 = vperm.xlu0 %6739, %v6733
    %v6741 = vpop.permute.xlu0 %6740
    %v6742 = vlaneseq
    %v6743 = vshrl.u32 %v6742, 7
    %v6744 = vsub.s32 %v767, %v6743
    %v6745 = vrot.slane %v6738, %v6744
    %v6746 = vlaneseq
    %v6747 = vshrl.u32 %v6746, 7
    %v6748 = vsub.s32 %v767, %v6747
    %v6749 = vrot.slane %v6741, %v6748
    %v6750 = vsel %vm176, %v6749, %v6745
    %v6752 = vsel %vm778, %v6750, 0.0
    %6753 = vadd.xlane.f32.xlu0 %v6752
    %v6754 = vpop.xlane.xlu0 %6753
    %v6755 = vrcp.pop %v6754
    %v6757 = vlaneseq
    %v6758 = vshrl.u32 %v6757, 7
    %v6759 = vsub.s32 0, %v6758
    %v6760 = vrot.slane %v6755, %v6759
    %v6761 = vlaneseq
    %v6762 = vshrl.u32 %v6761, 7
    %v6763 = vsub.s32 1, %v6762
    %v6764 = vrot.slane %v6755, %v6763
    %v6767 = vmul.f32 %v6731, %v6760
    %v6768 = vmul.f32 %v6733, %v6764
    %6770 = vset.pattern.permute.xlu0 0
    %6771 = vperm.xlu0 %6770, %v6767
    %v6772 = vpop.permute.xlu0 %6771
    %6775 = vset.pattern.permute.xlu0 0
    %6776 = vperm.xlu0 %6775, %v6768
    %v6777 = vpop.permute.xlu0 %6776
    %v6779 = vmul.f32 %v6772, %v45
    %v6780 = vmul.f32 %v6777, %v46
    %v6781 = vsel %vm99, %v6779, 0.0
    %v6782 = vrot.slane %v6781, 4
    %v6783 = vadd.f32 %v6781, %v6782
    %v6784 = vrot.slane %v6783, 2
    %v6785 = vadd.f32 %v6783, %v6784
    %v6786 = vrot.slane %v6785, 1
    %v6787 = vadd.f32 %v6785, %v6786
    %v6788 = vsel %vm99, %v6780, 0.0
    %v6789 = vrot.slane %v6788, 4
    %v6790 = vadd.f32 %v6788, %v6789
    %v6791 = vrot.slane %v6790, 2
    %v6792 = vadd.f32 %v6790, %v6791
    %v6793 = vrot.slane %v6792, 1
    %v6794 = vadd.f32 %v6792, %v6793
    %v6797 = vsel %vm176, %v6794, %v6787
    %v6798 = vsel %vm99, %v6797, 0
    %6800 = vmatprep.subr.mxu0 0.0
    %6801 = vmatpush1.msra.mxu0 0.0
    %6802 = vmatprep.subr.mxu0 0.0
    %6803 = vmatpush1.msra.mxu0 0.0
    %6804 = vmatprep.subr.mxu0 0.0
    %6805 = vmatpush1.msra.mxu0 0.0
    %6806 = vmatprep.subr.mxu0 0.0
    %6807 = vmatpush1.msra.mxu0 0.0
    %6808 = vmatprep.subr.mxu0 0.0
    %6809 = vmatpush1.msra.mxu0 0.0
    %6810 = vmatprep.subr.mxu0 0.0
    %6811 = vmatpush1.msra.mxu0 0.0
    %6812 = vmatprep.subr.mxu0 0.0
    %6813 = vmatpush1.msra.mxu0 0.0
    %6814 = vmatprep.subr.mxu0 0.0
    %6815 = vmatpush1.msra.mxu0 0.0
    %6816 = vmatprep.subr.mxu0 0.0
    %6817 = vmatpush1.msra.mxu0 0.0
    %6818 = vmatprep.subr.mxu0 0.0
    %6819 = vmatpush1.msra.mxu0 0.0
    %6820 = vmatprep.subr.mxu0 0.0
    %6821 = vmatpush1.msra.mxu0 0.0
    %6822 = vmatprep.subr.mxu0 0.0
    %6823 = vmatpush1.msra.mxu0 0.0
    %6824 = vmatprep.subr.mxu0 0.0
    %6825 = vmatpush1.msra.mxu0 %v91
    %6826 = vmatprep.subr.mxu0 0.0
    %6827 = vmatpush1.msra.mxu0 %v90
    %6828 = vmatprep.subr.mxu0 0.0
    %6829 = vmatpush1.msra.mxu0 %v89
    %6830 = vmatprep.subr.mxu0 0.0
    %6831 = vmatpush1.msra.mxu0 %v88
    %6832 = vmatprep.subr.mxu0 0.0
    %6833 = vmatpush2.msra.mxu0 0.0
    %6834 = vmatprep.subr.mxu0 0.0
    %6835 = vmatpush2.msra.mxu0 0.0
    %6836 = vmatprep.subr.mxu0 0.0
    %6837 = vmatpush2.msra.mxu0 0.0
    %6838 = vmatprep.subr.mxu0 0.0
    %6839 = vmatpush2.msra.mxu0 0.0
    %6840 = vmatprep.subr.mxu0 0.0
    %6841 = vmatpush2.msra.mxu0 0.0
    %6842 = vmatprep.subr.mxu0 0.0
    %6843 = vmatpush2.msra.mxu0 0.0
    %6844 = vmatprep.subr.mxu0 0.0
    %6845 = vmatpush2.msra.mxu0 0.0
    %6846 = vmatprep.subr.mxu0 0.0
    %6847 = vmatpush2.msra.mxu0 0.0
    %6848 = vmatprep.subr.mxu0 0.0
    %6849 = vmatpush2.msra.mxu0 0.0
    %6850 = vmatprep.subr.mxu0 0.0
    %6851 = vmatpush2.msra.mxu0 0.0
    %6852 = vmatprep.subr.mxu0 0.0
    %6853 = vmatpush2.msra.mxu0 0.0
    %6854 = vmatprep.subr.mxu0 0.0
    %6855 = vmatpush2.msra.mxu0 0.0
    %6856 = vmatprep.subr.mxu0 0.0
    %6857 = vmatpush2.msra.mxu0 0.0
    %6858 = vmatprep.subr.mxu0 0.0
    %6859 = vmatpush2.msra.mxu0 0.0
    %6860 = vmatprep.subr.mxu0 0.0
    %6861 = vmatpush2.msra.mxu0 0.0
    %6862 = vmatprep.subr.mxu0 0.0
    %6863 = vmatpush2.msra.mxu0 0.0
    %6864 = vmatprep.mubr.f32.mxu0 0.0
    %6865 = vmatmul.mubr.f32.gmra.mxu0 %v6798
    %v6866 = vpop.f32.mrf.mxu0
    %v6867 = vadd.f32 0.0, %v6866
    %v6868 = vpop.f32.mrf.mxu0
    %6869 = vdwg.mxu0
    %v6870 = vsel %vm99, %v6660, 0
    %6872 = vmatprep.subr.mxu0 0.0
    %6873 = vmatpush1.msra.mxu0 0.0
    %6874 = vmatprep.subr.mxu0 0.0
    %6875 = vmatpush1.msra.mxu0 0.0
    %6876 = vmatprep.subr.mxu0 0.0
    %6877 = vmatpush1.msra.mxu0 0.0
    %6878 = vmatprep.subr.mxu0 0.0
    %6879 = vmatpush1.msra.mxu0 0.0
    %6880 = vmatprep.subr.mxu0 0.0
    %6881 = vmatpush1.msra.mxu0 0.0
    %6882 = vmatprep.subr.mxu0 0.0
    %6883 = vmatpush1.msra.mxu0 0.0
    %6884 = vmatprep.subr.mxu0 0.0
    %6885 = vmatpush1.msra.mxu0 0.0
    %6886 = vmatprep.subr.mxu0 0.0
    %6887 = vmatpush1.msra.mxu0 0.0
    %6888 = vmatprep.subr.mxu0 0.0
    %6889 = vmatpush1.msra.mxu0 0.0
    %6890 = vmatprep.subr.mxu0 0.0
    %6891 = vmatpush1.msra.mxu0 0.0
    %6892 = vmatprep.subr.mxu0 0.0
    %6893 = vmatpush1.msra.mxu0 0.0
    %6894 = vmatprep.subr.mxu0 0.0
    %6895 = vmatpush1.msra.mxu0 0.0
    %6896 = vmatprep.subr.mxu0 0.0
    %6897 = vmatpush1.msra.mxu0 %v87
    %6898 = vmatprep.subr.mxu0 0.0
    %6899 = vmatpush1.msra.mxu0 %v86
    %6900 = vmatprep.subr.mxu0 0.0
    %6901 = vmatpush1.msra.mxu0 %v85
    %6902 = vmatprep.subr.mxu0 0.0
    %6903 = vmatpush1.msra.mxu0 %v84
    %6904 = vmatprep.subr.mxu0 0.0
    %6905 = vmatpush2.msra.mxu0 0.0
    %6906 = vmatprep.subr.mxu0 0.0
    %6907 = vmatpush2.msra.mxu0 0.0
    %6908 = vmatprep.subr.mxu0 0.0
    %6909 = vmatpush2.msra.mxu0 0.0
    %6910 = vmatprep.subr.mxu0 0.0
    %6911 = vmatpush2.msra.mxu0 0.0
    %6912 = vmatprep.subr.mxu0 0.0
    %6913 = vmatpush2.msra.mxu0 0.0
    %6914 = vmatprep.subr.mxu0 0.0
    %6915 = vmatpush2.msra.mxu0 0.0
    %6916 = vmatprep.subr.mxu0 0.0
    %6917 = vmatpush2.msra.mxu0 0.0
    %6918 = vmatprep.subr.mxu0 0.0
    %6919 = vmatpush2.msra.mxu0 0.0
    %6920 = vmatprep.subr.mxu0 0.0
    %6921 = vmatpush2.msra.mxu0 0.0
    %6922 = vmatprep.subr.mxu0 0.0
    %6923 = vmatpush2.msra.mxu0 0.0
    %6924 = vmatprep.subr.mxu0 0.0
    %6925 = vmatpush2.msra.mxu0 0.0
    %6926 = vmatprep.subr.mxu0 0.0
    %6927 = vmatpush2.msra.mxu0 0.0
    %6928 = vmatprep.subr.mxu0 0.0
    %6929 = vmatpush2.msra.mxu0 0.0
    %6930 = vmatprep.subr.mxu0 0.0
    %6931 = vmatpush2.msra.mxu0 0.0
    %6932 = vmatprep.subr.mxu0 0.0
    %6933 = vmatpush2.msra.mxu0 0.0
    %6934 = vmatprep.subr.mxu0 0.0
    %6935 = vmatpush2.msra.mxu0 0.0
    %6936 = vmatprep.mubr.f32.mxu0 0.0
    %6937 = vmatmul.mubr.f32.gmra.mxu0 %v6870
    %v6938 = vpop.f32.mrf.mxu0
    %v6939 = vadd.f32 %v6867, %v6938
    %v6940 = vpop.f32.mrf.mxu0
    %6941 = vdwg.mxu0
    %v6942 = vtanh.pop %v6939
    %v6944 = vsel %vm99, %v6942, 0
    %6946 = vmatprep.subr.mxu0 0.0
    %6947 = vmatpush1.msra.mxu0 0.0
    %6948 = vmatprep.subr.mxu0 0.0
    %6949 = vmatpush1.msra.mxu0 0.0
    %6950 = vmatprep.subr.mxu0 0.0
    %6951 = vmatpush1.msra.mxu0 0.0
    %6952 = vmatprep.subr.mxu0 0.0
    %6953 = vmatpush1.msra.mxu0 0.0
    %6954 = vmatprep.subr.mxu0 0.0
    %6955 = vmatpush1.msra.mxu0 0.0
    %6956 = vmatprep.subr.mxu0 0.0
    %6957 = vmatpush1.msra.mxu0 0.0
    %6958 = vmatprep.subr.mxu0 0.0
    %6959 = vmatpush1.msra.mxu0 0.0
    %6960 = vmatprep.subr.mxu0 0.0
    %6961 = vmatpush1.msra.mxu0 0.0
    %6962 = vmatprep.subr.mxu0 0.0
    %6963 = vmatpush1.msra.mxu0 0.0
    %6964 = vmatprep.subr.mxu0 0.0
    %6965 = vmatpush1.msra.mxu0 0.0
    %6966 = vmatprep.subr.mxu0 0.0
    %6967 = vmatpush1.msra.mxu0 0.0
    %6968 = vmatprep.subr.mxu0 0.0
    %6969 = vmatpush1.msra.mxu0 0.0
    %6970 = vmatprep.subr.mxu0 0.0
    %6971 = vmatpush1.msra.mxu0 %v95
    %6972 = vmatprep.subr.mxu0 0.0
    %6973 = vmatpush1.msra.mxu0 %v94
    %6974 = vmatprep.subr.mxu0 0.0
    %6975 = vmatpush1.msra.mxu0 %v93
    %6976 = vmatprep.subr.mxu0 0.0
    %6977 = vmatpush1.msra.mxu0 %v92
    %6978 = vmatprep.subr.mxu0 0.0
    %6979 = vmatpush2.msra.mxu0 0.0
    %6980 = vmatprep.subr.mxu0 0.0
    %6981 = vmatpush2.msra.mxu0 0.0
    %6982 = vmatprep.subr.mxu0 0.0
    %6983 = vmatpush2.msra.mxu0 0.0
    %6984 = vmatprep.subr.mxu0 0.0
    %6985 = vmatpush2.msra.mxu0 0.0
    %6986 = vmatprep.subr.mxu0 0.0
    %6987 = vmatpush2.msra.mxu0 0.0
    %6988 = vmatprep.subr.mxu0 0.0
    %6989 = vmatpush2.msra.mxu0 0.0
    %6990 = vmatprep.subr.mxu0 0.0
    %6991 = vmatpush2.msra.mxu0 0.0
    %6992 = vmatprep.subr.mxu0 0.0
    %6993 = vmatpush2.msra.mxu0 0.0
    %6994 = vmatprep.subr.mxu0 0.0
    %6995 = vmatpush2.msra.mxu0 0.0
    %6996 = vmatprep.subr.mxu0 0.0
    %6997 = vmatpush2.msra.mxu0 0.0
    %6998 = vmatprep.subr.mxu0 0.0
    %6999 = vmatpush2.msra.mxu0 0.0
    %7000 = vmatprep.subr.mxu0 0.0
    %7001 = vmatpush2.msra.mxu0 0.0
    %7002 = vmatprep.subr.mxu0 0.0
    %7003 = vmatpush2.msra.mxu0 0.0
    %7004 = vmatprep.subr.mxu0 0.0
    %7005 = vmatpush2.msra.mxu0 0.0
    %7006 = vmatprep.subr.mxu0 0.0
    %7007 = vmatpush2.msra.mxu0 0.0
    %7008 = vmatprep.subr.mxu0 0.0
    %7009 = vmatpush2.msra.mxu0 0.0
    %7010 = vmatprep.mubr.f32.mxu0 0.0
    %7011 = vmatmul.mubr.f32.gmra.mxu0 %v6944
    %v7012 = vpop.f32.mrf.mxu0
    %v7013 = vadd.f32 %v1012, %v7012
    %v7014 = vpop.f32.mrf.mxu0
    %7015 = vdwg.mxu0
    %v7016 = vsel %vm1087, %v7013, -inf
    %7017 = vmax.xlane.f32.xlu0 %v7016
    %v7018 = vpop.xlane.xlu0 %7017
    %v7019 = vsub.f32 %v7013, %v7018
    %v7020 = vmul.f32 %v7019, 1.442695
    %v7021 = vpow.pop %v7020
    %v7022 = vsel %vm1087, %v7021, 0.0
    %7023 = vadd.xlane.f32.xlu0 %v7022
    %v7024 = vpop.xlane.xlu0 %7023
    %v7025 = vlog2.pop %v7024
    %v7026 = vmul.f32 %v7025, 0.6931472
    %v7027 = vadd.f32 %v7018, %v7026
    %v7028 = vsub.f32 %v7013, %v7027
    %v7031 = vunpack.c.l.s4 1966171168
    %v7032 = vunpack.c.0.s8 %v7031
    %v7033 = vlaneseq
    %v7034 = vshrl.u32 %v7033, 7
    %v7035 = vsub.s32 %v7032, %v7034
    %v7036 = vrot.slane %v7028, %v7035
    %v7037 = vcombine.high %v7036, %v7036
    %v7039 = vunpack.c.l.s4 1966171168
    %v7040 = vunpack.c.0.s8 %v7039
    %v7041 = vlaneseq
    %v7042 = vshrl.u32 %v7041, 7
    %v7043 = vsub.s32 %v7040, %v7042
    %v7044 = vrot.slane %v7036, %v7043
    %v7046 = vunpack.c.l.s4 1966171168
    %v7047 = vunpack.c.0.s8 %v7046
    %v7048 = vlaneseq
    %v7049 = vshrl.u32 %v7048, 7
    %v7050 = vsub.s32 %v7047, %v7049
    %v7051 = vrot.slane %v7037, %v7050
    %7054 = vst.msk [vmem:[#allocation2 + $0x6] sm:$0x1] %vm1126, %v7044
    %7055 = vst.msk [vmem:[#allocation2 + $0xe] sm:$0x1] %vm1126, %v7051
    %7056 = vmatprep.subr.mxu0 0.0
    %7057 = vmatpush1.msra.mxu0 0.0
    %7058 = vmatprep.subr.mxu0 0.0
    %7059 = vmatpush1.msra.mxu0 0.0
    %7060 = vmatprep.subr.mxu0 0.0
    %7061 = vmatpush1.msra.mxu0 0.0
    %7062 = vmatprep.subr.mxu0 0.0
    %7063 = vmatpush1.msra.mxu0 0.0
    %7064 = vmatprep.subr.mxu0 0.0
    %7065 = vmatpush1.msra.mxu0 0.0
    %7066 = vmatprep.subr.mxu0 0.0
    %7067 = vmatpush1.msra.mxu0 0.0
    %7068 = vmatprep.subr.mxu0 0.0
    %7069 = vmatpush1.msra.mxu0 0.0
    %7070 = vmatprep.subr.mxu0 0.0
    %7071 = vmatpush1.msra.mxu0 0.0
    %7072 = vmatprep.subr.mxu0 0.0
    %7073 = vmatpush1.msra.mxu0 0.0
    %7074 = vmatprep.subr.mxu0 0.0
    %7075 = vmatpush1.msra.mxu0 0.0
    %7076 = vmatprep.subr.mxu0 0.0
    %7077 = vmatpush1.msra.mxu0 0.0
    %7078 = vmatprep.subr.mxu0 0.0
    %7079 = vmatpush1.msra.mxu0 0.0
    %7080 = vmatprep.subr.mxu0 0.0
    %7081 = vmatpush1.msra.mxu0 %v61
    %7082 = vmatprep.subr.mxu0 0.0
    %7083 = vmatpush1.msra.mxu0 %v60
    %7084 = vmatprep.subr.mxu0 0.0
    %7085 = vmatpush1.msra.mxu0 %v59
    %7086 = vmatprep.subr.mxu0 0.0
    %7087 = vmatpush1.msra.mxu0 %v58
    %7088 = vmatprep.subr.mxu0 0.0
    %7089 = vmatpush2.msra.mxu0 0.0
    %7090 = vmatprep.subr.mxu0 0.0
    %7091 = vmatpush2.msra.mxu0 0.0
    %7092 = vmatprep.subr.mxu0 0.0
    %7093 = vmatpush2.msra.mxu0 0.0
    %7094 = vmatprep.subr.mxu0 0.0
    %7095 = vmatpush2.msra.mxu0 0.0
    %7096 = vmatprep.subr.mxu0 0.0
    %7097 = vmatpush2.msra.mxu0 0.0
    %7098 = vmatprep.subr.mxu0 0.0
    %7099 = vmatpush2.msra.mxu0 0.0
    %7100 = vmatprep.subr.mxu0 0.0
    %7101 = vmatpush2.msra.mxu0 0.0
    %7102 = vmatprep.subr.mxu0 0.0
    %7103 = vmatpush2.msra.mxu0 0.0
    %7104 = vmatprep.subr.mxu0 0.0
    %7105 = vmatpush2.msra.mxu0 0.0
    %7106 = vmatprep.subr.mxu0 0.0
    %7107 = vmatpush2.msra.mxu0 0.0
    %7108 = vmatprep.subr.mxu0 0.0
    %7109 = vmatpush2.msra.mxu0 0.0
    %7110 = vmatprep.subr.mxu0 0.0
    %7111 = vmatpush2.msra.mxu0 0.0
    %7112 = vmatprep.subr.mxu0 0.0
    %7113 = vmatpush2.msra.mxu0 0.0
    %7114 = vmatprep.subr.mxu0 0.0
    %7115 = vmatpush2.msra.mxu0 0.0
    %7116 = vmatprep.subr.mxu0 0.0
    %7117 = vmatpush2.msra.mxu0 0.0
    %7118 = vmatprep.subr.mxu0 0.0
    %7119 = vmatpush2.msra.mxu0 0.0
    %7120 = vmatprep.mubr.f32.mxu0 0.0
    %7121 = vmatmul.mubr.f32.gmra.mxu0 %v6870
    %v7122 = vpop.f32.mrf.mxu0
    %v7123 = vadd.f32 0.0, %v7122
    %v7124 = vpop.f32.mrf.mxu0
    %7125 = vdwg.mxu0
    %v7126 = vrot.slane %v43, 7
    %v7127 = vrot.slane %v44, 6
    %v7128 = vsel %vm176, %v7127, %v7126
    %v7129 = vsel %vm178, %v7128, 0
    %7131 = vmatprep.subr.mxu0 0.0
    %7132 = vmatpush1.msra.mxu0 0.0
    %7133 = vmatprep.subr.mxu0 0.0
    %7134 = vmatpush1.msra.mxu0 0.0
    %7135 = vmatprep.subr.mxu0 0.0
    %7136 = vmatpush1.msra.mxu0 0.0
    %7137 = vmatprep.subr.mxu0 0.0
    %7138 = vmatpush1.msra.mxu0 0.0
    %7139 = vmatprep.subr.mxu0 0.0
    %7140 = vmatpush1.msra.mxu0 0.0
    %7141 = vmatprep.subr.mxu0 0.0
    %7142 = vmatpush1.msra.mxu0 0.0
    %7143 = vmatprep.subr.mxu0 0.0
    %7144 = vmatpush1.msra.mxu0 0.0
    %7145 = vmatprep.subr.mxu0 0.0
    %7146 = vmatpush1.msra.mxu0 0.0
    %7147 = vmatprep.subr.mxu0 0.0
    %7148 = vmatpush1.msra.mxu0 0.0
    %7149 = vmatprep.subr.mxu0 0.0
    %7150 = vmatpush1.msra.mxu0 0.0
    %7151 = vmatprep.subr.mxu0 0.0
    %7152 = vmatpush1.msra.mxu0 0.0
    %7153 = vmatprep.subr.mxu0 0.0
    %7154 = vmatpush1.msra.mxu0 0.0
    %7155 = vmatprep.subr.mxu0 0.0
    %7156 = vmatpush1.msra.mxu0 0.0
    %7157 = vmatprep.subr.mxu0 0.0
    %7158 = vmatpush1.msra.mxu0 0.0
    %7159 = vmatprep.subr.mxu0 0.0
    %7160 = vmatpush1.msra.mxu0 %v48
    %7161 = vmatprep.subr.mxu0 0.0
    %7162 = vmatpush1.msra.mxu0 %v47
    %7163 = vmatprep.subr.mxu0 0.0
    %7164 = vmatpush2.msra.mxu0 0.0
    %7165 = vmatprep.subr.mxu0 0.0
    %7166 = vmatpush2.msra.mxu0 0.0
    %7167 = vmatprep.subr.mxu0 0.0
    %7168 = vmatpush2.msra.mxu0 0.0
    %7169 = vmatprep.subr.mxu0 0.0
    %7170 = vmatpush2.msra.mxu0 0.0
    %7171 = vmatprep.subr.mxu0 0.0
    %7172 = vmatpush2.msra.mxu0 0.0
    %7173 = vmatprep.subr.mxu0 0.0
    %7174 = vmatpush2.msra.mxu0 0.0
    %7175 = vmatprep.subr.mxu0 0.0
    %7176 = vmatpush2.msra.mxu0 0.0
    %7177 = vmatprep.subr.mxu0 0.0
    %7178 = vmatpush2.msra.mxu0 0.0
    %7179 = vmatprep.subr.mxu0 0.0
    %7180 = vmatpush2.msra.mxu0 0.0
    %7181 = vmatprep.subr.mxu0 0.0
    %7182 = vmatpush2.msra.mxu0 0.0
    %7183 = vmatprep.subr.mxu0 0.0
    %7184 = vmatpush2.msra.mxu0 0.0
    %7185 = vmatprep.subr.mxu0 0.0
    %7186 = vmatpush2.msra.mxu0 0.0
    %7187 = vmatprep.subr.mxu0 0.0
    %7188 = vmatpush2.msra.mxu0 0.0
    %7189 = vmatprep.subr.mxu0 0.0
    %7190 = vmatpush2.msra.mxu0 0.0
    %7191 = vmatprep.subr.mxu0 0.0
    %7192 = vmatpush2.msra.mxu0 0.0
    %7193 = vmatprep.subr.mxu0 0.0
    %7194 = vmatpush2.msra.mxu0 0.0
    %7195 = vmatprep.mubr.f32.mxu0 0.0
    %7196 = vmatmul.mubr.f32.gmra.mxu0 %v7129
    %v7197 = vpop.f32.mrf.mxu0
    %v7198 = vadd.f32 %v7123, %v7197
    %v7199 = vpop.f32.mrf.mxu0
    %7200 = vdwg.mxu0
    %v7201 = vadd.f32 %v7198, %v255
    %7202 = vmatprep.subr.mxu0 0.0
    %7203 = vmatpush1.msra.mxu0 0.0
    %7204 = vmatprep.subr.mxu0 0.0
    %7205 = vmatpush1.msra.mxu0 0.0
    %7206 = vmatprep.subr.mxu0 0.0
    %7207 = vmatpush1.msra.mxu0 0.0
    %7208 = vmatprep.subr.mxu0 0.0
    %7209 = vmatpush1.msra.mxu0 0.0
    %7210 = vmatprep.subr.mxu0 0.0
    %7211 = vmatpush1.msra.mxu0 0.0
    %7212 = vmatprep.subr.mxu0 0.0
    %7213 = vmatpush1.msra.mxu0 0.0
    %7214 = vmatprep.subr.mxu0 0.0
    %7215 = vmatpush1.msra.mxu0 0.0
    %7216 = vmatprep.subr.mxu0 0.0
    %7217 = vmatpush1.msra.mxu0 0.0
    %7218 = vmatprep.subr.mxu0 0.0
    %7219 = vmatpush1.msra.mxu0 0.0
    %7220 = vmatprep.subr.mxu0 0.0
    %7221 = vmatpush1.msra.mxu0 0.0
    %7222 = vmatprep.subr.mxu0 0.0
    %7223 = vmatpush1.msra.mxu0 0.0
    %7224 = vmatprep.subr.mxu0 0.0
    %7225 = vmatpush1.msra.mxu0 0.0
    %7226 = vmatprep.subr.mxu0 0.0
    %7227 = vmatpush1.msra.mxu0 %v66
    %7228 = vmatprep.subr.mxu0 0.0
    %7229 = vmatpush1.msra.mxu0 %v65
    %7230 = vmatprep.subr.mxu0 0.0
    %7231 = vmatpush1.msra.mxu0 %v64
    %7232 = vmatprep.subr.mxu0 0.0
    %7233 = vmatpush1.msra.mxu0 %v63
    %7234 = vmatprep.subr.mxu0 0.0
    %7235 = vmatpush2.msra.mxu0 0.0
    %7236 = vmatprep.subr.mxu0 0.0
    %7237 = vmatpush2.msra.mxu0 0.0
    %7238 = vmatprep.subr.mxu0 0.0
    %7239 = vmatpush2.msra.mxu0 0.0
    %7240 = vmatprep.subr.mxu0 0.0
    %7241 = vmatpush2.msra.mxu0 0.0
    %7242 = vmatprep.subr.mxu0 0.0
    %7243 = vmatpush2.msra.mxu0 0.0
    %7244 = vmatprep.subr.mxu0 0.0
    %7245 = vmatpush2.msra.mxu0 0.0
    %7246 = vmatprep.subr.mxu0 0.0
    %7247 = vmatpush2.msra.mxu0 0.0
    %7248 = vmatprep.subr.mxu0 0.0
    %7249 = vmatpush2.msra.mxu0 0.0
    %7250 = vmatprep.subr.mxu0 0.0
    %7251 = vmatpush2.msra.mxu0 0.0
    %7252 = vmatprep.subr.mxu0 0.0
    %7253 = vmatpush2.msra.mxu0 0.0
    %7254 = vmatprep.subr.mxu0 0.0
    %7255 = vmatpush2.msra.mxu0 0.0
    %7256 = vmatprep.subr.mxu0 0.0
    %7257 = vmatpush2.msra.mxu0 0.0
    %7258 = vmatprep.subr.mxu0 0.0
    %7259 = vmatpush2.msra.mxu0 0.0
    %7260 = vmatprep.subr.mxu0 0.0
    %7261 = vmatpush2.msra.mxu0 0.0
    %7262 = vmatprep.subr.mxu0 0.0
    %7263 = vmatpush2.msra.mxu0 0.0
    %7264 = vmatprep.subr.mxu0 0.0
    %7265 = vmatpush2.msra.mxu0 0.0
    %7266 = vmatprep.mubr.f32.mxu0 0.0
    %7267 = vmatmul.mubr.f32.gmra.mxu0 %v6870
    %v7268 = vpop.f32.mrf.mxu0
    %v7269 = vadd.f32 0.0, %v7268
    %v7270 = vpop.f32.mrf.mxu0
    %7271 = vdwg.mxu0
    %7272 = vmatprep.subr.mxu0 0.0
    %7273 = vmatpush1.msra.mxu0 0.0
    %7274 = vmatprep.subr.mxu0 0.0
    %7275 = vmatpush1.msra.mxu0 0.0
    %7276 = vmatprep.subr.mxu0 0.0
    %7277 = vmatpush1.msra.mxu0 0.0
    %7278 = vmatprep.subr.mxu0 0.0
    %7279 = vmatpush1.msra.mxu0 0.0
    %7280 = vmatprep.subr.mxu0 0.0
    %7281 = vmatpush1.msra.mxu0 0.0
    %7282 = vmatprep.subr.mxu0 0.0
    %7283 = vmatpush1.msra.mxu0 0.0
    %7284 = vmatprep.subr.mxu0 0.0
    %7285 = vmatpush1.msra.mxu0 0.0
    %7286 = vmatprep.subr.mxu0 0.0
    %7287 = vmatpush1.msra.mxu0 0.0
    %7288 = vmatprep.subr.mxu0 0.0
    %7289 = vmatpush1.msra.mxu0 0.0
    %7290 = vmatprep.subr.mxu0 0.0
    %7291 = vmatpush1.msra.mxu0 0.0
    %7292 = vmatprep.subr.mxu0 0.0
    %7293 = vmatpush1.msra.mxu0 0.0
    %7294 = vmatprep.subr.mxu0 0.0
    %7295 = vmatpush1.msra.mxu0 0.0
    %7296 = vmatprep.subr.mxu0 0.0
    %7297 = vmatpush1.msra.mxu0 0.0
    %7298 = vmatprep.subr.mxu0 0.0
    %7299 = vmatpush1.msra.mxu0 0.0
    %7300 = vmatprep.subr.mxu0 0.0
    %7301 = vmatpush1.msra.mxu0 %v51
    %7302 = vmatprep.subr.mxu0 0.0
    %7303 = vmatpush1.msra.mxu0 %v50
    %7304 = vmatprep.subr.mxu0 0.0
    %7305 = vmatpush2.msra.mxu0 0.0
    %7306 = vmatprep.subr.mxu0 0.0
    %7307 = vmatpush2.msra.mxu0 0.0
    %7308 = vmatprep.subr.mxu0 0.0
    %7309 = vmatpush2.msra.mxu0 0.0
    %7310 = vmatprep.subr.mxu0 0.0
    %7311 = vmatpush2.msra.mxu0 0.0
    %7312 = vmatprep.subr.mxu0 0.0
    %7313 = vmatpush2.msra.mxu0 0.0
    %7314 = vmatprep.subr.mxu0 0.0
    %7315 = vmatpush2.msra.mxu0 0.0
    %7316 = vmatprep.subr.mxu0 0.0
    %7317 = vmatpush2.msra.mxu0 0.0
    %7318 = vmatprep.subr.mxu0 0.0
    %7319 = vmatpush2.msra.mxu0 0.0
    %7320 = vmatprep.subr.mxu0 0.0
    %7321 = vmatpush2.msra.mxu0 0.0
    %7322 = vmatprep.subr.mxu0 0.0
    %7323 = vmatpush2.msra.mxu0 0.0
    %7324 = vmatprep.subr.mxu0 0.0
    %7325 = vmatpush2.msra.mxu0 0.0
    %7326 = vmatprep.subr.mxu0 0.0
    %7327 = vmatpush2.msra.mxu0 0.0
    %7328 = vmatprep.subr.mxu0 0.0
    %7329 = vmatpush2.msra.mxu0 0.0
    %7330 = vmatprep.subr.mxu0 0.0
    %7331 = vmatpush2.msra.mxu0 0.0
    %7332 = vmatprep.subr.mxu0 0.0
    %7333 = vmatpush2.msra.mxu0 0.0
    %7334 = vmatprep.subr.mxu0 0.0
    %7335 = vmatpush2.msra.mxu0 0.0
    %7336 = vmatprep.mubr.f32.mxu0 0.0
    %7337 = vmatmul.mubr.f32.gmra.mxu0 %v7129
    %v7338 = vpop.f32.mrf.mxu0
    %v7339 = vadd.f32 %v7269, %v7338
    %v7340 = vpop.f32.mrf.mxu0
    %7341 = vdwg.mxu0
    %v7342 = vadd.f32 %v7339, %v402
    %7343 = vmatprep.subr.mxu0 0.0
    %7344 = vmatpush1.msra.mxu0 0.0
    %7345 = vmatprep.subr.mxu0 0.0
    %7346 = vmatpush1.msra.mxu0 0.0
    %7347 = vmatprep.subr.mxu0 0.0
    %7348 = vmatpush1.msra.mxu0 0.0
    %7349 = vmatprep.subr.mxu0 0.0
    %7350 = vmatpush1.msra.mxu0 0.0
    %7351 = vmatprep.subr.mxu0 0.0
    %7352 = vmatpush1.msra.mxu0 0.0
    %7353 = vmatprep.subr.mxu0 0.0
    %7354 = vmatpush1.msra.mxu0 0.0
    %7355 = vmatprep.subr.mxu0 0.0
    %7356 = vmatpush1.msra.mxu0 0.0
    %7357 = vmatprep.subr.mxu0 0.0
    %7358 = vmatpush1.msra.mxu0 0.0
    %7359 = vmatprep.subr.mxu0 0.0
    %7360 = vmatpush1.msra.mxu0 0.0
    %7361 = vmatprep.subr.mxu0 0.0
    %7362 = vmatpush1.msra.mxu0 0.0
    %7363 = vmatprep.subr.mxu0 0.0
    %7364 = vmatpush1.msra.mxu0 0.0
    %7365 = vmatprep.subr.mxu0 0.0
    %7366 = vmatpush1.msra.mxu0 0.0
    %7367 = vmatprep.subr.mxu0 0.0
    %7368 = vmatpush1.msra.mxu0 %v71
    %7369 = vmatprep.subr.mxu0 0.0
    %7370 = vmatpush1.msra.mxu0 %v70
    %7371 = vmatprep.subr.mxu0 0.0
    %7372 = vmatpush1.msra.mxu0 %v69
    %7373 = vmatprep.subr.mxu0 0.0
    %7374 = vmatpush1.msra.mxu0 %v68
    %7375 = vmatprep.subr.mxu0 0.0
    %7376 = vmatpush2.msra.mxu0 0.0
    %7377 = vmatprep.subr.mxu0 0.0
    %7378 = vmatpush2.msra.mxu0 0.0
    %7379 = vmatprep.subr.mxu0 0.0
    %7380 = vmatpush2.msra.mxu0 0.0
    %7381 = vmatprep.subr.mxu0 0.0
    %7382 = vmatpush2.msra.mxu0 0.0
    %7383 = vmatprep.subr.mxu0 0.0
    %7384 = vmatpush2.msra.mxu0 0.0
    %7385 = vmatprep.subr.mxu0 0.0
    %7386 = vmatpush2.msra.mxu0 0.0
    %7387 = vmatprep.subr.mxu0 0.0
    %7388 = vmatpush2.msra.mxu0 0.0
    %7389 = vmatprep.subr.mxu0 0.0
    %7390 = vmatpush2.msra.mxu0 0.0
    %7391 = vmatprep.subr.mxu0 0.0
    %7392 = vmatpush2.msra.mxu0 0.0
    %7393 = vmatprep.subr.mxu0 0.0
    %7394 = vmatpush2.msra.mxu0 0.0
    %7395 = vmatprep.subr.mxu0 0.0
    %7396 = vmatpush2.msra.mxu0 0.0
    %7397 = vmatprep.subr.mxu0 0.0
    %7398 = vmatpush2.msra.mxu0 0.0
    %7399 = vmatprep.subr.mxu0 0.0
    %7400 = vmatpush2.msra.mxu0 0.0
    %7401 = vmatprep.subr.mxu0 0.0
    %7402 = vmatpush2.msra.mxu0 0.0
    %7403 = vmatprep.subr.mxu0 0.0
    %7404 = vmatpush2.msra.mxu0 0.0
    %7405 = vmatprep.subr.mxu0 0.0
    %7406 = vmatpush2.msra.mxu0 0.0
    %7407 = vmatprep.mubr.f32.mxu0 0.0
    %7408 = vmatmul.mubr.f32.gmra.mxu0 %v6870
    %v7409 = vpop.f32.mrf.mxu0
    %v7410 = vadd.f32 0.0, %v7409
    %v7411 = vpop.f32.mrf.mxu0
    %7412 = vdwg.mxu0
    %7413 = vmatprep.subr.mxu0 0.0
    %7414 = vmatpush1.msra.mxu0 0.0
    %7415 = vmatprep.subr.mxu0 0.0
    %7416 = vmatpush1.msra.mxu0 0.0
    %7417 = vmatprep.subr.mxu0 0.0
    %7418 = vmatpush1.msra.mxu0 0.0
    %7419 = vmatprep.subr.mxu0 0.0
    %7420 = vmatpush1.msra.mxu0 0.0
    %7421 = vmatprep.subr.mxu0 0.0
    %7422 = vmatpush1.msra.mxu0 0.0
    %7423 = vmatprep.subr.mxu0 0.0
    %7424 = vmatpush1.msra.mxu0 0.0
    %7425 = vmatprep.subr.mxu0 0.0
    %7426 = vmatpush1.msra.mxu0 0.0
    %7427 = vmatprep.subr.mxu0 0.0
    %7428 = vmatpush1.msra.mxu0 0.0
    %7429 = vmatprep.subr.mxu0 0.0
    %7430 = vmatpush1.msra.mxu0 0.0
    %7431 = vmatprep.subr.mxu0 0.0
    %7432 = vmatpush1.msra.mxu0 0.0
    %7433 = vmatprep.subr.mxu0 0.0
    %7434 = vmatpush1.msra.mxu0 0.0
    %7435 = vmatprep.subr.mxu0 0.0
    %7436 = vmatpush1.msra.mxu0 0.0
    %7437 = vmatprep.subr.mxu0 0.0
    %7438 = vmatpush1.msra.mxu0 0.0
    %7439 = vmatprep.subr.mxu0 0.0
    %7440 = vmatpush1.msra.mxu0 0.0
    %7441 = vmatprep.subr.mxu0 0.0
    %7442 = vmatpush1.msra.mxu0 %v54
    %7443 = vmatprep.subr.mxu0 0.0
    %7444 = vmatpush1.msra.mxu0 %v53
    %7445 = vmatprep.subr.mxu0 0.0
    %7446 = vmatpush2.msra.mxu0 0.0
    %7447 = vmatprep.subr.mxu0 0.0
    %7448 = vmatpush2.msra.mxu0 0.0
    %7449 = vmatprep.subr.mxu0 0.0
    %7450 = vmatpush2.msra.mxu0 0.0
    %7451 = vmatprep.subr.mxu0 0.0
    %7452 = vmatpush2.msra.mxu0 0.0
    %7453 = vmatprep.subr.mxu0 0.0
    %7454 = vmatpush2.msra.mxu0 0.0
    %7455 = vmatprep.subr.mxu0 0.0
    %7456 = vmatpush2.msra.mxu0 0.0
    %7457 = vmatprep.subr.mxu0 0.0
    %7458 = vmatpush2.msra.mxu0 0.0
    %7459 = vmatprep.subr.mxu0 0.0
    %7460 = vmatpush2.msra.mxu0 0.0
    %7461 = vmatprep.subr.mxu0 0.0
    %7462 = vmatpush2.msra.mxu0 0.0
    %7463 = vmatprep.subr.mxu0 0.0
    %7464 = vmatpush2.msra.mxu0 0.0
    %7465 = vmatprep.subr.mxu0 0.0
    %7466 = vmatpush2.msra.mxu0 0.0
    %7467 = vmatprep.subr.mxu0 0.0
    %7468 = vmatpush2.msra.mxu0 0.0
    %7469 = vmatprep.subr.mxu0 0.0
    %7470 = vmatpush2.msra.mxu0 0.0
    %7471 = vmatprep.subr.mxu0 0.0
    %7472 = vmatpush2.msra.mxu0 0.0
    %7473 = vmatprep.subr.mxu0 0.0
    %7474 = vmatpush2.msra.mxu0 0.0
    %7475 = vmatprep.subr.mxu0 0.0
    %7476 = vmatpush2.msra.mxu0 0.0
    %7477 = vmatprep.mubr.f32.mxu0 0.0
    %7478 = vmatmul.mubr.f32.gmra.mxu0 %v7129
    %v7479 = vpop.f32.mrf.mxu0
    %v7480 = vadd.f32 %v7410, %v7479
    %v7481 = vpop.f32.mrf.mxu0
    %7482 = vdwg.mxu0
    %v7483 = vadd.f32 %v7480, %v549
    %7484 = vmatprep.subr.mxu0 0.0
    %7485 = vmatpush1.msra.mxu0 0.0
    %7486 = vmatprep.subr.mxu0 0.0
    %7487 = vmatpush1.msra.mxu0 0.0
    %7488 = vmatprep.subr.mxu0 0.0
    %7489 = vmatpush1.msra.mxu0 0.0
    %7490 = vmatprep.subr.mxu0 0.0
    %7491 = vmatpush1.msra.mxu0 0.0
    %7492 = vmatprep.subr.mxu0 0.0
    %7493 = vmatpush1.msra.mxu0 0.0
    %7494 = vmatprep.subr.mxu0 0.0
    %7495 = vmatpush1.msra.mxu0 0.0
    %7496 = vmatprep.subr.mxu0 0.0
    %7497 = vmatpush1.msra.mxu0 0.0
    %7498 = vmatprep.subr.mxu0 0.0
    %7499 = vmatpush1.msra.mxu0 0.0
    %7500 = vmatprep.subr.mxu0 0.0
    %7501 = vmatpush1.msra.mxu0 0.0
    %7502 = vmatprep.subr.mxu0 0.0
    %7503 = vmatpush1.msra.mxu0 0.0
    %7504 = vmatprep.subr.mxu0 0.0
    %7505 = vmatpush1.msra.mxu0 0.0
    %7506 = vmatprep.subr.mxu0 0.0
    %7507 = vmatpush1.msra.mxu0 0.0
    %7508 = vmatprep.subr.mxu0 0.0
    %7509 = vmatpush1.msra.mxu0 %v76
    %7510 = vmatprep.subr.mxu0 0.0
    %7511 = vmatpush1.msra.mxu0 %v75
    %7512 = vmatprep.subr.mxu0 0.0
    %7513 = vmatpush1.msra.mxu0 %v74
    %7514 = vmatprep.subr.mxu0 0.0
    %7515 = vmatpush1.msra.mxu0 %v73
    %7516 = vmatprep.subr.mxu0 0.0
    %7517 = vmatpush2.msra.mxu0 0.0
    %7518 = vmatprep.subr.mxu0 0.0
    %7519 = vmatpush2.msra.mxu0 0.0
    %7520 = vmatprep.subr.mxu0 0.0
    %7521 = vmatpush2.msra.mxu0 0.0
    %7522 = vmatprep.subr.mxu0 0.0
    %7523 = vmatpush2.msra.mxu0 0.0
    %7524 = vmatprep.subr.mxu0 0.0
    %7525 = vmatpush2.msra.mxu0 0.0
    %7526 = vmatprep.subr.mxu0 0.0
    %7527 = vmatpush2.msra.mxu0 0.0
    %7528 = vmatprep.subr.mxu0 0.0
    %7529 = vmatpush2.msra.mxu0 0.0
    %7530 = vmatprep.subr.mxu0 0.0
    %7531 = vmatpush2.msra.mxu0 0.0
    %7532 = vmatprep.subr.mxu0 0.0
    %7533 = vmatpush2.msra.mxu0 0.0
    %7534 = vmatprep.subr.mxu0 0.0
    %7535 = vmatpush2.msra.mxu0 0.0
    %7536 = vmatprep.subr.mxu0 0.0
    %7537 = vmatpush2.msra.mxu0 0.0
    %7538 = vmatprep.subr.mxu0 0.0
    %7539 = vmatpush2.msra.mxu0 0.0
    %7540 = vmatprep.subr.mxu0 0.0
    %7541 = vmatpush2.msra.mxu0 0.0
    %7542 = vmatprep.subr.mxu0 0.0
    %7543 = vmatpush2.msra.mxu0 0.0
    %7544 = vmatprep.subr.mxu0 0.0
    %7545 = vmatpush2.msra.mxu0 0.0
    %7546 = vmatprep.subr.mxu0 0.0
    %7547 = vmatpush2.msra.mxu0 0.0
    %7548 = vmatprep.mubr.f32.mxu0 0.0
    %7549 = vmatmul.mubr.f32.gmra.mxu0 %v6870
    %v7550 = vpop.f32.mrf.mxu0
    %v7551 = vadd.f32 0.0, %v7550
    %v7552 = vpop.f32.mrf.mxu0
    %7553 = vdwg.mxu0
    %7554 = vmatprep.subr.mxu0 0.0
    %7555 = vmatpush1.msra.mxu0 0.0
    %7556 = vmatprep.subr.mxu0 0.0
    %7557 = vmatpush1.msra.mxu0 0.0
    %7558 = vmatprep.subr.mxu0 0.0
    %7559 = vmatpush1.msra.mxu0 0.0
    %7560 = vmatprep.subr.mxu0 0.0
    %7561 = vmatpush1.msra.mxu0 0.0
    %7562 = vmatprep.subr.mxu0 0.0
    %7563 = vmatpush1.msra.mxu0 0.0
    %7564 = vmatprep.subr.mxu0 0.0
    %7565 = vmatpush1.msra.mxu0 0.0
    %7566 = vmatprep.subr.mxu0 0.0
    %7567 = vmatpush1.msra.mxu0 0.0
    %7568 = vmatprep.subr.mxu0 0.0
    %7569 = vmatpush1.msra.mxu0 0.0
    %7570 = vmatprep.subr.mxu0 0.0
    %7571 = vmatpush1.msra.mxu0 0.0
    %7572 = vmatprep.subr.mxu0 0.0
    %7573 = vmatpush1.msra.mxu0 0.0
    %7574 = vmatprep.subr.mxu0 0.0
    %7575 = vmatpush1.msra.mxu0 0.0
    %7576 = vmatprep.subr.mxu0 0.0
    %7577 = vmatpush1.msra.mxu0 0.0
    %7578 = vmatprep.subr.mxu0 0.0
    %7579 = vmatpush1.msra.mxu0 0.0
    %7580 = vmatprep.subr.mxu0 0.0
    %7581 = vmatpush1.msra.mxu0 0.0
    %7582 = vmatprep.subr.mxu0 0.0
    %7583 = vmatpush1.msra.mxu0 %v57
    %7584 = vmatprep.subr.mxu0 0.0
    %7585 = vmatpush1.msra.mxu0 %v56
    %7586 = vmatprep.subr.mxu0 0.0
    %7587 = vmatpush2.msra.mxu0 0.0
    %7588 = vmatprep.subr.mxu0 0.0
    %7589 = vmatpush2.msra.mxu0 0.0
    %7590 = vmatprep.subr.mxu0 0.0
    %7591 = vmatpush2.msra.mxu0 0.0
    %7592 = vmatprep.subr.mxu0 0.0
    %7593 = vmatpush2.msra.mxu0 0.0
    %7594 = vmatprep.subr.mxu0 0.0
    %7595 = vmatpush2.msra.mxu0 0.0
    %7596 = vmatprep.subr.mxu0 0.0
    %7597 = vmatpush2.msra.mxu0 0.0
    %7598 = vmatprep.subr.mxu0 0.0
    %7599 = vmatpush2.msra.mxu0 0.0
    %7600 = vmatprep.subr.mxu0 0.0
    %7601 = vmatpush2.msra.mxu0 0.0
    %7602 = vmatprep.subr.mxu0 0.0
    %7603 = vmatpush2.msra.mxu0 0.0
    %7604 = vmatprep.subr.mxu0 0.0
    %7605 = vmatpush2.msra.mxu0 0.0
    %7606 = vmatprep.subr.mxu0 0.0
    %7607 = vmatpush2.msra.mxu0 0.0
    %7608 = vmatprep.subr.mxu0 0.0
    %7609 = vmatpush2.msra.mxu0 0.0
    %7610 = vmatprep.subr.mxu0 0.0
    %7611 = vmatpush2.msra.mxu0 0.0
    %7612 = vmatprep.subr.mxu0 0.0
    %7613 = vmatpush2.msra.mxu0 0.0
    %7614 = vmatprep.subr.mxu0 0.0
    %7615 = vmatpush2.msra.mxu0 0.0
    %7616 = vmatprep.subr.mxu0 0.0
    %7617 = vmatpush2.msra.mxu0 0.0
    %7618 = vmatprep.mubr.f32.mxu0 0.0
    %7619 = vmatmul.mubr.f32.gmra.mxu0 %v7129
    %v7620 = vpop.f32.mrf.mxu0
    %v7621 = vadd.f32 %v7551, %v7620
    %v7622 = vpop.f32.mrf.mxu0
    %7623 = vdwg.mxu0
    %v7624 = vadd.f32 %v7621, %v696
    %v7625 = vxor.u32 %v7201, 2147483648
    %v7626 = vmul.f32 %v7625, 1.442695
    %v7627 = vpow.pop %v7626
    %v7628 = vadd.f32 %v7627, 1.0
    %v7629 = vrcp.pop %v7628
    %v7630 = vmul.f32 1.0, %v7629
    %v7631 = vxor.u32 %v7342, 2147483648
    %v7632 = vmul.f32 %v7631, 1.442695
    %v7633 = vpow.pop %v7632
    %v7634 = vadd.f32 %v7633, 1.0
    %v7635 = vrcp.pop %v7634
    %v7636 = vmul.f32 1.0, %v7635
    %v7637 = vtanh.pop %v7483
    %v7638 = vxor.u32 %v7624, 2147483648
    %v7639 = vmul.f32 %v7638, 1.442695
    %v7640 = vpow.pop %v7639
    %v7641 = vadd.f32 %v7640, 1.0
    %v7642 = vrcp.pop %v7641
    %v7643 = vmul.f32 1.0, %v7642
    %v7644 = vmul.f32 %v7636, %v6658
    %v7645 = vmul.f32 %v7630, %v7637
    %v7646 = vadd.f32 %v7644, %v7645
    %v7647 = vtanh.pop %v7646
    %v7648 = vmul.f32 %v7643, %v7647
    %v7651 = vunpack.c.l.s4 1966171168
    %v7652 = vunpack.c.0.s8 %v7651
    %v7653 = vlaneseq
    %v7654 = vshrl.u32 %v7653, 7
    %v7655 = vsub.s32 %v7652, %v7654
    %v7656 = vrot.slane %v7648, %v7655
    %v7657 = vcombine.high %v7656, %v7656
    %v7659 = vunpack.c.l.s4 1966171168
    %v7660 = vunpack.c.0.s8 %v7659
    %v7661 = vlaneseq
    %v7662 = vshrl.u32 %v7661, 7
    %v7663 = vsub.s32 %v7660, %v7662
    %v7664 = vrot.slane %v7656, %v7663
    %v7666 = vunpack.c.l.s4 1966171168
    %v7667 = vunpack.c.0.s8 %v7666
    %v7668 = vlaneseq
    %v7669 = vshrl.u32 %v7668, 7
    %v7670 = vsub.s32 %v7667, %v7669
    %v7671 = vrot.slane %v7657, %v7670
    %v7672 = vlaneseq
    %v7673 = vshrl.u32 %v7672, 7
    %v7674 = vsub.s32 0, %v7673
    %v7675 = vrot.slane %v7664, %v7674
    %v7676 = vlaneseq
    %v7677 = vshrl.u32 %v7676, 7
    %v7678 = vsub.s32 0, %v7677
    %v7679 = vrot.slane %v7671, %v7678
    %v7682 = vmul.f32 %v45, %v7675
    %v7683 = vmul.f32 %v46, %v7679
    %v7684 = vsel %vm99, %v7682, 0.0
    %7685 = vadd.xlane.f32.xlu0 %v7684
    %v7686 = vpop.xlane.xlu0 %7685
    %v7687 = vsel %vm99, %v7683, 0.0
    %7688 = vadd.xlane.f32.xlu0 %v7687
    %v7689 = vpop.xlane.xlu0 %7688
    %v7692 = vlaneseq
    %v7693 = vshrl.u32 %v7692, 7
    %v7694 = vsub.s32 %v767, %v7693
    %v7695 = vrot.slane %v7686, %v7694
    %v7696 = vlaneseq
    %v7697 = vshrl.u32 %v7696, 7
    %v7698 = vsub.s32 %v767, %v7697
    %v7699 = vrot.slane %v7689, %v7698
    %v7700 = vsel %vm176, %v7699, %v7695
    %v7702 = vsel %vm778, %v7700, -inf
    %7703 = vmax.xlane.f32.xlu0 %v7702
    %v7704 = vpop.xlane.xlu0 %7703
    %v7706 = vlaneseq
    %v7707 = vshrl.u32 %v7706, 7
    %v7708 = vsub.s32 0, %v7707
    %v7709 = vrot.slane %v7704, %v7708
    %v7710 = vlaneseq
    %v7711 = vshrl.u32 %v7710, 7
    %v7712 = vsub.s32 1, %v7711
    %v7713 = vrot.slane %v7704, %v7712
    %v7716 = vsub.f32 %v7686, %v7709
    %v7717 = vsub.f32 %v7689, %v7713
    %v7718 = vmul.f32 %v7716, 1.442695
    %v7719 = vpow.pop %v7718
    %v7720 = vmul.f32 %v7717, 1.442695
    %v7721 = vpow.pop %v7720
    %7724 = vset.pattern.permute.xlu0 0
    %7725 = vperm.xlu0 %7724, %v7719
    %v7726 = vpop.permute.xlu0 %7725
    %7727 = vset.pattern.permute.xlu0 0
    %7728 = vperm.xlu0 %7727, %v7721
    %v7729 = vpop.permute.xlu0 %7728
    %v7730 = vlaneseq
    %v7731 = vshrl.u32 %v7730, 7
    %v7732 = vsub.s32 %v767, %v7731
    %v7733 = vrot.slane %v7726, %v7732
    %v7734 = vlaneseq
    %v7735 = vshrl.u32 %v7734, 7
    %v7736 = vsub.s32 %v767, %v7735
    %v7737 = vrot.slane %v7729, %v7736
    %v7738 = vsel %vm176, %v7737, %v7733
    %v7740 = vsel %vm778, %v7738, 0.0
    %7741 = vadd.xlane.f32.xlu0 %v7740
    %v7742 = vpop.xlane.xlu0 %7741
    %v7743 = vrcp.pop %v7742
    %v7745 = vlaneseq
    %v7746 = vshrl.u32 %v7745, 7
    %v7747 = vsub.s32 0, %v7746
    %v7748 = vrot.slane %v7743, %v7747
    %v7749 = vlaneseq
    %v7750 = vshrl.u32 %v7749, 7
    %v7751 = vsub.s32 1, %v7750
    %v7752 = vrot.slane %v7743, %v7751
    %v7755 = vmul.f32 %v7719, %v7748
    %v7756 = vmul.f32 %v7721, %v7752
    %7758 = vset.pattern.permute.xlu0 0
    %7759 = vperm.xlu0 %7758, %v7755
    %v7760 = vpop.permute.xlu0 %7759
    %7763 = vset.pattern.permute.xlu0 0
    %7764 = vperm.xlu0 %7763, %v7756
    %v7765 = vpop.permute.xlu0 %7764
    %v7767 = vmul.f32 %v7760, %v45
    %v7768 = vmul.f32 %v7765, %v46
    %v7769 = vsel %vm99, %v7767, 0.0
    %v7770 = vrot.slane %v7769, 4
    %v7771 = vadd.f32 %v7769, %v7770
    %v7772 = vrot.slane %v7771, 2
    %v7773 = vadd.f32 %v7771, %v7772
    %v7774 = vrot.slane %v7773, 1
    %v7775 = vadd.f32 %v7773, %v7774
    %v7776 = vsel %vm99, %v7768, 0.0
    %v7777 = vrot.slane %v7776, 4
    %v7778 = vadd.f32 %v7776, %v7777
    %v7779 = vrot.slane %v7778, 2
    %v7780 = vadd.f32 %v7778, %v7779
    %v7781 = vrot.slane %v7780, 1
    %v7782 = vadd.f32 %v7780, %v7781
    %v7785 = vsel %vm176, %v7782, %v7775
    %v7786 = vsel %vm99, %v7785, 0
    %7788 = vmatprep.subr.mxu0 0.0
    %7789 = vmatpush1.msra.mxu0 0.0
    %7790 = vmatprep.subr.mxu0 0.0
    %7791 = vmatpush1.msra.mxu0 0.0
    %7792 = vmatprep.subr.mxu0 0.0
    %7793 = vmatpush1.msra.mxu0 0.0
    %7794 = vmatprep.subr.mxu0 0.0
    %7795 = vmatpush1.msra.mxu0 0.0
    %7796 = vmatprep.subr.mxu0 0.0
    %7797 = vmatpush1.msra.mxu0 0.0
    %7798 = vmatprep.subr.mxu0 0.0
    %7799 = vmatpush1.msra.mxu0 0.0
    %7800 = vmatprep.subr.mxu0 0.0
    %7801 = vmatpush1.msra.mxu0 0.0
    %7802 = vmatprep.subr.mxu0 0.0
    %7803 = vmatpush1.msra.mxu0 0.0
    %7804 = vmatprep.subr.mxu0 0.0
    %7805 = vmatpush1.msra.mxu0 0.0
    %7806 = vmatprep.subr.mxu0 0.0
    %7807 = vmatpush1.msra.mxu0 0.0
    %7808 = vmatprep.subr.mxu0 0.0
    %7809 = vmatpush1.msra.mxu0 0.0
    %7810 = vmatprep.subr.mxu0 0.0
    %7811 = vmatpush1.msra.mxu0 0.0
    %7812 = vmatprep.subr.mxu0 0.0
    %7813 = vmatpush1.msra.mxu0 %v91
    %7814 = vmatprep.subr.mxu0 0.0
    %7815 = vmatpush1.msra.mxu0 %v90
    %7816 = vmatprep.subr.mxu0 0.0
    %7817 = vmatpush1.msra.mxu0 %v89
    %7818 = vmatprep.subr.mxu0 0.0
    %7819 = vmatpush1.msra.mxu0 %v88
    %7820 = vmatprep.subr.mxu0 0.0
    %7821 = vmatpush2.msra.mxu0 0.0
    %7822 = vmatprep.subr.mxu0 0.0
    %7823 = vmatpush2.msra.mxu0 0.0
    %7824 = vmatprep.subr.mxu0 0.0
    %7825 = vmatpush2.msra.mxu0 0.0
    %7826 = vmatprep.subr.mxu0 0.0
    %7827 = vmatpush2.msra.mxu0 0.0
    %7828 = vmatprep.subr.mxu0 0.0
    %7829 = vmatpush2.msra.mxu0 0.0
    %7830 = vmatprep.subr.mxu0 0.0
    %7831 = vmatpush2.msra.mxu0 0.0
    %7832 = vmatprep.subr.mxu0 0.0
    %7833 = vmatpush2.msra.mxu0 0.0
    %7834 = vmatprep.subr.mxu0 0.0
    %7835 = vmatpush2.msra.mxu0 0.0
    %7836 = vmatprep.subr.mxu0 0.0
    %7837 = vmatpush2.msra.mxu0 0.0
    %7838 = vmatprep.subr.mxu0 0.0
    %7839 = vmatpush2.msra.mxu0 0.0
    %7840 = vmatprep.subr.mxu0 0.0
    %7841 = vmatpush2.msra.mxu0 0.0
    %7842 = vmatprep.subr.mxu0 0.0
    %7843 = vmatpush2.msra.mxu0 0.0
    %7844 = vmatprep.subr.mxu0 0.0
    %7845 = vmatpush2.msra.mxu0 0.0
    %7846 = vmatprep.subr.mxu0 0.0
    %7847 = vmatpush2.msra.mxu0 0.0
    %7848 = vmatprep.subr.mxu0 0.0
    %7849 = vmatpush2.msra.mxu0 0.0
    %7850 = vmatprep.subr.mxu0 0.0
    %7851 = vmatpush2.msra.mxu0 0.0
    %7852 = vmatprep.mubr.f32.mxu0 0.0
    %7853 = vmatmul.mubr.f32.gmra.mxu0 %v7786
    %v7854 = vpop.f32.mrf.mxu0
    %v7855 = vadd.f32 0.0, %v7854
    %v7856 = vpop.f32.mrf.mxu0
    %7857 = vdwg.mxu0
    %v7858 = vsel %vm99, %v7648, 0
    %7860 = vmatprep.subr.mxu0 0.0
    %7861 = vmatpush1.msra.mxu0 0.0
    %7862 = vmatprep.subr.mxu0 0.0
    %7863 = vmatpush1.msra.mxu0 0.0
    %7864 = vmatprep.subr.mxu0 0.0
    %7865 = vmatpush1.msra.mxu0 0.0
    %7866 = vmatprep.subr.mxu0 0.0
    %7867 = vmatpush1.msra.mxu0 0.0
    %7868 = vmatprep.subr.mxu0 0.0
    %7869 = vmatpush1.msra.mxu0 0.0
    %7870 = vmatprep.subr.mxu0 0.0
    %7871 = vmatpush1.msra.mxu0 0.0
    %7872 = vmatprep.subr.mxu0 0.0
    %7873 = vmatpush1.msra.mxu0 0.0
    %7874 = vmatprep.subr.mxu0 0.0
    %7875 = vmatpush1.msra.mxu0 0.0
    %7876 = vmatprep.subr.mxu0 0.0
    %7877 = vmatpush1.msra.mxu0 0.0
    %7878 = vmatprep.subr.mxu0 0.0
    %7879 = vmatpush1.msra.mxu0 0.0
    %7880 = vmatprep.subr.mxu0 0.0
    %7881 = vmatpush1.msra.mxu0 0.0
    %7882 = vmatprep.subr.mxu0 0.0
    %7883 = vmatpush1.msra.mxu0 0.0
    %7884 = vmatprep.subr.mxu0 0.0
    %7885 = vmatpush1.msra.mxu0 %v87
    %7886 = vmatprep.subr.mxu0 0.0
    %7887 = vmatpush1.msra.mxu0 %v86
    %7888 = vmatprep.subr.mxu0 0.0
    %7889 = vmatpush1.msra.mxu0 %v85
    %7890 = vmatprep.subr.mxu0 0.0
    %7891 = vmatpush1.msra.mxu0 %v84
    %7892 = vmatprep.subr.mxu0 0.0
    %7893 = vmatpush2.msra.mxu0 0.0
    %7894 = vmatprep.subr.mxu0 0.0
    %7895 = vmatpush2.msra.mxu0 0.0
    %7896 = vmatprep.subr.mxu0 0.0
    %7897 = vmatpush2.msra.mxu0 0.0
    %7898 = vmatprep.subr.mxu0 0.0
    %7899 = vmatpush2.msra.mxu0 0.0
    %7900 = vmatprep.subr.mxu0 0.0
    %7901 = vmatpush2.msra.mxu0 0.0
    %7902 = vmatprep.subr.mxu0 0.0
    %7903 = vmatpush2.msra.mxu0 0.0
    %7904 = vmatprep.subr.mxu0 0.0
    %7905 = vmatpush2.msra.mxu0 0.0
    %7906 = vmatprep.subr.mxu0 0.0
    %7907 = vmatpush2.msra.mxu0 0.0
    %7908 = vmatprep.subr.mxu0 0.0
    %7909 = vmatpush2.msra.mxu0 0.0
    %7910 = vmatprep.subr.mxu0 0.0
    %7911 = vmatpush2.msra.mxu0 0.0
    %7912 = vmatprep.subr.mxu0 0.0
    %7913 = vmatpush2.msra.mxu0 0.0
    %7914 = vmatprep.subr.mxu0 0.0
    %7915 = vmatpush2.msra.mxu0 0.0
    %7916 = vmatprep.subr.mxu0 0.0
    %7917 = vmatpush2.msra.mxu0 0.0
    %7918 = vmatprep.subr.mxu0 0.0
    %7919 = vmatpush2.msra.mxu0 0.0
    %7920 = vmatprep.subr.mxu0 0.0
    %7921 = vmatpush2.msra.mxu0 0.0
    %7922 = vmatprep.subr.mxu0 0.0
    %7923 = vmatpush2.msra.mxu0 0.0
    %7924 = vmatprep.mubr.f32.mxu0 0.0
    %7925 = vmatmul.mubr.f32.gmra.mxu0 %v7858
    %v7926 = vpop.f32.mrf.mxu0
    %v7927 = vadd.f32 %v7855, %v7926
    %v7928 = vpop.f32.mrf.mxu0
    %7929 = vdwg.mxu0
    %v7930 = vtanh.pop %v7927
    %v7932 = vsel %vm99, %v7930, 0
    %7934 = vmatprep.subr.mxu0 0.0
    %7935 = vmatpush1.msra.mxu0 0.0
    %7936 = vmatprep.subr.mxu0 0.0
    %7937 = vmatpush1.msra.mxu0 0.0
    %7938 = vmatprep.subr.mxu0 0.0
    %7939 = vmatpush1.msra.mxu0 0.0
    %7940 = vmatprep.subr.mxu0 0.0
    %7941 = vmatpush1.msra.mxu0 0.0
    %7942 = vmatprep.subr.mxu0 0.0
    %7943 = vmatpush1.msra.mxu0 0.0
    %7944 = vmatprep.subr.mxu0 0.0
    %7945 = vmatpush1.msra.mxu0 0.0
    %7946 = vmatprep.subr.mxu0 0.0
    %7947 = vmatpush1.msra.mxu0 0.0
    %7948 = vmatprep.subr.mxu0 0.0
    %7949 = vmatpush1.msra.mxu0 0.0
    %7950 = vmatprep.subr.mxu0 0.0
    %7951 = vmatpush1.msra.mxu0 0.0
    %7952 = vmatprep.subr.mxu0 0.0
    %7953 = vmatpush1.msra.mxu0 0.0
    %7954 = vmatprep.subr.mxu0 0.0
    %7955 = vmatpush1.msra.mxu0 0.0
    %7956 = vmatprep.subr.mxu0 0.0
    %7957 = vmatpush1.msra.mxu0 0.0
    %7958 = vmatprep.subr.mxu0 0.0
    %7959 = vmatpush1.msra.mxu0 %v95
    %7960 = vmatprep.subr.mxu0 0.0
    %7961 = vmatpush1.msra.mxu0 %v94
    %7962 = vmatprep.subr.mxu0 0.0
    %7963 = vmatpush1.msra.mxu0 %v93
    %7964 = vmatprep.subr.mxu0 0.0
    %7965 = vmatpush1.msra.mxu0 %v92
    %7966 = vmatprep.subr.mxu0 0.0
    %7967 = vmatpush2.msra.mxu0 0.0
    %7968 = vmatprep.subr.mxu0 0.0
    %7969 = vmatpush2.msra.mxu0 0.0
    %7970 = vmatprep.subr.mxu0 0.0
    %7971 = vmatpush2.msra.mxu0 0.0
    %7972 = vmatprep.subr.mxu0 0.0
    %7973 = vmatpush2.msra.mxu0 0.0
    %7974 = vmatprep.subr.mxu0 0.0
    %7975 = vmatpush2.msra.mxu0 0.0
    %7976 = vmatprep.subr.mxu0 0.0
    %7977 = vmatpush2.msra.mxu0 0.0
    %7978 = vmatprep.subr.mxu0 0.0
    %7979 = vmatpush2.msra.mxu0 0.0
    %7980 = vmatprep.subr.mxu0 0.0
    %7981 = vmatpush2.msra.mxu0 0.0
    %7982 = vmatprep.subr.mxu0 0.0
    %7983 = vmatpush2.msra.mxu0 0.0
    %7984 = vmatprep.subr.mxu0 0.0
    %7985 = vmatpush2.msra.mxu0 0.0
    %7986 = vmatprep.subr.mxu0 0.0
    %7987 = vmatpush2.msra.mxu0 0.0
    %7988 = vmatprep.subr.mxu0 0.0
    %7989 = vmatpush2.msra.mxu0 0.0
    %7990 = vmatprep.subr.mxu0 0.0
    %7991 = vmatpush2.msra.mxu0 0.0
    %7992 = vmatprep.subr.mxu0 0.0
    %7993 = vmatpush2.msra.mxu0 0.0
    %7994 = vmatprep.subr.mxu0 0.0
    %7995 = vmatpush2.msra.mxu0 0.0
    %7996 = vmatprep.subr.mxu0 0.0
    %7997 = vmatpush2.msra.mxu0 0.0
    %7998 = vmatprep.mubr.f32.mxu0 0.0
    %7999 = vmatmul.mubr.f32.gmra.mxu0 %v7932
    %v8000 = vpop.f32.mrf.mxu0
    %v8001 = vadd.f32 %v1012, %v8000
    %v8002 = vpop.f32.mrf.mxu0
    %8003 = vdwg.mxu0
    %v8004 = vsel %vm1087, %v8001, -inf
    %8005 = vmax.xlane.f32.xlu0 %v8004
    %v8006 = vpop.xlane.xlu0 %8005
    %v8007 = vsub.f32 %v8001, %v8006
    %v8008 = vmul.f32 %v8007, 1.442695
    %v8009 = vpow.pop %v8008
    %v8010 = vsel %vm1087, %v8009, 0.0
    %8011 = vadd.xlane.f32.xlu0 %v8010
    %v8012 = vpop.xlane.xlu0 %8011
    %v8013 = vlog2.pop %v8012
    %v8014 = vmul.f32 %v8013, 0.6931472
    %v8015 = vadd.f32 %v8006, %v8014
    %v8016 = vsub.f32 %v8001, %v8015
    %v8019 = vunpack.c.l.s4 1966171168
    %v8020 = vunpack.c.0.s8 %v8019
    %v8021 = vlaneseq
    %v8022 = vshrl.u32 %v8021, 7
    %v8023 = vsub.s32 %v8020, %v8022
    %v8024 = vrot.slane %v8016, %v8023
    %v8025 = vcombine.high %v8024, %v8024
    %v8027 = vunpack.c.l.s4 1966171168
    %v8028 = vunpack.c.0.s8 %v8027
    %v8029 = vlaneseq
    %v8030 = vshrl.u32 %v8029, 7
    %v8031 = vsub.s32 %v8028, %v8030
    %v8032 = vrot.slane %v8024, %v8031
    %v8034 = vunpack.c.l.s4 1966171168
    %v8035 = vunpack.c.0.s8 %v8034
    %v8036 = vlaneseq
    %v8037 = vshrl.u32 %v8036, 7
    %v8038 = vsub.s32 %v8035, %v8037
    %v8039 = vrot.slane %v8025, %v8038
    %8042 = vst.msk [vmem:[#allocation2 + $0x7] sm:$0x1] %vm1126, %v8032
    %8043 = vst.msk [vmem:[#allocation2 + $0xf] sm:$0x1] %vm1126, %v8039
    %vm8044 = vcmask 254976
    %8045 = vst.msk [vmem:[#allocation4] sm:$0x3] %vm8044, %v7648
    %8046 = vst.msk [vmem:[#allocation6] sm:$0x3] %vm8044, %v7646
    // Predicated region
    $region46: #{decoder_forward.1} parent=1 // pred_check
      _
    $region47: #{decoder_forward.1} parent=1 // pred_check_branch
      %8048 = sbr.rel (0) target = $region49
    $region48: #{decoder_forward.1} parent=1 // pred_region
      %s8050 = ssub.s32 256, 256
      %8051 = vsyncadd [#allocation3], %s8050
      %s8052 = sshll.u32 [#allocation2], 4
      %s8053 = int_to_ptr.vmem [resolvable:$true] %s8052
      %8058 = dma.vmem_to_hbm [thread:$0]  %s8053, 256, %s11, [#allocation3], 128, 128, 8
    $region49: #{decoder_forward.1} parent=1 // pred_fallthru
      _
    // Predicated region
    $region50: #{decoder_forward.1} parent=1 // pred_check
      _
    $region51: #{decoder_forward.1} parent=1 // pred_check_branch
      %8060 = sbr.rel (0) target = $region53
    $region52: #{decoder_forward.1} parent=1 // pred_region
      %s8062 = ssub.s32 32, 32
      %8063 = vsyncadd [#allocation5], %s8062
      %s8065 = sshll.u32 [#allocation4], 4
      %s8066 = int_to_ptr.vmem [resolvable:$true] %s8065
      %8068 = dma.vmem_to_hbm [thread:$0]  %s8066, 32, %s12, [#allocation5]
    $region53: #{decoder_forward.1} parent=1 // pred_fallthru
      _
    // Predicated region
    $region54: #{decoder_forward.1} parent=1 // pred_check
      _
    $region55: #{decoder_forward.1} parent=1 // pred_check_branch
      %8070 = sbr.rel (0) target = $region57
    $region56: #{decoder_forward.1} parent=1 // pred_region
      %s8072 = ssub.s32 32, 32
      %8073 = vsyncadd [#allocation5], %s8072
      %s8075 = sshll.u32 [#allocation6], 4
      %s8076 = int_to_ptr.vmem [resolvable:$true] %s8075
      %8078 = dma.vmem_to_hbm [thread:$0]  %s8076, 32, %s13, [#allocation5]
    $region57: #{decoder_forward.1} parent=1 // pred_fallthru
      _
    // Predicated region
    $region58: #{decoder_forward.1} parent=1 // pred_check
      _
    $region59: #{decoder_forward.1} parent=1 // pred_check_branch
      %8080 = sbr.rel (0) target = $region61
    $region60: #{decoder_forward.1} parent=1 // pred_region
      %8081 = dma.done [#allocation3], 256
    $region61: #{decoder_forward.1} parent=1 // pred_fallthru
      _
    // Predicated region
    $region62: #{decoder_forward.1} parent=1 // pred_check
      _
    $region63: #{decoder_forward.1} parent=1 // pred_check_branch
      %8083 = sbr.rel (0) target = $region65
    $region64: #{decoder_forward.1} parent=1 // pred_region
      %8084 = dma.done [#allocation5], 32
    $region65: #{decoder_forward.1} parent=1 // pred_fallthru
      _
    // Predicated region
    $region66: #{decoder_forward.1} parent=1 // pred_check
      _
    $region67: #{decoder_forward.1} parent=1 // pred_check_branch
      %8086 = sbr.rel (0) target = $region69
    $region68: #{decoder_forward.1} parent=1 // pred_region
      %8087 = dma.done [#allocation5], 32
    $region69: #{decoder_forward.1} parent=1 // pred_fallthru
      _
    %8088 = vsyncpa [#allocation3], 1
    %8089 = vsyncpa [#allocation5], 1

</llo_original>
